<compile_context>
chip_gen: v6e
topology: v6e:2x2x1
jax: 0.10.0
libtpu: 0.0.40
codegen_flags: <defaults>
</compile_context>

<pallas_src>
import functools

import jax
import jax.numpy as jnp
from jax.experimental import pallas as pl
from jax.experimental.pallas import tpu as pltpu


NODES_PER_GRAPH = 300
NODES_PADDED = 384          # 3 * 128 -> all per-graph lane slices are aligned
FC_OUT_PAD = 8              # fc output channels padded 4 -> 8 (narrow store)


# ----------------------------------------------------------------------------
# Fused kernel: ffn1 + 5 GCN layers + reshape + fc, Gb graphs per grid step.
# All activations are feature-major (transposed): [F, Gb*384].
# ----------------------------------------------------------------------------
def gcn300_fused_kernel(
    xT_ref, aT_ref,
    wf1T_ref, bf1_ref, wf2T_ref, bf2_ref,
    w1T_ref, b1_ref, w2T_ref, b2_ref, w3T_ref, b3_ref,
    w4T_ref, b4_ref, w5T_ref, b5_ref,
    wfc_ref, bfc_ref,
    out_ref,
):
    f32, bf16 = jnp.float32, jnp.bfloat16
    gb = aT_ref.shape[1]        # graphs in this block (static)
    npad = aT_ref.shape[2]      # padded nodes per graph (384)

    xT = xT_ref[0]              # (100, gb*384) bf16

    # --- ffn1: Linear(100,400)+BN(400) -> ReLU -> Linear(400,100)+BN(100)
    # BatchNorm scale/shift and Linear biases are pre-folded into the weights
    # and bias vectors on the host; dropout is identity in eval mode.
    h = jnp.dot(wf1T_ref[...], xT, preferred_element_type=f32) + bf1_ref[...]
    h = jnp.maximum(h, 0.0).astype(bf16)       # keep (400, gb*384) bf16
    h = jnp.dot(wf2T_ref[...], h, preferred_element_type=f32) + bf2_ref[...]
    h = h.astype(bf16)                         # (100, gb*384)

    # --- GCN layer (transposed): H'^T = (W^T H^T) A_norm^T + b^T, then ReLU.
    # The W^T matmul runs on the full Gb*384 lane axis; the aggregation is
    # per-graph (block-diagonal adjacency), 128-aligned slices/concat.
    def gcn(h_in, wT_ref, b_ref):
        hw = jnp.dot(wT_ref[...], h_in, preferred_element_type=f32).astype(bf16)
        if gb == 1:
            hp = jnp.dot(hw, aT_ref[0, 0], preferred_element_type=f32)
        else:
            hp = jnp.concatenate(
                [jnp.dot(hw[:, g * npad:(g + 1) * npad], aT_ref[0, g],
                         preferred_element_type=f32)
                 for g in range(gb)],
                axis=1)
        return jnp.maximum(hp + b_ref[...], 0.0)

    h = gcn(h, w1T_ref, b1_ref).astype(bf16)   # (64, gb*384)
    h = gcn(h, w2T_ref, b2_ref).astype(bf16)   # (32, gb*384)
    h = gcn(h, w3T_ref, b3_ref).astype(bf16)   # (16, gb*384)
    h = gcn(h, w4T_ref, b4_ref).astype(bf16)   # ( 8, gb*384)
    h5 = gcn(h, w5T_ref, b5_ref)               # ( 4, gb*384) f32

    # --- fused reshape([300,4] -> [1,1200]) + fc Linear(1200 -> 4) per graph:
    # y_g[c] = sum_{n,f} h5[f, g*384+n] * Wfc[4n+f, c]
    #        = sum_f  h5_g[f, :] @ Wfc_r[f]     (Wfc_r = (4, 384, 8), pads zero)
    for g in range(gb):
        acc = bfc_ref[...]                     # (1, 8) f32 (cols >= 4 are 0)
        base = g * npad
        for f in range(4):
            row = h5[f:f + 1, base:base + npad].astype(bf16)   # (1, 384)
            acc = acc + jnp.dot(row, wfc_ref[f], preferred_element_type=f32)
        out_ref[0, g:g + 1, :] = acc


# ----------------------------------------------------------------------------
# Wrapper: adjacency build, weight prep (BN/bias folding), pallas_call.
# ----------------------------------------------------------------------------
def build_normalized_adjacency_T(edge_index, num_graphs, nodes_per_graph, npad):
    """Per-graph transposed normalized adjacency A_norm^T[src, dst], padded.

    PyG gcn_norm semantics: parallel edges scatter-added, self-loops added
    only where missing (add_remaining_self_loops), then D^-1/2 (A) D^-1/2
    with deg computed at the destination.  Built directly in (src, dst)
    layout so no wrapper-side transpose is needed.  Padding nodes
    (>= nodes_per_graph) have all-zero rows/cols.
    Assumes edges never cross graph boundaries (block-diagonal PyG batch).
    """
    src, dst = edge_index[0], edge_index[1]
    gid = dst // nodes_per_graph
    src_l = src - gid * nodes_per_graph
    dst_l = dst - gid * nodes_per_graph
    at = jnp.zeros((num_graphs, npad, npad), jnp.float32)
    at = at.at[gid, src_l, dst_l].add(1.0)                    # A^T[src, dst]
    idx = jnp.arange(nodes_per_graph)
    diag = at[:, idx, idx]
    at = at.at[:, idx, idx].set(jnp.where(diag == 0.0, 1.0, diag))
    deg = at.sum(axis=1)                                      # in-degree per dst
    dinv = jnp.where(deg > 0.0, jax.lax.rsqrt(jnp.maximum(deg, 1e-12)), 0.0)
    return at * dinv[:, :, None] * dinv[:, None, :]


def _prep_params(params):
    """Fold BN/bias into weights, transpose to feature-major, pad fc weight."""
    bf16, f32 = jnp.bfloat16, jnp.float32
    p = {}
    # ffn1 Linear+BN folding:  s*(W^T x + b) + t = (s⊙W^T) x + (s*b + t)
    s1 = params["bn1_scale"].reshape(-1)
    t1 = params["bn1_shift"].reshape(-1)
    p["wf1T"] = (s1[:, None] * params["wf1"].T).astype(bf16)          # (400, 100)
    p["bf1"] = (s1 * params["bf1"].reshape(-1) + t1).reshape(-1, 1).astype(f32)
    s2 = params["bn2_scale"].reshape(-1)
    t2 = params["bn2_shift"].reshape(-1)
    p["wf2T"] = (s2[:, None] * params["wf2"].T).astype(bf16)          # (100, 400)
    p["bf2"] = (s2 * params["bf2"].reshape(-1) + t2).reshape(-1, 1).astype(f32)
    for i in range(1, 6):
        p[f"w{i}T"] = params[f"w{i}"].T.astype(bf16)                  # (Fout, Fin)
        p[f"b{i}"] = params[f"b{i}"].reshape(-1, 1).astype(f32)       # (Fout, 1)
    # fc: regroup rows by f-mod-4, pad nodes 300->384 and channels 4->8.
    wfc_r = params["wfc"].reshape(NODES_PER_GRAPH, 4, 4).transpose(1, 0, 2)
    wfc_pad = jnp.zeros((4, NODES_PADDED, FC_OUT_PAD), f32)
    wfc_pad = wfc_pad.at[:, :NODES_PER_GRAPH, :4].set(wfc_r)
    p["wfc"] = wfc_pad.astype(bf16)                                   # (4, 384, 8)
    p["bfc"] = jnp.zeros((1, FC_OUT_PAD), f32).at[0, :4].set(
        params["bfc"].reshape(-1))
    return p


def _pick_graphs_per_block(num_graphs):
    """Cap block at 4 graphs, keep >= 2 grid steps so both v7x TCs get work."""
    if num_graphs <= 1:
        return 1
    return max(1, min(4, num_graphs // 2))


@functools.partial(jax.jit, static_argnames=("num_graphs", "graphs_per_block"))
def gcn300_forward(x, edge_index, params, num_graphs, graphs_per_block=None):
    npg, npad = NODES_PER_GRAPH, NODES_PADDED
    nfeat = x.shape[1]
    assert x.shape[0] == num_graphs * npg, "nodes must be batched 300 per graph"

    gb = graphs_per_block if graphs_per_block is not None else _pick_graphs_per_block(num_graphs)
    nb = -(-num_graphs // gb)          # ceil(G / gb) grid steps
    g_pad = nb * gb

    # Features: (G*300, F) -> (NB, F, gb*384), feature-major, bf16.
    xg = x.reshape(num_graphs, npg, nfeat).transpose(0, 2, 1)          # (G, F, 300)
    xg = jnp.pad(xg, ((0, g_pad - num_graphs), (0, 0), (0, npad - npg)))
    xT = (xg.reshape(nb, gb, nfeat, npad).transpose(0, 2, 1, 3)
            .reshape(nb, nfeat, gb * npad).astype(jnp.bfloat16))

    # Normalized adjacency, built directly transposed: (NB, gb, 384, 384) bf16.
    aT = build_normalized_adjacency_T(edge_index, num_graphs, npg, npad)
    aT = jnp.pad(aT, ((0, g_pad - num_graphs), (0, 0), (0, 0)))
    aT = aT.reshape(nb, gb, npad, npad).astype(jnp.bfloat16)

    p = _prep_params(params)
    inputs = (
        xT, aT,
        p["wf1T"], p["bf1"], p["wf2T"], p["bf2"],
        p["w1T"], p["b1"], p["w2T"], p["b2"], p["w3T"], p["b3"],
        p["w4T"], p["b4"], p["w5T"], p["b5"],
        p["wfc"], p["bfc"],
    )

    def const_spec(arr):
        nd = arr.ndim
        return pl.BlockSpec(arr.shape, lambda i, _nd=nd: (0,) * _nd)

    in_specs = [
        pl.BlockSpec((1, nfeat, gb * npad), lambda i: (i, 0, 0)),
        pl.BlockSpec((1, gb, npad, npad), lambda i: (i, 0, 0, 0)),
    ] + [const_spec(a) for a in inputs[2:]]

    # Advisory cost estimate (lets XLA overlap the call with surrounding ops).
    fl = 2 * 400 * nfeat * npad + 2 * nfeat * 400 * npad
    for fi, fo in ((nfeat, 64), (64, 32), (32, 16), (16, 8), (8, 4)):
        fl += 2 * fo * fi * npad + 2 * fo * npad * npad
    fl += 2 * 4 * npad * FC_OUT_PAD
    bytes_accessed = sum(int(a.size) * a.dtype.itemsize for a in inputs)
    bytes_accessed += g_pad * FC_OUT_PAD * 4
    cost = pl.CostEstimate(flops=g_pad * fl, transcendentals=0,
                           bytes_accessed=int(bytes_accessed))

    out = pl.pallas_call(
        gcn300_fused_kernel,
        out_shape=jax.ShapeDtypeStruct((nb, gb, FC_OUT_PAD), jnp.float32),
        grid=(nb,),
        in_specs=in_specs,
        out_specs=pl.BlockSpec((1, gb, FC_OUT_PAD), lambda i: (i, 0, 0)),
        compiler_params=pltpu.CompilerParams(
            dimension_semantics=("parallel",)),
        cost_estimate=cost,
    )(*inputs)

    return out.reshape(g_pad, FC_OUT_PAD)[:num_graphs, :4]             # (G, 4)


# ----------------------------------------------------------------------------
# Parameter init (PyTorch-default-style, eval-mode BatchNorm folded).
# ----------------------------------------------------------------------------
def init_params(key):
    dims = dict(
        wf1=(100, 400), bf1=(1, 400),
        wf2=(400, 100), bf2=(1, 100),
        w1=(100, 64), b1=(1, 64),
        w2=(64, 32), b2=(1, 32),
        w3=(32, 16), b3=(1, 16),
        w4=(16, 8), b4=(1, 8),
        w5=(8, 4), b5=(1, 4),
        wfc=(1200, 4), bfc=(1, 4),
    )
    params = {}
    keys = jax.random.split(key, len(dims))
    for k, (name, shape) in zip(keys, sorted(dims.items())):
        params[name] = (0.05 * jax.random.normal(k, shape)).astype(jnp.float32)

    # Eval-mode BatchNorm1d at PyTorch defaults, folded to scale/shift.
    eps = 1e-5
    for name, f in (("bn1", 400), ("bn2", 100)):
        gamma = jnp.ones((1, f), jnp.float32)
        beta = jnp.zeros((1, f), jnp.float32)
        rm = jnp.zeros((1, f), jnp.float32)
        rv = jnp.ones((1, f), jnp.float32)
        scale = gamma / jnp.sqrt(rv + eps)
        params[f"{name}_scale"] = scale
        params[f"{name}_shift"] = beta - rm * scale
    return params


if __name__ == "__main__":
    key = jax.random.PRNGKey(0)
    k_x, k_e, k_p = jax.random.split(key, 3)

    num_graphs = 4
    num_features = 100                   # ffn1's first Linear implies 100
    edges_per_graph = 900
    num_nodes = num_graphs * NODES_PER_GRAPH

    x = jax.random.normal(k_x, (num_nodes, num_features), dtype=jnp.float32)

    # Block-diagonal PyG-style batch: edges stay within their graph.
    local = jax.random.randint(
        k_e, (2, num_graphs, edges_per_graph), 0, NODES_PER_GRAPH, dtype=jnp.int32)
    offsets = (jnp.arange(num_graphs, dtype=jnp.int32) * NODES_PER_GRAPH)[None, :, None]
    edge_index = (local + offsets).reshape(2, -1)

    params = init_params(k_p)

    out = gcn300_forward(x, edge_index, params, num_graphs=num_graphs)
    out = jax.block_until_ready(out)
    assert out.shape == (num_graphs, 4) and out.dtype == jnp.float32
    assert bool(jnp.all(jnp.isfinite(out)))
    # TODO(synk): dropout / BatchNorm training-mode statistics not modeled (eval-mode semantics).
    print("KERNEL_OK")
</pallas_src>

<mosaic_0001>
module attributes {stable_mosaic.version = 11 : i64} {
  func.func private @main(%arg0: i32) attributes {dimension_semantics = [#tpu.dimension_semantics<core_parallel>], iteration_bounds = array<i64: 2>, tpu.core_type = #tpu.core_type<sc_scalar_subcore>, window_params = []} {
    return
  }
}

module attributes {stable_mosaic.version = 11 : i64} {
  func.func private @main(%arg0: i32) attributes {dimension_semantics = [#tpu.dimension_semantics<core_parallel>], iteration_bounds = array<i64: 2>, tpu.core_type = #tpu.core_type<sc_scalar_subcore>, window_params = []} {
    return
  }
}

module attributes {stable_mosaic.version = 11 : i64} {
  func.func @gcn300_fused_kernel(%arg0: i32, %arg1: memref<1x100x768xbf16, #tpu.memory_space<vmem>>, %arg2: memref<1x2x384x384xbf16, #tpu.memory_space<vmem>>, %arg3: memref<400x100xbf16, #tpu.memory_space<vmem>>, %arg4: memref<400x1xf32, #tpu.memory_space<vmem>>, %arg5: memref<100x400xbf16, #tpu.memory_space<vmem>>, %arg6: memref<100x1xf32, #tpu.memory_space<vmem>>, %arg7: memref<64x100xbf16, #tpu.memory_space<vmem>>, %arg8: memref<64x1xf32, #tpu.memory_space<vmem>>, %arg9: memref<32x64xbf16, #tpu.memory_space<vmem>>, %arg10: memref<32x1xf32, #tpu.memory_space<vmem>>, %arg11: memref<16x32xbf16, #tpu.memory_space<vmem>>, %arg12: memref<16x1xf32, #tpu.memory_space<vmem>>, %arg13: memref<8x16xbf16, #tpu.memory_space<vmem>>, %arg14: memref<8x1xf32, #tpu.memory_space<vmem>>, %arg15: memref<4x8xbf16, #tpu.memory_space<vmem>>, %arg16: memref<4x1xf32, #tpu.memory_space<vmem>>, %arg17: memref<4x384x8xbf16, #tpu.memory_space<vmem>>, %arg18: memref<1x8xf32, #tpu.memory_space<vmem>>, %arg19: memref<1x2x8xf32, #tpu.memory_space<vmem>>) attributes {dimension_semantics = [#tpu.dimension_semantics<parallel>], iteration_bounds = array<i64: 2>, scalar_prefetch = 0 : i64, scratch_operands = 0 : i64, tpu.core_type = #tpu.core_type<tc>, window_params = [{transform_indices = @transform_0, window_bounds = array<i64: 1, 100, 768>}, {transform_indices = @transform_1, window_bounds = array<i64: 1, 2, 384, 384>}, {pipeline_mode = #tpu.pipeline_mode<synchronous>, transform_indices = @transform_2, window_bounds = array<i64: 400, 100>}, {pipeline_mode = #tpu.pipeline_mode<synchronous>, transform_indices = @transform_3, window_bounds = array<i64: 400, 1>}, {pipeline_mode = #tpu.pipeline_mode<synchronous>, transform_indices = @transform_4, window_bounds = array<i64: 100, 400>}, {pipeline_mode = #tpu.pipeline_mode<synchronous>, transform_indices = @transform_5, window_bounds = array<i64: 100, 1>}, {pipeline_mode = #tpu.pipeline_mode<synchronous>, transform_indices = @transform_6, window_bounds = array<i64: 64, 100>}, {pipeline_mode = #tpu.pipeline_mode<synchronous>, transform_indices = @transform_7, window_bounds = array<i64: 64, 1>}, {pipeline_mode = #tpu.pipeline_mode<synchronous>, transform_indices = @transform_8, window_bounds = array<i64: 32, 64>}, {pipeline_mode = #tpu.pipeline_mode<synchronous>, transform_indices = @transform_9, window_bounds = array<i64: 32, 1>}, {pipeline_mode = #tpu.pipeline_mode<synchronous>, transform_indices = @transform_10, window_bounds = array<i64: 16, 32>}, {pipeline_mode = #tpu.pipeline_mode<synchronous>, transform_indices = @transform_11, window_bounds = array<i64: 16, 1>}, {pipeline_mode = #tpu.pipeline_mode<synchronous>, transform_indices = @transform_12, window_bounds = array<i64: 8, 16>}, {pipeline_mode = #tpu.pipeline_mode<synchronous>, transform_indices = @transform_13, window_bounds = array<i64: 8, 1>}, {pipeline_mode = #tpu.pipeline_mode<synchronous>, transform_indices = @transform_14, window_bounds = array<i64: 4, 8>}, {pipeline_mode = #tpu.pipeline_mode<synchronous>, transform_indices = @transform_15, window_bounds = array<i64: 4, 1>}, {pipeline_mode = #tpu.pipeline_mode<synchronous>, transform_indices = @transform_16, window_bounds = array<i64: 4, 384, 8>}, {pipeline_mode = #tpu.pipeline_mode<synchronous>, transform_indices = @transform_17, window_bounds = array<i64: 1, 8>}, {transform_indices = @transform_18, window_bounds = array<i64: 1, 2, 8>}]} {
    %c0 = arith.constant 0 : index
    %c0_0 = arith.constant 0 : index
    %c0_1 = arith.constant 0 : index
    %0 = vector.load %arg1[%c0, %c0_0, %c0_1] : memref<1x100x768xbf16, #tpu.memory_space<vmem>>, vector<1x100x768xbf16>
    %1 = vector.shape_cast %0 : vector<1x100x768xbf16> to vector<100x768xbf16>
    %c0_2 = arith.constant 0 : index
    %c0_3 = arith.constant 0 : index
    %2 = vector.load %arg3[%c0_2, %c0_3] : memref<400x100xbf16, #tpu.memory_space<vmem>>, vector<400x100xbf16>
    %cst = arith.constant dense<0.000000e+00> : vector<400x768xf32>
    %3 = tpu.matmul %2, %1, %cst {dimension_numbers = #tpu.dot_dimension_numbers<[1], [0], [0], [1], [0, 0, 1, 1], [], []>} : vector<400x100xbf16>, vector<100x768xbf16>, vector<400x768xf32> -> vector<400x768xf32>
    %c0_4 = arith.constant 0 : index
    %c0_5 = arith.constant 0 : index
    %4 = vector.load %arg4[%c0_4, %c0_5] : memref<400x1xf32, #tpu.memory_space<vmem>>, vector<400x1xf32>
    %5 = vector.broadcast %4 : vector<400x1xf32> to vector<400x768xf32>
    %6 = arith.addf %3, %5 : vector<400x768xf32>
    %cst_6 = arith.constant 0.000000e+00 : f32
    %7 = vector.broadcast %cst_6 : f32 to vector<400x768xf32>
    %8 = arith.maximumf %6, %7 : vector<400x768xf32>
    %9 = arith.truncf %8 : vector<400x768xf32> to vector<400x768xbf16>
    %c0_7 = arith.constant 0 : index
    %c0_8 = arith.constant 0 : index
    %10 = vector.load %arg5[%c0_7, %c0_8] : memref<100x400xbf16, #tpu.memory_space<vmem>>, vector<100x400xbf16>
    %cst_9 = arith.constant dense<0.000000e+00> : vector<100x768xf32>
    %11 = tpu.matmul %10, %9, %cst_9 {dimension_numbers = #tpu.dot_dimension_numbers<[1], [0], [0], [1], [0, 0, 1, 1], [], []>} : vector<100x400xbf16>, vector<400x768xbf16>, vector<100x768xf32> -> vector<100x768xf32>
    %c0_10 = arith.constant 0 : index
    %c0_11 = arith.constant 0 : index
    %12 = vector.load %arg6[%c0_10, %c0_11] : memref<100x1xf32, #tpu.memory_space<vmem>>, vector<100x1xf32>
    %13 = vector.broadcast %12 : vector<100x1xf32> to vector<100x768xf32>
    %14 = arith.addf %11, %13 : vector<100x768xf32>
    %15 = arith.truncf %14 : vector<100x768xf32> to vector<100x768xbf16>
    %c0_12 = arith.constant 0 : index
    %c0_13 = arith.constant 0 : index
    %16 = vector.load %arg7[%c0_12, %c0_13] : memref<64x100xbf16, #tpu.memory_space<vmem>>, vector<64x100xbf16>
    %cst_14 = arith.constant dense<0.000000e+00> : vector<64x768xf32>
    %17 = tpu.matmul %16, %15, %cst_14 {dimension_numbers = #tpu.dot_dimension_numbers<[1], [0], [0], [1], [0, 0, 1, 1], [], []>} : vector<64x100xbf16>, vector<100x768xbf16>, vector<64x768xf32> -> vector<64x768xf32>
    %18 = arith.truncf %17 : vector<64x768xf32> to vector<64x768xbf16>
    %19 = vector.extract_strided_slice %18 {offsets = [0, 0], sizes = [64, 384], strides = [1, 1]} : vector<64x768xbf16> to vector<64x384xbf16>
    %c0_15 = arith.constant 0 : index
    %c0_16 = arith.constant 0 : index
    %c0_17 = arith.constant 0 : index
    %c0_18 = arith.constant 0 : index
    %20 = vector.load %arg2[%c0_15, %c0_16, %c0_17, %c0_18] : memref<1x2x384x384xbf16, #tpu.memory_space<vmem>>, vector<1x1x384x384xbf16>
    %21 = vector.shape_cast %20 : vector<1x1x384x384xbf16> to vector<384x384xbf16>
    %cst_19 = arith.constant dense<0.000000e+00> : vector<64x384xf32>
    %22 = tpu.matmul %19, %21, %cst_19 {dimension_numbers = #tpu.dot_dimension_numbers<[1], [0], [0], [1], [0, 0, 1, 1], [], []>} : vector<64x384xbf16>, vector<384x384xbf16>, vector<64x384xf32> -> vector<64x384xf32>
    %23 = vector.extract_strided_slice %18 {offsets = [0, 384], sizes = [64, 384], strides = [1, 1]} : vector<64x768xbf16> to vector<64x384xbf16>
    %c0_20 = arith.constant 0 : index
    %c1 = arith.constant 1 : index
    %c0_21 = arith.constant 0 : index
    %c0_22 = arith.constant 0 : index
    %24 = vector.load %arg2[%c0_20, %c1, %c0_21, %c0_22] : memref<1x2x384x384xbf16, #tpu.memory_space<vmem>>, vector<1x1x384x384xbf16>
    %25 = vector.shape_cast %24 : vector<1x1x384x384xbf16> to vector<384x384xbf16>
    %cst_23 = arith.constant dense<0.000000e+00> : vector<64x384xf32>
    %26 = tpu.matmul %23, %25, %cst_23 {dimension_numbers = #tpu.dot_dimension_numbers<[1], [0], [0], [1], [0, 0, 1, 1], [], []>} : vector<64x384xbf16>, vector<384x384xbf16>, vector<64x384xf32> -> vector<64x384xf32>
    %27 = tpu.concatenate %22, %26 in 1 : vector<64x384xf32>, vector<64x384xf32> -> vector<64x768xf32>
    %c0_24 = arith.constant 0 : index
    %c0_25 = arith.constant 0 : index
    %28 = vector.load %arg8[%c0_24, %c0_25] : memref<64x1xf32, #tpu.memory_space<vmem>>, vector<64x1xf32>
    %29 = vector.broadcast %28 : vector<64x1xf32> to vector<64x768xf32>
    %30 = arith.addf %27, %29 : vector<64x768xf32>
    %cst_26 = arith.constant 0.000000e+00 : f32
    %31 = vector.broadcast %cst_26 : f32 to vector<64x768xf32>
    %32 = arith.maximumf %30, %31 : vector<64x768xf32>
    %33 = arith.truncf %32 : vector<64x768xf32> to vector<64x768xbf16>
    %c0_27 = arith.constant 0 : index
    %c0_28 = arith.constant 0 : index
    %34 = vector.load %arg9[%c0_27, %c0_28] : memref<32x64xbf16, #tpu.memory_space<vmem>>, vector<32x64xbf16>
    %cst_29 = arith.constant dense<0.000000e+00> : vector<32x768xf32>
    %35 = tpu.matmul %34, %33, %cst_29 {dimension_numbers = #tpu.dot_dimension_numbers<[1], [0], [0], [1], [0, 0, 1, 1], [], []>} : vector<32x64xbf16>, vector<64x768xbf16>, vector<32x768xf32> -> vector<32x768xf32>
    %36 = arith.truncf %35 : vector<32x768xf32> to vector<32x768xbf16>
    %37 = vector.extract_strided_slice %36 {offsets = [0, 0], sizes = [32, 384], strides = [1, 1]} : vector<32x768xbf16> to vector<32x384xbf16>
    %c0_30 = arith.constant 0 : index
    %c0_31 = arith.constant 0 : index
    %c0_32 = arith.constant 0 : index
    %c0_33 = arith.constant 0 : index
    %38 = vector.load %arg2[%c0_30, %c0_31, %c0_32, %c0_33] : memref<1x2x384x384xbf16, #tpu.memory_space<vmem>>, vector<1x1x384x384xbf16>
    %39 = vector.shape_cast %38 : vector<1x1x384x384xbf16> to vector<384x384xbf16>
    %cst_34 = arith.constant dense<0.000000e+00> : vector<32x384xf32>
    %40 = tpu.matmul %37, %39, %cst_34 {dimension_numbers = #tpu.dot_dimension_numbers<[1], [0], [0], [1], [0, 0, 1, 1], [], []>} : vector<32x384xbf16>, vector<384x384xbf16>, vector<32x384xf32> -> vector<32x384xf32>
    %41 = vector.extract_strided_slice %36 {offsets = [0, 384], sizes = [32, 384], strides = [1, 1]} : vector<32x768xbf16> to vector<32x384xbf16>
    %c0_35 = arith.constant 0 : index
    %c1_36 = arith.constant 1 : index
    %c0_37 = arith.constant 0 : index
    %c0_38 = arith.constant 0 : index
    %42 = vector.load %arg2[%c0_35, %c1_36, %c0_37, %c0_38] : memref<1x2x384x384xbf16, #tpu.memory_space<vmem>>, vector<1x1x384x384xbf16>
    %43 = vector.shape_cast %42 : vector<1x1x384x384xbf16> to vector<384x384xbf16>
    %cst_39 = arith.constant dense<0.000000e+00> : vector<32x384xf32>
    %44 = tpu.matmul %41, %43, %cst_39 {dimension_numbers = #tpu.dot_dimension_numbers<[1], [0], [0], [1], [0, 0, 1, 1], [], []>} : vector<32x384xbf16>, vector<384x384xbf16>, vector<32x384xf32> -> vector<32x384xf32>
    %45 = tpu.concatenate %40, %44 in 1 : vector<32x384xf32>, vector<32x384xf32> -> vector<32x768xf32>
    %c0_40 = arith.constant 0 : index
    %c0_41 = arith.constant 0 : index
    %46 = vector.load %arg10[%c0_40, %c0_41] : memref<32x1xf32, #tpu.memory_space<vmem>>, vector<32x1xf32>
    %47 = vector.broadcast %46 : vector<32x1xf32> to vector<32x768xf32>
    %48 = arith.addf %45, %47 : vector<32x768xf32>
    %cst_42 = arith.constant 0.000000e+00 : f32
    %49 = vector.broadcast %cst_42 : f32 to vector<32x768xf32>
    %50 = arith.maximumf %48, %49 : vector<32x768xf32>
    %51 = arith.truncf %50 : vector<32x768xf32> to vector<32x768xbf16>
    %c0_43 = arith.constant 0 : index
    %c0_44 = arith.constant 0 : index
    %52 = vector.load %arg11[%c0_43, %c0_44] : memref<16x32xbf16, #tpu.memory_space<vmem>>, vector<16x32xbf16>
    %cst_45 = arith.constant dense<0.000000e+00> : vector<16x768xf32>
    %53 = tpu.matmul %52, %51, %cst_45 {dimension_numbers = #tpu.dot_dimension_numbers<[1], [0], [0], [1], [0, 0, 1, 1], [], []>} : vector<16x32xbf16>, vector<32x768xbf16>, vector<16x768xf32> -> vector<16x768xf32>
    %54 = arith.truncf %53 : vector<16x768xf32> to vector<16x768xbf16>
    %55 = vector.extract_strided_slice %54 {offsets = [0, 0], sizes = [16, 384], strides = [1, 1]} : vector<16x768xbf16> to vector<16x384xbf16>
    %c0_46 = arith.constant 0 : index
    %c0_47 = arith.constant 0 : index
    %c0_48 = arith.constant 0 : index
    %c0_49 = arith.constant 0 : index
    %56 = vector.load %arg2[%c0_46, %c0_47, %c0_48, %c0_49] : memref<1x2x384x384xbf16, #tpu.memory_space<vmem>>, vector<1x1x384x384xbf16>
    %57 = vector.shape_cast %56 : vector<1x1x384x384xbf16> to vector<384x384xbf16>
    %cst_50 = arith.constant dense<0.000000e+00> : vector<16x384xf32>
    %58 = tpu.matmul %55, %57, %cst_50 {dimension_numbers = #tpu.dot_dimension_numbers<[1], [0], [0], [1], [0, 0, 1, 1], [], []>} : vector<16x384xbf16>, vector<384x384xbf16>, vector<16x384xf32> -> vector<16x384xf32>
    %59 = vector.extract_strided_slice %54 {offsets = [0, 384], sizes = [16, 384], strides = [1, 1]} : vector<16x768xbf16> to vector<16x384xbf16>
    %c0_51 = arith.constant 0 : index
    %c1_52 = arith.constant 1 : index
    %c0_53 = arith.constant 0 : index
    %c0_54 = arith.constant 0 : index
    %60 = vector.load %arg2[%c0_51, %c1_52, %c0_53, %c0_54] : memref<1x2x384x384xbf16, #tpu.memory_space<vmem>>, vector<1x1x384x384xbf16>
    %61 = vector.shape_cast %60 : vector<1x1x384x384xbf16> to vector<384x384xbf16>
    %cst_55 = arith.constant dense<0.000000e+00> : vector<16x384xf32>
    %62 = tpu.matmul %59, %61, %cst_55 {dimension_numbers = #tpu.dot_dimension_numbers<[1], [0], [0], [1], [0, 0, 1, 1], [], []>} : vector<16x384xbf16>, vector<384x384xbf16>, vector<16x384xf32> -> vector<16x384xf32>
    %63 = tpu.concatenate %58, %62 in 1 : vector<16x384xf32>, vector<16x384xf32> -> vector<16x768xf32>
    %c0_56 = arith.constant 0 : index
    %c0_57 = arith.constant 0 : index
    %64 = vector.load %arg12[%c0_56, %c0_57] : memref<16x1xf32, #tpu.memory_space<vmem>>, vector<16x1xf32>
    %65 = vector.broadcast %64 : vector<16x1xf32> to vector<16x768xf32>
    %66 = arith.addf %63, %65 : vector<16x768xf32>
    %cst_58 = arith.constant 0.000000e+00 : f32
    %67 = vector.broadcast %cst_58 : f32 to vector<16x768xf32>
    %68 = arith.maximumf %66, %67 : vector<16x768xf32>
    %69 = arith.truncf %68 : vector<16x768xf32> to vector<16x768xbf16>
    %c0_59 = arith.constant 0 : index
    %c0_60 = arith.constant 0 : index
    %70 = vector.load %arg13[%c0_59, %c0_60] : memref<8x16xbf16, #tpu.memory_space<vmem>>, vector<8x16xbf16>
    %cst_61 = arith.constant dense<0.000000e+00> : vector<8x768xf32>
    %71 = tpu.matmul %70, %69, %cst_61 {dimension_numbers = #tpu.dot_dimension_numbers<[1], [0], [0], [1], [0, 0, 1, 1], [], []>} : vector<8x16xbf16>, vector<16x768xbf16>, vector<8x768xf32> -> vector<8x768xf32>
    %72 = arith.truncf %71 : vector<8x768xf32> to vector<8x768xbf16>
    %73 = vector.extract_strided_slice %72 {offsets = [0, 0], sizes = [8, 384], strides = [1, 1]} : vector<8x768xbf16> to vector<8x384xbf16>
    %c0_62 = arith.constant 0 : index
    %c0_63 = arith.constant 0 : index
    %c0_64 = arith.constant 0 : index
    %c0_65 = arith.constant 0 : index
    %74 = vector.load %arg2[%c0_62, %c0_63, %c0_64, %c0_65] : memref<1x2x384x384xbf16, #tpu.memory_space<vmem>>, vector<1x1x384x384xbf16>
    %75 = vector.shape_cast %74 : vector<1x1x384x384xbf16> to vector<384x384xbf16>
    %cst_66 = arith.constant dense<0.000000e+00> : vector<8x384xf32>
    %76 = tpu.matmul %73, %75, %cst_66 {dimension_numbers = #tpu.dot_dimension_numbers<[1], [0], [0], [1], [0, 0, 1, 1], [], []>} : vector<8x384xbf16>, vector<384x384xbf16>, vector<8x384xf32> -> vector<8x384xf32>
    %77 = vector.extract_strided_slice %72 {offsets = [0, 384], sizes = [8, 384], strides = [1, 1]} : vector<8x768xbf16> to vector<8x384xbf16>
    %c0_67 = arith.constant 0 : index
    %c1_68 = arith.constant 1 : index
    %c0_69 = arith.constant 0 : index
    %c0_70 = arith.constant 0 : index
    %78 = vector.load %arg2[%c0_67, %c1_68, %c0_69, %c0_70] : memref<1x2x384x384xbf16, #tpu.memory_space<vmem>>, vector<1x1x384x384xbf16>
    %79 = vector.shape_cast %78 : vector<1x1x384x384xbf16> to vector<384x384xbf16>
    %cst_71 = arith.constant dense<0.000000e+00> : vector<8x384xf32>
    %80 = tpu.matmul %77, %79, %cst_71 {dimension_numbers = #tpu.dot_dimension_numbers<[1], [0], [0], [1], [0, 0, 1, 1], [], []>} : vector<8x384xbf16>, vector<384x384xbf16>, vector<8x384xf32> -> vector<8x384xf32>
    %81 = tpu.concatenate %76, %80 in 1 : vector<8x384xf32>, vector<8x384xf32> -> vector<8x768xf32>
    %c0_72 = arith.constant 0 : index
    %c0_73 = arith.constant 0 : index
    %82 = vector.load %arg14[%c0_72, %c0_73] : memref<8x1xf32, #tpu.memory_space<vmem>>, vector<8x1xf32>
    %83 = vector.broadcast %82 : vector<8x1xf32> to vector<8x768xf32>
    %84 = arith.addf %81, %83 : vector<8x768xf32>
    %cst_74 = arith.constant 0.000000e+00 : f32
    %85 = vector.broadcast %cst_74 : f32 to vector<8x768xf32>
    %86 = arith.maximumf %84, %85 : vector<8x768xf32>
    %87 = arith.truncf %86 : vector<8x768xf32> to vector<8x768xbf16>
    %c0_75 = arith.constant 0 : index
    %c0_76 = arith.constant 0 : index
    %88 = vector.load %arg15[%c0_75, %c0_76] : memref<4x8xbf16, #tpu.memory_space<vmem>>, vector<4x8xbf16>
    %cst_77 = arith.constant dense<0.000000e+00> : vector<4x768xf32>
    %89 = tpu.matmul %88, %87, %cst_77 {dimension_numbers = #tpu.dot_dimension_numbers<[1], [0], [0], [1], [0, 0, 1, 1], [], []>} : vector<4x8xbf16>, vector<8x768xbf16>, vector<4x768xf32> -> vector<4x768xf32>
    %90 = arith.truncf %89 : vector<4x768xf32> to vector<4x768xbf16>
    %91 = vector.extract_strided_slice %90 {offsets = [0, 0], sizes = [4, 384], strides = [1, 1]} : vector<4x768xbf16> to vector<4x384xbf16>
    %c0_78 = arith.constant 0 : index
    %c0_79 = arith.constant 0 : index
    %c0_80 = arith.constant 0 : index
    %c0_81 = arith.constant 0 : index
    %92 = vector.load %arg2[%c0_78, %c0_79, %c0_80, %c0_81] : memref<1x2x384x384xbf16, #tpu.memory_space<vmem>>, vector<1x1x384x384xbf16>
    %93 = vector.shape_cast %92 : vector<1x1x384x384xbf16> to vector<384x384xbf16>
    %cst_82 = arith.constant dense<0.000000e+00> : vector<4x384xf32>
    %94 = tpu.matmul %91, %93, %cst_82 {dimension_numbers = #tpu.dot_dimension_numbers<[1], [0], [0], [1], [0, 0, 1, 1], [], []>} : vector<4x384xbf16>, vector<384x384xbf16>, vector<4x384xf32> -> vector<4x384xf32>
    %95 = vector.extract_strided_slice %90 {offsets = [0, 384], sizes = [4, 384], strides = [1, 1]} : vector<4x768xbf16> to vector<4x384xbf16>
    %c0_83 = arith.constant 0 : index
    %c1_84 = arith.constant 1 : index
    %c0_85 = arith.constant 0 : index
    %c0_86 = arith.constant 0 : index
    %96 = vector.load %arg2[%c0_83, %c1_84, %c0_85, %c0_86] : memref<1x2x384x384xbf16, #tpu.memory_space<vmem>>, vector<1x1x384x384xbf16>
    %97 = vector.shape_cast %96 : vector<1x1x384x384xbf16> to vector<384x384xbf16>
    %cst_87 = arith.constant dense<0.000000e+00> : vector<4x384xf32>
    %98 = tpu.matmul %95, %97, %cst_87 {dimension_numbers = #tpu.dot_dimension_numbers<[1], [0], [0], [1], [0, 0, 1, 1], [], []>} : vector<4x384xbf16>, vector<384x384xbf16>, vector<4x384xf32> -> vector<4x384xf32>
    %99 = tpu.concatenate %94, %98 in 1 : vector<4x384xf32>, vector<4x384xf32> -> vector<4x768xf32>
    %c0_88 = arith.constant 0 : index
    %c0_89 = arith.constant 0 : index
    %100 = vector.load %arg16[%c0_88, %c0_89] : memref<4x1xf32, #tpu.memory_space<vmem>>, vector<4x1xf32>
    %101 = vector.broadcast %100 : vector<4x1xf32> to vector<4x768xf32>
    %102 = arith.addf %99, %101 : vector<4x768xf32>
    %cst_90 = arith.constant 0.000000e+00 : f32
    %103 = vector.broadcast %cst_90 : f32 to vector<4x768xf32>
    %104 = arith.maximumf %102, %103 : vector<4x768xf32>
    %c0_91 = arith.constant 0 : index
    %c0_92 = arith.constant 0 : index
    %105 = vector.load %arg18[%c0_91, %c0_92] : memref<1x8xf32, #tpu.memory_space<vmem>>, vector<1x8xf32>
    %106 = vector.extract_strided_slice %104 {offsets = [0, 0], sizes = [1, 384], strides = [1, 1]} : vector<4x768xf32> to vector<1x384xf32>
    %107 = arith.truncf %106 : vector<1x384xf32> to vector<1x384xbf16>
    %c0_93 = arith.constant 0 : index
    %c0_94 = arith.constant 0 : index
    %c0_95 = arith.constant 0 : index
    %108 = vector.load %arg17[%c0_93, %c0_94, %c0_95] : memref<4x384x8xbf16, #tpu.memory_space<vmem>>, vector<1x384x8xbf16>
    %109 = vector.shape_cast %108 : vector<1x384x8xbf16> to vector<384x8xbf16>
    %cst_96 = arith.constant dense<0.000000e+00> : vector<1x8xf32>
    %110 = tpu.matmul %107, %109, %cst_96 {dimension_numbers = #tpu.dot_dimension_numbers<[1], [0], [0], [1], [0, 0, 1, 1], [], []>} : vector<1x384xbf16>, vector<384x8xbf16>, vector<1x8xf32> -> vector<1x8xf32>
    %111 = arith.addf %105, %110 : vector<1x8xf32>
    %112 = vector.extract_strided_slice %104 {offsets = [1, 0], sizes = [1, 384], strides = [1, 1]} : vector<4x768xf32> to vector<1x384xf32>
    %113 = arith.truncf %112 : vector<1x384xf32> to vector<1x384xbf16>
    %c1_97 = arith.constant 1 : index
    %c0_98 = arith.constant 0 : index
    %c0_99 = arith.constant 0 : index
    %114 = vector.load %arg17[%c1_97, %c0_98, %c0_99] : memref<4x384x8xbf16, #tpu.memory_space<vmem>>, vector<1x384x8xbf16>
    %115 = vector.shape_cast %114 : vector<1x384x8xbf16> to vector<384x8xbf16>
    %cst_100 = arith.constant dense<0.000000e+00> : vector<1x8xf32>
    %116 = tpu.matmul %113, %115, %cst_100 {dimension_numbers = #tpu.dot_dimension_numbers<[1], [0], [0], [1], [0, 0, 1, 1], [], []>} : vector<1x384xbf16>, vector<384x8xbf16>, vector<1x8xf32> -> vector<1x8xf32>
    %117 = arith.addf %111, %116 : vector<1x8xf32>
    %118 = vector.extract_strided_slice %104 {offsets = [2, 0], sizes = [1, 384], strides = [1, 1]} : vector<4x768xf32> to vector<1x384xf32>
    %119 = arith.truncf %118 : vector<1x384xf32> to vector<1x384xbf16>
    %c2 = arith.constant 2 : index
    %c0_101 = arith.constant 0 : index
    %c0_102 = arith.constant 0 : index
    %120 = vector.load %arg17[%c2, %c0_101, %c0_102] : memref<4x384x8xbf16, #tpu.memory_space<vmem>>, vector<1x384x8xbf16>
    %121 = vector.shape_cast %120 : vector<1x384x8xbf16> to vector<384x8xbf16>
    %cst_103 = arith.constant dense<0.000000e+00> : vector<1x8xf32>
    %122 = tpu.matmul %119, %121, %cst_103 {dimension_numbers = #tpu.dot_dimension_numbers<[1], [0], [0], [1], [0, 0, 1, 1], [], []>} : vector<1x384xbf16>, vector<384x8xbf16>, vector<1x8xf32> -> vector<1x8xf32>
    %123 = arith.addf %117, %122 : vector<1x8xf32>
    %124 = vector.extract_strided_slice %104 {offsets = [3, 0], sizes = [1, 384], strides = [1, 1]} : vector<4x768xf32> to vector<1x384xf32>
    %125 = arith.truncf %124 : vector<1x384xf32> to vector<1x384xbf16>
    %c3 = arith.constant 3 : index
    %c0_104 = arith.constant 0 : index
    %c0_105 = arith.constant 0 : index
    %126 = vector.load %arg17[%c3, %c0_104, %c0_105] : memref<4x384x8xbf16, #tpu.memory_space<vmem>>, vector<1x384x8xbf16>
    %127 = vector.shape_cast %126 : vector<1x384x8xbf16> to vector<384x8xbf16>
    %cst_106 = arith.constant dense<0.000000e+00> : vector<1x8xf32>
    %128 = tpu.matmul %125, %127, %cst_106 {dimension_numbers = #tpu.dot_dimension_numbers<[1], [0], [0], [1], [0, 0, 1, 1], [], []>} : vector<1x384xbf16>, vector<384x8xbf16>, vector<1x8xf32> -> vector<1x8xf32>
    %129 = arith.addf %123, %128 : vector<1x8xf32>
    %c0_107 = arith.constant 0 : index
    %c0_108 = arith.constant 0 : index
    %c0_109 = arith.constant 0 : index
    %130 = vector.load %arg19[%c0_107, %c0_108, %c0_109] : memref<1x2x8xf32, #tpu.memory_space<vmem>>, vector<1x1x8xf32>
    %131 = vector.shape_cast %130 : vector<1x1x8xf32> to vector<1x8xf32>
    %132 = vector.shape_cast %129 : vector<1x8xf32> to vector<1x1x8xf32>
    tpu.vector_store %arg19[%c0_107, %c0_108, %c0_109], %132 {strides = array<i32>} : memref<1x2x8xf32, #tpu.memory_space<vmem>>, vector<1x1x8xf32>,
    %c0_110 = arith.constant 0 : index
    %c0_111 = arith.constant 0 : index
    %133 = vector.load %arg18[%c0_110, %c0_111] : memref<1x8xf32, #tpu.memory_space<vmem>>, vector<1x8xf32>
    %134 = vector.extract_strided_slice %104 {offsets = [0, 384], sizes = [1, 384], strides = [1, 1]} : vector<4x768xf32> to vector<1x384xf32>
    %135 = arith.truncf %134 : vector<1x384xf32> to vector<1x384xbf16>
    %c0_112 = arith.constant 0 : index
    %c0_113 = arith.constant 0 : index
    %c0_114 = arith.constant 0 : index
    %136 = vector.load %arg17[%c0_112, %c0_113, %c0_114] : memref<4x384x8xbf16, #tpu.memory_space<vmem>>, vector<1x384x8xbf16>
    %137 = vector.shape_cast %136 : vector<1x384x8xbf16> to vector<384x8xbf16>
    %cst_115 = arith.constant dense<0.000000e+00> : vector<1x8xf32>
    %138 = tpu.matmul %135, %137, %cst_115 {dimension_numbers = #tpu.dot_dimension_numbers<[1], [0], [0], [1], [0, 0, 1, 1], [], []>} : vector<1x384xbf16>, vector<384x8xbf16>, vector<1x8xf32> -> vector<1x8xf32>
    %139 = arith.addf %133, %138 : vector<1x8xf32>
    %140 = vector.extract_strided_slice %104 {offsets = [1, 384], sizes = [1, 384], strides = [1, 1]} : vector<4x768xf32> to vector<1x384xf32>
    %141 = arith.truncf %140 : vector<1x384xf32> to vector<1x384xbf16>
    %c1_116 = arith.constant 1 : index
    %c0_117 = arith.constant 0 : index
    %c0_118 = arith.constant 0 : index
    %142 = vector.load %arg17[%c1_116, %c0_117, %c0_118] : memref<4x384x8xbf16, #tpu.memory_space<vmem>>, vector<1x384x8xbf16>
    %143 = vector.shape_cast %142 : vector<1x384x8xbf16> to vector<384x8xbf16>
    %cst_119 = arith.constant dense<0.000000e+00> : vector<1x8xf32>
    %144 = tpu.matmul %141, %143, %cst_119 {dimension_numbers = #tpu.dot_dimension_numbers<[1], [0], [0], [1], [0, 0, 1, 1], [], []>} : vector<1x384xbf16>, vector<384x8xbf16>, vector<1x8xf32> -> vector<1x8xf32>
    %145 = arith.addf %139, %144 : vector<1x8xf32>
    %146 = vector.extract_strided_slice %104 {offsets = [2, 384], sizes = [1, 384], strides = [1, 1]} : vector<4x768xf32> to vector<1x384xf32>
    %147 = arith.truncf %146 : vector<1x384xf32> to vector<1x384xbf16>
    %c2_120 = arith.constant 2 : index
    %c0_121 = arith.constant 0 : index
    %c0_122 = arith.constant 0 : index
    %148 = vector.load %arg17[%c2_120, %c0_121, %c0_122] : memref<4x384x8xbf16, #tpu.memory_space<vmem>>, vector<1x384x8xbf16>
    %149 = vector.shape_cast %148 : vector<1x384x8xbf16> to vector<384x8xbf16>
    %cst_123 = arith.constant dense<0.000000e+00> : vector<1x8xf32>
    %150 = tpu.matmul %147, %149, %cst_123 {dimension_numbers = #tpu.dot_dimension_numbers<[1], [0], [0], [1], [0, 0, 1, 1], [], []>} : vector<1x384xbf16>, vector<384x8xbf16>, vector<1x8xf32> -> vector<1x8xf32>
    %151 = arith.addf %145, %150 : vector<1x8xf32>
    %152 = vector.extract_strided_slice %104 {offsets = [3, 384], sizes = [1, 384], strides = [1, 1]} : vector<4x768xf32> to vector<1x384xf32>
    %153 = arith.truncf %152 : vector<1x384xf32> to vector<1x384xbf16>
    %c3_124 = arith.constant 3 : index
    %c0_125 = arith.constant 0 : index
    %c0_126 = arith.constant 0 : index
    %154 = vector.load %arg17[%c3_124, %c0_125, %c0_126] : memref<4x384x8xbf16, #tpu.memory_space<vmem>>, vector<1x384x8xbf16>
    %155 = vector.shape_cast %154 : vector<1x384x8xbf16> to vector<384x8xbf16>
    %cst_127 = arith.constant dense<0.000000e+00> : vector<1x8xf32>
    %156 = tpu.matmul %153, %155, %cst_127 {dimension_numbers = #tpu.dot_dimension_numbers<[1], [0], [0], [1], [0, 0, 1, 1], [], []>} : vector<1x384xbf16>, vector<384x8xbf16>, vector<1x8xf32> -> vector<1x8xf32>
    %157 = arith.addf %151, %156 : vector<1x8xf32>
    %c0_128 = arith.constant 0 : index
    %c1_129 = arith.constant 1 : index
    %c0_130 = arith.constant 0 : index
    %158 = vector.load %arg19[%c0_128, %c1_129, %c0_130] : memref<1x2x8xf32, #tpu.memory_space<vmem>>, vector<1x1x8xf32>
    %159 = vector.shape_cast %158 : vector<1x1x8xf32> to vector<1x8xf32>
    %160 = vector.shape_cast %157 : vector<1x8xf32> to vector<1x1x8xf32>
    tpu.vector_store %arg19[%c0_128, %c1_129, %c0_130], %160 {strides = array<i32>} : memref<1x2x8xf32, #tpu.memory_space<vmem>>, vector<1x1x8xf32>,
    return
  }
  func.func @transform_0(%arg0: i32) -> (i32, i32, i32) {
    %c0_i32 = arith.constant 0 : i32
    %c0_i32_0 = arith.constant 0 : i32
    %c0_i32_1 = arith.constant 0 : i32
    return %arg0, %c0_i32, %c0_i32_0 : i32, i32, i32
  }
  func.func @transform_1(%arg0: i32) -> (i32, i32, i32, i32) {
    %c0_i32 = arith.constant 0 : i32
    %c0_i32_0 = arith.constant 0 : i32
    %c0_i32_1 = arith.constant 0 : i32
    %c0_i32_2 = arith.constant 0 : i32
    return %arg0, %c0_i32, %c0_i32_0, %c0_i32_1 : i32, i32, i32, i32
  }
  func.func @transform_2(%arg0: i32) -> (i32, i32) {
    %c0_i32 = arith.constant 0 : i32
    %c0_i32_0 = arith.constant 0 : i32
    %c0_i32_1 = arith.constant 0 : i32
    return %c0_i32, %c0_i32_0 : i32, i32
  }
  func.func @transform_3(%arg0: i32) -> (i32, i32) {
    %c0_i32 = arith.constant 0 : i32
    %c0_i32_0 = arith.constant 0 : i32
    %c0_i32_1 = arith.constant 0 : i32
    return %c0_i32, %c0_i32_0 : i32, i32
  }
  func.func @transform_4(%arg0: i32) -> (i32, i32) {
    %c0_i32 = arith.constant 0 : i32
    %c0_i32_0 = arith.constant 0 : i32
    %c0_i32_1 = arith.constant 0 : i32
    return %c0_i32, %c0_i32_0 : i32, i32
  }
  func.func @transform_5(%arg0: i32) -> (i32, i32) {
    %c0_i32 = arith.constant 0 : i32
    %c0_i32_0 = arith.constant 0 : i32
    %c0_i32_1 = arith.constant 0 : i32
    return %c0_i32, %c0_i32_0 : i32, i32
  }
  func.func @transform_6(%arg0: i32) -> (i32, i32) {
    %c0_i32 = arith.constant 0 : i32
    %c0_i32_0 = arith.constant 0 : i32
    %c0_i32_1 = arith.constant 0 : i32
    return %c0_i32, %c0_i32_0 : i32, i32
  }
  func.func @transform_7(%arg0: i32) -> (i32, i32) {
    %c0_i32 = arith.constant 0 : i32
    %c0_i32_0 = arith.constant 0 : i32
    %c0_i32_1 = arith.constant 0 : i32
    return %c0_i32, %c0_i32_0 : i32, i32
  }
  func.func @transform_8(%arg0: i32) -> (i32, i32) {
    %c0_i32 = arith.constant 0 : i32
    %c0_i32_0 = arith.constant 0 : i32
    %c0_i32_1 = arith.constant 0 : i32
    return %c0_i32, %c0_i32_0 : i32, i32
  }
  func.func @transform_9(%arg0: i32) -> (i32, i32) {
    %c0_i32 = arith.constant 0 : i32
    %c0_i32_0 = arith.constant 0 : i32
    %c0_i32_1 = arith.constant 0 : i32
    return %c0_i32, %c0_i32_0 : i32, i32
  }
  func.func @transform_10(%arg0: i32) -> (i32, i32) {
    %c0_i32 = arith.constant 0 : i32
    %c0_i32_0 = arith.constant 0 : i32
    %c0_i32_1 = arith.constant 0 : i32
    return %c0_i32, %c0_i32_0 : i32, i32
  }
  func.func @transform_11(%arg0: i32) -> (i32, i32) {
    %c0_i32 = arith.constant 0 : i32
    %c0_i32_0 = arith.constant 0 : i32
    %c0_i32_1 = arith.constant 0 : i32
    return %c0_i32, %c0_i32_0 : i32, i32
  }
  func.func @transform_12(%arg0: i32) -> (i32, i32) {
    %c0_i32 = arith.constant 0 : i32
    %c0_i32_0 = arith.constant 0 : i32
    %c0_i32_1 = arith.constant 0 : i32
    return %c0_i32, %c0_i32_0 : i32, i32
  }
  func.func @transform_13(%arg0: i32) -> (i32, i32) {
    %c0_i32 = arith.constant 0 : i32
    %c0_i32_0 = arith.constant 0 : i32
    %c0_i32_1 = arith.constant 0 : i32
    return %c0_i32, %c0_i32_0 : i32, i32
  }
  func.func @transform_14(%arg0: i32) -> (i32, i32) {
    %c0_i32 = arith.constant 0 : i32
    %c0_i32_0 = arith.constant 0 : i32
    %c0_i32_1 = arith.constant 0 : i32
    return %c0_i32, %c0_i32_0 : i32, i32
  }
  func.func @transform_15(%arg0: i32) -> (i32, i32) {
    %c0_i32 = arith.constant 0 : i32
    %c0_i32_0 = arith.constant 0 : i32
    %c0_i32_1 = arith.constant 0 : i32
    return %c0_i32, %c0_i32_0 : i32, i32
  }
  func.func @transform_16(%arg0: i32) -> (i32, i32, i32) {
    %c0_i32 = arith.constant 0 : i32
    %c0_i32_0 = arith.constant 0 : i32
    %c0_i32_1 = arith.constant 0 : i32
    %c0_i32_2 = arith.constant 0 : i32
    return %c0_i32, %c0_i32_0, %c0_i32_1 : i32, i32, i32
  }
  func.func @transform_17(%arg0: i32) -> (i32, i32) {
    %c0_i32 = arith.constant 0 : i32
    %c0_i32_0 = arith.constant 0 : i32
    %c0_i32_1 = arith.constant 0 : i32
    return %c0_i32, %c0_i32_0 : i32, i32
  }
  func.func @transform_18(%arg0: i32) -> (i32, i32, i32) {
    %c0_i32 = arith.constant 0 : i32
    %c0_i32_0 = arith.constant 0 : i32
    %c0_i32_1 = arith.constant 0 : i32
    return %arg0, %c0_i32, %c0_i32_0 : i32, i32, i32
  }
}

</mosaic_0001>

<llo_original>
// kernel: gcn300_forward.1
$region0: #{gcn300_forward.1}
  #allocation0 [shape = 'u32[]', space=smem, size = 0x4, offset = 0x4, fixed_abs, tag = 'smem constant byte address 0x4 - core index']
  #allocation1 [shape = 'u32[144,128]{1,0:T(1,128)}', space=vmem, size = 0x12000, scoped, tag = 'internal scratch']
  %s0 = inlined_call_operand.vmem [shape: bf16[2,100,768], index: 0, kind: input, shape index: {}]
  %s1 = inlined_call_operand.vmem [shape: bf16[2,2,384,384], index: 1, kind: input, shape index: {}]
  %s2 = inlined_call_operand.vmem [shape: bf16[400,100], index: 2, kind: input, shape index: {}]
  %s3 = inlined_call_operand.vmem [shape: f32[400,1], index: 3, kind: input, shape index: {}]
  %s4 = inlined_call_operand.vmem [shape: bf16[100,400], index: 4, kind: input, shape index: {}]
  %s5 = inlined_call_operand.vmem [shape: f32[100,1], index: 5, kind: input, shape index: {}]
  %s6 = inlined_call_operand.vmem [shape: bf16[64,100], index: 6, kind: input, shape index: {}]
  %s7 = inlined_call_operand.vmem [shape: f32[64,1], index: 7, kind: input, shape index: {}]
  %s8 = inlined_call_operand.vmem [shape: bf16[32,64], index: 8, kind: input, shape index: {}]
  %s9 = inlined_call_operand.vmem [shape: f32[32,1], index: 9, kind: input, shape index: {}]
  %s10 = inlined_call_operand.vmem [shape: bf16[16,32], index: 10, kind: input, shape index: {}]
  %s11 = inlined_call_operand.vmem [shape: f32[16,1], index: 11, kind: input, shape index: {}]
  %s12 = inlined_call_operand.vmem [shape: bf16[8,16], index: 12, kind: input, shape index: {}]
  %s13 = inlined_call_operand.vmem [shape: f32[8,1], index: 13, kind: input, shape index: {}]
  %s14 = inlined_call_operand.vmem [shape: bf16[4,8], index: 14, kind: input, shape index: {}]
  %s15 = inlined_call_operand.vmem [shape: f32[4,1], index: 15, kind: input, shape index: {}]
  %s16 = inlined_call_operand.vmem [shape: bf16[4,384,8], index: 16, kind: input, shape index: {}]
  %s17 = inlined_call_operand.vmem [shape: f32[1,8], index: 17, kind: input, shape index: {}]
  %s18 = inlined_call_operand.hbm [shape: f32[2,2,8], index: 18, kind: output, shape index: {}]
  %s19 = sld [smem:[#allocation0]]
  $region105: #{gcn300_forward.1} parent=0
    _
  %s21 = ssub.s32 1, %s19
  %s22 = scalar_select 0, %s21, %s19
  $region1: #{gcn300_forward.1} parent=0
    #allocation2 [shape = 'u8[2048]{0}', space=vmem, size = 0x800, scoped, tag = 'output window, operand 0']
    #allocation3 [shape = 's32[2]{0}', space=sflag, size = 0x8, scoped, tag = 'scoped memory for gcn300_forward.1']
    %23 = vsyncpa [#allocation3], 0
    %s24 = scalar_lea.sflag [#allocation3], 1
    %25 = vsyncpa %s24, 0
    loop: start=0, step=1, limit=4
    $region2: #{gcn300_forward.1} parent=1 // loop_pre_header
      _
    $region3: #{gcn300_forward.1} parent=1 // loop_header
      %s27 = sphi 0, %s31
      %p28 = scmp.ge.s32.totalorder %s27, 4
      %s37 = sphi 0, %s39
      %s40 = sphi 0, %s37
      %s41 = sphi 0, %s40
      %s57 = sphi 0, %s41
      %s63 = sphi 0, %s65
      %s66 = sphi 0, %s63
      %s67 = sphi 0, %s66
      %s83 = sphi 0, %s67
      %s87 = sphi 0, %s87
      %s89 = sphi 0, %s87
      %s90 = sphi 0, %s89
      %s104 = sphi 0, %s90
      %s108 = sphi 0, %s108
      %s110 = sphi 0, %s108
      %s111 = sphi 0, %s110
      %s125 = sphi 0, %s111
      %s129 = sphi 0, %s129
      %s131 = sphi 0, %s129
      %s132 = sphi 0, %s131
      %s146 = sphi 0, %s132
      %s150 = sphi 0, %s150
      %s152 = sphi 0, %s150
      %s153 = sphi 0, %s152
      %s167 = sphi 0, %s153
      %s171 = sphi 0, %s171
      %s173 = sphi 0, %s171
      %s174 = sphi 0, %s173
      %s188 = sphi 0, %s174
      %s192 = sphi 0, %s192
      %s194 = sphi 0, %s192
      %s195 = sphi 0, %s194
      %s209 = sphi 0, %s195
      %s213 = sphi 0, %s213
      %s215 = sphi 0, %s213
      %s216 = sphi 0, %s215
      %s230 = sphi 0, %s216
      %s234 = sphi 0, %s234
      %s236 = sphi 0, %s234
      %s237 = sphi 0, %s236
      %s251 = sphi 0, %s237
      %s255 = sphi 0, %s255
      %s257 = sphi 0, %s255
      %s258 = sphi 0, %s257
      %s272 = sphi 0, %s258
      %s276 = sphi 0, %s276
      %s278 = sphi 0, %s276
      %s279 = sphi 0, %s278
      %s293 = sphi 0, %s279
      %s297 = sphi 0, %s297
      %s299 = sphi 0, %s297
      %s300 = sphi 0, %s299
      %s314 = sphi 0, %s300
      %s318 = sphi 0, %s318
      %s320 = sphi 0, %s318
      %s321 = sphi 0, %s320
      %s335 = sphi 0, %s321
      %s339 = sphi 0, %s339
      %s341 = sphi 0, %s339
      %s342 = sphi 0, %s341
      %s356 = sphi 0, %s342
      %s360 = sphi 0, %s360
      %s362 = sphi 0, %s360
      %s363 = sphi 0, %s362
      %s377 = sphi 0, %s363
      %s381 = sphi 0, %s381
      %s383 = sphi 0, %s381
      %s384 = sphi 0, %s383
      %s398 = sphi 0, %s384
      %s402 = sphi 0, %s402
      %s404 = sphi 0, %s402
      %s405 = sphi 0, %s404
      %s419 = sphi 0, %s405
      %s425 = sphi 0, %s427
      %s428 = sphi 0, %s425
      %s429 = sphi 0, %s428
      %s445 = sphi 0, %s429
    $region4: #{gcn300_forward.1} parent=1 // loop_header_branch
      %30 = sbr.rel (%p28) target = $region8
    $region5: #{gcn300_forward.1} parent=1 // loop_body
      %s32 = ssub.s32 %s27, 1
      %s33 = ssub.s32 %s27, 2
      %s34 = sadd.s32 %s27, 1
      %s35 = ssub.s32 %s27, %s34
      %p36 = scmp.eq.s32.totalorder %s35, 0
      %s38 = sadd.s32 %s37, 1
      %s39 = scalar_select %p36, %s37, %s38
      %p42 = pneg %p36
      %p43 = scmp.eq.s32.totalorder %s27, 1
      %p44 = por %p42, %p43
      %p45 = scmp.ne.s32.totalorder %s37, %s40
      %p46 = scmp.eq.s32.totalorder %s27, 0
      %p47 = por %p45, %p46
      %p48 = scmp.ne.s32.totalorder %s37, %s40
      %p49 = scmp.eq.s32.totalorder %s32, 1
      %p50 = por %p48, %p49
      %p51 = scmp.ne.s32.totalorder %s40, %s41
      %p52 = scmp.eq.s32.totalorder %s32, 0
      %p53 = por %p51, %p52
      %p54 = scmp.ne.s32.totalorder %s40, %s41
      %p55 = scmp.eq.s32.totalorder %s33, 1
      %p56 = por %p54, %p55
      %p58 = scmp.ne.s32.totalorder %s41, %s57
      %p59 = scmp.eq.s32.totalorder %s33, 0
      %p60 = por %p58, %p59
      %s61 = ssub.s32 %s27, %s34
      %p62 = scmp.eq.s32.totalorder %s61, 0
      %s64 = sadd.s32 %s63, 1
      %s65 = scalar_select %p62, %s63, %s64
      %p68 = pneg %p62
      %p69 = scmp.eq.s32.totalorder %s27, 1
      %p70 = por %p68, %p69
      %p71 = scmp.ne.s32.totalorder %s63, %s66
      %p72 = scmp.eq.s32.totalorder %s27, 0
      %p73 = por %p71, %p72
      %p74 = scmp.ne.s32.totalorder %s63, %s66
      %p75 = scmp.eq.s32.totalorder %s32, 1
      %p76 = por %p74, %p75
      %p77 = scmp.ne.s32.totalorder %s66, %s67
      %p78 = scmp.eq.s32.totalorder %s32, 0
      %p79 = por %p77, %p78
      %p80 = scmp.ne.s32.totalorder %s66, %s67
      %p81 = scmp.eq.s32.totalorder %s33, 1
      %p82 = por %p80, %p81
      %p84 = scmp.ne.s32.totalorder %s67, %s83
      %p85 = scmp.eq.s32.totalorder %s33, 0
      %p86 = por %p84, %p85
      %s88 = sadd.s32 %s87, 1
      %p91 = scmp.eq.s32.totalorder %s27, 1
      %p92 = scmp.ne.s32.totalorder %s87, %s89
      %p93 = scmp.eq.s32.totalorder %s27, 0
      %p94 = por %p92, %p93
      %p95 = scmp.ne.s32.totalorder %s87, %s89
      %p96 = scmp.eq.s32.totalorder %s32, 1
      %p97 = por %p95, %p96
      %p98 = scmp.ne.s32.totalorder %s89, %s90
      %p99 = scmp.eq.s32.totalorder %s32, 0
      %p100 = por %p98, %p99
      %p101 = scmp.ne.s32.totalorder %s89, %s90
      %p102 = scmp.eq.s32.totalorder %s33, 1
      %p103 = por %p101, %p102
      %p105 = scmp.ne.s32.totalorder %s90, %s104
      %p106 = scmp.eq.s32.totalorder %s33, 0
      %p107 = por %p105, %p106
      %s109 = sadd.s32 %s108, 1
      %p112 = scmp.eq.s32.totalorder %s27, 1
      %p113 = scmp.ne.s32.totalorder %s108, %s110
      %p114 = scmp.eq.s32.totalorder %s27, 0
      %p115 = por %p113, %p114
      %p116 = scmp.ne.s32.totalorder %s108, %s110
      %p117 = scmp.eq.s32.totalorder %s32, 1
      %p118 = por %p116, %p117
      %p119 = scmp.ne.s32.totalorder %s110, %s111
      %p120 = scmp.eq.s32.totalorder %s32, 0
      %p121 = por %p119, %p120
      %p122 = scmp.ne.s32.totalorder %s110, %s111
      %p123 = scmp.eq.s32.totalorder %s33, 1
      %p124 = por %p122, %p123
      %p126 = scmp.ne.s32.totalorder %s111, %s125
      %p127 = scmp.eq.s32.totalorder %s33, 0
      %p128 = por %p126, %p127
      %s130 = sadd.s32 %s129, 1
      %p133 = scmp.eq.s32.totalorder %s27, 1
      %p134 = scmp.ne.s32.totalorder %s129, %s131
      %p135 = scmp.eq.s32.totalorder %s27, 0
      %p136 = por %p134, %p135
      %p137 = scmp.ne.s32.totalorder %s129, %s131
      %p138 = scmp.eq.s32.totalorder %s32, 1
      %p139 = por %p137, %p138
      %p140 = scmp.ne.s32.totalorder %s131, %s132
      %p141 = scmp.eq.s32.totalorder %s32, 0
      %p142 = por %p140, %p141
      %p143 = scmp.ne.s32.totalorder %s131, %s132
      %p144 = scmp.eq.s32.totalorder %s33, 1
      %p145 = por %p143, %p144
      %p147 = scmp.ne.s32.totalorder %s132, %s146
      %p148 = scmp.eq.s32.totalorder %s33, 0
      %p149 = por %p147, %p148
      %s151 = sadd.s32 %s150, 1
      %p154 = scmp.eq.s32.totalorder %s27, 1
      %p155 = scmp.ne.s32.totalorder %s150, %s152
      %p156 = scmp.eq.s32.totalorder %s27, 0
      %p157 = por %p155, %p156
      %p158 = scmp.ne.s32.totalorder %s150, %s152
      %p159 = scmp.eq.s32.totalorder %s32, 1
      %p160 = por %p158, %p159
      %p161 = scmp.ne.s32.totalorder %s152, %s153
      %p162 = scmp.eq.s32.totalorder %s32, 0
      %p163 = por %p161, %p162
      %p164 = scmp.ne.s32.totalorder %s152, %s153
      %p165 = scmp.eq.s32.totalorder %s33, 1
      %p166 = por %p164, %p165
      %p168 = scmp.ne.s32.totalorder %s153, %s167
      %p169 = scmp.eq.s32.totalorder %s33, 0
      %p170 = por %p168, %p169
      %s172 = sadd.s32 %s171, 1
      %p175 = scmp.eq.s32.totalorder %s27, 1
      %p176 = scmp.ne.s32.totalorder %s171, %s173
      %p177 = scmp.eq.s32.totalorder %s27, 0
      %p178 = por %p176, %p177
      %p179 = scmp.ne.s32.totalorder %s171, %s173
      %p180 = scmp.eq.s32.totalorder %s32, 1
      %p181 = por %p179, %p180
      %p182 = scmp.ne.s32.totalorder %s173, %s174
      %p183 = scmp.eq.s32.totalorder %s32, 0
      %p184 = por %p182, %p183
      %p185 = scmp.ne.s32.totalorder %s173, %s174
      %p186 = scmp.eq.s32.totalorder %s33, 1
      %p187 = por %p185, %p186
      %p189 = scmp.ne.s32.totalorder %s174, %s188
      %p190 = scmp.eq.s32.totalorder %s33, 0
      %p191 = por %p189, %p190
      %s193 = sadd.s32 %s192, 1
      %p196 = scmp.eq.s32.totalorder %s27, 1
      %p197 = scmp.ne.s32.totalorder %s192, %s194
      %p198 = scmp.eq.s32.totalorder %s27, 0
      %p199 = por %p197, %p198
      %p200 = scmp.ne.s32.totalorder %s192, %s194
      %p201 = scmp.eq.s32.totalorder %s32, 1
      %p202 = por %p200, %p201
      %p203 = scmp.ne.s32.totalorder %s194, %s195
      %p204 = scmp.eq.s32.totalorder %s32, 0
      %p205 = por %p203, %p204
      %p206 = scmp.ne.s32.totalorder %s194, %s195
      %p207 = scmp.eq.s32.totalorder %s33, 1
      %p208 = por %p206, %p207
      %p210 = scmp.ne.s32.totalorder %s195, %s209
      %p211 = scmp.eq.s32.totalorder %s33, 0
      %p212 = por %p210, %p211
      %s214 = sadd.s32 %s213, 1
      %p217 = scmp.eq.s32.totalorder %s27, 1
      %p218 = scmp.ne.s32.totalorder %s213, %s215
      %p219 = scmp.eq.s32.totalorder %s27, 0
      %p220 = por %p218, %p219
      %p221 = scmp.ne.s32.totalorder %s213, %s215
      %p222 = scmp.eq.s32.totalorder %s32, 1
      %p223 = por %p221, %p222
      %p224 = scmp.ne.s32.totalorder %s215, %s216
      %p225 = scmp.eq.s32.totalorder %s32, 0
      %p226 = por %p224, %p225
      %p227 = scmp.ne.s32.totalorder %s215, %s216
      %p228 = scmp.eq.s32.totalorder %s33, 1
      %p229 = por %p227, %p228
      %p231 = scmp.ne.s32.totalorder %s216, %s230
      %p232 = scmp.eq.s32.totalorder %s33, 0
      %p233 = por %p231, %p232
      %s235 = sadd.s32 %s234, 1
      %p238 = scmp.eq.s32.totalorder %s27, 1
      %p239 = scmp.ne.s32.totalorder %s234, %s236
      %p240 = scmp.eq.s32.totalorder %s27, 0
      %p241 = por %p239, %p240
      %p242 = scmp.ne.s32.totalorder %s234, %s236
      %p243 = scmp.eq.s32.totalorder %s32, 1
      %p244 = por %p242, %p243
      %p245 = scmp.ne.s32.totalorder %s236, %s237
      %p246 = scmp.eq.s32.totalorder %s32, 0
      %p247 = por %p245, %p246
      %p248 = scmp.ne.s32.totalorder %s236, %s237
      %p249 = scmp.eq.s32.totalorder %s33, 1
      %p250 = por %p248, %p249
      %p252 = scmp.ne.s32.totalorder %s237, %s251
      %p253 = scmp.eq.s32.totalorder %s33, 0
      %p254 = por %p252, %p253
      %s256 = sadd.s32 %s255, 1
      %p259 = scmp.eq.s32.totalorder %s27, 1
      %p260 = scmp.ne.s32.totalorder %s255, %s257
      %p261 = scmp.eq.s32.totalorder %s27, 0
      %p262 = por %p260, %p261
      %p263 = scmp.ne.s32.totalorder %s255, %s257
      %p264 = scmp.eq.s32.totalorder %s32, 1
      %p265 = por %p263, %p264
      %p266 = scmp.ne.s32.totalorder %s257, %s258
      %p267 = scmp.eq.s32.totalorder %s32, 0
      %p268 = por %p266, %p267
      %p269 = scmp.ne.s32.totalorder %s257, %s258
      %p270 = scmp.eq.s32.totalorder %s33, 1
      %p271 = por %p269, %p270
      %p273 = scmp.ne.s32.totalorder %s258, %s272
      %p274 = scmp.eq.s32.totalorder %s33, 0
      %p275 = por %p273, %p274
      %s277 = sadd.s32 %s276, 1
      %p280 = scmp.eq.s32.totalorder %s27, 1
      %p281 = scmp.ne.s32.totalorder %s276, %s278
      %p282 = scmp.eq.s32.totalorder %s27, 0
      %p283 = por %p281, %p282
      %p284 = scmp.ne.s32.totalorder %s276, %s278
      %p285 = scmp.eq.s32.totalorder %s32, 1
      %p286 = por %p284, %p285
      %p287 = scmp.ne.s32.totalorder %s278, %s279
      %p288 = scmp.eq.s32.totalorder %s32, 0
      %p289 = por %p287, %p288
      %p290 = scmp.ne.s32.totalorder %s278, %s279
      %p291 = scmp.eq.s32.totalorder %s33, 1
      %p292 = por %p290, %p291
      %p294 = scmp.ne.s32.totalorder %s279, %s293
      %p295 = scmp.eq.s32.totalorder %s33, 0
      %p296 = por %p294, %p295
      %s298 = sadd.s32 %s297, 1
      %p301 = scmp.eq.s32.totalorder %s27, 1
      %p302 = scmp.ne.s32.totalorder %s297, %s299
      %p303 = scmp.eq.s32.totalorder %s27, 0
      %p304 = por %p302, %p303
      %p305 = scmp.ne.s32.totalorder %s297, %s299
      %p306 = scmp.eq.s32.totalorder %s32, 1
      %p307 = por %p305, %p306
      %p308 = scmp.ne.s32.totalorder %s299, %s300
      %p309 = scmp.eq.s32.totalorder %s32, 0
      %p310 = por %p308, %p309
      %p311 = scmp.ne.s32.totalorder %s299, %s300
      %p312 = scmp.eq.s32.totalorder %s33, 1
      %p313 = por %p311, %p312
      %p315 = scmp.ne.s32.totalorder %s300, %s314
      %p316 = scmp.eq.s32.totalorder %s33, 0
      %p317 = por %p315, %p316
      %s319 = sadd.s32 %s318, 1
      %p322 = scmp.eq.s32.totalorder %s27, 1
      %p323 = scmp.ne.s32.totalorder %s318, %s320
      %p324 = scmp.eq.s32.totalorder %s27, 0
      %p325 = por %p323, %p324
      %p326 = scmp.ne.s32.totalorder %s318, %s320
      %p327 = scmp.eq.s32.totalorder %s32, 1
      %p328 = por %p326, %p327
      %p329 = scmp.ne.s32.totalorder %s320, %s321
      %p330 = scmp.eq.s32.totalorder %s32, 0
      %p331 = por %p329, %p330
      %p332 = scmp.ne.s32.totalorder %s320, %s321
      %p333 = scmp.eq.s32.totalorder %s33, 1
      %p334 = por %p332, %p333
      %p336 = scmp.ne.s32.totalorder %s321, %s335
      %p337 = scmp.eq.s32.totalorder %s33, 0
      %p338 = por %p336, %p337
      %s340 = sadd.s32 %s339, 1
      %p343 = scmp.eq.s32.totalorder %s27, 1
      %p344 = scmp.ne.s32.totalorder %s339, %s341
      %p345 = scmp.eq.s32.totalorder %s27, 0
      %p346 = por %p344, %p345
      %p347 = scmp.ne.s32.totalorder %s339, %s341
      %p348 = scmp.eq.s32.totalorder %s32, 1
      %p349 = por %p347, %p348
      %p350 = scmp.ne.s32.totalorder %s341, %s342
      %p351 = scmp.eq.s32.totalorder %s32, 0
      %p352 = por %p350, %p351
      %p353 = scmp.ne.s32.totalorder %s341, %s342
      %p354 = scmp.eq.s32.totalorder %s33, 1
      %p355 = por %p353, %p354
      %p357 = scmp.ne.s32.totalorder %s342, %s356
      %p358 = scmp.eq.s32.totalorder %s33, 0
      %p359 = por %p357, %p358
      %s361 = sadd.s32 %s360, 1
      %p364 = scmp.eq.s32.totalorder %s27, 1
      %p365 = scmp.ne.s32.totalorder %s360, %s362
      %p366 = scmp.eq.s32.totalorder %s27, 0
      %p367 = por %p365, %p366
      %p368 = scmp.ne.s32.totalorder %s360, %s362
      %p369 = scmp.eq.s32.totalorder %s32, 1
      %p370 = por %p368, %p369
      %p371 = scmp.ne.s32.totalorder %s362, %s363
      %p372 = scmp.eq.s32.totalorder %s32, 0
      %p373 = por %p371, %p372
      %p374 = scmp.ne.s32.totalorder %s362, %s363
      %p375 = scmp.eq.s32.totalorder %s33, 1
      %p376 = por %p374, %p375
      %p378 = scmp.ne.s32.totalorder %s363, %s377
      %p379 = scmp.eq.s32.totalorder %s33, 0
      %p380 = por %p378, %p379
      %s382 = sadd.s32 %s381, 1
      %p385 = scmp.eq.s32.totalorder %s27, 1
      %p386 = scmp.ne.s32.totalorder %s381, %s383
      %p387 = scmp.eq.s32.totalorder %s27, 0
      %p388 = por %p386, %p387
      %p389 = scmp.ne.s32.totalorder %s381, %s383
      %p390 = scmp.eq.s32.totalorder %s32, 1
      %p391 = por %p389, %p390
      %p392 = scmp.ne.s32.totalorder %s383, %s384
      %p393 = scmp.eq.s32.totalorder %s32, 0
      %p394 = por %p392, %p393
      %p395 = scmp.ne.s32.totalorder %s383, %s384
      %p396 = scmp.eq.s32.totalorder %s33, 1
      %p397 = por %p395, %p396
      %p399 = scmp.ne.s32.totalorder %s384, %s398
      %p400 = scmp.eq.s32.totalorder %s33, 0
      %p401 = por %p399, %p400
      %s403 = sadd.s32 %s402, 1
      %p406 = scmp.eq.s32.totalorder %s27, 1
      %p407 = scmp.ne.s32.totalorder %s402, %s404
      %p408 = scmp.eq.s32.totalorder %s27, 0
      %p409 = por %p407, %p408
      %p410 = scmp.ne.s32.totalorder %s402, %s404
      %p411 = scmp.eq.s32.totalorder %s32, 1
      %p412 = por %p410, %p411
      %p413 = scmp.ne.s32.totalorder %s404, %s405
      %p414 = scmp.eq.s32.totalorder %s32, 0
      %p415 = por %p413, %p414
      %p416 = scmp.ne.s32.totalorder %s404, %s405
      %p417 = scmp.eq.s32.totalorder %s33, 1
      %p418 = por %p416, %p417
      %p420 = scmp.ne.s32.totalorder %s405, %s419
      %p421 = scmp.eq.s32.totalorder %s33, 0
      %p422 = por %p420, %p421
      %s423 = ssub.s32 %s27, %s34
      %p424 = scmp.eq.s32.totalorder %s423, 0
      %s426 = sadd.s32 %s425, 1
      %s427 = scalar_select %p424, %s425, %s426
      %p430 = pneg %p424
      %p431 = scmp.eq.s32.totalorder %s27, 1
      %p432 = por %p430, %p431
      %p433 = scmp.ne.s32.totalorder %s425, %s428
      %p434 = scmp.eq.s32.totalorder %s27, 0
      %p435 = por %p433, %p434
      %p436 = scmp.ne.s32.totalorder %s425, %s428
      %p437 = scmp.eq.s32.totalorder %s32, 1
      %p438 = por %p436, %p437
      %p439 = scmp.ne.s32.totalorder %s428, %s429
      %p440 = scmp.eq.s32.totalorder %s32, 0
      %p441 = por %p439, %p440
      %p442 = scmp.ne.s32.totalorder %s428, %s429
      %p443 = scmp.eq.s32.totalorder %s33, 1
      %p444 = por %p442, %p443
      %p446 = scmp.ne.s32.totalorder %s429, %s445
      %p447 = scmp.eq.s32.totalorder %s33, 0
      %p448 = por %p446, %p447
      %p449 = scmp.le.s32.totalorder 1, %s27
      %p450 = scmp.lt.s32.totalorder %s27, 3
      %p451 = pnand %p449, %p450
      %p452 = pneg %p451
      // Predicated region
      $region9: #{gcn300_forward.1} parent=5 // pred_check
        _
      $region10: #{gcn300_forward.1} parent=5 // pred_check_branch
        %454 = sbr.rel (%p451) target = $region12
      $region11: #{gcn300_forward.1} parent=5 // pred_region
        %s455 = ssub.s32 %s27, 1
        // Predicated region
        $region13: #{gcn300_forward.1} parent=11 // pred_check
          %p456 = pneg %p100
        $region14: #{gcn300_forward.1} parent=11 // pred_check_branch
          %458 = sbr.rel (%p456) target = $region16
        $region15: #{gcn300_forward.1} parent=11 // pred_region
          _
        $region16: #{gcn300_forward.1} parent=11 // pred_fallthru
          _
        // Predicated region
        $region17: #{gcn300_forward.1} parent=11 // pred_check
          %p459 = pneg %p121
        $region18: #{gcn300_forward.1} parent=11 // pred_check_branch
          %461 = sbr.rel (%p459) target = $region20
        $region19: #{gcn300_forward.1} parent=11 // pred_region
          _
        $region20: #{gcn300_forward.1} parent=11 // pred_fallthru
          _
        // Predicated region
        $region21: #{gcn300_forward.1} parent=11 // pred_check
          %p462 = pneg %p142
        $region22: #{gcn300_forward.1} parent=11 // pred_check_branch
          %464 = sbr.rel (%p462) target = $region24
        $region23: #{gcn300_forward.1} parent=11 // pred_region
          _
        $region24: #{gcn300_forward.1} parent=11 // pred_fallthru
          _
        // Predicated region
        $region25: #{gcn300_forward.1} parent=11 // pred_check
          %p465 = pneg %p163
        $region26: #{gcn300_forward.1} parent=11 // pred_check_branch
          %467 = sbr.rel (%p465) target = $region28
        $region27: #{gcn300_forward.1} parent=11 // pred_region
          _
        $region28: #{gcn300_forward.1} parent=11 // pred_fallthru
          _
        // Predicated region
        $region29: #{gcn300_forward.1} parent=11 // pred_check
          %p468 = pneg %p184
        $region30: #{gcn300_forward.1} parent=11 // pred_check_branch
          %470 = sbr.rel (%p468) target = $region32
        $region31: #{gcn300_forward.1} parent=11 // pred_region
          _
        $region32: #{gcn300_forward.1} parent=11 // pred_fallthru
          _
        // Predicated region
        $region33: #{gcn300_forward.1} parent=11 // pred_check
          %p471 = pneg %p205
        $region34: #{gcn300_forward.1} parent=11 // pred_check_branch
          %473 = sbr.rel (%p471) target = $region36
        $region35: #{gcn300_forward.1} parent=11 // pred_region
          _
        $region36: #{gcn300_forward.1} parent=11 // pred_fallthru
          _
        // Predicated region
        $region37: #{gcn300_forward.1} parent=11 // pred_check
          %p474 = pneg %p226
        $region38: #{gcn300_forward.1} parent=11 // pred_check_branch
          %476 = sbr.rel (%p474) target = $region40
        $region39: #{gcn300_forward.1} parent=11 // pred_region
          _
        $region40: #{gcn300_forward.1} parent=11 // pred_fallthru
          _
        // Predicated region
        $region41: #{gcn300_forward.1} parent=11 // pred_check
          %p477 = pneg %p247
        $region42: #{gcn300_forward.1} parent=11 // pred_check_branch
          %479 = sbr.rel (%p477) target = $region44
        $region43: #{gcn300_forward.1} parent=11 // pred_region
          _
        $region44: #{gcn300_forward.1} parent=11 // pred_fallthru
          _
        // Predicated region
        $region45: #{gcn300_forward.1} parent=11 // pred_check
          %p480 = pneg %p268
        $region46: #{gcn300_forward.1} parent=11 // pred_check_branch
          %482 = sbr.rel (%p480) target = $region48
        $region47: #{gcn300_forward.1} parent=11 // pred_region
          _
        $region48: #{gcn300_forward.1} parent=11 // pred_fallthru
          _
        // Predicated region
        $region49: #{gcn300_forward.1} parent=11 // pred_check
          %p483 = pneg %p289
        $region50: #{gcn300_forward.1} parent=11 // pred_check_branch
          %485 = sbr.rel (%p483) target = $region52
        $region51: #{gcn300_forward.1} parent=11 // pred_region
          _
        $region52: #{gcn300_forward.1} parent=11 // pred_fallthru
          _
        // Predicated region
        $region53: #{gcn300_forward.1} parent=11 // pred_check
          %p486 = pneg %p310
        $region54: #{gcn300_forward.1} parent=11 // pred_check_branch
          %488 = sbr.rel (%p486) target = $region56
        $region55: #{gcn300_forward.1} parent=11 // pred_region
          _
        $region56: #{gcn300_forward.1} parent=11 // pred_fallthru
          _
        // Predicated region
        $region57: #{gcn300_forward.1} parent=11 // pred_check
          %p489 = pneg %p331
        $region58: #{gcn300_forward.1} parent=11 // pred_check_branch
          %491 = sbr.rel (%p489) target = $region60
        $region59: #{gcn300_forward.1} parent=11 // pred_region
          _
        $region60: #{gcn300_forward.1} parent=11 // pred_fallthru
          _
        // Predicated region
        $region61: #{gcn300_forward.1} parent=11 // pred_check
          %p492 = pneg %p352
        $region62: #{gcn300_forward.1} parent=11 // pred_check_branch
          %494 = sbr.rel (%p492) target = $region64
        $region63: #{gcn300_forward.1} parent=11 // pred_region
          _
        $region64: #{gcn300_forward.1} parent=11 // pred_fallthru
          _
        // Predicated region
        $region65: #{gcn300_forward.1} parent=11 // pred_check
          %p495 = pneg %p373
        $region66: #{gcn300_forward.1} parent=11 // pred_check_branch
          %497 = sbr.rel (%p495) target = $region68
        $region67: #{gcn300_forward.1} parent=11 // pred_region
          _
        $region68: #{gcn300_forward.1} parent=11 // pred_fallthru
          _
        // Predicated region
        $region69: #{gcn300_forward.1} parent=11 // pred_check
          %p498 = pneg %p394
        $region70: #{gcn300_forward.1} parent=11 // pred_check_branch
          %500 = sbr.rel (%p498) target = $region72
        $region71: #{gcn300_forward.1} parent=11 // pred_region
          _
        $region72: #{gcn300_forward.1} parent=11 // pred_fallthru
          _
        // Predicated region
        $region73: #{gcn300_forward.1} parent=11 // pred_check
          %p501 = pneg %p415
        $region74: #{gcn300_forward.1} parent=11 // pred_check_branch
          %503 = sbr.rel (%p501) target = $region76
        $region75: #{gcn300_forward.1} parent=11 // pred_region
          _
        $region76: #{gcn300_forward.1} parent=11 // pred_fallthru
          _
      $region12: #{gcn300_forward.1} parent=5 // pred_fallthru
        _
      %p504 = scmp.lt.s32.totalorder %s27, 2
      // Predicated region
      $region77: #{gcn300_forward.1} parent=5 // pred_check
        %p505 = pneg %p504
      $region78: #{gcn300_forward.1} parent=5 // pred_check_branch
        %507 = sbr.rel (%p505) target = $region80
      $region79: #{gcn300_forward.1} parent=5 // pred_region
        // Predicated region
        $region81: #{gcn300_forward.1} parent=79 // pred_check
          %p508 = pneg %p47
        $region82: #{gcn300_forward.1} parent=79 // pred_check_branch
          %510 = sbr.rel (%p508) target = $region84
        $region83: #{gcn300_forward.1} parent=79 // pred_region
          %p511 = scmp.lt.s32.totalorder %s27, 1
          %s512 = scalar_select %p511, %s27, 1
          %s513 = smul.addr %s512, 78
          %s514 = smul.addr %s513, 4
          %s515 = scalar_lea.vmem %s0, %s514
        $region84: #{gcn300_forward.1} parent=79 // pred_fallthru
          _
        // Predicated region
        $region85: #{gcn300_forward.1} parent=79 // pred_check
          %p516 = pneg %p73
        $region86: #{gcn300_forward.1} parent=79 // pred_check_branch
          %518 = sbr.rel (%p516) target = $region88
        $region87: #{gcn300_forward.1} parent=79 // pred_region
          %p519 = scmp.lt.s32.totalorder %s27, 1
          %s520 = scalar_select %p519, %s27, 1
          %s521 = smul.addr %s520, 288
          %s522 = smul.addr %s521, 4
          %s523 = scalar_lea.vmem %s1, %s522
        $region88: #{gcn300_forward.1} parent=79 // pred_fallthru
          _
      $region80: #{gcn300_forward.1} parent=5 // pred_fallthru
        _
      %p524 = scmp.le.s32.totalorder 1, %s27
      %p525 = scmp.lt.s32.totalorder %s27, 3
      %p526 = pnand %p524, %p525
      %p527 = pneg %p526
      // Predicated region
      $region89: #{gcn300_forward.1} parent=5 // pred_check
        _
      $region90: #{gcn300_forward.1} parent=5 // pred_check_branch
        %529 = sbr.rel (%p526) target = $region92
      $region91: #{gcn300_forward.1} parent=5 // pred_region
        %s530 = ssub.s32 %s27, 1
        %p531 = scmp.lt.s32.totalorder %s32, 1
        %s532 = scalar_select %p531, %s32, 1
        %s533 = smul.addr %s532, 78
        %s534 = smul.addr %s533, 4
        %s535 = scalar_lea.vmem %s0, %s534
        %p536 = pneg %p53
        %p537 = pneg %p50
        %p538 = scmp.lt.s32.totalorder %s32, 1
        %s539 = scalar_select %p538, %s32, 1
        %s540 = smul.addr %s539, 288
        %s541 = smul.addr %s540, 4
        %s542 = scalar_lea.vmem %s1, %s541
        %p543 = pneg %p79
        %p544 = pneg %p76
        %p545 = pneg %p100
        %p546 = pneg %p97
        %p547 = pneg %p121
        %p548 = pneg %p118
        %p549 = pneg %p142
        %p550 = pneg %p139
        %p551 = pneg %p163
        %p552 = pneg %p160
        %p553 = pneg %p184
        %p554 = pneg %p181
        %p555 = pneg %p205
        %p556 = pneg %p202
        %p557 = pneg %p226
        %p558 = pneg %p223
        %p559 = pneg %p247
        %p560 = pneg %p244
        %p561 = pneg %p268
        %p562 = pneg %p265
        %p563 = pneg %p289
        %p564 = pneg %p286
        %p565 = pneg %p310
        %p566 = pneg %p307
        %p567 = pneg %p331
        %p568 = pneg %p328
        %p569 = pneg %p352
        %p570 = pneg %p349
        %p571 = pneg %p373
        %p572 = pneg %p370
        %p573 = pneg %p394
        %p574 = pneg %p391
        %p575 = pneg %p415
        %p576 = pneg %p412
        %p577 = pneg %p441
        %p578 = pneg %p438
        %s579 = sand.u32 %s428, 1
        %s580 = scalar_lea.sflag [#allocation3], %s579
        %s581 = sand.u32 %s428, 1
        %s582 = smul.addr %s581, 2
        %s583 = scalar_lea.vmem [#allocation2], %s582
        %p584 = scmp.lt.s32.totalorder %s32, 1
        %s585 = scalar_select %p584, %s32, 1
        %s586 = smul.addr %s585, 78
        %s587 = smul.addr %s586, 4
        %s588 = scalar_lea.vmem %s0, %s587
        %p589 = scmp.lt.s32.totalorder %s32, 1
        %s590 = scalar_select %p589, %s32, 1
        %s591 = smul.addr %s590, 288
        %s592 = smul.addr %s591, 4
        %s593 = scalar_lea.vmem %s1, %s592
        %v595 = vld [vmem:[%s588] sm:$0xff]
        %v596 = vld [vmem:[%s588 + $0x8] sm:$0xff]
        %v597 = vld [vmem:[%s588 + $0x10] sm:$0xff]
        %v598 = vld [vmem:[%s588 + $0x18] sm:$0xff]
        %v599 = vld [vmem:[%s588 + $0x20] sm:$0xff]
        %v600 = vld [vmem:[%s588 + $0x28] sm:$0xff]
        %v601 = vld [vmem:[%s588 + $0x30] sm:$0xff]
        %v602 = vld [vmem:[%s588 + $0x38] sm:$0xff]
        %v603 = vld [vmem:[%s588 + $0x40] sm:$0xff]
        %v604 = vld [vmem:[%s588 + $0x48] sm:$0xff]
        %v605 = vld [vmem:[%s588 + $0x50] sm:$0xff]
        %v606 = vld [vmem:[%s588 + $0x58] sm:$0xff]
        %v607 = vld [vmem:[%s588 + $0x60] sm:$0xff]
        %v608 = vld [vmem:[%s588 + $0x68] sm:$0xff]
        %v609 = vld [vmem:[%s588 + $0x70] sm:$0xff]
        %v610 = vld [vmem:[%s588 + $0x78] sm:$0xff]
        %v611 = vld [vmem:[%s588 + $0x80] sm:$0xff]
        %v612 = vld [vmem:[%s588 + $0x88] sm:$0xff]
        %v613 = vld [vmem:[%s588 + $0x90] sm:$0xff]
        %v614 = vld [vmem:[%s588 + $0x98] sm:$0xff]
        %v615 = vld [vmem:[%s588 + $0xa0] sm:$0xff]
        %v616 = vld [vmem:[%s588 + $0xa8] sm:$0xff]
        %v617 = vld [vmem:[%s588 + $0xb0] sm:$0xff]
        %v618 = vld [vmem:[%s588 + $0xb8] sm:$0xff]
        %v619 = vld [vmem:[%s588 + $0xc0] sm:$0xff]
        %v620 = vld [vmem:[%s588 + $0xc8] sm:$0xff]
        %v621 = vld [vmem:[%s588 + $0xd0] sm:$0xff]
        %v622 = vld [vmem:[%s588 + $0xd8] sm:$0xff]
        %v623 = vld [vmem:[%s588 + $0xe0] sm:$0xff]
        %v624 = vld [vmem:[%s588 + $0xe8] sm:$0xff]
        %v625 = vld [vmem:[%s588 + $0xf0] sm:$0xff]
        %v626 = vld [vmem:[%s588 + $0xf8] sm:$0xff]
        %v627 = vld [vmem:[%s588 + $0x100] sm:$0xff]
        %v628 = vld [vmem:[%s588 + $0x108] sm:$0xff]
        %v629 = vld [vmem:[%s588 + $0x110] sm:$0xff]
        %v630 = vld [vmem:[%s588 + $0x118] sm:$0xff]
        %v631 = vld [vmem:[%s588 + $0x120] sm:$0x33]
        %v632 = vld [vmem:[%s588 + $0x128] sm:$0x33]
        %v633 = vld [vmem:[%s588 + $0x130] sm:$0x33]
        %v634 = vld [vmem:[%s2] sm:$0xf]
        %v635 = vld [vmem:[%s2 + $0x4] sm:$0xf]
        %v636 = vld [vmem:[%s2 + $0x8] sm:$0xf]
        %v637 = vld [vmem:[%s2 + $0xc] sm:$0xf]
        %v638 = vld [vmem:[%s2 + $0x10] sm:$0xf]
        %v639 = vld [vmem:[%s2 + $0x14] sm:$0xf]
        %v640 = vld [vmem:[%s2 + $0x18] sm:$0xf]
        %v641 = vld [vmem:[%s2 + $0x1c] sm:$0xf]
        %v642 = vld [vmem:[%s2 + $0x20] sm:$0xf]
        %v643 = vld [vmem:[%s2 + $0x24] sm:$0xf]
        %v644 = vld [vmem:[%s2 + $0x28] sm:$0xf]
        %v645 = vld [vmem:[%s2 + $0x2c] sm:$0xf]
        %v646 = vld [vmem:[%s2 + $0x30] sm:$0xf]
        %v647 = vld [vmem:[%s2 + $0x34] sm:$0xf]
        %v648 = vld [vmem:[%s2 + $0x38] sm:$0xf]
        %v649 = vld [vmem:[%s2 + $0x3c] sm:$0xf]
        %v650 = vld [vmem:[%s2 + $0x40] sm:$0xf]
        %v651 = vld [vmem:[%s2 + $0x44] sm:$0xf]
        %v652 = vld [vmem:[%s2 + $0x48] sm:$0xf]
        %v653 = vld [vmem:[%s2 + $0x4c] sm:$0xf]
        %v654 = vld [vmem:[%s2 + $0x50] sm:$0xf]
        %v655 = vld [vmem:[%s2 + $0x54] sm:$0xf]
        %v656 = vld [vmem:[%s2 + $0x58] sm:$0xf]
        %v657 = vld [vmem:[%s2 + $0x5c] sm:$0xf]
        %v658 = vld [vmem:[%s2 + $0x60] sm:$0xf]
        %v659 = vld [vmem:[%s2 + $0x64] sm:$0xf]
        %v660 = vld [vmem:[%s2 + $0x68] sm:$0xf]
        %v661 = vld [vmem:[%s2 + $0x6c] sm:$0xf]
        %v662 = vld [vmem:[%s2 + $0x70] sm:$0xf]
        %v663 = vld [vmem:[%s2 + $0x74] sm:$0xf]
        %v664 = vld [vmem:[%s2 + $0x78] sm:$0xf]
        %v665 = vld [vmem:[%s2 + $0x7c] sm:$0xf]
        %v666 = vld [vmem:[%s2 + $0x80] sm:$0xf]
        %v667 = vld [vmem:[%s2 + $0x84] sm:$0xf]
        %v668 = vld [vmem:[%s2 + $0x88] sm:$0xf]
        %v669 = vld [vmem:[%s2 + $0x8c] sm:$0xf]
        %v670 = vld [vmem:[%s2 + $0x90] sm:$0xf]
        %v671 = vld [vmem:[%s2 + $0x94] sm:$0xf]
        %v672 = vld [vmem:[%s2 + $0x98] sm:$0xf]
        %v673 = vld [vmem:[%s2 + $0x9c] sm:$0xf]
        %v674 = vld [vmem:[%s2 + $0xa0] sm:$0xf]
        %v675 = vld [vmem:[%s2 + $0xa4] sm:$0xf]
        %v676 = vld [vmem:[%s2 + $0xa8] sm:$0xf]
        %v677 = vld [vmem:[%s2 + $0xac] sm:$0xf]
        %v678 = vld [vmem:[%s2 + $0xb0] sm:$0xf]
        %v679 = vld [vmem:[%s2 + $0xb4] sm:$0xf]
        %v680 = vld [vmem:[%s2 + $0xb8] sm:$0xf]
        %v681 = vld [vmem:[%s2 + $0xbc] sm:$0xf]
        %v682 = vld [vmem:[%s2 + $0xc0] sm:$0xf]
        %v683 = vld [vmem:[%s2 + $0xc4] sm:$0xf]
        %v684 = vld [vmem:[%s3] sm:$0xff]
        %v685 = vld [vmem:[%s3 + $0x8] sm:$0xff]
        %v686 = vld [vmem:[%s3 + $0x10] sm:$0xff]
        %v687 = vld [vmem:[%s3 + $0x18] sm:$0xff]
        %v688 = vld [vmem:[%s3 + $0x20] sm:$0xff]
        %v689 = vld [vmem:[%s3 + $0x28] sm:$0xff]
        %v690 = vld [vmem:[%s3 + $0x30] sm:$0xff]
        %v691 = vld [vmem:[%s3 + $0x38] sm:$0xff]
        %v692 = vld [vmem:[%s3 + $0x40] sm:$0xff]
        %v693 = vld [vmem:[%s3 + $0x48] sm:$0xff]
        %v694 = vld [vmem:[%s3 + $0x50] sm:$0xff]
        %v695 = vld [vmem:[%s3 + $0x58] sm:$0xff]
        %v696 = vld [vmem:[%s3 + $0x60] sm:$0xff]
        %v697 = vld [vmem:[%s3 + $0x68] sm:$0xff]
        %v698 = vld [vmem:[%s3 + $0x70] sm:$0xff]
        %v699 = vld [vmem:[%s3 + $0x78] sm:$0xff]
        %v700 = vld [vmem:[%s3 + $0x80] sm:$0xff]
        %v701 = vld [vmem:[%s3 + $0x88] sm:$0xff]
        %v702 = vld [vmem:[%s3 + $0x90] sm:$0xff]
        %v703 = vld [vmem:[%s3 + $0x98] sm:$0xff]
        %v704 = vld [vmem:[%s3 + $0xa0] sm:$0xff]
        %v705 = vld [vmem:[%s3 + $0xa8] sm:$0xff]
        %v706 = vld [vmem:[%s3 + $0xb0] sm:$0xff]
        %v707 = vld [vmem:[%s3 + $0xb8] sm:$0xff]
        %v708 = vld [vmem:[%s3 + $0xc0] sm:$0xff]
        %v709 = vld [vmem:[%s3 + $0xc8] sm:$0xff]
        %v710 = vld [vmem:[%s3 + $0xd0] sm:$0xff]
        %v711 = vld [vmem:[%s3 + $0xd8] sm:$0xff]
        %v712 = vld [vmem:[%s3 + $0xe0] sm:$0xff]
        %v713 = vld [vmem:[%s3 + $0xe8] sm:$0xff]
        %v714 = vld [vmem:[%s3 + $0xf0] sm:$0xff]
        %v715 = vld [vmem:[%s3 + $0xf8] sm:$0xff]
        %v716 = vld [vmem:[%s3 + $0x100] sm:$0xff]
        %v717 = vld [vmem:[%s3 + $0x108] sm:$0xff]
        %v718 = vld [vmem:[%s3 + $0x110] sm:$0xff]
        %v719 = vld [vmem:[%s3 + $0x118] sm:$0xff]
        %v720 = vld [vmem:[%s3 + $0x120] sm:$0xff]
        %v721 = vld [vmem:[%s3 + $0x128] sm:$0xff]
        %v722 = vld [vmem:[%s3 + $0x130] sm:$0xff]
        %v723 = vld [vmem:[%s3 + $0x138] sm:$0xff]
        %v724 = vld [vmem:[%s3 + $0x140] sm:$0xff]
        %v725 = vld [vmem:[%s3 + $0x148] sm:$0xff]
        %v726 = vld [vmem:[%s3 + $0x150] sm:$0xff]
        %v727 = vld [vmem:[%s3 + $0x158] sm:$0xff]
        %v728 = vld [vmem:[%s3 + $0x160] sm:$0xff]
        %v729 = vld [vmem:[%s3 + $0x168] sm:$0xff]
        %v730 = vld [vmem:[%s3 + $0x170] sm:$0xff]
        %v731 = vld [vmem:[%s3 + $0x178] sm:$0xff]
        %v732 = vld [vmem:[%s3 + $0x180] sm:$0xff]
        %v733 = vld [vmem:[%s3 + $0x188] sm:$0xff]
        %735 = vset.pattern.permute.xlu0 0
        %736 = vperm.xlu0 %735, %v684
        %v737 = vpop.permute.xlu0 %736
        %740 = vset.pattern.permute.xlu0 0
        %741 = vperm.xlu0 %740, %v685
        %v742 = vpop.permute.xlu0 %741
        %745 = vset.pattern.permute.xlu0 0
        %746 = vperm.xlu0 %745, %v686
        %v747 = vpop.permute.xlu0 %746
        %750 = vset.pattern.permute.xlu0 0
        %751 = vperm.xlu0 %750, %v687
        %v752 = vpop.permute.xlu0 %751
        %755 = vset.pattern.permute.xlu0 0
        %756 = vperm.xlu0 %755, %v688
        %v757 = vpop.permute.xlu0 %756
        %760 = vset.pattern.permute.xlu0 0
        %761 = vperm.xlu0 %760, %v689
        %v762 = vpop.permute.xlu0 %761
        %765 = vset.pattern.permute.xlu0 0
        %766 = vperm.xlu0 %765, %v690
        %v767 = vpop.permute.xlu0 %766
        %770 = vset.pattern.permute.xlu0 0
        %771 = vperm.xlu0 %770, %v691
        %v772 = vpop.permute.xlu0 %771
        %775 = vset.pattern.permute.xlu0 0
        %776 = vperm.xlu0 %775, %v692
        %v777 = vpop.permute.xlu0 %776
        %780 = vset.pattern.permute.xlu0 0
        %781 = vperm.xlu0 %780, %v693
        %v782 = vpop.permute.xlu0 %781
        %785 = vset.pattern.permute.xlu0 0
        %786 = vperm.xlu0 %785, %v694
        %v787 = vpop.permute.xlu0 %786
        %790 = vset.pattern.permute.xlu0 0
        %791 = vperm.xlu0 %790, %v695
        %v792 = vpop.permute.xlu0 %791
        %795 = vset.pattern.permute.xlu0 0
        %796 = vperm.xlu0 %795, %v696
        %v797 = vpop.permute.xlu0 %796
        %800 = vset.pattern.permute.xlu0 0
        %801 = vperm.xlu0 %800, %v697
        %v802 = vpop.permute.xlu0 %801
        %805 = vset.pattern.permute.xlu0 0
        %806 = vperm.xlu0 %805, %v698
        %v807 = vpop.permute.xlu0 %806
        %810 = vset.pattern.permute.xlu0 0
        %811 = vperm.xlu0 %810, %v699
        %v812 = vpop.permute.xlu0 %811
        %815 = vset.pattern.permute.xlu0 0
        %816 = vperm.xlu0 %815, %v700
        %v817 = vpop.permute.xlu0 %816
        %820 = vset.pattern.permute.xlu0 0
        %821 = vperm.xlu0 %820, %v701
        %v822 = vpop.permute.xlu0 %821
        %825 = vset.pattern.permute.xlu0 0
        %826 = vperm.xlu0 %825, %v702
        %v827 = vpop.permute.xlu0 %826
        %830 = vset.pattern.permute.xlu0 0
        %831 = vperm.xlu0 %830, %v703
        %v832 = vpop.permute.xlu0 %831
        %835 = vset.pattern.permute.xlu0 0
        %836 = vperm.xlu0 %835, %v704
        %v837 = vpop.permute.xlu0 %836
        %840 = vset.pattern.permute.xlu0 0
        %841 = vperm.xlu0 %840, %v705
        %v842 = vpop.permute.xlu0 %841
        %845 = vset.pattern.permute.xlu0 0
        %846 = vperm.xlu0 %845, %v706
        %v847 = vpop.permute.xlu0 %846
        %850 = vset.pattern.permute.xlu0 0
        %851 = vperm.xlu0 %850, %v707
        %v852 = vpop.permute.xlu0 %851
        %855 = vset.pattern.permute.xlu0 0
        %856 = vperm.xlu0 %855, %v708
        %v857 = vpop.permute.xlu0 %856
        %860 = vset.pattern.permute.xlu0 0
        %861 = vperm.xlu0 %860, %v709
        %v862 = vpop.permute.xlu0 %861
        %865 = vset.pattern.permute.xlu0 0
        %866 = vperm.xlu0 %865, %v710
        %v867 = vpop.permute.xlu0 %866
        %870 = vset.pattern.permute.xlu0 0
        %871 = vperm.xlu0 %870, %v711
        %v872 = vpop.permute.xlu0 %871
        %875 = vset.pattern.permute.xlu0 0
        %876 = vperm.xlu0 %875, %v712
        %v877 = vpop.permute.xlu0 %876
        %880 = vset.pattern.permute.xlu0 0
        %881 = vperm.xlu0 %880, %v713
        %v882 = vpop.permute.xlu0 %881
        %885 = vset.pattern.permute.xlu0 0
        %886 = vperm.xlu0 %885, %v714
        %v887 = vpop.permute.xlu0 %886
        %890 = vset.pattern.permute.xlu0 0
        %891 = vperm.xlu0 %890, %v715
        %v892 = vpop.permute.xlu0 %891
        %895 = vset.pattern.permute.xlu0 0
        %896 = vperm.xlu0 %895, %v716
        %v897 = vpop.permute.xlu0 %896
        %900 = vset.pattern.permute.xlu0 0
        %901 = vperm.xlu0 %900, %v717
        %v902 = vpop.permute.xlu0 %901
        %905 = vset.pattern.permute.xlu0 0
        %906 = vperm.xlu0 %905, %v718
        %v907 = vpop.permute.xlu0 %906
        %910 = vset.pattern.permute.xlu0 0
        %911 = vperm.xlu0 %910, %v719
        %v912 = vpop.permute.xlu0 %911
        %915 = vset.pattern.permute.xlu0 0
        %916 = vperm.xlu0 %915, %v720
        %v917 = vpop.permute.xlu0 %916
        %920 = vset.pattern.permute.xlu0 0
        %921 = vperm.xlu0 %920, %v721
        %v922 = vpop.permute.xlu0 %921
        %925 = vset.pattern.permute.xlu0 0
        %926 = vperm.xlu0 %925, %v722
        %v927 = vpop.permute.xlu0 %926
        %930 = vset.pattern.permute.xlu0 0
        %931 = vperm.xlu0 %930, %v723
        %v932 = vpop.permute.xlu0 %931
        %935 = vset.pattern.permute.xlu0 0
        %936 = vperm.xlu0 %935, %v724
        %v937 = vpop.permute.xlu0 %936
        %940 = vset.pattern.permute.xlu0 0
        %941 = vperm.xlu0 %940, %v725
        %v942 = vpop.permute.xlu0 %941
        %945 = vset.pattern.permute.xlu0 0
        %946 = vperm.xlu0 %945, %v726
        %v947 = vpop.permute.xlu0 %946
        %950 = vset.pattern.permute.xlu0 0
        %951 = vperm.xlu0 %950, %v727
        %v952 = vpop.permute.xlu0 %951
        %955 = vset.pattern.permute.xlu0 0
        %956 = vperm.xlu0 %955, %v728
        %v957 = vpop.permute.xlu0 %956
        %960 = vset.pattern.permute.xlu0 0
        %961 = vperm.xlu0 %960, %v729
        %v962 = vpop.permute.xlu0 %961
        %965 = vset.pattern.permute.xlu0 0
        %966 = vperm.xlu0 %965, %v730
        %v967 = vpop.permute.xlu0 %966
        %970 = vset.pattern.permute.xlu0 0
        %971 = vperm.xlu0 %970, %v731
        %v972 = vpop.permute.xlu0 %971
        %975 = vset.pattern.permute.xlu0 0
        %976 = vperm.xlu0 %975, %v732
        %v977 = vpop.permute.xlu0 %976
        %980 = vset.pattern.permute.xlu0 0
        %981 = vperm.xlu0 %980, %v733
        %v982 = vpop.permute.xlu0 %981
        %v1034 = vunpack.c.l.b16 %v634
        %v1035 = vunpack.c.l.b16 %v635
        %v1036 = vunpack.c.l.b16 %v636
        %v1037 = vunpack.c.l.b16 %v637
        %v1038 = vunpack.c.l.b16 %v638
        %v1039 = vunpack.c.l.b16 %v639
        %v1040 = vunpack.c.l.b16 %v640
        %v1041 = vunpack.c.l.b16 %v641
        %v1042 = vunpack.c.l.b16 %v642
        %v1043 = vunpack.c.l.b16 %v643
        %v1044 = vunpack.c.l.b16 %v644
        %v1045 = vunpack.c.l.b16 %v645
        %v1046 = vunpack.c.l.b16 %v646
        %v1047 = vunpack.c.l.b16 %v647
        %v1048 = vunpack.c.l.b16 %v648
        %v1049 = vunpack.c.l.b16 %v649
        %v1050 = vunpack.c.l.b16 %v650
        %v1051 = vunpack.c.l.b16 %v651
        %v1052 = vunpack.c.l.b16 %v652
        %v1053 = vunpack.c.l.b16 %v653
        %v1054 = vunpack.c.l.b16 %v654
        %v1055 = vunpack.c.l.b16 %v655
        %v1056 = vunpack.c.l.b16 %v656
        %v1057 = vunpack.c.l.b16 %v657
        %v1058 = vunpack.c.l.b16 %v658
        %v1059 = vunpack.c.l.b16 %v659
        %v1060 = vunpack.c.l.b16 %v660
        %v1061 = vunpack.c.l.b16 %v661
        %v1062 = vunpack.c.l.b16 %v662
        %v1063 = vunpack.c.l.b16 %v663
        %v1064 = vunpack.c.l.b16 %v664
        %v1065 = vunpack.c.l.b16 %v665
        %v1066 = vunpack.c.l.b16 %v666
        %v1067 = vunpack.c.l.b16 %v667
        %v1068 = vunpack.c.l.b16 %v668
        %v1069 = vunpack.c.l.b16 %v669
        %v1070 = vunpack.c.l.b16 %v670
        %v1071 = vunpack.c.l.b16 %v671
        %v1072 = vunpack.c.l.b16 %v672
        %v1073 = vunpack.c.l.b16 %v673
        %v1074 = vunpack.c.l.b16 %v674
        %v1075 = vunpack.c.l.b16 %v675
        %v1076 = vunpack.c.l.b16 %v676
        %v1077 = vunpack.c.l.b16 %v677
        %v1078 = vunpack.c.l.b16 %v678
        %v1079 = vunpack.c.l.b16 %v679
        %v1080 = vunpack.c.l.b16 %v680
        %v1081 = vunpack.c.l.b16 %v681
        %v1082 = vunpack.c.l.b16 %v682
        %v1083 = vunpack.c.l.b16 %v683
        %v1084 = vpack.c.b16 %v1035, %v1034
        %v1085 = vpack.c.b16 %v1037, %v1036
        %v1086 = vpack.c.b16 %v1039, %v1038
        %v1087 = vpack.c.b16 %v1041, %v1040
        %v1088 = vpack.c.b16 %v1043, %v1042
        %v1089 = vpack.c.b16 %v1045, %v1044
        %v1090 = vpack.c.b16 %v1047, %v1046
        %v1091 = vpack.c.b16 %v1049, %v1048
        %v1092 = vpack.c.b16 %v1051, %v1050
        %v1093 = vpack.c.b16 %v1053, %v1052
        %v1094 = vpack.c.b16 %v1055, %v1054
        %v1095 = vpack.c.b16 %v1057, %v1056
        %v1096 = vpack.c.b16 %v1059, %v1058
        %v1097 = vpack.c.b16 %v1061, %v1060
        %v1098 = vpack.c.b16 %v1063, %v1062
        %v1099 = vpack.c.b16 %v1065, %v1064
        %v1100 = vpack.c.b16 %v1067, %v1066
        %v1101 = vpack.c.b16 %v1069, %v1068
        %v1102 = vpack.c.b16 %v1071, %v1070
        %v1103 = vpack.c.b16 %v1073, %v1072
        %v1104 = vpack.c.b16 %v1075, %v1074
        %v1105 = vpack.c.b16 %v1077, %v1076
        %v1106 = vpack.c.b16 %v1079, %v1078
        %v1107 = vpack.c.b16 %v1081, %v1080
        %v1108 = vpack.c.b16 %v1083, %v1082
        %v1148 = vunpack.c.l.b16 %v595
        %v1149 = vunpack.c.h.b16 %v595
        %v1150 = vunpack.c.l.b16 %v596
        %v1151 = vunpack.c.h.b16 %v596
        %v1152 = vunpack.c.l.b16 %v597
        %v1153 = vunpack.c.h.b16 %v597
        %v1154 = vunpack.c.l.b16 %v598
        %v1155 = vunpack.c.h.b16 %v598
        %v1156 = vunpack.c.l.b16 %v599
        %v1157 = vunpack.c.h.b16 %v599
        %v1158 = vunpack.c.l.b16 %v600
        %v1159 = vunpack.c.h.b16 %v600
        %v1160 = vunpack.c.l.b16 %v601
        %v1161 = vunpack.c.h.b16 %v601
        %v1162 = vunpack.c.l.b16 %v602
        %v1163 = vunpack.c.h.b16 %v602
        %v1164 = vunpack.c.l.b16 %v603
        %v1165 = vunpack.c.h.b16 %v603
        %v1166 = vunpack.c.l.b16 %v604
        %v1167 = vunpack.c.h.b16 %v604
        %v1168 = vunpack.c.l.b16 %v605
        %v1169 = vunpack.c.h.b16 %v605
        %v1170 = vunpack.c.l.b16 %v606
        %v1171 = vunpack.c.h.b16 %v606
        %v1172 = vunpack.c.l.b16 %v607
        %v1173 = vunpack.c.h.b16 %v607
        %v1174 = vunpack.c.l.b16 %v608
        %v1175 = vunpack.c.h.b16 %v608
        %v1176 = vunpack.c.l.b16 %v609
        %v1177 = vunpack.c.h.b16 %v609
        %v1178 = vunpack.c.l.b16 %v610
        %v1179 = vunpack.c.h.b16 %v610
        %v1180 = vunpack.c.l.b16 %v611
        %v1181 = vunpack.c.h.b16 %v611
        %v1182 = vunpack.c.l.b16 %v612
        %v1183 = vunpack.c.h.b16 %v612
        %v1184 = vunpack.c.l.b16 %v613
        %v1185 = vunpack.c.h.b16 %v613
        %v1186 = vunpack.c.l.b16 %v614
        %v1187 = vunpack.c.h.b16 %v614
        %v1188 = vunpack.c.l.b16 %v615
        %v1189 = vunpack.c.h.b16 %v615
        %v1190 = vunpack.c.l.b16 %v616
        %v1191 = vunpack.c.h.b16 %v616
        %v1192 = vunpack.c.l.b16 %v617
        %v1193 = vunpack.c.h.b16 %v617
        %v1194 = vunpack.c.l.b16 %v618
        %v1195 = vunpack.c.h.b16 %v618
        %v1196 = vunpack.c.l.b16 %v619
        %v1197 = vunpack.c.h.b16 %v619
        %v1198 = vunpack.c.l.b16 %v620
        %v1199 = vunpack.c.h.b16 %v620
        %v1200 = vunpack.c.l.b16 %v621
        %v1201 = vunpack.c.h.b16 %v621
        %v1202 = vunpack.c.l.b16 %v622
        %v1203 = vunpack.c.h.b16 %v622
        %v1204 = vunpack.c.l.b16 %v623
        %v1205 = vunpack.c.h.b16 %v623
        %v1206 = vunpack.c.l.b16 %v624
        %v1207 = vunpack.c.h.b16 %v624
        %v1208 = vunpack.c.l.b16 %v625
        %v1209 = vunpack.c.h.b16 %v625
        %v1210 = vunpack.c.l.b16 %v626
        %v1211 = vunpack.c.h.b16 %v626
        %v1212 = vunpack.c.l.b16 %v627
        %v1213 = vunpack.c.h.b16 %v627
        %v1214 = vunpack.c.l.b16 %v628
        %v1215 = vunpack.c.h.b16 %v628
        %v1216 = vunpack.c.l.b16 %v629
        %v1217 = vunpack.c.h.b16 %v629
        %v1218 = vunpack.c.l.b16 %v630
        %v1219 = vunpack.c.h.b16 %v630
        %v1220 = vunpack.c.l.b16 %v631
        %v1221 = vunpack.c.h.b16 %v631
        %v1222 = vunpack.c.l.b16 %v632
        %v1223 = vunpack.c.h.b16 %v632
        %v1224 = vunpack.c.l.b16 %v633
        %v1225 = vunpack.c.h.b16 %v633
        %v1226 = vpack.c.b16 %v1154, %v1148
        %v1227 = vpack.c.b16 %v1155, %v1149
        %v1228 = vpack.c.b16 %v1156, %v1150
        %v1229 = vpack.c.b16 %v1157, %v1151
        %v1230 = vpack.c.b16 %v1158, %v1152
        %v1231 = vpack.c.b16 %v1159, %v1153
        %v1232 = vpack.c.b16 %v1166, %v1160
        %v1233 = vpack.c.b16 %v1167, %v1161
        %v1234 = vpack.c.b16 %v1168, %v1162
        %v1235 = vpack.c.b16 %v1169, %v1163
        %v1236 = vpack.c.b16 %v1170, %v1164
        %v1237 = vpack.c.b16 %v1171, %v1165
        %v1238 = vpack.c.b16 %v1178, %v1172
        %v1239 = vpack.c.b16 %v1179, %v1173
        %v1240 = vpack.c.b16 %v1180, %v1174
        %v1241 = vpack.c.b16 %v1181, %v1175
        %v1242 = vpack.c.b16 %v1182, %v1176
        %v1243 = vpack.c.b16 %v1183, %v1177
        %v1244 = vpack.c.b16 %v1190, %v1184
        %v1245 = vpack.c.b16 %v1191, %v1185
        %v1246 = vpack.c.b16 %v1192, %v1186
        %v1247 = vpack.c.b16 %v1193, %v1187
        %v1248 = vpack.c.b16 %v1194, %v1188
        %v1249 = vpack.c.b16 %v1195, %v1189
        %v1250 = vpack.c.b16 %v1202, %v1196
        %v1251 = vpack.c.b16 %v1203, %v1197
        %v1252 = vpack.c.b16 %v1204, %v1198
        %v1253 = vpack.c.b16 %v1205, %v1199
        %v1254 = vpack.c.b16 %v1206, %v1200
        %v1255 = vpack.c.b16 %v1207, %v1201
        %v1256 = vpack.c.b16 %v1214, %v1208
        %v1257 = vpack.c.b16 %v1215, %v1209
        %v1258 = vpack.c.b16 %v1216, %v1210
        %v1259 = vpack.c.b16 %v1217, %v1211
        %v1260 = vpack.c.b16 %v1218, %v1212
        %v1261 = vpack.c.b16 %v1219, %v1213
        %v1262 = vpack.c.b16 %v1220, %v1220
        %v1263 = vpack.c.b16 %v1221, %v1221
        %v1264 = vpack.c.b16 %v1222, %v1222
        %v1265 = vpack.c.b16 %v1223, %v1223
        %v1266 = vpack.c.b16 %v1224, %v1224
        %v1267 = vpack.c.b16 %v1225, %v1225
        %vm1304 = vcmask 818176
        %v1306 = vsel %vm1304, %v1084, 0
        %v1309 = vsel %vm1304, %v1085, 0
        %v1312 = vsel %vm1304, %v1086, 0
        %v1315 = vsel %vm1304, %v1087, 0
        %v1318 = vsel %vm1304, %v1088, 0
        %v1321 = vsel %vm1304, %v1089, 0
        %v1324 = vsel %vm1304, %v1090, 0
        %v1327 = vsel %vm1304, %v1091, 0
        %v1330 = vsel %vm1304, %v1092, 0
        %v1333 = vsel %vm1304, %v1093, 0
        %v1336 = vsel %vm1304, %v1094, 0
        %v1339 = vsel %vm1304, %v1095, 0
        %v1342 = vsel %vm1304, %v1096, 0
        %v1345 = vsel %vm1304, %v1097, 0
        %v1348 = vsel %vm1304, %v1098, 0
        %v1351 = vsel %vm1304, %v1099, 0
        %v1354 = vsel %vm1304, %v1100, 0
        %v1357 = vsel %vm1304, %v1101, 0
        %v1360 = vsel %vm1304, %v1102, 0
        %v1363 = vsel %vm1304, %v1103, 0
        %v1366 = vsel %vm1304, %v1104, 0
        %v1369 = vsel %vm1304, %v1105, 0
        %v1372 = vsel %vm1304, %v1106, 0
        %v1375 = vsel %vm1304, %v1107, 0
        %v1378 = vsel %vm1304, %v1108, 0
        %vm1380 = vcmask 1041408
        %v1382 = vsel %vm1380, %v1262, 0
        %v1385 = vsel %vm1380, %v1263, 0
        %v1388 = vsel %vm1380, %v1264, 0
        %v1391 = vsel %vm1380, %v1265, 0
        %v1394 = vsel %vm1380, %v1266, 0
        %v1397 = vsel %vm1380, %v1267, 0
        %1399 = vmatprep.subr.bf16.mxu0 0
        %1400 = vmatpush1.bf16.msra.mxu0 0
        %1401 = vmatprep.subr.bf16.mxu0 %v1385
        %1402 = vmatpush1.bf16.msra.mxu0 %v1382
        %1403 = vmatprep.subr.bf16.mxu0 %v1257
        %1404 = vmatpush1.bf16.msra.mxu0 %v1256
        %1405 = vmatprep.subr.bf16.mxu0 %v1251
        %1406 = vmatpush1.bf16.msra.mxu0 %v1250
        %1407 = vmatprep.subr.bf16.mxu0 %v1245
        %1408 = vmatpush1.bf16.msra.mxu0 %v1244
        %1409 = vmatprep.subr.bf16.mxu0 %v1239
        %1410 = vmatpush1.bf16.msra.mxu0 %v1238
        %1411 = vmatprep.subr.bf16.mxu0 %v1233
        %1412 = vmatpush1.bf16.msra.mxu0 %v1232
        %1413 = vmatprep.subr.bf16.mxu0 %v1227
        %1414 = vmatpush1.bf16.msra.mxu0 %v1226
        %1415 = vmatprep.subr.bf16.mxu0 0
        %1416 = vmatpush2.bf16.msra.mxu0 0
        %1417 = vmatprep.subr.bf16.mxu0 0
        %1418 = vmatpush2.bf16.msra.mxu0 0
        %1419 = vmatprep.subr.bf16.mxu0 0
        %1420 = vmatpush2.bf16.msra.mxu0 0
        %1421 = vmatprep.subr.bf16.mxu0 0
        %1422 = vmatpush2.bf16.msra.mxu0 0
        %1423 = vmatprep.subr.bf16.mxu0 0
        %1424 = vmatpush2.bf16.msra.mxu0 0
        %1425 = vmatprep.subr.bf16.mxu0 0
        %1426 = vmatpush2.bf16.msra.mxu0 0
        %1427 = vmatprep.subr.bf16.mxu0 0
        %1428 = vmatpush2.bf16.msra.mxu0 0
        %1429 = vmatprep.subr.bf16.mxu0 0
        %1430 = vmatpush2.bf16.msra.mxu0 0
        %1431 = vmatprep.mubr.bf16.mxu0 0
        %1432 = vmatmul.mubr.bf16.gmra.mxu0 %v1306
        %v1433 = vpop.f32.mrf.mxu0
        %v1434 = vadd.f32 %v737, %v1433
        %v1435 = vpop.f32.mrf.mxu0
        %v1436 = vadd.f32 %v737, %v1435
        %v1437 = vpop.f32.mrf.mxu0
        %v1438 = vadd.f32 %v742, %v1437
        %v1439 = vpop.f32.mrf.mxu0
        %v1440 = vadd.f32 %v742, %v1439
        %1441 = vmatprep.mubr.bf16.mxu0 0
        %1442 = vmatmul.mubr.bf16.gmra.mxu0 %v1309
        %v1443 = vpop.f32.mrf.mxu0
        %v1444 = vadd.f32 %v747, %v1443
        %v1445 = vpop.f32.mrf.mxu0
        %v1446 = vadd.f32 %v747, %v1445
        %v1447 = vpop.f32.mrf.mxu0
        %v1448 = vadd.f32 %v752, %v1447
        %v1449 = vpop.f32.mrf.mxu0
        %v1450 = vadd.f32 %v752, %v1449
        %1451 = vmatprep.mubr.bf16.mxu0 0
        %1452 = vmatmul.mubr.bf16.gmra.mxu0 %v1312
        %v1453 = vpop.f32.mrf.mxu0
        %v1454 = vadd.f32 %v757, %v1453
        %v1455 = vpop.f32.mrf.mxu0
        %v1456 = vadd.f32 %v757, %v1455
        %v1457 = vpop.f32.mrf.mxu0
        %v1458 = vadd.f32 %v762, %v1457
        %v1459 = vpop.f32.mrf.mxu0
        %v1460 = vadd.f32 %v762, %v1459
        %1461 = vmatprep.mubr.bf16.mxu0 0
        %1462 = vmatmul.mubr.bf16.gmra.mxu0 %v1315
        %v1463 = vpop.f32.mrf.mxu0
        %v1464 = vadd.f32 %v767, %v1463
        %v1465 = vpop.f32.mrf.mxu0
        %v1466 = vadd.f32 %v767, %v1465
        %v1467 = vpop.f32.mrf.mxu0
        %v1468 = vadd.f32 %v772, %v1467
        %v1469 = vpop.f32.mrf.mxu0
        %v1470 = vadd.f32 %v772, %v1469
        %1471 = vmatprep.mubr.bf16.mxu0 0
        %1472 = vmatmul.mubr.bf16.gmra.mxu0 %v1318
        %v1473 = vpop.f32.mrf.mxu0
        %v1474 = vadd.f32 %v777, %v1473
        %v1475 = vpop.f32.mrf.mxu0
        %v1476 = vadd.f32 %v777, %v1475
        %v1477 = vpop.f32.mrf.mxu0
        %v1478 = vadd.f32 %v782, %v1477
        %v1479 = vpop.f32.mrf.mxu0
        %v1480 = vadd.f32 %v782, %v1479
        %1481 = vmatprep.mubr.bf16.mxu0 0
        %1482 = vmatmul.mubr.bf16.gmra.mxu0 %v1321
        %v1483 = vpop.f32.mrf.mxu0
        %v1484 = vadd.f32 %v787, %v1483
        %v1485 = vpop.f32.mrf.mxu0
        %v1486 = vadd.f32 %v787, %v1485
        %v1487 = vpop.f32.mrf.mxu0
        %v1488 = vadd.f32 %v792, %v1487
        %v1489 = vpop.f32.mrf.mxu0
        %v1490 = vadd.f32 %v792, %v1489
        %1491 = vmatprep.mubr.bf16.mxu0 0
        %1492 = vmatmul.mubr.bf16.gmra.mxu0 %v1324
        %v1493 = vpop.f32.mrf.mxu0
        %v1494 = vadd.f32 %v797, %v1493
        %v1495 = vpop.f32.mrf.mxu0
        %v1496 = vadd.f32 %v797, %v1495
        %v1497 = vpop.f32.mrf.mxu0
        %v1498 = vadd.f32 %v802, %v1497
        %v1499 = vpop.f32.mrf.mxu0
        %v1500 = vadd.f32 %v802, %v1499
        %1501 = vmatprep.mubr.bf16.mxu0 0
        %1502 = vmatmul.mubr.bf16.gmra.mxu0 %v1327
        %v1503 = vpop.f32.mrf.mxu0
        %v1504 = vadd.f32 %v807, %v1503
        %v1505 = vpop.f32.mrf.mxu0
        %v1506 = vadd.f32 %v807, %v1505
        %v1507 = vpop.f32.mrf.mxu0
        %v1508 = vadd.f32 %v812, %v1507
        %v1509 = vpop.f32.mrf.mxu0
        %v1510 = vadd.f32 %v812, %v1509
        %1511 = vmatprep.mubr.bf16.mxu0 0
        %1512 = vmatmul.mubr.bf16.gmra.mxu0 %v1330
        %v1513 = vpop.f32.mrf.mxu0
        %v1514 = vadd.f32 %v817, %v1513
        %v1515 = vpop.f32.mrf.mxu0
        %v1516 = vadd.f32 %v817, %v1515
        %v1517 = vpop.f32.mrf.mxu0
        %v1518 = vadd.f32 %v822, %v1517
        %v1519 = vpop.f32.mrf.mxu0
        %v1520 = vadd.f32 %v822, %v1519
        %1521 = vmatprep.mubr.bf16.mxu0 0
        %1522 = vmatmul.mubr.bf16.gmra.mxu0 %v1333
        %v1523 = vpop.f32.mrf.mxu0
        %v1524 = vadd.f32 %v827, %v1523
        %v1525 = vpop.f32.mrf.mxu0
        %v1526 = vadd.f32 %v827, %v1525
        %v1527 = vpop.f32.mrf.mxu0
        %v1528 = vadd.f32 %v832, %v1527
        %v1529 = vpop.f32.mrf.mxu0
        %v1530 = vadd.f32 %v832, %v1529
        %1531 = vmatprep.mubr.bf16.mxu0 0
        %1532 = vmatmul.mubr.bf16.gmra.mxu0 %v1336
        %v1533 = vpop.f32.mrf.mxu0
        %v1534 = vadd.f32 %v837, %v1533
        %v1535 = vpop.f32.mrf.mxu0
        %v1536 = vadd.f32 %v837, %v1535
        %v1537 = vpop.f32.mrf.mxu0
        %v1538 = vadd.f32 %v842, %v1537
        %v1539 = vpop.f32.mrf.mxu0
        %v1540 = vadd.f32 %v842, %v1539
        %1541 = vmatprep.mubr.bf16.mxu0 0
        %1542 = vmatmul.mubr.bf16.gmra.mxu0 %v1339
        %v1543 = vpop.f32.mrf.mxu0
        %v1544 = vadd.f32 %v847, %v1543
        %v1545 = vpop.f32.mrf.mxu0
        %v1546 = vadd.f32 %v847, %v1545
        %v1547 = vpop.f32.mrf.mxu0
        %v1548 = vadd.f32 %v852, %v1547
        %v1549 = vpop.f32.mrf.mxu0
        %v1550 = vadd.f32 %v852, %v1549
        %1551 = vmatprep.mubr.bf16.mxu0 0
        %1552 = vmatmul.mubr.bf16.gmra.mxu0 %v1342
        %v1553 = vpop.f32.mrf.mxu0
        %v1554 = vadd.f32 %v857, %v1553
        %v1555 = vpop.f32.mrf.mxu0
        %v1556 = vadd.f32 %v857, %v1555
        %v1557 = vpop.f32.mrf.mxu0
        %v1558 = vadd.f32 %v862, %v1557
        %v1559 = vpop.f32.mrf.mxu0
        %v1560 = vadd.f32 %v862, %v1559
        %1561 = vmatprep.mubr.bf16.mxu0 0
        %1562 = vmatmul.mubr.bf16.gmra.mxu0 %v1345
        %v1563 = vpop.f32.mrf.mxu0
        %v1564 = vadd.f32 %v867, %v1563
        %v1565 = vpop.f32.mrf.mxu0
        %v1566 = vadd.f32 %v867, %v1565
        %v1567 = vpop.f32.mrf.mxu0
        %v1568 = vadd.f32 %v872, %v1567
        %v1569 = vpop.f32.mrf.mxu0
        %v1570 = vadd.f32 %v872, %v1569
        %1571 = vmatprep.mubr.bf16.mxu0 0
        %1572 = vmatmul.mubr.bf16.gmra.mxu0 %v1348
        %v1573 = vpop.f32.mrf.mxu0
        %v1574 = vadd.f32 %v877, %v1573
        %v1575 = vpop.f32.mrf.mxu0
        %v1576 = vadd.f32 %v877, %v1575
        %v1577 = vpop.f32.mrf.mxu0
        %v1578 = vadd.f32 %v882, %v1577
        %v1579 = vpop.f32.mrf.mxu0
        %v1580 = vadd.f32 %v882, %v1579
        %1581 = vmatprep.mubr.bf16.mxu0 0
        %1582 = vmatmul.mubr.bf16.gmra.mxu0 %v1351
        %v1583 = vpop.f32.mrf.mxu0
        %v1584 = vadd.f32 %v887, %v1583
        %v1585 = vpop.f32.mrf.mxu0
        %v1586 = vadd.f32 %v887, %v1585
        %v1587 = vpop.f32.mrf.mxu0
        %v1588 = vadd.f32 %v892, %v1587
        %v1589 = vpop.f32.mrf.mxu0
        %v1590 = vadd.f32 %v892, %v1589
        %1591 = vmatprep.mubr.bf16.mxu0 0
        %1592 = vmatmul.mubr.bf16.gmra.mxu0 %v1354
        %v1593 = vpop.f32.mrf.mxu0
        %v1594 = vadd.f32 %v897, %v1593
        %v1595 = vpop.f32.mrf.mxu0
        %v1596 = vadd.f32 %v897, %v1595
        %v1597 = vpop.f32.mrf.mxu0
        %v1598 = vadd.f32 %v902, %v1597
        %v1599 = vpop.f32.mrf.mxu0
        %v1600 = vadd.f32 %v902, %v1599
        %1601 = vmatprep.mubr.bf16.mxu0 0
        %1602 = vmatmul.mubr.bf16.gmra.mxu0 %v1357
        %v1603 = vpop.f32.mrf.mxu0
        %v1604 = vadd.f32 %v907, %v1603
        %v1605 = vpop.f32.mrf.mxu0
        %v1606 = vadd.f32 %v907, %v1605
        %v1607 = vpop.f32.mrf.mxu0
        %v1608 = vadd.f32 %v912, %v1607
        %v1609 = vpop.f32.mrf.mxu0
        %v1610 = vadd.f32 %v912, %v1609
        %1611 = vmatprep.mubr.bf16.mxu0 0
        %1612 = vmatmul.mubr.bf16.gmra.mxu0 %v1360
        %v1613 = vpop.f32.mrf.mxu0
        %v1614 = vadd.f32 %v917, %v1613
        %v1615 = vpop.f32.mrf.mxu0
        %v1616 = vadd.f32 %v917, %v1615
        %v1617 = vpop.f32.mrf.mxu0
        %v1618 = vadd.f32 %v922, %v1617
        %v1619 = vpop.f32.mrf.mxu0
        %v1620 = vadd.f32 %v922, %v1619
        %1621 = vmatprep.mubr.bf16.mxu0 0
        %1622 = vmatmul.mubr.bf16.gmra.mxu0 %v1363
        %v1623 = vpop.f32.mrf.mxu0
        %v1624 = vadd.f32 %v927, %v1623
        %v1625 = vpop.f32.mrf.mxu0
        %v1626 = vadd.f32 %v927, %v1625
        %v1627 = vpop.f32.mrf.mxu0
        %v1628 = vadd.f32 %v932, %v1627
        %v1629 = vpop.f32.mrf.mxu0
        %v1630 = vadd.f32 %v932, %v1629
        %1631 = vmatprep.mubr.bf16.mxu0 0
        %1632 = vmatmul.mubr.bf16.gmra.mxu0 %v1366
        %v1633 = vpop.f32.mrf.mxu0
        %v1634 = vadd.f32 %v937, %v1633
        %v1635 = vpop.f32.mrf.mxu0
        %v1636 = vadd.f32 %v937, %v1635
        %v1637 = vpop.f32.mrf.mxu0
        %v1638 = vadd.f32 %v942, %v1637
        %v1639 = vpop.f32.mrf.mxu0
        %v1640 = vadd.f32 %v942, %v1639
        %1641 = vmatprep.mubr.bf16.mxu0 0
        %1642 = vmatmul.mubr.bf16.gmra.mxu0 %v1369
        %v1643 = vpop.f32.mrf.mxu0
        %v1644 = vadd.f32 %v947, %v1643
        %v1645 = vpop.f32.mrf.mxu0
        %v1646 = vadd.f32 %v947, %v1645
        %v1647 = vpop.f32.mrf.mxu0
        %v1648 = vadd.f32 %v952, %v1647
        %v1649 = vpop.f32.mrf.mxu0
        %v1650 = vadd.f32 %v952, %v1649
        %1651 = vmatprep.mubr.bf16.mxu0 0
        %1652 = vmatmul.mubr.bf16.gmra.mxu0 %v1372
        %v1653 = vpop.f32.mrf.mxu0
        %v1654 = vadd.f32 %v957, %v1653
        %v1655 = vpop.f32.mrf.mxu0
        %v1656 = vadd.f32 %v957, %v1655
        %v1657 = vpop.f32.mrf.mxu0
        %v1658 = vadd.f32 %v962, %v1657
        %v1659 = vpop.f32.mrf.mxu0
        %v1660 = vadd.f32 %v962, %v1659
        %1661 = vmatprep.mubr.bf16.mxu0 0
        %1662 = vmatmul.mubr.bf16.gmra.mxu0 %v1375
        %v1663 = vpop.f32.mrf.mxu0
        %v1664 = vadd.f32 %v967, %v1663
        %v1665 = vpop.f32.mrf.mxu0
        %v1666 = vadd.f32 %v967, %v1665
        %v1667 = vpop.f32.mrf.mxu0
        %v1668 = vadd.f32 %v972, %v1667
        %v1669 = vpop.f32.mrf.mxu0
        %v1670 = vadd.f32 %v972, %v1669
        %1671 = vmatprep.mubr.bf16.mxu0 0
        %1672 = vmatmul.mubr.bf16.gmra.mxu0 %v1378
        %v1673 = vpop.f32.mrf.mxu0
        %v1674 = vadd.f32 %v977, %v1673
        %v1675 = vpop.f32.mrf.mxu0
        %v1676 = vadd.f32 %v977, %v1675
        %v1677 = vpop.f32.mrf.mxu0
        %v1678 = vadd.f32 %v982, %v1677
        %v1679 = vpop.f32.mrf.mxu0
        %v1680 = vadd.f32 %v982, %v1679
        %1681 = vdwg.mxu0
        %1682 = vmatprep.subr.bf16.mxu0 0
        %1683 = vmatpush1.bf16.msra.mxu0 0
        %1684 = vmatprep.subr.bf16.mxu0 %v1391
        %1685 = vmatpush1.bf16.msra.mxu0 %v1388
        %1686 = vmatprep.subr.bf16.mxu0 %v1259
        %1687 = vmatpush1.bf16.msra.mxu0 %v1258
        %1688 = vmatprep.subr.bf16.mxu0 %v1253
        %1689 = vmatpush1.bf16.msra.mxu0 %v1252
        %1690 = vmatprep.subr.bf16.mxu0 %v1247
        %1691 = vmatpush1.bf16.msra.mxu0 %v1246
        %1692 = vmatprep.subr.bf16.mxu0 %v1241
        %1693 = vmatpush1.bf16.msra.mxu0 %v1240
        %1694 = vmatprep.subr.bf16.mxu0 %v1235
        %1695 = vmatpush1.bf16.msra.mxu0 %v1234
        %1696 = vmatprep.subr.bf16.mxu0 %v1229
        %1697 = vmatpush1.bf16.msra.mxu0 %v1228
        %1698 = vmatprep.subr.bf16.mxu0 0
        %1699 = vmatpush2.bf16.msra.mxu0 0
        %1700 = vmatprep.subr.bf16.mxu0 0
        %1701 = vmatpush2.bf16.msra.mxu0 0
        %1702 = vmatprep.subr.bf16.mxu0 0
        %1703 = vmatpush2.bf16.msra.mxu0 0
        %1704 = vmatprep.subr.bf16.mxu0 0
        %1705 = vmatpush2.bf16.msra.mxu0 0
        %1706 = vmatprep.subr.bf16.mxu0 0
        %1707 = vmatpush2.bf16.msra.mxu0 0
        %1708 = vmatprep.subr.bf16.mxu0 0
        %1709 = vmatpush2.bf16.msra.mxu0 0
        %1710 = vmatprep.subr.bf16.mxu0 0
        %1711 = vmatpush2.bf16.msra.mxu0 0
        %1712 = vmatprep.subr.bf16.mxu0 0
        %1713 = vmatpush2.bf16.msra.mxu0 0
        %1714 = vmatprep.mubr.bf16.mxu0 0
        %1715 = vmatmul.mubr.bf16.gmra.mxu0 %v1306
        %v1716 = vpop.f32.mrf.mxu0
        %v1717 = vadd.f32 %v737, %v1716
        %v1718 = vpop.f32.mrf.mxu0
        %v1719 = vadd.f32 %v737, %v1718
        %v1720 = vpop.f32.mrf.mxu0
        %v1721 = vadd.f32 %v742, %v1720
        %v1722 = vpop.f32.mrf.mxu0
        %v1723 = vadd.f32 %v742, %v1722
        %1724 = vmatprep.mubr.bf16.mxu0 0
        %1725 = vmatmul.mubr.bf16.gmra.mxu0 %v1309
        %v1726 = vpop.f32.mrf.mxu0
        %v1727 = vadd.f32 %v747, %v1726
        %v1728 = vpop.f32.mrf.mxu0
        %v1729 = vadd.f32 %v747, %v1728
        %v1730 = vpop.f32.mrf.mxu0
        %v1731 = vadd.f32 %v752, %v1730
        %v1732 = vpop.f32.mrf.mxu0
        %v1733 = vadd.f32 %v752, %v1732
        %1734 = vmatprep.mubr.bf16.mxu0 0
        %1735 = vmatmul.mubr.bf16.gmra.mxu0 %v1312
        %v1736 = vpop.f32.mrf.mxu0
        %v1737 = vadd.f32 %v757, %v1736
        %v1738 = vpop.f32.mrf.mxu0
        %v1739 = vadd.f32 %v757, %v1738
        %v1740 = vpop.f32.mrf.mxu0
        %v1741 = vadd.f32 %v762, %v1740
        %v1742 = vpop.f32.mrf.mxu0
        %v1743 = vadd.f32 %v762, %v1742
        %1744 = vmatprep.mubr.bf16.mxu0 0
        %1745 = vmatmul.mubr.bf16.gmra.mxu0 %v1315
        %v1746 = vpop.f32.mrf.mxu0
        %v1747 = vadd.f32 %v767, %v1746
        %v1748 = vpop.f32.mrf.mxu0
        %v1749 = vadd.f32 %v767, %v1748
        %v1750 = vpop.f32.mrf.mxu0
        %v1751 = vadd.f32 %v772, %v1750
        %v1752 = vpop.f32.mrf.mxu0
        %v1753 = vadd.f32 %v772, %v1752
        %1754 = vmatprep.mubr.bf16.mxu0 0
        %1755 = vmatmul.mubr.bf16.gmra.mxu0 %v1318
        %v1756 = vpop.f32.mrf.mxu0
        %v1757 = vadd.f32 %v777, %v1756
        %v1758 = vpop.f32.mrf.mxu0
        %v1759 = vadd.f32 %v777, %v1758
        %v1760 = vpop.f32.mrf.mxu0
        %v1761 = vadd.f32 %v782, %v1760
        %v1762 = vpop.f32.mrf.mxu0
        %v1763 = vadd.f32 %v782, %v1762
        %1764 = vmatprep.mubr.bf16.mxu0 0
        %1765 = vmatmul.mubr.bf16.gmra.mxu0 %v1321
        %v1766 = vpop.f32.mrf.mxu0
        %v1767 = vadd.f32 %v787, %v1766
        %v1768 = vpop.f32.mrf.mxu0
        %v1769 = vadd.f32 %v787, %v1768
        %v1770 = vpop.f32.mrf.mxu0
        %v1771 = vadd.f32 %v792, %v1770
        %v1772 = vpop.f32.mrf.mxu0
        %v1773 = vadd.f32 %v792, %v1772
        %1774 = vmatprep.mubr.bf16.mxu0 0
        %1775 = vmatmul.mubr.bf16.gmra.mxu0 %v1324
        %v1776 = vpop.f32.mrf.mxu0
        %v1777 = vadd.f32 %v797, %v1776
        %v1778 = vpop.f32.mrf.mxu0
        %v1779 = vadd.f32 %v797, %v1778
        %v1780 = vpop.f32.mrf.mxu0
        %v1781 = vadd.f32 %v802, %v1780
        %v1782 = vpop.f32.mrf.mxu0
        %v1783 = vadd.f32 %v802, %v1782
        %1784 = vmatprep.mubr.bf16.mxu0 0
        %1785 = vmatmul.mubr.bf16.gmra.mxu0 %v1327
        %v1786 = vpop.f32.mrf.mxu0
        %v1787 = vadd.f32 %v807, %v1786
        %v1788 = vpop.f32.mrf.mxu0
        %v1789 = vadd.f32 %v807, %v1788
        %v1790 = vpop.f32.mrf.mxu0
        %v1791 = vadd.f32 %v812, %v1790
        %v1792 = vpop.f32.mrf.mxu0
        %v1793 = vadd.f32 %v812, %v1792
        %1794 = vmatprep.mubr.bf16.mxu0 0
        %1795 = vmatmul.mubr.bf16.gmra.mxu0 %v1330
        %v1796 = vpop.f32.mrf.mxu0
        %v1797 = vadd.f32 %v817, %v1796
        %v1798 = vpop.f32.mrf.mxu0
        %v1799 = vadd.f32 %v817, %v1798
        %v1800 = vpop.f32.mrf.mxu0
        %v1801 = vadd.f32 %v822, %v1800
        %v1802 = vpop.f32.mrf.mxu0
        %v1803 = vadd.f32 %v822, %v1802
        %1804 = vmatprep.mubr.bf16.mxu0 0
        %1805 = vmatmul.mubr.bf16.gmra.mxu0 %v1333
        %v1806 = vpop.f32.mrf.mxu0
        %v1807 = vadd.f32 %v827, %v1806
        %v1808 = vpop.f32.mrf.mxu0
        %v1809 = vadd.f32 %v827, %v1808
        %v1810 = vpop.f32.mrf.mxu0
        %v1811 = vadd.f32 %v832, %v1810
        %v1812 = vpop.f32.mrf.mxu0
        %v1813 = vadd.f32 %v832, %v1812
        %1814 = vmatprep.mubr.bf16.mxu0 0
        %1815 = vmatmul.mubr.bf16.gmra.mxu0 %v1336
        %v1816 = vpop.f32.mrf.mxu0
        %v1817 = vadd.f32 %v837, %v1816
        %v1818 = vpop.f32.mrf.mxu0
        %v1819 = vadd.f32 %v837, %v1818
        %v1820 = vpop.f32.mrf.mxu0
        %v1821 = vadd.f32 %v842, %v1820
        %v1822 = vpop.f32.mrf.mxu0
        %v1823 = vadd.f32 %v842, %v1822
        %1824 = vmatprep.mubr.bf16.mxu0 0
        %1825 = vmatmul.mubr.bf16.gmra.mxu0 %v1339
        %v1826 = vpop.f32.mrf.mxu0
        %v1827 = vadd.f32 %v847, %v1826
        %v1828 = vpop.f32.mrf.mxu0
        %v1829 = vadd.f32 %v847, %v1828
        %v1830 = vpop.f32.mrf.mxu0
        %v1831 = vadd.f32 %v852, %v1830
        %v1832 = vpop.f32.mrf.mxu0
        %v1833 = vadd.f32 %v852, %v1832
        %1834 = vmatprep.mubr.bf16.mxu0 0
        %1835 = vmatmul.mubr.bf16.gmra.mxu0 %v1342
        %v1836 = vpop.f32.mrf.mxu0
        %v1837 = vadd.f32 %v857, %v1836
        %v1838 = vpop.f32.mrf.mxu0
        %v1839 = vadd.f32 %v857, %v1838
        %v1840 = vpop.f32.mrf.mxu0
        %v1841 = vadd.f32 %v862, %v1840
        %v1842 = vpop.f32.mrf.mxu0
        %v1843 = vadd.f32 %v862, %v1842
        %1844 = vmatprep.mubr.bf16.mxu0 0
        %1845 = vmatmul.mubr.bf16.gmra.mxu0 %v1345
        %v1846 = vpop.f32.mrf.mxu0
        %v1847 = vadd.f32 %v867, %v1846
        %v1848 = vpop.f32.mrf.mxu0
        %v1849 = vadd.f32 %v867, %v1848
        %v1850 = vpop.f32.mrf.mxu0
        %v1851 = vadd.f32 %v872, %v1850
        %v1852 = vpop.f32.mrf.mxu0
        %v1853 = vadd.f32 %v872, %v1852
        %1854 = vmatprep.mubr.bf16.mxu0 0
        %1855 = vmatmul.mubr.bf16.gmra.mxu0 %v1348
        %v1856 = vpop.f32.mrf.mxu0
        %v1857 = vadd.f32 %v877, %v1856
        %v1858 = vpop.f32.mrf.mxu0
        %v1859 = vadd.f32 %v877, %v1858
        %v1860 = vpop.f32.mrf.mxu0
        %v1861 = vadd.f32 %v882, %v1860
        %v1862 = vpop.f32.mrf.mxu0
        %v1863 = vadd.f32 %v882, %v1862
        %1864 = vmatprep.mubr.bf16.mxu0 0
        %1865 = vmatmul.mubr.bf16.gmra.mxu0 %v1351
        %v1866 = vpop.f32.mrf.mxu0
        %v1867 = vadd.f32 %v887, %v1866
        %v1868 = vpop.f32.mrf.mxu0
        %v1869 = vadd.f32 %v887, %v1868
        %v1870 = vpop.f32.mrf.mxu0
        %v1871 = vadd.f32 %v892, %v1870
        %v1872 = vpop.f32.mrf.mxu0
        %v1873 = vadd.f32 %v892, %v1872
        %1874 = vmatprep.mubr.bf16.mxu0 0
        %1875 = vmatmul.mubr.bf16.gmra.mxu0 %v1354
        %v1876 = vpop.f32.mrf.mxu0
        %v1877 = vadd.f32 %v897, %v1876
        %v1878 = vpop.f32.mrf.mxu0
        %v1879 = vadd.f32 %v897, %v1878
        %v1880 = vpop.f32.mrf.mxu0
        %v1881 = vadd.f32 %v902, %v1880
        %v1882 = vpop.f32.mrf.mxu0
        %v1883 = vadd.f32 %v902, %v1882
        %1884 = vmatprep.mubr.bf16.mxu0 0
        %1885 = vmatmul.mubr.bf16.gmra.mxu0 %v1357
        %v1886 = vpop.f32.mrf.mxu0
        %v1887 = vadd.f32 %v907, %v1886
        %v1888 = vpop.f32.mrf.mxu0
        %v1889 = vadd.f32 %v907, %v1888
        %v1890 = vpop.f32.mrf.mxu0
        %v1891 = vadd.f32 %v912, %v1890
        %v1892 = vpop.f32.mrf.mxu0
        %v1893 = vadd.f32 %v912, %v1892
        %1894 = vmatprep.mubr.bf16.mxu0 0
        %1895 = vmatmul.mubr.bf16.gmra.mxu0 %v1360
        %v1896 = vpop.f32.mrf.mxu0
        %v1897 = vadd.f32 %v917, %v1896
        %v1898 = vpop.f32.mrf.mxu0
        %v1899 = vadd.f32 %v917, %v1898
        %v1900 = vpop.f32.mrf.mxu0
        %v1901 = vadd.f32 %v922, %v1900
        %v1902 = vpop.f32.mrf.mxu0
        %v1903 = vadd.f32 %v922, %v1902
        %1904 = vmatprep.mubr.bf16.mxu0 0
        %1905 = vmatmul.mubr.bf16.gmra.mxu0 %v1363
        %v1906 = vpop.f32.mrf.mxu0
        %v1907 = vadd.f32 %v927, %v1906
        %v1908 = vpop.f32.mrf.mxu0
        %v1909 = vadd.f32 %v927, %v1908
        %v1910 = vpop.f32.mrf.mxu0
        %v1911 = vadd.f32 %v932, %v1910
        %v1912 = vpop.f32.mrf.mxu0
        %v1913 = vadd.f32 %v932, %v1912
        %1914 = vmatprep.mubr.bf16.mxu0 0
        %1915 = vmatmul.mubr.bf16.gmra.mxu0 %v1366
        %v1916 = vpop.f32.mrf.mxu0
        %v1917 = vadd.f32 %v937, %v1916
        %v1918 = vpop.f32.mrf.mxu0
        %v1919 = vadd.f32 %v937, %v1918
        %v1920 = vpop.f32.mrf.mxu0
        %v1921 = vadd.f32 %v942, %v1920
        %v1922 = vpop.f32.mrf.mxu0
        %v1923 = vadd.f32 %v942, %v1922
        %1924 = vmatprep.mubr.bf16.mxu0 0
        %1925 = vmatmul.mubr.bf16.gmra.mxu0 %v1369
        %v1926 = vpop.f32.mrf.mxu0
        %v1927 = vadd.f32 %v947, %v1926
        %v1928 = vpop.f32.mrf.mxu0
        %v1929 = vadd.f32 %v947, %v1928
        %v1930 = vpop.f32.mrf.mxu0
        %v1931 = vadd.f32 %v952, %v1930
        %v1932 = vpop.f32.mrf.mxu0
        %v1933 = vadd.f32 %v952, %v1932
        %1934 = vmatprep.mubr.bf16.mxu0 0
        %1935 = vmatmul.mubr.bf16.gmra.mxu0 %v1372
        %v1936 = vpop.f32.mrf.mxu0
        %v1937 = vadd.f32 %v957, %v1936
        %v1938 = vpop.f32.mrf.mxu0
        %v1939 = vadd.f32 %v957, %v1938
        %v1940 = vpop.f32.mrf.mxu0
        %v1941 = vadd.f32 %v962, %v1940
        %v1942 = vpop.f32.mrf.mxu0
        %v1943 = vadd.f32 %v962, %v1942
        %1944 = vmatprep.mubr.bf16.mxu0 0
        %1945 = vmatmul.mubr.bf16.gmra.mxu0 %v1375
        %v1946 = vpop.f32.mrf.mxu0
        %v1947 = vadd.f32 %v967, %v1946
        %v1948 = vpop.f32.mrf.mxu0
        %v1949 = vadd.f32 %v967, %v1948
        %v1950 = vpop.f32.mrf.mxu0
        %v1951 = vadd.f32 %v972, %v1950
        %v1952 = vpop.f32.mrf.mxu0
        %v1953 = vadd.f32 %v972, %v1952
        %1954 = vmatprep.mubr.bf16.mxu0 0
        %1955 = vmatmul.mubr.bf16.gmra.mxu0 %v1378
        %v1956 = vpop.f32.mrf.mxu0
        %v1957 = vadd.f32 %v977, %v1956
        %v1958 = vpop.f32.mrf.mxu0
        %v1959 = vadd.f32 %v977, %v1958
        %v1960 = vpop.f32.mrf.mxu0
        %v1961 = vadd.f32 %v982, %v1960
        %v1962 = vpop.f32.mrf.mxu0
        %v1963 = vadd.f32 %v982, %v1962
        %1964 = vdwg.mxu0
        %1965 = vmatprep.subr.bf16.mxu0 0
        %1966 = vmatpush1.bf16.msra.mxu0 0
        %1967 = vmatprep.subr.bf16.mxu0 %v1397
        %1968 = vmatpush1.bf16.msra.mxu0 %v1394
        %1969 = vmatprep.subr.bf16.mxu0 %v1261
        %1970 = vmatpush1.bf16.msra.mxu0 %v1260
        %1971 = vmatprep.subr.bf16.mxu0 %v1255
        %1972 = vmatpush1.bf16.msra.mxu0 %v1254
        %1973 = vmatprep.subr.bf16.mxu0 %v1249
        %1974 = vmatpush1.bf16.msra.mxu0 %v1248
        %1975 = vmatprep.subr.bf16.mxu0 %v1243
        %1976 = vmatpush1.bf16.msra.mxu0 %v1242
        %1977 = vmatprep.subr.bf16.mxu0 %v1237
        %1978 = vmatpush1.bf16.msra.mxu0 %v1236
        %1979 = vmatprep.subr.bf16.mxu0 %v1231
        %1980 = vmatpush1.bf16.msra.mxu0 %v1230
        %1981 = vmatprep.subr.bf16.mxu0 0
        %1982 = vmatpush2.bf16.msra.mxu0 0
        %1983 = vmatprep.subr.bf16.mxu0 0
        %1984 = vmatpush2.bf16.msra.mxu0 0
        %1985 = vmatprep.subr.bf16.mxu0 0
        %1986 = vmatpush2.bf16.msra.mxu0 0
        %1987 = vmatprep.subr.bf16.mxu0 0
        %1988 = vmatpush2.bf16.msra.mxu0 0
        %1989 = vmatprep.subr.bf16.mxu0 0
        %1990 = vmatpush2.bf16.msra.mxu0 0
        %1991 = vmatprep.subr.bf16.mxu0 0
        %1992 = vmatpush2.bf16.msra.mxu0 0
        %1993 = vmatprep.subr.bf16.mxu0 0
        %1994 = vmatpush2.bf16.msra.mxu0 0
        %1995 = vmatprep.subr.bf16.mxu0 0
        %1996 = vmatpush2.bf16.msra.mxu0 0
        %1997 = vmatprep.mubr.bf16.mxu0 0
        %1998 = vmatmul.mubr.bf16.gmra.mxu0 %v1306
        %v1999 = vpop.f32.mrf.mxu0
        %v2000 = vadd.f32 %v737, %v1999
        %v2001 = vpop.f32.mrf.mxu0
        %v2002 = vadd.f32 %v737, %v2001
        %v2003 = vpop.f32.mrf.mxu0
        %v2004 = vadd.f32 %v742, %v2003
        %v2005 = vpop.f32.mrf.mxu0
        %v2006 = vadd.f32 %v742, %v2005
        %2007 = vmatprep.mubr.bf16.mxu0 0
        %2008 = vmatmul.mubr.bf16.gmra.mxu0 %v1309
        %v2009 = vpop.f32.mrf.mxu0
        %v2010 = vadd.f32 %v747, %v2009
        %v2011 = vpop.f32.mrf.mxu0
        %v2012 = vadd.f32 %v747, %v2011
        %v2013 = vpop.f32.mrf.mxu0
        %v2014 = vadd.f32 %v752, %v2013
        %v2015 = vpop.f32.mrf.mxu0
        %v2016 = vadd.f32 %v752, %v2015
        %2017 = vmatprep.mubr.bf16.mxu0 0
        %2018 = vmatmul.mubr.bf16.gmra.mxu0 %v1312
        %v2019 = vpop.f32.mrf.mxu0
        %v2020 = vadd.f32 %v757, %v2019
        %v2021 = vpop.f32.mrf.mxu0
        %v2022 = vadd.f32 %v757, %v2021
        %v2023 = vpop.f32.mrf.mxu0
        %v2024 = vadd.f32 %v762, %v2023
        %v2025 = vpop.f32.mrf.mxu0
        %v2026 = vadd.f32 %v762, %v2025
        %2027 = vmatprep.mubr.bf16.mxu0 0
        %2028 = vmatmul.mubr.bf16.gmra.mxu0 %v1315
        %v2029 = vpop.f32.mrf.mxu0
        %v2030 = vadd.f32 %v767, %v2029
        %v2031 = vpop.f32.mrf.mxu0
        %v2032 = vadd.f32 %v767, %v2031
        %v2033 = vpop.f32.mrf.mxu0
        %v2034 = vadd.f32 %v772, %v2033
        %v2035 = vpop.f32.mrf.mxu0
        %v2036 = vadd.f32 %v772, %v2035
        %2037 = vmatprep.mubr.bf16.mxu0 0
        %2038 = vmatmul.mubr.bf16.gmra.mxu0 %v1318
        %v2039 = vpop.f32.mrf.mxu0
        %v2040 = vadd.f32 %v777, %v2039
        %v2041 = vpop.f32.mrf.mxu0
        %v2042 = vadd.f32 %v777, %v2041
        %v2043 = vpop.f32.mrf.mxu0
        %v2044 = vadd.f32 %v782, %v2043
        %v2045 = vpop.f32.mrf.mxu0
        %v2046 = vadd.f32 %v782, %v2045
        %2047 = vmatprep.mubr.bf16.mxu0 0
        %2048 = vmatmul.mubr.bf16.gmra.mxu0 %v1321
        %v2049 = vpop.f32.mrf.mxu0
        %v2050 = vadd.f32 %v787, %v2049
        %v2051 = vpop.f32.mrf.mxu0
        %v2052 = vadd.f32 %v787, %v2051
        %v2053 = vpop.f32.mrf.mxu0
        %v2054 = vadd.f32 %v792, %v2053
        %v2055 = vpop.f32.mrf.mxu0
        %v2056 = vadd.f32 %v792, %v2055
        %2057 = vmatprep.mubr.bf16.mxu0 0
        %2058 = vmatmul.mubr.bf16.gmra.mxu0 %v1324
        %v2059 = vpop.f32.mrf.mxu0
        %v2060 = vadd.f32 %v797, %v2059
        %v2061 = vpop.f32.mrf.mxu0
        %v2062 = vadd.f32 %v797, %v2061
        %v2063 = vpop.f32.mrf.mxu0
        %v2064 = vadd.f32 %v802, %v2063
        %v2065 = vpop.f32.mrf.mxu0
        %v2066 = vadd.f32 %v802, %v2065
        %2067 = vmatprep.mubr.bf16.mxu0 0
        %2068 = vmatmul.mubr.bf16.gmra.mxu0 %v1327
        %v2069 = vpop.f32.mrf.mxu0
        %v2070 = vadd.f32 %v807, %v2069
        %v2071 = vpop.f32.mrf.mxu0
        %v2072 = vadd.f32 %v807, %v2071
        %v2073 = vpop.f32.mrf.mxu0
        %v2074 = vadd.f32 %v812, %v2073
        %v2075 = vpop.f32.mrf.mxu0
        %v2076 = vadd.f32 %v812, %v2075
        %2077 = vmatprep.mubr.bf16.mxu0 0
        %2078 = vmatmul.mubr.bf16.gmra.mxu0 %v1330
        %v2079 = vpop.f32.mrf.mxu0
        %v2080 = vadd.f32 %v817, %v2079
        %v2081 = vpop.f32.mrf.mxu0
        %v2082 = vadd.f32 %v817, %v2081
        %v2083 = vpop.f32.mrf.mxu0
        %v2084 = vadd.f32 %v822, %v2083
        %v2085 = vpop.f32.mrf.mxu0
        %v2086 = vadd.f32 %v822, %v2085
        %2087 = vmatprep.mubr.bf16.mxu0 0
        %2088 = vmatmul.mubr.bf16.gmra.mxu0 %v1333
        %v2089 = vpop.f32.mrf.mxu0
        %v2090 = vadd.f32 %v827, %v2089
        %v2091 = vpop.f32.mrf.mxu0
        %v2092 = vadd.f32 %v827, %v2091
        %v2093 = vpop.f32.mrf.mxu0
        %v2094 = vadd.f32 %v832, %v2093
        %v2095 = vpop.f32.mrf.mxu0
        %v2096 = vadd.f32 %v832, %v2095
        %2097 = vmatprep.mubr.bf16.mxu0 0
        %2098 = vmatmul.mubr.bf16.gmra.mxu0 %v1336
        %v2099 = vpop.f32.mrf.mxu0
        %v2100 = vadd.f32 %v837, %v2099
        %v2101 = vpop.f32.mrf.mxu0
        %v2102 = vadd.f32 %v837, %v2101
        %v2103 = vpop.f32.mrf.mxu0
        %v2104 = vadd.f32 %v842, %v2103
        %v2105 = vpop.f32.mrf.mxu0
        %v2106 = vadd.f32 %v842, %v2105
        %2107 = vmatprep.mubr.bf16.mxu0 0
        %2108 = vmatmul.mubr.bf16.gmra.mxu0 %v1339
        %v2109 = vpop.f32.mrf.mxu0
        %v2110 = vadd.f32 %v847, %v2109
        %v2111 = vpop.f32.mrf.mxu0
        %v2112 = vadd.f32 %v847, %v2111
        %v2113 = vpop.f32.mrf.mxu0
        %v2114 = vadd.f32 %v852, %v2113
        %v2115 = vpop.f32.mrf.mxu0
        %v2116 = vadd.f32 %v852, %v2115
        %2117 = vmatprep.mubr.bf16.mxu0 0
        %2118 = vmatmul.mubr.bf16.gmra.mxu0 %v1342
        %v2119 = vpop.f32.mrf.mxu0
        %v2120 = vadd.f32 %v857, %v2119
        %v2121 = vpop.f32.mrf.mxu0
        %v2122 = vadd.f32 %v857, %v2121
        %v2123 = vpop.f32.mrf.mxu0
        %v2124 = vadd.f32 %v862, %v2123
        %v2125 = vpop.f32.mrf.mxu0
        %v2126 = vadd.f32 %v862, %v2125
        %2127 = vmatprep.mubr.bf16.mxu0 0
        %2128 = vmatmul.mubr.bf16.gmra.mxu0 %v1345
        %v2129 = vpop.f32.mrf.mxu0
        %v2130 = vadd.f32 %v867, %v2129
        %v2131 = vpop.f32.mrf.mxu0
        %v2132 = vadd.f32 %v867, %v2131
        %v2133 = vpop.f32.mrf.mxu0
        %v2134 = vadd.f32 %v872, %v2133
        %v2135 = vpop.f32.mrf.mxu0
        %v2136 = vadd.f32 %v872, %v2135
        %2137 = vmatprep.mubr.bf16.mxu0 0
        %2138 = vmatmul.mubr.bf16.gmra.mxu0 %v1348
        %v2139 = vpop.f32.mrf.mxu0
        %v2140 = vadd.f32 %v877, %v2139
        %v2141 = vpop.f32.mrf.mxu0
        %v2142 = vadd.f32 %v877, %v2141
        %v2143 = vpop.f32.mrf.mxu0
        %v2144 = vadd.f32 %v882, %v2143
        %v2145 = vpop.f32.mrf.mxu0
        %v2146 = vadd.f32 %v882, %v2145
        %2147 = vmatprep.mubr.bf16.mxu0 0
        %2148 = vmatmul.mubr.bf16.gmra.mxu0 %v1351
        %v2149 = vpop.f32.mrf.mxu0
        %v2150 = vadd.f32 %v887, %v2149
        %v2151 = vpop.f32.mrf.mxu0
        %v2152 = vadd.f32 %v887, %v2151
        %v2153 = vpop.f32.mrf.mxu0
        %v2154 = vadd.f32 %v892, %v2153
        %v2155 = vpop.f32.mrf.mxu0
        %v2156 = vadd.f32 %v892, %v2155
        %2157 = vmatprep.mubr.bf16.mxu0 0
        %2158 = vmatmul.mubr.bf16.gmra.mxu0 %v1354
        %v2159 = vpop.f32.mrf.mxu0
        %v2160 = vadd.f32 %v897, %v2159
        %v2161 = vpop.f32.mrf.mxu0
        %v2162 = vadd.f32 %v897, %v2161
        %v2163 = vpop.f32.mrf.mxu0
        %v2164 = vadd.f32 %v902, %v2163
        %v2165 = vpop.f32.mrf.mxu0
        %v2166 = vadd.f32 %v902, %v2165
        %2167 = vmatprep.mubr.bf16.mxu0 0
        %2168 = vmatmul.mubr.bf16.gmra.mxu0 %v1357
        %v2169 = vpop.f32.mrf.mxu0
        %v2170 = vadd.f32 %v907, %v2169
        %v2171 = vpop.f32.mrf.mxu0
        %v2172 = vadd.f32 %v907, %v2171
        %v2173 = vpop.f32.mrf.mxu0
        %v2174 = vadd.f32 %v912, %v2173
        %v2175 = vpop.f32.mrf.mxu0
        %v2176 = vadd.f32 %v912, %v2175
        %2177 = vmatprep.mubr.bf16.mxu0 0
        %2178 = vmatmul.mubr.bf16.gmra.mxu0 %v1360
        %v2179 = vpop.f32.mrf.mxu0
        %v2180 = vadd.f32 %v917, %v2179
        %v2181 = vpop.f32.mrf.mxu0
        %v2182 = vadd.f32 %v917, %v2181
        %v2183 = vpop.f32.mrf.mxu0
        %v2184 = vadd.f32 %v922, %v2183
        %v2185 = vpop.f32.mrf.mxu0
        %v2186 = vadd.f32 %v922, %v2185
        %2187 = vmatprep.mubr.bf16.mxu0 0
        %2188 = vmatmul.mubr.bf16.gmra.mxu0 %v1363
        %v2189 = vpop.f32.mrf.mxu0
        %v2190 = vadd.f32 %v927, %v2189
        %v2191 = vpop.f32.mrf.mxu0
        %v2192 = vadd.f32 %v927, %v2191
        %v2193 = vpop.f32.mrf.mxu0
        %v2194 = vadd.f32 %v932, %v2193
        %v2195 = vpop.f32.mrf.mxu0
        %v2196 = vadd.f32 %v932, %v2195
        %2197 = vmatprep.mubr.bf16.mxu0 0
        %2198 = vmatmul.mubr.bf16.gmra.mxu0 %v1366
        %v2199 = vpop.f32.mrf.mxu0
        %v2200 = vadd.f32 %v937, %v2199
        %v2201 = vpop.f32.mrf.mxu0
        %v2202 = vadd.f32 %v937, %v2201
        %v2203 = vpop.f32.mrf.mxu0
        %v2204 = vadd.f32 %v942, %v2203
        %v2205 = vpop.f32.mrf.mxu0
        %v2206 = vadd.f32 %v942, %v2205
        %2207 = vmatprep.mubr.bf16.mxu0 0
        %2208 = vmatmul.mubr.bf16.gmra.mxu0 %v1369
        %v2209 = vpop.f32.mrf.mxu0
        %v2210 = vadd.f32 %v947, %v2209
        %v2211 = vpop.f32.mrf.mxu0
        %v2212 = vadd.f32 %v947, %v2211
        %v2213 = vpop.f32.mrf.mxu0
        %v2214 = vadd.f32 %v952, %v2213
        %v2215 = vpop.f32.mrf.mxu0
        %v2216 = vadd.f32 %v952, %v2215
        %2217 = vmatprep.mubr.bf16.mxu0 0
        %2218 = vmatmul.mubr.bf16.gmra.mxu0 %v1372
        %v2219 = vpop.f32.mrf.mxu0
        %v2220 = vadd.f32 %v957, %v2219
        %v2221 = vpop.f32.mrf.mxu0
        %v2222 = vadd.f32 %v957, %v2221
        %v2223 = vpop.f32.mrf.mxu0
        %v2224 = vadd.f32 %v962, %v2223
        %v2225 = vpop.f32.mrf.mxu0
        %v2226 = vadd.f32 %v962, %v2225
        %2227 = vmatprep.mubr.bf16.mxu0 0
        %2228 = vmatmul.mubr.bf16.gmra.mxu0 %v1375
        %v2229 = vpop.f32.mrf.mxu0
        %v2230 = vadd.f32 %v967, %v2229
        %v2231 = vpop.f32.mrf.mxu0
        %v2232 = vadd.f32 %v967, %v2231
        %v2233 = vpop.f32.mrf.mxu0
        %v2234 = vadd.f32 %v972, %v2233
        %v2235 = vpop.f32.mrf.mxu0
        %v2236 = vadd.f32 %v972, %v2235
        %2237 = vmatprep.mubr.bf16.mxu0 0
        %2238 = vmatmul.mubr.bf16.gmra.mxu0 %v1378
        %v2239 = vpop.f32.mrf.mxu0
        %v2240 = vadd.f32 %v977, %v2239
        %v2241 = vpop.f32.mrf.mxu0
        %v2242 = vadd.f32 %v977, %v2241
        %v2243 = vpop.f32.mrf.mxu0
        %v2244 = vadd.f32 %v982, %v2243
        %v2245 = vpop.f32.mrf.mxu0
        %v2246 = vadd.f32 %v982, %v2245
        %2247 = vdwg.mxu0
        %v2248 = vmax.f32 %v1434, 0.0
        %v2249 = vmax.f32 %v1436, 0.0
        %v2250 = vmax.f32 %v1717, 0.0
        %v2251 = vmax.f32 %v1719, 0.0
        %v2252 = vmax.f32 %v2000, 0.0
        %v2253 = vmax.f32 %v2002, 0.0
        %v2254 = vmax.f32 %v1438, 0.0
        %v2255 = vmax.f32 %v1440, 0.0
        %v2256 = vmax.f32 %v1721, 0.0
        %v2257 = vmax.f32 %v1723, 0.0
        %v2258 = vmax.f32 %v2004, 0.0
        %v2259 = vmax.f32 %v2006, 0.0
        %v2260 = vmax.f32 %v1444, 0.0
        %v2261 = vmax.f32 %v1446, 0.0
        %v2262 = vmax.f32 %v1727, 0.0
        %v2263 = vmax.f32 %v1729, 0.0
        %v2264 = vmax.f32 %v2010, 0.0
        %v2265 = vmax.f32 %v2012, 0.0
        %v2266 = vmax.f32 %v1448, 0.0
        %v2267 = vmax.f32 %v1450, 0.0
        %v2268 = vmax.f32 %v1731, 0.0
        %v2269 = vmax.f32 %v1733, 0.0
        %v2270 = vmax.f32 %v2014, 0.0
        %v2271 = vmax.f32 %v2016, 0.0
        %v2272 = vmax.f32 %v1454, 0.0
        %v2273 = vmax.f32 %v1456, 0.0
        %v2274 = vmax.f32 %v1737, 0.0
        %v2275 = vmax.f32 %v1739, 0.0
        %v2276 = vmax.f32 %v2020, 0.0
        %v2277 = vmax.f32 %v2022, 0.0
        %v2278 = vmax.f32 %v1458, 0.0
        %v2279 = vmax.f32 %v1460, 0.0
        %v2280 = vmax.f32 %v1741, 0.0
        %v2281 = vmax.f32 %v1743, 0.0
        %v2282 = vmax.f32 %v2024, 0.0
        %v2283 = vmax.f32 %v2026, 0.0
        %v2284 = vmax.f32 %v1464, 0.0
        %v2285 = vmax.f32 %v1466, 0.0
        %v2286 = vmax.f32 %v1747, 0.0
        %v2287 = vmax.f32 %v1749, 0.0
        %v2288 = vmax.f32 %v2030, 0.0
        %v2289 = vmax.f32 %v2032, 0.0
        %v2290 = vmax.f32 %v1468, 0.0
        %v2291 = vmax.f32 %v1470, 0.0
        %v2292 = vmax.f32 %v1751, 0.0
        %v2293 = vmax.f32 %v1753, 0.0
        %v2294 = vmax.f32 %v2034, 0.0
        %v2295 = vmax.f32 %v2036, 0.0
        %v2296 = vmax.f32 %v1474, 0.0
        %v2297 = vmax.f32 %v1476, 0.0
        %v2298 = vmax.f32 %v1757, 0.0
        %v2299 = vmax.f32 %v1759, 0.0
        %v2300 = vmax.f32 %v2040, 0.0
        %v2301 = vmax.f32 %v2042, 0.0
        %v2302 = vmax.f32 %v1478, 0.0
        %v2303 = vmax.f32 %v1480, 0.0
        %v2304 = vmax.f32 %v1761, 0.0
        %v2305 = vmax.f32 %v1763, 0.0
        %v2306 = vmax.f32 %v2044, 0.0
        %v2307 = vmax.f32 %v2046, 0.0
        %v2308 = vmax.f32 %v1484, 0.0
        %v2309 = vmax.f32 %v1486, 0.0
        %v2310 = vmax.f32 %v1767, 0.0
        %v2311 = vmax.f32 %v1769, 0.0
        %v2312 = vmax.f32 %v2050, 0.0
        %v2313 = vmax.f32 %v2052, 0.0
        %v2314 = vmax.f32 %v1488, 0.0
        %v2315 = vmax.f32 %v1490, 0.0
        %v2316 = vmax.f32 %v1771, 0.0
        %v2317 = vmax.f32 %v1773, 0.0
        %v2318 = vmax.f32 %v2054, 0.0
        %v2319 = vmax.f32 %v2056, 0.0
        %v2320 = vmax.f32 %v1494, 0.0
        %v2321 = vmax.f32 %v1496, 0.0
        %v2322 = vmax.f32 %v1777, 0.0
        %v2323 = vmax.f32 %v1779, 0.0
        %v2324 = vmax.f32 %v2060, 0.0
        %v2325 = vmax.f32 %v2062, 0.0
        %v2326 = vmax.f32 %v1498, 0.0
        %v2327 = vmax.f32 %v1500, 0.0
        %v2328 = vmax.f32 %v1781, 0.0
        %v2329 = vmax.f32 %v1783, 0.0
        %v2330 = vmax.f32 %v2064, 0.0
        %v2331 = vmax.f32 %v2066, 0.0
        %v2332 = vmax.f32 %v1504, 0.0
        %v2333 = vmax.f32 %v1506, 0.0
        %v2334 = vmax.f32 %v1787, 0.0
        %v2335 = vmax.f32 %v1789, 0.0
        %v2336 = vmax.f32 %v2070, 0.0
        %v2337 = vmax.f32 %v2072, 0.0
        %v2338 = vmax.f32 %v1508, 0.0
        %v2339 = vmax.f32 %v1510, 0.0
        %v2340 = vmax.f32 %v1791, 0.0
        %v2341 = vmax.f32 %v1793, 0.0
        %v2342 = vmax.f32 %v2074, 0.0
        %v2343 = vmax.f32 %v2076, 0.0
        %v2344 = vmax.f32 %v1514, 0.0
        %v2345 = vmax.f32 %v1516, 0.0
        %v2346 = vmax.f32 %v1797, 0.0
        %v2347 = vmax.f32 %v1799, 0.0
        %v2348 = vmax.f32 %v2080, 0.0
        %v2349 = vmax.f32 %v2082, 0.0
        %v2350 = vmax.f32 %v1518, 0.0
        %v2351 = vmax.f32 %v1520, 0.0
        %v2352 = vmax.f32 %v1801, 0.0
        %v2353 = vmax.f32 %v1803, 0.0
        %v2354 = vmax.f32 %v2084, 0.0
        %v2355 = vmax.f32 %v2086, 0.0
        %v2356 = vmax.f32 %v1524, 0.0
        %v2357 = vmax.f32 %v1526, 0.0
        %v2358 = vmax.f32 %v1807, 0.0
        %v2359 = vmax.f32 %v1809, 0.0
        %v2360 = vmax.f32 %v2090, 0.0
        %v2361 = vmax.f32 %v2092, 0.0
        %v2362 = vmax.f32 %v1528, 0.0
        %v2363 = vmax.f32 %v1530, 0.0
        %v2364 = vmax.f32 %v1811, 0.0
        %v2365 = vmax.f32 %v1813, 0.0
        %v2366 = vmax.f32 %v2094, 0.0
        %v2367 = vmax.f32 %v2096, 0.0
        %v2368 = vmax.f32 %v1534, 0.0
        %v2369 = vmax.f32 %v1536, 0.0
        %v2370 = vmax.f32 %v1817, 0.0
        %v2371 = vmax.f32 %v1819, 0.0
        %v2372 = vmax.f32 %v2100, 0.0
        %v2373 = vmax.f32 %v2102, 0.0
        %v2374 = vmax.f32 %v1538, 0.0
        %v2375 = vmax.f32 %v1540, 0.0
        %v2376 = vmax.f32 %v1821, 0.0
        %v2377 = vmax.f32 %v1823, 0.0
        %v2378 = vmax.f32 %v2104, 0.0
        %v2379 = vmax.f32 %v2106, 0.0
        %v2380 = vmax.f32 %v1544, 0.0
        %v2381 = vmax.f32 %v1546, 0.0
        %v2382 = vmax.f32 %v1827, 0.0
        %v2383 = vmax.f32 %v1829, 0.0
        %v2384 = vmax.f32 %v2110, 0.0
        %v2385 = vmax.f32 %v2112, 0.0
        %v2386 = vmax.f32 %v1548, 0.0
        %v2387 = vmax.f32 %v1550, 0.0
        %v2388 = vmax.f32 %v1831, 0.0
        %v2389 = vmax.f32 %v1833, 0.0
        %v2390 = vmax.f32 %v2114, 0.0
        %v2391 = vmax.f32 %v2116, 0.0
        %v2392 = vmax.f32 %v1554, 0.0
        %v2393 = vmax.f32 %v1556, 0.0
        %v2394 = vmax.f32 %v1837, 0.0
        %v2395 = vmax.f32 %v1839, 0.0
        %v2396 = vmax.f32 %v2120, 0.0
        %v2397 = vmax.f32 %v2122, 0.0
        %v2398 = vmax.f32 %v1558, 0.0
        %v2399 = vmax.f32 %v1560, 0.0
        %v2400 = vmax.f32 %v1841, 0.0
        %v2401 = vmax.f32 %v1843, 0.0
        %v2402 = vmax.f32 %v2124, 0.0
        %v2403 = vmax.f32 %v2126, 0.0
        %v2404 = vmax.f32 %v1564, 0.0
        %v2405 = vmax.f32 %v1566, 0.0
        %v2406 = vmax.f32 %v1847, 0.0
        %v2407 = vmax.f32 %v1849, 0.0
        %v2408 = vmax.f32 %v2130, 0.0
        %v2409 = vmax.f32 %v2132, 0.0
        %v2410 = vmax.f32 %v1568, 0.0
        %v2411 = vmax.f32 %v1570, 0.0
        %v2412 = vmax.f32 %v1851, 0.0
        %v2413 = vmax.f32 %v1853, 0.0
        %v2414 = vmax.f32 %v2134, 0.0
        %v2415 = vmax.f32 %v2136, 0.0
        %v2416 = vmax.f32 %v1574, 0.0
        %v2417 = vmax.f32 %v1576, 0.0
        %v2418 = vmax.f32 %v1857, 0.0
        %v2419 = vmax.f32 %v1859, 0.0
        %v2420 = vmax.f32 %v2140, 0.0
        %v2421 = vmax.f32 %v2142, 0.0
        %v2422 = vmax.f32 %v1578, 0.0
        %v2423 = vmax.f32 %v1580, 0.0
        %v2424 = vmax.f32 %v1861, 0.0
        %v2425 = vmax.f32 %v1863, 0.0
        %v2426 = vmax.f32 %v2144, 0.0
        %v2427 = vmax.f32 %v2146, 0.0
        %v2428 = vmax.f32 %v1584, 0.0
        %v2429 = vmax.f32 %v1586, 0.0
        %v2430 = vmax.f32 %v1867, 0.0
        %v2431 = vmax.f32 %v1869, 0.0
        %v2432 = vmax.f32 %v2150, 0.0
        %v2433 = vmax.f32 %v2152, 0.0
        %v2434 = vmax.f32 %v1588, 0.0
        %v2435 = vmax.f32 %v1590, 0.0
        %v2436 = vmax.f32 %v1871, 0.0
        %v2437 = vmax.f32 %v1873, 0.0
        %v2438 = vmax.f32 %v2154, 0.0
        %v2439 = vmax.f32 %v2156, 0.0
        %v2440 = vmax.f32 %v1594, 0.0
        %v2441 = vmax.f32 %v1596, 0.0
        %v2442 = vmax.f32 %v1877, 0.0
        %v2443 = vmax.f32 %v1879, 0.0
        %v2444 = vmax.f32 %v2160, 0.0
        %v2445 = vmax.f32 %v2162, 0.0
        %v2446 = vmax.f32 %v1598, 0.0
        %v2447 = vmax.f32 %v1600, 0.0
        %v2448 = vmax.f32 %v1881, 0.0
        %v2449 = vmax.f32 %v1883, 0.0
        %v2450 = vmax.f32 %v2164, 0.0
        %v2451 = vmax.f32 %v2166, 0.0
        %v2452 = vmax.f32 %v1604, 0.0
        %v2453 = vmax.f32 %v1606, 0.0
        %v2454 = vmax.f32 %v1887, 0.0
        %v2455 = vmax.f32 %v1889, 0.0
        %v2456 = vmax.f32 %v2170, 0.0
        %v2457 = vmax.f32 %v2172, 0.0
        %v2458 = vmax.f32 %v1608, 0.0
        %v2459 = vmax.f32 %v1610, 0.0
        %v2460 = vmax.f32 %v1891, 0.0
        %v2461 = vmax.f32 %v1893, 0.0
        %v2462 = vmax.f32 %v2174, 0.0
        %v2463 = vmax.f32 %v2176, 0.0
        %v2464 = vmax.f32 %v1614, 0.0
        %v2465 = vmax.f32 %v1616, 0.0
        %v2466 = vmax.f32 %v1897, 0.0
        %v2467 = vmax.f32 %v1899, 0.0
        %v2468 = vmax.f32 %v2180, 0.0
        %v2469 = vmax.f32 %v2182, 0.0
        %v2470 = vmax.f32 %v1618, 0.0
        %v2471 = vmax.f32 %v1620, 0.0
        %v2472 = vmax.f32 %v1901, 0.0
        %v2473 = vmax.f32 %v1903, 0.0
        %v2474 = vmax.f32 %v2184, 0.0
        %v2475 = vmax.f32 %v2186, 0.0
        %v2476 = vmax.f32 %v1624, 0.0
        %v2477 = vmax.f32 %v1626, 0.0
        %v2478 = vmax.f32 %v1907, 0.0
        %v2479 = vmax.f32 %v1909, 0.0
        %v2480 = vmax.f32 %v2190, 0.0
        %v2481 = vmax.f32 %v2192, 0.0
        %v2482 = vmax.f32 %v1628, 0.0
        %v2483 = vmax.f32 %v1630, 0.0
        %v2484 = vmax.f32 %v1911, 0.0
        %v2485 = vmax.f32 %v1913, 0.0
        %v2486 = vmax.f32 %v2194, 0.0
        %v2487 = vmax.f32 %v2196, 0.0
        %v2488 = vmax.f32 %v1634, 0.0
        %v2489 = vmax.f32 %v1636, 0.0
        %v2490 = vmax.f32 %v1917, 0.0
        %v2491 = vmax.f32 %v1919, 0.0
        %v2492 = vmax.f32 %v2200, 0.0
        %v2493 = vmax.f32 %v2202, 0.0
        %v2494 = vmax.f32 %v1638, 0.0
        %v2495 = vmax.f32 %v1640, 0.0
        %v2496 = vmax.f32 %v1921, 0.0
        %v2497 = vmax.f32 %v1923, 0.0
        %v2498 = vmax.f32 %v2204, 0.0
        %v2499 = vmax.f32 %v2206, 0.0
        %v2500 = vmax.f32 %v1644, 0.0
        %v2501 = vmax.f32 %v1646, 0.0
        %v2502 = vmax.f32 %v1927, 0.0
        %v2503 = vmax.f32 %v1929, 0.0
        %v2504 = vmax.f32 %v2210, 0.0
        %v2505 = vmax.f32 %v2212, 0.0
        %v2506 = vmax.f32 %v1648, 0.0
        %v2507 = vmax.f32 %v1650, 0.0
        %v2508 = vmax.f32 %v1931, 0.0
        %v2509 = vmax.f32 %v1933, 0.0
        %v2510 = vmax.f32 %v2214, 0.0
        %v2511 = vmax.f32 %v2216, 0.0
        %v2512 = vmax.f32 %v1654, 0.0
        %v2513 = vmax.f32 %v1656, 0.0
        %v2514 = vmax.f32 %v1937, 0.0
        %v2515 = vmax.f32 %v1939, 0.0
        %v2516 = vmax.f32 %v2220, 0.0
        %v2517 = vmax.f32 %v2222, 0.0
        %v2518 = vmax.f32 %v1658, 0.0
        %v2519 = vmax.f32 %v1660, 0.0
        %v2520 = vmax.f32 %v1941, 0.0
        %v2521 = vmax.f32 %v1943, 0.0
        %v2522 = vmax.f32 %v2224, 0.0
        %v2523 = vmax.f32 %v2226, 0.0
        %v2524 = vmax.f32 %v1664, 0.0
        %v2525 = vmax.f32 %v1666, 0.0
        %v2526 = vmax.f32 %v1947, 0.0
        %v2527 = vmax.f32 %v1949, 0.0
        %v2528 = vmax.f32 %v2230, 0.0
        %v2529 = vmax.f32 %v2232, 0.0
        %v2530 = vmax.f32 %v1668, 0.0
        %v2531 = vmax.f32 %v1670, 0.0
        %v2532 = vmax.f32 %v1951, 0.0
        %v2533 = vmax.f32 %v1953, 0.0
        %v2534 = vmax.f32 %v2234, 0.0
        %v2535 = vmax.f32 %v2236, 0.0
        %v2536 = vmax.f32 %v1674, 0.0
        %v2537 = vmax.f32 %v1676, 0.0
        %v2538 = vmax.f32 %v1957, 0.0
        %v2539 = vmax.f32 %v1959, 0.0
        %v2540 = vmax.f32 %v2240, 0.0
        %v2541 = vmax.f32 %v2242, 0.0
        %v2542 = vmax.f32 %v1678, 0.0
        %v2543 = vmax.f32 %v1680, 0.0
        %v2544 = vmax.f32 %v1961, 0.0
        %v2545 = vmax.f32 %v1963, 0.0
        %v2546 = vmax.f32 %v2244, 0.0
        %v2547 = vmax.f32 %v2246, 0.0
        %v2548 = vpack.c.bf16 %v2254, %v2248
        %v2549 = vpack.c.bf16 %v2255, %v2249
        %v2550 = vpack.c.bf16 %v2256, %v2250
        %v2551 = vpack.c.bf16 %v2257, %v2251
        %v2552 = vpack.c.bf16 %v2258, %v2252
        %v2553 = vpack.c.bf16 %v2259, %v2253
        %v2554 = vpack.c.bf16 %v2266, %v2260
        %v2555 = vpack.c.bf16 %v2267, %v2261
        %v2556 = vpack.c.bf16 %v2268, %v2262
        %v2557 = vpack.c.bf16 %v2269, %v2263
        %v2558 = vpack.c.bf16 %v2270, %v2264
        %v2559 = vpack.c.bf16 %v2271, %v2265
        %v2560 = vpack.c.bf16 %v2278, %v2272
        %v2561 = vpack.c.bf16 %v2279, %v2273
        %v2562 = vpack.c.bf16 %v2280, %v2274
        %v2563 = vpack.c.bf16 %v2281, %v2275
        %v2564 = vpack.c.bf16 %v2282, %v2276
        %v2565 = vpack.c.bf16 %v2283, %v2277
        %v2566 = vpack.c.bf16 %v2290, %v2284
        %v2567 = vpack.c.bf16 %v2291, %v2285
        %v2568 = vpack.c.bf16 %v2292, %v2286
        %v2569 = vpack.c.bf16 %v2293, %v2287
        %v2570 = vpack.c.bf16 %v2294, %v2288
        %v2571 = vpack.c.bf16 %v2295, %v2289
        %v2572 = vpack.c.bf16 %v2302, %v2296
        %v2573 = vpack.c.bf16 %v2303, %v2297
        %v2574 = vpack.c.bf16 %v2304, %v2298
        %v2575 = vpack.c.bf16 %v2305, %v2299
        %v2576 = vpack.c.bf16 %v2306, %v2300
        %v2577 = vpack.c.bf16 %v2307, %v2301
        %v2578 = vpack.c.bf16 %v2314, %v2308
        %v2579 = vpack.c.bf16 %v2315, %v2309
        %v2580 = vpack.c.bf16 %v2316, %v2310
        %v2581 = vpack.c.bf16 %v2317, %v2311
        %v2582 = vpack.c.bf16 %v2318, %v2312
        %v2583 = vpack.c.bf16 %v2319, %v2313
        %v2584 = vpack.c.bf16 %v2326, %v2320
        %v2585 = vpack.c.bf16 %v2327, %v2321
        %v2586 = vpack.c.bf16 %v2328, %v2322
        %v2587 = vpack.c.bf16 %v2329, %v2323
        %v2588 = vpack.c.bf16 %v2330, %v2324
        %v2589 = vpack.c.bf16 %v2331, %v2325
        %v2590 = vpack.c.bf16 %v2338, %v2332
        %v2591 = vpack.c.bf16 %v2339, %v2333
        %v2592 = vpack.c.bf16 %v2340, %v2334
        %v2593 = vpack.c.bf16 %v2341, %v2335
        %v2594 = vpack.c.bf16 %v2342, %v2336
        %v2595 = vpack.c.bf16 %v2343, %v2337
        %v2596 = vpack.c.bf16 %v2350, %v2344
        %v2597 = vpack.c.bf16 %v2351, %v2345
        %v2598 = vpack.c.bf16 %v2352, %v2346
        %v2599 = vpack.c.bf16 %v2353, %v2347
        %v2600 = vpack.c.bf16 %v2354, %v2348
        %v2601 = vpack.c.bf16 %v2355, %v2349
        %v2602 = vpack.c.bf16 %v2362, %v2356
        %v2603 = vpack.c.bf16 %v2363, %v2357
        %v2604 = vpack.c.bf16 %v2364, %v2358
        %v2605 = vpack.c.bf16 %v2365, %v2359
        %v2606 = vpack.c.bf16 %v2366, %v2360
        %v2607 = vpack.c.bf16 %v2367, %v2361
        %v2608 = vpack.c.bf16 %v2374, %v2368
        %v2609 = vpack.c.bf16 %v2375, %v2369
        %v2610 = vpack.c.bf16 %v2376, %v2370
        %v2611 = vpack.c.bf16 %v2377, %v2371
        %v2612 = vpack.c.bf16 %v2378, %v2372
        %v2613 = vpack.c.bf16 %v2379, %v2373
        %v2614 = vpack.c.bf16 %v2386, %v2380
        %v2615 = vpack.c.bf16 %v2387, %v2381
        %v2616 = vpack.c.bf16 %v2388, %v2382
        %v2617 = vpack.c.bf16 %v2389, %v2383
        %v2618 = vpack.c.bf16 %v2390, %v2384
        %v2619 = vpack.c.bf16 %v2391, %v2385
        %v2620 = vpack.c.bf16 %v2398, %v2392
        %v2621 = vpack.c.bf16 %v2399, %v2393
        %v2622 = vpack.c.bf16 %v2400, %v2394
        %v2623 = vpack.c.bf16 %v2401, %v2395
        %v2624 = vpack.c.bf16 %v2402, %v2396
        %v2625 = vpack.c.bf16 %v2403, %v2397
        %v2626 = vpack.c.bf16 %v2410, %v2404
        %v2627 = vpack.c.bf16 %v2411, %v2405
        %v2628 = vpack.c.bf16 %v2412, %v2406
        %v2629 = vpack.c.bf16 %v2413, %v2407
        %v2630 = vpack.c.bf16 %v2414, %v2408
        %v2631 = vpack.c.bf16 %v2415, %v2409
        %v2632 = vpack.c.bf16 %v2422, %v2416
        %v2633 = vpack.c.bf16 %v2423, %v2417
        %v2634 = vpack.c.bf16 %v2424, %v2418
        %v2635 = vpack.c.bf16 %v2425, %v2419
        %v2636 = vpack.c.bf16 %v2426, %v2420
        %v2637 = vpack.c.bf16 %v2427, %v2421
        %v2638 = vpack.c.bf16 %v2434, %v2428
        %v2639 = vpack.c.bf16 %v2435, %v2429
        %v2640 = vpack.c.bf16 %v2436, %v2430
        %v2641 = vpack.c.bf16 %v2437, %v2431
        %v2642 = vpack.c.bf16 %v2438, %v2432
        %v2643 = vpack.c.bf16 %v2439, %v2433
        %v2644 = vpack.c.bf16 %v2446, %v2440
        %v2645 = vpack.c.bf16 %v2447, %v2441
        %v2646 = vpack.c.bf16 %v2448, %v2442
        %v2647 = vpack.c.bf16 %v2449, %v2443
        %v2648 = vpack.c.bf16 %v2450, %v2444
        %v2649 = vpack.c.bf16 %v2451, %v2445
        %v2650 = vpack.c.bf16 %v2458, %v2452
        %v2651 = vpack.c.bf16 %v2459, %v2453
        %v2652 = vpack.c.bf16 %v2460, %v2454
        %v2653 = vpack.c.bf16 %v2461, %v2455
        %v2654 = vpack.c.bf16 %v2462, %v2456
        %v2655 = vpack.c.bf16 %v2463, %v2457
        %v2656 = vpack.c.bf16 %v2470, %v2464
        %v2657 = vpack.c.bf16 %v2471, %v2465
        %v2658 = vpack.c.bf16 %v2472, %v2466
        %v2659 = vpack.c.bf16 %v2473, %v2467
        %v2660 = vpack.c.bf16 %v2474, %v2468
        %v2661 = vpack.c.bf16 %v2475, %v2469
        %v2662 = vpack.c.bf16 %v2482, %v2476
        %v2663 = vpack.c.bf16 %v2483, %v2477
        %v2664 = vpack.c.bf16 %v2484, %v2478
        %v2665 = vpack.c.bf16 %v2485, %v2479
        %v2666 = vpack.c.bf16 %v2486, %v2480
        %v2667 = vpack.c.bf16 %v2487, %v2481
        %v2668 = vpack.c.bf16 %v2494, %v2488
        %v2669 = vpack.c.bf16 %v2495, %v2489
        %v2670 = vpack.c.bf16 %v2496, %v2490
        %v2671 = vpack.c.bf16 %v2497, %v2491
        %v2672 = vpack.c.bf16 %v2498, %v2492
        %v2673 = vpack.c.bf16 %v2499, %v2493
        %v2674 = vpack.c.bf16 %v2506, %v2500
        %v2675 = vpack.c.bf16 %v2507, %v2501
        %v2676 = vpack.c.bf16 %v2508, %v2502
        %v2677 = vpack.c.bf16 %v2509, %v2503
        %v2678 = vpack.c.bf16 %v2510, %v2504
        %v2679 = vpack.c.bf16 %v2511, %v2505
        %v2680 = vpack.c.bf16 %v2518, %v2512
        %v2681 = vpack.c.bf16 %v2519, %v2513
        %v2682 = vpack.c.bf16 %v2520, %v2514
        %v2683 = vpack.c.bf16 %v2521, %v2515
        %v2684 = vpack.c.bf16 %v2522, %v2516
        %v2685 = vpack.c.bf16 %v2523, %v2517
        %v2686 = vpack.c.bf16 %v2530, %v2524
        %v2687 = vpack.c.bf16 %v2531, %v2525
        %v2688 = vpack.c.bf16 %v2532, %v2526
        %v2689 = vpack.c.bf16 %v2533, %v2527
        %v2690 = vpack.c.bf16 %v2534, %v2528
        %v2691 = vpack.c.bf16 %v2535, %v2529
        %v2692 = vpack.c.bf16 %v2542, %v2536
        %v2693 = vpack.c.bf16 %v2543, %v2537
        %v2694 = vpack.c.bf16 %v2544, %v2538
        %v2695 = vpack.c.bf16 %v2545, %v2539
        %v2696 = vpack.c.bf16 %v2546, %v2540
        %v2697 = vpack.c.bf16 %v2547, %v2541
        %v2698 = vld [vmem:[%s4] sm:$0xff]
        %v2699 = vld [vmem:[%s4 + $0x8] sm:$0xff]
        %v2700 = vld [vmem:[%s4 + $0x10] sm:$0xff]
        %v2701 = vld [vmem:[%s4 + $0x18] sm:$0xff]
        %v2702 = vld [vmem:[%s4 + $0x20] sm:$0xff]
        %v2703 = vld [vmem:[%s4 + $0x28] sm:$0xff]
        %v2704 = vld [vmem:[%s4 + $0x30] sm:$0xff]
        %v2705 = vld [vmem:[%s4 + $0x38] sm:$0xff]
        %v2706 = vld [vmem:[%s4 + $0x40] sm:$0xff]
        %v2707 = vld [vmem:[%s4 + $0x48] sm:$0xff]
        %v2708 = vld [vmem:[%s4 + $0x50] sm:$0xff]
        %v2709 = vld [vmem:[%s4 + $0x58] sm:$0xff]
        %v2710 = vld [vmem:[%s4 + $0x60] sm:$0xff]
        %v2711 = vld [vmem:[%s4 + $0x68] sm:$0xff]
        %v2712 = vld [vmem:[%s4 + $0x70] sm:$0xff]
        %v2713 = vld [vmem:[%s4 + $0x78] sm:$0xff]
        %v2714 = vld [vmem:[%s4 + $0x80] sm:$0xff]
        %v2715 = vld [vmem:[%s4 + $0x88] sm:$0xff]
        %v2716 = vld [vmem:[%s4 + $0x90] sm:$0xff]
        %v2717 = vld [vmem:[%s4 + $0x98] sm:$0xff]
        %v2718 = vld [vmem:[%s4 + $0xa0] sm:$0xff]
        %v2719 = vld [vmem:[%s4 + $0xa8] sm:$0xff]
        %v2720 = vld [vmem:[%s4 + $0xb0] sm:$0xff]
        %v2721 = vld [vmem:[%s4 + $0xb8] sm:$0xff]
        %v2722 = vld [vmem:[%s4 + $0xc0] sm:$0x33]
        %v2723 = vld [vmem:[%s4 + $0xc8] sm:$0x33]
        %v2724 = vld [vmem:[%s5] sm:$0xff]
        %v2725 = vld [vmem:[%s5 + $0x8] sm:$0xff]
        %v2726 = vld [vmem:[%s5 + $0x10] sm:$0xff]
        %v2727 = vld [vmem:[%s5 + $0x18] sm:$0xff]
        %v2728 = vld [vmem:[%s5 + $0x20] sm:$0xff]
        %v2729 = vld [vmem:[%s5 + $0x28] sm:$0xff]
        %v2730 = vld [vmem:[%s5 + $0x30] sm:$0xff]
        %v2731 = vld [vmem:[%s5 + $0x38] sm:$0xff]
        %v2732 = vld [vmem:[%s5 + $0x40] sm:$0xff]
        %v2733 = vld [vmem:[%s5 + $0x48] sm:$0xff]
        %v2734 = vld [vmem:[%s5 + $0x50] sm:$0xff]
        %v2735 = vld [vmem:[%s5 + $0x58] sm:$0xff]
        %v2736 = vld [vmem:[%s5 + $0x60] sm:$0xf]
        %2738 = vset.pattern.permute.xlu0 0
        %2739 = vperm.xlu0 %2738, %v2724
        %v2740 = vpop.permute.xlu0 %2739
        %2743 = vset.pattern.permute.xlu0 0
        %2744 = vperm.xlu0 %2743, %v2725
        %v2745 = vpop.permute.xlu0 %2744
        %2748 = vset.pattern.permute.xlu0 0
        %2749 = vperm.xlu0 %2748, %v2726
        %v2750 = vpop.permute.xlu0 %2749
        %2753 = vset.pattern.permute.xlu0 0
        %2754 = vperm.xlu0 %2753, %v2727
        %v2755 = vpop.permute.xlu0 %2754
        %2758 = vset.pattern.permute.xlu0 0
        %2759 = vperm.xlu0 %2758, %v2728
        %v2760 = vpop.permute.xlu0 %2759
        %2763 = vset.pattern.permute.xlu0 0
        %2764 = vperm.xlu0 %2763, %v2729
        %v2765 = vpop.permute.xlu0 %2764
        %2768 = vset.pattern.permute.xlu0 0
        %2769 = vperm.xlu0 %2768, %v2730
        %v2770 = vpop.permute.xlu0 %2769
        %2773 = vset.pattern.permute.xlu0 0
        %2774 = vperm.xlu0 %2773, %v2731
        %v2775 = vpop.permute.xlu0 %2774
        %2778 = vset.pattern.permute.xlu0 0
        %2779 = vperm.xlu0 %2778, %v2732
        %v2780 = vpop.permute.xlu0 %2779
        %2783 = vset.pattern.permute.xlu0 0
        %2784 = vperm.xlu0 %2783, %v2733
        %v2785 = vpop.permute.xlu0 %2784
        %2788 = vset.pattern.permute.xlu0 0
        %2789 = vperm.xlu0 %2788, %v2734
        %v2790 = vpop.permute.xlu0 %2789
        %2793 = vset.pattern.permute.xlu0 0
        %2794 = vperm.xlu0 %2793, %v2735
        %v2795 = vpop.permute.xlu0 %2794
        %2798 = vset.pattern.permute.xlu0 0
        %2799 = vperm.xlu0 %2798, %v2736
        %v2800 = vpop.permute.xlu0 %2799
        %v2828 = vunpack.c.l.b16 %v2698
        %v2829 = vunpack.c.h.b16 %v2698
        %v2830 = vunpack.c.l.b16 %v2699
        %v2831 = vunpack.c.h.b16 %v2699
        %v2832 = vunpack.c.l.b16 %v2700
        %v2833 = vunpack.c.h.b16 %v2700
        %v2834 = vunpack.c.l.b16 %v2701
        %v2835 = vunpack.c.h.b16 %v2701
        %v2836 = vunpack.c.l.b16 %v2702
        %v2837 = vunpack.c.h.b16 %v2702
        %v2838 = vunpack.c.l.b16 %v2703
        %v2839 = vunpack.c.h.b16 %v2703
        %v2840 = vunpack.c.l.b16 %v2704
        %v2841 = vunpack.c.h.b16 %v2704
        %v2842 = vunpack.c.l.b16 %v2705
        %v2843 = vunpack.c.h.b16 %v2705
        %v2844 = vunpack.c.l.b16 %v2706
        %v2845 = vunpack.c.h.b16 %v2706
        %v2846 = vunpack.c.l.b16 %v2707
        %v2847 = vunpack.c.h.b16 %v2707
        %v2848 = vunpack.c.l.b16 %v2708
        %v2849 = vunpack.c.h.b16 %v2708
        %v2850 = vunpack.c.l.b16 %v2709
        %v2851 = vunpack.c.h.b16 %v2709
        %v2852 = vunpack.c.l.b16 %v2710
        %v2853 = vunpack.c.h.b16 %v2710
        %v2854 = vunpack.c.l.b16 %v2711
        %v2855 = vunpack.c.h.b16 %v2711
        %v2856 = vunpack.c.l.b16 %v2712
        %v2857 = vunpack.c.h.b16 %v2712
        %v2858 = vunpack.c.l.b16 %v2713
        %v2859 = vunpack.c.h.b16 %v2713
        %v2860 = vunpack.c.l.b16 %v2714
        %v2861 = vunpack.c.h.b16 %v2714
        %v2862 = vunpack.c.l.b16 %v2715
        %v2863 = vunpack.c.h.b16 %v2715
        %v2864 = vunpack.c.l.b16 %v2716
        %v2865 = vunpack.c.h.b16 %v2716
        %v2866 = vunpack.c.l.b16 %v2717
        %v2867 = vunpack.c.h.b16 %v2717
        %v2868 = vunpack.c.l.b16 %v2718
        %v2869 = vunpack.c.h.b16 %v2718
        %v2870 = vunpack.c.l.b16 %v2719
        %v2871 = vunpack.c.h.b16 %v2719
        %v2872 = vunpack.c.l.b16 %v2720
        %v2873 = vunpack.c.h.b16 %v2720
        %v2874 = vunpack.c.l.b16 %v2721
        %v2875 = vunpack.c.h.b16 %v2721
        %v2876 = vunpack.c.l.b16 %v2722
        %v2877 = vunpack.c.h.b16 %v2722
        %v2878 = vunpack.c.l.b16 %v2723
        %v2879 = vunpack.c.h.b16 %v2723
        %v2880 = vpack.c.b16 %v2832, %v2828
        %v2881 = vpack.c.b16 %v2833, %v2829
        %v2882 = vpack.c.b16 %v2834, %v2830
        %v2883 = vpack.c.b16 %v2835, %v2831
        %v2884 = vpack.c.b16 %v2840, %v2836
        %v2885 = vpack.c.b16 %v2841, %v2837
        %v2886 = vpack.c.b16 %v2842, %v2838
        %v2887 = vpack.c.b16 %v2843, %v2839
        %v2888 = vpack.c.b16 %v2848, %v2844
        %v2889 = vpack.c.b16 %v2849, %v2845
        %v2890 = vpack.c.b16 %v2850, %v2846
        %v2891 = vpack.c.b16 %v2851, %v2847
        %v2892 = vpack.c.b16 %v2856, %v2852
        %v2893 = vpack.c.b16 %v2857, %v2853
        %v2894 = vpack.c.b16 %v2858, %v2854
        %v2895 = vpack.c.b16 %v2859, %v2855
        %v2896 = vpack.c.b16 %v2864, %v2860
        %v2897 = vpack.c.b16 %v2865, %v2861
        %v2898 = vpack.c.b16 %v2866, %v2862
        %v2899 = vpack.c.b16 %v2867, %v2863
        %v2900 = vpack.c.b16 %v2872, %v2868
        %v2901 = vpack.c.b16 %v2873, %v2869
        %v2902 = vpack.c.b16 %v2874, %v2870
        %v2903 = vpack.c.b16 %v2875, %v2871
        %v2904 = vpack.c.b16 %v2876, %v2876
        %v2905 = vpack.c.b16 %v2877, %v2877
        %v2906 = vpack.c.b16 %v2878, %v2878
        %v2907 = vpack.c.b16 %v2879, %v2879
        %vm2929 = vcmask 130048
        %v2931 = vsel %vm2929, %v2883, 0
        %v2934 = vsel %vm2929, %v2887, 0
        %v2937 = vsel %vm2929, %v2891, 0
        %v2940 = vsel %vm2929, %v2895, 0
        %v2943 = vsel %vm2929, %v2899, 0
        %v2946 = vsel %vm2929, %v2903, 0
        %v2949 = vsel %vm2929, %v2907, 0
        %2951 = vmatprep.subr.bf16.mxu0 %v2591
        %2952 = vmatpush1.bf16.msra.mxu0 %v2590
        %2953 = vmatprep.subr.bf16.mxu0 %v2585
        %2954 = vmatpush1.bf16.msra.mxu0 %v2584
        %2955 = vmatprep.subr.bf16.mxu0 %v2579
        %2956 = vmatpush1.bf16.msra.mxu0 %v2578
        %2957 = vmatprep.subr.bf16.mxu0 %v2573
        %2958 = vmatpush1.bf16.msra.mxu0 %v2572
        %2959 = vmatprep.subr.bf16.mxu0 %v2567
        %2960 = vmatpush1.bf16.msra.mxu0 %v2566
        %2961 = vmatprep.subr.bf16.mxu0 %v2561
        %2962 = vmatpush1.bf16.msra.mxu0 %v2560
        %2963 = vmatprep.subr.bf16.mxu0 %v2555
        %2964 = vmatpush1.bf16.msra.mxu0 %v2554
        %2965 = vmatprep.subr.bf16.mxu0 %v2549
        %2966 = vmatpush1.bf16.msra.mxu0 %v2548
        %2967 = vmatprep.subr.bf16.mxu0 %v2639
        %2968 = vmatpush2.bf16.msra.mxu0 %v2638
        %2969 = vmatprep.subr.bf16.mxu0 %v2633
        %2970 = vmatpush2.bf16.msra.mxu0 %v2632
        %2971 = vmatprep.subr.bf16.mxu0 %v2627
        %2972 = vmatpush2.bf16.msra.mxu0 %v2626
        %2973 = vmatprep.subr.bf16.mxu0 %v2621
        %2974 = vmatpush2.bf16.msra.mxu0 %v2620
        %2975 = vmatprep.subr.bf16.mxu0 %v2615
        %2976 = vmatpush2.bf16.msra.mxu0 %v2614
        %2977 = vmatprep.subr.bf16.mxu0 %v2609
        %2978 = vmatpush2.bf16.msra.mxu0 %v2608
        %2979 = vmatprep.subr.bf16.mxu0 %v2603
        %2980 = vmatpush2.bf16.msra.mxu0 %v2602
        %2981 = vmatprep.subr.bf16.mxu0 %v2597
        %2982 = vmatpush2.bf16.msra.mxu0 %v2596
        %2983 = vmatprep.mubr.bf16.mxu0 %v2881
        %2984 = vmatmul.mubr.bf16.gmra.mxu0 %v2880
        %v2985 = vpop.f32.mrf.mxu0
        %v2986 = vadd.f32 %v2740, %v2985
        %v2987 = vpop.f32.mrf.mxu0
        %v2988 = vadd.f32 %v2740, %v2987
        %v2989 = vpop.f32.mrf.mxu0
        %v2990 = vadd.f32 %v2745, %v2989
        %v2991 = vpop.f32.mrf.mxu0
        %v2992 = vadd.f32 %v2745, %v2991
        %2993 = vmatprep.mubr.bf16.mxu0 %v2885
        %2994 = vmatmul.mubr.bf16.gmra.mxu0 %v2884
        %v2995 = vpop.f32.mrf.mxu0
        %v2996 = vadd.f32 %v2750, %v2995
        %v2997 = vpop.f32.mrf.mxu0
        %v2998 = vadd.f32 %v2750, %v2997
        %v2999 = vpop.f32.mrf.mxu0
        %v3000 = vadd.f32 %v2755, %v2999
        %v3001 = vpop.f32.mrf.mxu0
        %v3002 = vadd.f32 %v2755, %v3001
        %3003 = vmatprep.mubr.bf16.mxu0 %v2889
        %3004 = vmatmul.mubr.bf16.gmra.mxu0 %v2888
        %v3005 = vpop.f32.mrf.mxu0
        %v3006 = vadd.f32 %v2760, %v3005
        %v3007 = vpop.f32.mrf.mxu0
        %v3008 = vadd.f32 %v2760, %v3007
        %v3009 = vpop.f32.mrf.mxu0
        %v3010 = vadd.f32 %v2765, %v3009
        %v3011 = vpop.f32.mrf.mxu0
        %v3012 = vadd.f32 %v2765, %v3011
        %3013 = vmatprep.mubr.bf16.mxu0 %v2893
        %3014 = vmatmul.mubr.bf16.gmra.mxu0 %v2892
        %v3015 = vpop.f32.mrf.mxu0
        %v3016 = vadd.f32 %v2770, %v3015
        %v3017 = vpop.f32.mrf.mxu0
        %v3018 = vadd.f32 %v2770, %v3017
        %v3019 = vpop.f32.mrf.mxu0
        %v3020 = vadd.f32 %v2775, %v3019
        %v3021 = vpop.f32.mrf.mxu0
        %v3022 = vadd.f32 %v2775, %v3021
        %3023 = vmatprep.mubr.bf16.mxu0 %v2897
        %3024 = vmatmul.mubr.bf16.gmra.mxu0 %v2896
        %v3025 = vpop.f32.mrf.mxu0
        %v3026 = vadd.f32 %v2780, %v3025
        %v3027 = vpop.f32.mrf.mxu0
        %v3028 = vadd.f32 %v2780, %v3027
        %v3029 = vpop.f32.mrf.mxu0
        %v3030 = vadd.f32 %v2785, %v3029
        %v3031 = vpop.f32.mrf.mxu0
        %v3032 = vadd.f32 %v2785, %v3031
        %3033 = vmatprep.mubr.bf16.mxu0 %v2901
        %3034 = vmatmul.mubr.bf16.gmra.mxu0 %v2900
        %v3035 = vpop.f32.mrf.mxu0
        %v3036 = vadd.f32 %v2790, %v3035
        %v3037 = vpop.f32.mrf.mxu0
        %v3038 = vadd.f32 %v2790, %v3037
        %v3039 = vpop.f32.mrf.mxu0
        %v3040 = vadd.f32 %v2795, %v3039
        %v3041 = vpop.f32.mrf.mxu0
        %v3042 = vadd.f32 %v2795, %v3041
        %3043 = vmatprep.mubr.bf16.mxu0 %v2905
        %3044 = vmatmul.mubr.bf16.gmra.mxu0 %v2904
        %v3045 = vpop.f32.mrf.mxu0
        %v3046 = vadd.f32 %v2800, %v3045
        %v3047 = vpop.f32.mrf.mxu0
        %v3048 = vadd.f32 %v2800, %v3047
        %v3049 = vpop.f32.mrf.mxu0
        %v3050 = vpop.f32.mrf.mxu0
        %3051 = vdwg.mxu0
        %3052 = vmatprep.subr.bf16.mxu0 %v2687
        %3053 = vmatpush1.bf16.msra.mxu0 %v2686
        %3054 = vmatprep.subr.bf16.mxu0 %v2681
        %3055 = vmatpush1.bf16.msra.mxu0 %v2680
        %3056 = vmatprep.subr.bf16.mxu0 %v2675
        %3057 = vmatpush1.bf16.msra.mxu0 %v2674
        %3058 = vmatprep.subr.bf16.mxu0 %v2669
        %3059 = vmatpush1.bf16.msra.mxu0 %v2668
        %3060 = vmatprep.subr.bf16.mxu0 %v2663
        %3061 = vmatpush1.bf16.msra.mxu0 %v2662
        %3062 = vmatprep.subr.bf16.mxu0 %v2657
        %3063 = vmatpush1.bf16.msra.mxu0 %v2656
        %3064 = vmatprep.subr.bf16.mxu0 %v2651
        %3065 = vmatpush1.bf16.msra.mxu0 %v2650
        %3066 = vmatprep.subr.bf16.mxu0 %v2645
        %3067 = vmatpush1.bf16.msra.mxu0 %v2644
        %3068 = vmatprep.subr.bf16.mxu0 0
        %3069 = vmatpush2.bf16.msra.mxu0 0
        %3070 = vmatprep.subr.bf16.mxu0 0
        %3071 = vmatpush2.bf16.msra.mxu0 0
        %3072 = vmatprep.subr.bf16.mxu0 0
        %3073 = vmatpush2.bf16.msra.mxu0 0
        %3074 = vmatprep.subr.bf16.mxu0 0
        %3075 = vmatpush2.bf16.msra.mxu0 0
        %3076 = vmatprep.subr.bf16.mxu0 0
        %3077 = vmatpush2.bf16.msra.mxu0 0
        %3078 = vmatprep.subr.bf16.mxu0 0
        %3079 = vmatpush2.bf16.msra.mxu0 0
        %3080 = vmatprep.subr.bf16.mxu0 0
        %3081 = vmatpush2.bf16.msra.mxu0 0
        %3082 = vmatprep.subr.bf16.mxu0 %v2693
        %3083 = vmatpush2.bf16.msra.mxu0 %v2692
        %3084 = vmatprep.mubr.bf16.mxu0 %v2931
        %3085 = vmatmul.mubr.bf16.gmra.mxu0 %v2882
        %v3086 = vpop.f32.mrf.mxu0
        %v3087 = vadd.f32 %v2986, %v3086
        %v3088 = vpop.f32.mrf.mxu0
        %v3089 = vadd.f32 %v2988, %v3088
        %v3090 = vpop.f32.mrf.mxu0
        %v3091 = vadd.f32 %v2990, %v3090
        %v3092 = vpop.f32.mrf.mxu0
        %v3093 = vadd.f32 %v2992, %v3092
        %3094 = vmatprep.mubr.bf16.mxu0 %v2934
        %3095 = vmatmul.mubr.bf16.gmra.mxu0 %v2886
        %v3096 = vpop.f32.mrf.mxu0
        %v3097 = vadd.f32 %v2996, %v3096
        %v3098 = vpop.f32.mrf.mxu0
        %v3099 = vadd.f32 %v2998, %v3098
        %v3100 = vpop.f32.mrf.mxu0
        %v3101 = vadd.f32 %v3000, %v3100
        %v3102 = vpop.f32.mrf.mxu0
        %v3103 = vadd.f32 %v3002, %v3102
        %3104 = vmatprep.mubr.bf16.mxu0 %v2937
        %3105 = vmatmul.mubr.bf16.gmra.mxu0 %v2890
        %v3106 = vpop.f32.mrf.mxu0
        %v3107 = vadd.f32 %v3006, %v3106
        %v3108 = vpop.f32.mrf.mxu0
        %v3109 = vadd.f32 %v3008, %v3108
        %v3110 = vpop.f32.mrf.mxu0
        %v3111 = vadd.f32 %v3010, %v3110
        %v3112 = vpop.f32.mrf.mxu0
        %v3113 = vadd.f32 %v3012, %v3112
        %3114 = vmatprep.mubr.bf16.mxu0 %v2940
        %3115 = vmatmul.mubr.bf16.gmra.mxu0 %v2894
        %v3116 = vpop.f32.mrf.mxu0
        %v3117 = vadd.f32 %v3016, %v3116
        %v3118 = vpop.f32.mrf.mxu0
        %v3119 = vadd.f32 %v3018, %v3118
        %v3120 = vpop.f32.mrf.mxu0
        %v3121 = vadd.f32 %v3020, %v3120
        %v3122 = vpop.f32.mrf.mxu0
        %v3123 = vadd.f32 %v3022, %v3122
        %3124 = vmatprep.mubr.bf16.mxu0 %v2943
        %3125 = vmatmul.mubr.bf16.gmra.mxu0 %v2898
        %v3126 = vpop.f32.mrf.mxu0
        %v3127 = vadd.f32 %v3026, %v3126
        %v3128 = vpop.f32.mrf.mxu0
        %v3129 = vadd.f32 %v3028, %v3128
        %v3130 = vpop.f32.mrf.mxu0
        %v3131 = vadd.f32 %v3030, %v3130
        %v3132 = vpop.f32.mrf.mxu0
        %v3133 = vadd.f32 %v3032, %v3132
        %3134 = vmatprep.mubr.bf16.mxu0 %v2946
        %3135 = vmatmul.mubr.bf16.gmra.mxu0 %v2902
        %v3136 = vpop.f32.mrf.mxu0
        %v3137 = vadd.f32 %v3036, %v3136
        %v3138 = vpop.f32.mrf.mxu0
        %v3139 = vadd.f32 %v3038, %v3138
        %v3140 = vpop.f32.mrf.mxu0
        %v3141 = vadd.f32 %v3040, %v3140
        %v3142 = vpop.f32.mrf.mxu0
        %v3143 = vadd.f32 %v3042, %v3142
        %3144 = vmatprep.mubr.bf16.mxu0 %v2949
        %3145 = vmatmul.mubr.bf16.gmra.mxu0 %v2906
        %v3146 = vpop.f32.mrf.mxu0
        %v3147 = vadd.f32 %v3046, %v3146
        %v3148 = vpop.f32.mrf.mxu0
        %v3149 = vadd.f32 %v3048, %v3148
        %v3150 = vpop.f32.mrf.mxu0
        %v3151 = vpop.f32.mrf.mxu0
        %3152 = vdwg.mxu0
        %3153 = vmatprep.subr.bf16.mxu0 %v2593
        %3154 = vmatpush1.bf16.msra.mxu0 %v2592
        %3155 = vmatprep.subr.bf16.mxu0 %v2587
        %3156 = vmatpush1.bf16.msra.mxu0 %v2586
        %3157 = vmatprep.subr.bf16.mxu0 %v2581
        %3158 = vmatpush1.bf16.msra.mxu0 %v2580
        %3159 = vmatprep.subr.bf16.mxu0 %v2575
        %3160 = vmatpush1.bf16.msra.mxu0 %v2574
        %3161 = vmatprep.subr.bf16.mxu0 %v2569
        %3162 = vmatpush1.bf16.msra.mxu0 %v2568
        %3163 = vmatprep.subr.bf16.mxu0 %v2563
        %3164 = vmatpush1.bf16.msra.mxu0 %v2562
        %3165 = vmatprep.subr.bf16.mxu0 %v2557
        %3166 = vmatpush1.bf16.msra.mxu0 %v2556
        %3167 = vmatprep.subr.bf16.mxu0 %v2551
        %3168 = vmatpush1.bf16.msra.mxu0 %v2550
        %3169 = vmatprep.subr.bf16.mxu0 %v2641
        %3170 = vmatpush2.bf16.msra.mxu0 %v2640
        %3171 = vmatprep.subr.bf16.mxu0 %v2635
        %3172 = vmatpush2.bf16.msra.mxu0 %v2634
        %3173 = vmatprep.subr.bf16.mxu0 %v2629
        %3174 = vmatpush2.bf16.msra.mxu0 %v2628
        %3175 = vmatprep.subr.bf16.mxu0 %v2623
        %3176 = vmatpush2.bf16.msra.mxu0 %v2622
        %3177 = vmatprep.subr.bf16.mxu0 %v2617
        %3178 = vmatpush2.bf16.msra.mxu0 %v2616
        %3179 = vmatprep.subr.bf16.mxu0 %v2611
        %3180 = vmatpush2.bf16.msra.mxu0 %v2610
        %3181 = vmatprep.subr.bf16.mxu0 %v2605
        %3182 = vmatpush2.bf16.msra.mxu0 %v2604
        %3183 = vmatprep.subr.bf16.mxu0 %v2599
        %3184 = vmatpush2.bf16.msra.mxu0 %v2598
        %3185 = vmatprep.mubr.bf16.mxu0 %v2881
        %3186 = vmatmul.mubr.bf16.gmra.mxu0 %v2880
        %v3187 = vpop.f32.mrf.mxu0
        %v3188 = vadd.f32 %v2740, %v3187
        %v3189 = vpop.f32.mrf.mxu0
        %v3190 = vadd.f32 %v2740, %v3189
        %v3191 = vpop.f32.mrf.mxu0
        %v3192 = vadd.f32 %v2745, %v3191
        %v3193 = vpop.f32.mrf.mxu0
        %v3194 = vadd.f32 %v2745, %v3193
        %3195 = vmatprep.mubr.bf16.mxu0 %v2885
        %3196 = vmatmul.mubr.bf16.gmra.mxu0 %v2884
        %v3197 = vpop.f32.mrf.mxu0
        %v3198 = vadd.f32 %v2750, %v3197
        %v3199 = vpop.f32.mrf.mxu0
        %v3200 = vadd.f32 %v2750, %v3199
        %v3201 = vpop.f32.mrf.mxu0
        %v3202 = vadd.f32 %v2755, %v3201
        %v3203 = vpop.f32.mrf.mxu0
        %v3204 = vadd.f32 %v2755, %v3203
        %3205 = vmatprep.mubr.bf16.mxu0 %v2889
        %3206 = vmatmul.mubr.bf16.gmra.mxu0 %v2888
        %v3207 = vpop.f32.mrf.mxu0
        %v3208 = vadd.f32 %v2760, %v3207
        %v3209 = vpop.f32.mrf.mxu0
        %v3210 = vadd.f32 %v2760, %v3209
        %v3211 = vpop.f32.mrf.mxu0
        %v3212 = vadd.f32 %v2765, %v3211
        %v3213 = vpop.f32.mrf.mxu0
        %v3214 = vadd.f32 %v2765, %v3213
        %3215 = vmatprep.mubr.bf16.mxu0 %v2893
        %3216 = vmatmul.mubr.bf16.gmra.mxu0 %v2892
        %v3217 = vpop.f32.mrf.mxu0
        %v3218 = vadd.f32 %v2770, %v3217
        %v3219 = vpop.f32.mrf.mxu0
        %v3220 = vadd.f32 %v2770, %v3219
        %v3221 = vpop.f32.mrf.mxu0
        %v3222 = vadd.f32 %v2775, %v3221
        %v3223 = vpop.f32.mrf.mxu0
        %v3224 = vadd.f32 %v2775, %v3223
        %3225 = vmatprep.mubr.bf16.mxu0 %v2897
        %3226 = vmatmul.mubr.bf16.gmra.mxu0 %v2896
        %v3227 = vpop.f32.mrf.mxu0
        %v3228 = vadd.f32 %v2780, %v3227
        %v3229 = vpop.f32.mrf.mxu0
        %v3230 = vadd.f32 %v2780, %v3229
        %v3231 = vpop.f32.mrf.mxu0
        %v3232 = vadd.f32 %v2785, %v3231
        %v3233 = vpop.f32.mrf.mxu0
        %v3234 = vadd.f32 %v2785, %v3233
        %3235 = vmatprep.mubr.bf16.mxu0 %v2901
        %3236 = vmatmul.mubr.bf16.gmra.mxu0 %v2900
        %v3237 = vpop.f32.mrf.mxu0
        %v3238 = vadd.f32 %v2790, %v3237
        %v3239 = vpop.f32.mrf.mxu0
        %v3240 = vadd.f32 %v2790, %v3239
        %v3241 = vpop.f32.mrf.mxu0
        %v3242 = vadd.f32 %v2795, %v3241
        %v3243 = vpop.f32.mrf.mxu0
        %v3244 = vadd.f32 %v2795, %v3243
        %3245 = vmatprep.mubr.bf16.mxu0 %v2905
        %3246 = vmatmul.mubr.bf16.gmra.mxu0 %v2904
        %v3247 = vpop.f32.mrf.mxu0
        %v3248 = vadd.f32 %v2800, %v3247
        %v3249 = vpop.f32.mrf.mxu0
        %v3250 = vadd.f32 %v2800, %v3249
        %v3251 = vpop.f32.mrf.mxu0
        %v3252 = vpop.f32.mrf.mxu0
        %3253 = vdwg.mxu0
        %3254 = vmatprep.subr.bf16.mxu0 %v2689
        %3255 = vmatpush1.bf16.msra.mxu0 %v2688
        %3256 = vmatprep.subr.bf16.mxu0 %v2683
        %3257 = vmatpush1.bf16.msra.mxu0 %v2682
        %3258 = vmatprep.subr.bf16.mxu0 %v2677
        %3259 = vmatpush1.bf16.msra.mxu0 %v2676
        %3260 = vmatprep.subr.bf16.mxu0 %v2671
        %3261 = vmatpush1.bf16.msra.mxu0 %v2670
        %3262 = vmatprep.subr.bf16.mxu0 %v2665
        %3263 = vmatpush1.bf16.msra.mxu0 %v2664
        %3264 = vmatprep.subr.bf16.mxu0 %v2659
        %3265 = vmatpush1.bf16.msra.mxu0 %v2658
        %3266 = vmatprep.subr.bf16.mxu0 %v2653
        %3267 = vmatpush1.bf16.msra.mxu0 %v2652
        %3268 = vmatprep.subr.bf16.mxu0 %v2647
        %3269 = vmatpush1.bf16.msra.mxu0 %v2646
        %3270 = vmatprep.subr.bf16.mxu0 0
        %3271 = vmatpush2.bf16.msra.mxu0 0
        %3272 = vmatprep.subr.bf16.mxu0 0
        %3273 = vmatpush2.bf16.msra.mxu0 0
        %3274 = vmatprep.subr.bf16.mxu0 0
        %3275 = vmatpush2.bf16.msra.mxu0 0
        %3276 = vmatprep.subr.bf16.mxu0 0
        %3277 = vmatpush2.bf16.msra.mxu0 0
        %3278 = vmatprep.subr.bf16.mxu0 0
        %3279 = vmatpush2.bf16.msra.mxu0 0
        %3280 = vmatprep.subr.bf16.mxu0 0
        %3281 = vmatpush2.bf16.msra.mxu0 0
        %3282 = vmatprep.subr.bf16.mxu0 0
        %3283 = vmatpush2.bf16.msra.mxu0 0
        %3284 = vmatprep.subr.bf16.mxu0 %v2695
        %3285 = vmatpush2.bf16.msra.mxu0 %v2694
        %3286 = vmatprep.mubr.bf16.mxu0 %v2931
        %3287 = vmatmul.mubr.bf16.gmra.mxu0 %v2882
        %v3288 = vpop.f32.mrf.mxu0
        %v3289 = vadd.f32 %v3188, %v3288
        %v3290 = vpop.f32.mrf.mxu0
        %v3291 = vadd.f32 %v3190, %v3290
        %v3292 = vpop.f32.mrf.mxu0
        %v3293 = vadd.f32 %v3192, %v3292
        %v3294 = vpop.f32.mrf.mxu0
        %v3295 = vadd.f32 %v3194, %v3294
        %3296 = vmatprep.mubr.bf16.mxu0 %v2934
        %3297 = vmatmul.mubr.bf16.gmra.mxu0 %v2886
        %v3298 = vpop.f32.mrf.mxu0
        %v3299 = vadd.f32 %v3198, %v3298
        %v3300 = vpop.f32.mrf.mxu0
        %v3301 = vadd.f32 %v3200, %v3300
        %v3302 = vpop.f32.mrf.mxu0
        %v3303 = vadd.f32 %v3202, %v3302
        %v3304 = vpop.f32.mrf.mxu0
        %v3305 = vadd.f32 %v3204, %v3304
        %3306 = vmatprep.mubr.bf16.mxu0 %v2937
        %3307 = vmatmul.mubr.bf16.gmra.mxu0 %v2890
        %v3308 = vpop.f32.mrf.mxu0
        %v3309 = vadd.f32 %v3208, %v3308
        %v3310 = vpop.f32.mrf.mxu0
        %v3311 = vadd.f32 %v3210, %v3310
        %v3312 = vpop.f32.mrf.mxu0
        %v3313 = vadd.f32 %v3212, %v3312
        %v3314 = vpop.f32.mrf.mxu0
        %v3315 = vadd.f32 %v3214, %v3314
        %3316 = vmatprep.mubr.bf16.mxu0 %v2940
        %3317 = vmatmul.mubr.bf16.gmra.mxu0 %v2894
        %v3318 = vpop.f32.mrf.mxu0
        %v3319 = vadd.f32 %v3218, %v3318
        %v3320 = vpop.f32.mrf.mxu0
        %v3321 = vadd.f32 %v3220, %v3320
        %v3322 = vpop.f32.mrf.mxu0
        %v3323 = vadd.f32 %v3222, %v3322
        %v3324 = vpop.f32.mrf.mxu0
        %v3325 = vadd.f32 %v3224, %v3324
        %3326 = vmatprep.mubr.bf16.mxu0 %v2943
        %3327 = vmatmul.mubr.bf16.gmra.mxu0 %v2898
        %v3328 = vpop.f32.mrf.mxu0
        %v3329 = vadd.f32 %v3228, %v3328
        %v3330 = vpop.f32.mrf.mxu0
        %v3331 = vadd.f32 %v3230, %v3330
        %v3332 = vpop.f32.mrf.mxu0
        %v3333 = vadd.f32 %v3232, %v3332
        %v3334 = vpop.f32.mrf.mxu0
        %v3335 = vadd.f32 %v3234, %v3334
        %3336 = vmatprep.mubr.bf16.mxu0 %v2946
        %3337 = vmatmul.mubr.bf16.gmra.mxu0 %v2902
        %v3338 = vpop.f32.mrf.mxu0
        %v3339 = vadd.f32 %v3238, %v3338
        %v3340 = vpop.f32.mrf.mxu0
        %v3341 = vadd.f32 %v3240, %v3340
        %v3342 = vpop.f32.mrf.mxu0
        %v3343 = vadd.f32 %v3242, %v3342
        %v3344 = vpop.f32.mrf.mxu0
        %v3345 = vadd.f32 %v3244, %v3344
        %3346 = vmatprep.mubr.bf16.mxu0 %v2949
        %3347 = vmatmul.mubr.bf16.gmra.mxu0 %v2906
        %v3348 = vpop.f32.mrf.mxu0
        %v3349 = vadd.f32 %v3248, %v3348
        %v3350 = vpop.f32.mrf.mxu0
        %v3351 = vadd.f32 %v3250, %v3350
        %v3352 = vpop.f32.mrf.mxu0
        %v3353 = vpop.f32.mrf.mxu0
        %3354 = vdwg.mxu0
        %3355 = vmatprep.subr.bf16.mxu0 %v2595
        %3356 = vmatpush1.bf16.msra.mxu0 %v2594
        %3357 = vmatprep.subr.bf16.mxu0 %v2589
        %3358 = vmatpush1.bf16.msra.mxu0 %v2588
        %3359 = vmatprep.subr.bf16.mxu0 %v2583
        %3360 = vmatpush1.bf16.msra.mxu0 %v2582
        %3361 = vmatprep.subr.bf16.mxu0 %v2577
        %3362 = vmatpush1.bf16.msra.mxu0 %v2576
        %3363 = vmatprep.subr.bf16.mxu0 %v2571
        %3364 = vmatpush1.bf16.msra.mxu0 %v2570
        %3365 = vmatprep.subr.bf16.mxu0 %v2565
        %3366 = vmatpush1.bf16.msra.mxu0 %v2564
        %3367 = vmatprep.subr.bf16.mxu0 %v2559
        %3368 = vmatpush1.bf16.msra.mxu0 %v2558
        %3369 = vmatprep.subr.bf16.mxu0 %v2553
        %3370 = vmatpush1.bf16.msra.mxu0 %v2552
        %3371 = vmatprep.subr.bf16.mxu0 %v2643
        %3372 = vmatpush2.bf16.msra.mxu0 %v2642
        %3373 = vmatprep.subr.bf16.mxu0 %v2637
        %3374 = vmatpush2.bf16.msra.mxu0 %v2636
        %3375 = vmatprep.subr.bf16.mxu0 %v2631
        %3376 = vmatpush2.bf16.msra.mxu0 %v2630
        %3377 = vmatprep.subr.bf16.mxu0 %v2625
        %3378 = vmatpush2.bf16.msra.mxu0 %v2624
        %3379 = vmatprep.subr.bf16.mxu0 %v2619
        %3380 = vmatpush2.bf16.msra.mxu0 %v2618
        %3381 = vmatprep.subr.bf16.mxu0 %v2613
        %3382 = vmatpush2.bf16.msra.mxu0 %v2612
        %3383 = vmatprep.subr.bf16.mxu0 %v2607
        %3384 = vmatpush2.bf16.msra.mxu0 %v2606
        %3385 = vmatprep.subr.bf16.mxu0 %v2601
        %3386 = vmatpush2.bf16.msra.mxu0 %v2600
        %3387 = vmatprep.mubr.bf16.mxu0 %v2881
        %3388 = vmatmul.mubr.bf16.gmra.mxu0 %v2880
        %v3389 = vpop.f32.mrf.mxu0
        %v3390 = vadd.f32 %v2740, %v3389
        %v3391 = vpop.f32.mrf.mxu0
        %v3392 = vadd.f32 %v2740, %v3391
        %v3393 = vpop.f32.mrf.mxu0
        %v3394 = vadd.f32 %v2745, %v3393
        %v3395 = vpop.f32.mrf.mxu0
        %v3396 = vadd.f32 %v2745, %v3395
        %3397 = vmatprep.mubr.bf16.mxu0 %v2885
        %3398 = vmatmul.mubr.bf16.gmra.mxu0 %v2884
        %v3399 = vpop.f32.mrf.mxu0
        %v3400 = vadd.f32 %v2750, %v3399
        %v3401 = vpop.f32.mrf.mxu0
        %v3402 = vadd.f32 %v2750, %v3401
        %v3403 = vpop.f32.mrf.mxu0
        %v3404 = vadd.f32 %v2755, %v3403
        %v3405 = vpop.f32.mrf.mxu0
        %v3406 = vadd.f32 %v2755, %v3405
        %3407 = vmatprep.mubr.bf16.mxu0 %v2889
        %3408 = vmatmul.mubr.bf16.gmra.mxu0 %v2888
        %v3409 = vpop.f32.mrf.mxu0
        %v3410 = vadd.f32 %v2760, %v3409
        %v3411 = vpop.f32.mrf.mxu0
        %v3412 = vadd.f32 %v2760, %v3411
        %v3413 = vpop.f32.mrf.mxu0
        %v3414 = vadd.f32 %v2765, %v3413
        %v3415 = vpop.f32.mrf.mxu0
        %v3416 = vadd.f32 %v2765, %v3415
        %3417 = vmatprep.mubr.bf16.mxu0 %v2893
        %3418 = vmatmul.mubr.bf16.gmra.mxu0 %v2892
        %v3419 = vpop.f32.mrf.mxu0
        %v3420 = vadd.f32 %v2770, %v3419
        %v3421 = vpop.f32.mrf.mxu0
        %v3422 = vadd.f32 %v2770, %v3421
        %v3423 = vpop.f32.mrf.mxu0
        %v3424 = vadd.f32 %v2775, %v3423
        %v3425 = vpop.f32.mrf.mxu0
        %v3426 = vadd.f32 %v2775, %v3425
        %3427 = vmatprep.mubr.bf16.mxu0 %v2897
        %3428 = vmatmul.mubr.bf16.gmra.mxu0 %v2896
        %v3429 = vpop.f32.mrf.mxu0
        %v3430 = vadd.f32 %v2780, %v3429
        %v3431 = vpop.f32.mrf.mxu0
        %v3432 = vadd.f32 %v2780, %v3431
        %v3433 = vpop.f32.mrf.mxu0
        %v3434 = vadd.f32 %v2785, %v3433
        %v3435 = vpop.f32.mrf.mxu0
        %v3436 = vadd.f32 %v2785, %v3435
        %3437 = vmatprep.mubr.bf16.mxu0 %v2901
        %3438 = vmatmul.mubr.bf16.gmra.mxu0 %v2900
        %v3439 = vpop.f32.mrf.mxu0
        %v3440 = vadd.f32 %v2790, %v3439
        %v3441 = vpop.f32.mrf.mxu0
        %v3442 = vadd.f32 %v2790, %v3441
        %v3443 = vpop.f32.mrf.mxu0
        %v3444 = vadd.f32 %v2795, %v3443
        %v3445 = vpop.f32.mrf.mxu0
        %v3446 = vadd.f32 %v2795, %v3445
        %3447 = vmatprep.mubr.bf16.mxu0 %v2905
        %3448 = vmatmul.mubr.bf16.gmra.mxu0 %v2904
        %v3449 = vpop.f32.mrf.mxu0
        %v3450 = vadd.f32 %v2800, %v3449
        %v3451 = vpop.f32.mrf.mxu0
        %v3452 = vadd.f32 %v2800, %v3451
        %v3453 = vpop.f32.mrf.mxu0
        %v3454 = vpop.f32.mrf.mxu0
        %3455 = vdwg.mxu0
        %3456 = vmatprep.subr.bf16.mxu0 %v2691
        %3457 = vmatpush1.bf16.msra.mxu0 %v2690
        %3458 = vmatprep.subr.bf16.mxu0 %v2685
        %3459 = vmatpush1.bf16.msra.mxu0 %v2684
        %3460 = vmatprep.subr.bf16.mxu0 %v2679
        %3461 = vmatpush1.bf16.msra.mxu0 %v2678
        %3462 = vmatprep.subr.bf16.mxu0 %v2673
        %3463 = vmatpush1.bf16.msra.mxu0 %v2672
        %3464 = vmatprep.subr.bf16.mxu0 %v2667
        %3465 = vmatpush1.bf16.msra.mxu0 %v2666
        %3466 = vmatprep.subr.bf16.mxu0 %v2661
        %3467 = vmatpush1.bf16.msra.mxu0 %v2660
        %3468 = vmatprep.subr.bf16.mxu0 %v2655
        %3469 = vmatpush1.bf16.msra.mxu0 %v2654
        %3470 = vmatprep.subr.bf16.mxu0 %v2649
        %3471 = vmatpush1.bf16.msra.mxu0 %v2648
        %3472 = vmatprep.subr.bf16.mxu0 0
        %3473 = vmatpush2.bf16.msra.mxu0 0
        %3474 = vmatprep.subr.bf16.mxu0 0
        %3475 = vmatpush2.bf16.msra.mxu0 0
        %3476 = vmatprep.subr.bf16.mxu0 0
        %3477 = vmatpush2.bf16.msra.mxu0 0
        %3478 = vmatprep.subr.bf16.mxu0 0
        %3479 = vmatpush2.bf16.msra.mxu0 0
        %3480 = vmatprep.subr.bf16.mxu0 0
        %3481 = vmatpush2.bf16.msra.mxu0 0
        %3482 = vmatprep.subr.bf16.mxu0 0
        %3483 = vmatpush2.bf16.msra.mxu0 0
        %3484 = vmatprep.subr.bf16.mxu0 0
        %3485 = vmatpush2.bf16.msra.mxu0 0
        %3486 = vmatprep.subr.bf16.mxu0 %v2697
        %3487 = vmatpush2.bf16.msra.mxu0 %v2696
        %3488 = vmatprep.mubr.bf16.mxu0 %v2931
        %3489 = vmatmul.mubr.bf16.gmra.mxu0 %v2882
        %v3490 = vpop.f32.mrf.mxu0
        %v3491 = vadd.f32 %v3390, %v3490
        %v3492 = vpop.f32.mrf.mxu0
        %v3493 = vadd.f32 %v3392, %v3492
        %v3494 = vpop.f32.mrf.mxu0
        %v3495 = vadd.f32 %v3394, %v3494
        %v3496 = vpop.f32.mrf.mxu0
        %v3497 = vadd.f32 %v3396, %v3496
        %3498 = vmatprep.mubr.bf16.mxu0 %v2934
        %3499 = vmatmul.mubr.bf16.gmra.mxu0 %v2886
        %v3500 = vpop.f32.mrf.mxu0
        %v3501 = vadd.f32 %v3400, %v3500
        %v3502 = vpop.f32.mrf.mxu0
        %v3503 = vadd.f32 %v3402, %v3502
        %v3504 = vpop.f32.mrf.mxu0
        %v3505 = vadd.f32 %v3404, %v3504
        %v3506 = vpop.f32.mrf.mxu0
        %v3507 = vadd.f32 %v3406, %v3506
        %3508 = vmatprep.mubr.bf16.mxu0 %v2937
        %3509 = vmatmul.mubr.bf16.gmra.mxu0 %v2890
        %v3510 = vpop.f32.mrf.mxu0
        %v3511 = vadd.f32 %v3410, %v3510
        %v3512 = vpop.f32.mrf.mxu0
        %v3513 = vadd.f32 %v3412, %v3512
        %v3514 = vpop.f32.mrf.mxu0
        %v3515 = vadd.f32 %v3414, %v3514
        %v3516 = vpop.f32.mrf.mxu0
        %v3517 = vadd.f32 %v3416, %v3516
        %3518 = vmatprep.mubr.bf16.mxu0 %v2940
        %3519 = vmatmul.mubr.bf16.gmra.mxu0 %v2894
        %v3520 = vpop.f32.mrf.mxu0
        %v3521 = vadd.f32 %v3420, %v3520
        %v3522 = vpop.f32.mrf.mxu0
        %v3523 = vadd.f32 %v3422, %v3522
        %v3524 = vpop.f32.mrf.mxu0
        %v3525 = vadd.f32 %v3424, %v3524
        %v3526 = vpop.f32.mrf.mxu0
        %v3527 = vadd.f32 %v3426, %v3526
        %3528 = vmatprep.mubr.bf16.mxu0 %v2943
        %3529 = vmatmul.mubr.bf16.gmra.mxu0 %v2898
        %v3530 = vpop.f32.mrf.mxu0
        %v3531 = vadd.f32 %v3430, %v3530
        %v3532 = vpop.f32.mrf.mxu0
        %v3533 = vadd.f32 %v3432, %v3532
        %v3534 = vpop.f32.mrf.mxu0
        %v3535 = vadd.f32 %v3434, %v3534
        %v3536 = vpop.f32.mrf.mxu0
        %v3537 = vadd.f32 %v3436, %v3536
        %3538 = vmatprep.mubr.bf16.mxu0 %v2946
        %3539 = vmatmul.mubr.bf16.gmra.mxu0 %v2902
        %v3540 = vpop.f32.mrf.mxu0
        %v3541 = vadd.f32 %v3440, %v3540
        %v3542 = vpop.f32.mrf.mxu0
        %v3543 = vadd.f32 %v3442, %v3542
        %v3544 = vpop.f32.mrf.mxu0
        %v3545 = vadd.f32 %v3444, %v3544
        %v3546 = vpop.f32.mrf.mxu0
        %v3547 = vadd.f32 %v3446, %v3546
        %3548 = vmatprep.mubr.bf16.mxu0 %v2949
        %3549 = vmatmul.mubr.bf16.gmra.mxu0 %v2906
        %v3550 = vpop.f32.mrf.mxu0
        %v3551 = vadd.f32 %v3450, %v3550
        %v3552 = vpop.f32.mrf.mxu0
        %v3553 = vadd.f32 %v3452, %v3552
        %v3554 = vpop.f32.mrf.mxu0
        %v3555 = vpop.f32.mrf.mxu0
        %3556 = vdwg.mxu0
        %v3557 = vpack.c.bf16 %v3091, %v3087
        %v3558 = vpack.c.bf16 %v3093, %v3089
        %v3559 = vpack.c.bf16 %v3293, %v3289
        %v3560 = vpack.c.bf16 %v3295, %v3291
        %v3561 = vpack.c.bf16 %v3495, %v3491
        %v3562 = vpack.c.bf16 %v3497, %v3493
        %v3563 = vpack.c.bf16 %v3101, %v3097
        %v3564 = vpack.c.bf16 %v3103, %v3099
        %v3565 = vpack.c.bf16 %v3303, %v3299
        %v3566 = vpack.c.bf16 %v3305, %v3301
        %v3567 = vpack.c.bf16 %v3505, %v3501
        %v3568 = vpack.c.bf16 %v3507, %v3503
        %v3569 = vpack.c.bf16 %v3111, %v3107
        %v3570 = vpack.c.bf16 %v3113, %v3109
        %v3571 = vpack.c.bf16 %v3313, %v3309
        %v3572 = vpack.c.bf16 %v3315, %v3311
        %v3573 = vpack.c.bf16 %v3515, %v3511
        %v3574 = vpack.c.bf16 %v3517, %v3513
        %v3575 = vpack.c.bf16 %v3121, %v3117
        %v3576 = vpack.c.bf16 %v3123, %v3119
        %v3577 = vpack.c.bf16 %v3323, %v3319
        %v3578 = vpack.c.bf16 %v3325, %v3321
        %v3579 = vpack.c.bf16 %v3525, %v3521
        %v3580 = vpack.c.bf16 %v3527, %v3523
        %v3581 = vpack.c.bf16 %v3131, %v3127
        %v3582 = vpack.c.bf16 %v3133, %v3129
        %v3583 = vpack.c.bf16 %v3333, %v3329
        %v3584 = vpack.c.bf16 %v3335, %v3331
        %v3585 = vpack.c.bf16 %v3535, %v3531
        %v3586 = vpack.c.bf16 %v3537, %v3533
        %v3587 = vpack.c.bf16 %v3141, %v3137
        %v3588 = vpack.c.bf16 %v3143, %v3139
        %v3589 = vpack.c.bf16 %v3343, %v3339
        %v3590 = vpack.c.bf16 %v3345, %v3341
        %v3591 = vpack.c.bf16 %v3545, %v3541
        %v3592 = vpack.c.bf16 %v3547, %v3543
        %v3593 = vpack.c.bf16 %v3147, %v3147
        %v3594 = vpack.c.bf16 %v3149, %v3149
        %v3595 = vpack.c.bf16 %v3349, %v3349
        %v3596 = vpack.c.bf16 %v3351, %v3351
        %v3597 = vpack.c.bf16 %v3551, %v3551
        %v3598 = vpack.c.bf16 %v3553, %v3553
        %v3599 = vld [vmem:[%s6] sm:$0xf]
        %v3600 = vld [vmem:[%s6 + $0x4] sm:$0xf]
        %v3601 = vld [vmem:[%s6 + $0x8] sm:$0xf]
        %v3602 = vld [vmem:[%s6 + $0xc] sm:$0xf]
        %v3603 = vld [vmem:[%s6 + $0x10] sm:$0xf]
        %v3604 = vld [vmem:[%s6 + $0x14] sm:$0xf]
        %v3605 = vld [vmem:[%s6 + $0x18] sm:$0xf]
        %v3606 = vld [vmem:[%s6 + $0x1c] sm:$0xf]
        %v3615 = vunpack.c.l.b16 %v3599
        %v3616 = vunpack.c.l.b16 %v3600
        %v3617 = vunpack.c.l.b16 %v3601
        %v3618 = vunpack.c.l.b16 %v3602
        %v3619 = vunpack.c.l.b16 %v3603
        %v3620 = vunpack.c.l.b16 %v3604
        %v3621 = vunpack.c.l.b16 %v3605
        %v3622 = vunpack.c.l.b16 %v3606
        %v3623 = vpack.c.b16 %v3616, %v3615
        %v3624 = vpack.c.b16 %v3618, %v3617
        %v3625 = vpack.c.b16 %v3620, %v3619
        %v3626 = vpack.c.b16 %v3622, %v3621
        %v3628 = vsel %vm1304, %v3623, 0
        %v3631 = vsel %vm1304, %v3624, 0
        %v3634 = vsel %vm1304, %v3625, 0
        %v3637 = vsel %vm1304, %v3626, 0
        %v3640 = vsel %vm1380, %v3593, 0
        %v3643 = vsel %vm1380, %v3594, 0
        %v3646 = vsel %vm1380, %v3595, 0
        %v3649 = vsel %vm1380, %v3596, 0
        %v3652 = vsel %vm1380, %v3597, 0
        %v3655 = vsel %vm1380, %v3598, 0
        %3657 = vmatprep.subr.bf16.mxu0 0
        %3658 = vmatpush1.bf16.msra.mxu0 0
        %3659 = vmatprep.subr.bf16.mxu0 %v3643
        %3660 = vmatpush1.bf16.msra.mxu0 %v3640
        %3661 = vmatprep.subr.bf16.mxu0 %v3588
        %3662 = vmatpush1.bf16.msra.mxu0 %v3587
        %3663 = vmatprep.subr.bf16.mxu0 %v3582
        %3664 = vmatpush1.bf16.msra.mxu0 %v3581
        %3665 = vmatprep.subr.bf16.mxu0 %v3576
        %3666 = vmatpush1.bf16.msra.mxu0 %v3575
        %3667 = vmatprep.subr.bf16.mxu0 %v3570
        %3668 = vmatpush1.bf16.msra.mxu0 %v3569
        %3669 = vmatprep.subr.bf16.mxu0 %v3564
        %3670 = vmatpush1.bf16.msra.mxu0 %v3563
        %3671 = vmatprep.subr.bf16.mxu0 %v3558
        %3672 = vmatpush1.bf16.msra.mxu0 %v3557
        %3673 = vmatprep.subr.bf16.mxu0 0
        %3674 = vmatpush2.bf16.msra.mxu0 0
        %3675 = vmatprep.subr.bf16.mxu0 0
        %3676 = vmatpush2.bf16.msra.mxu0 0
        %3677 = vmatprep.subr.bf16.mxu0 0
        %3678 = vmatpush2.bf16.msra.mxu0 0
        %3679 = vmatprep.subr.bf16.mxu0 0
        %3680 = vmatpush2.bf16.msra.mxu0 0
        %3681 = vmatprep.subr.bf16.mxu0 0
        %3682 = vmatpush2.bf16.msra.mxu0 0
        %3683 = vmatprep.subr.bf16.mxu0 0
        %3684 = vmatpush2.bf16.msra.mxu0 0
        %3685 = vmatprep.subr.bf16.mxu0 0
        %3686 = vmatpush2.bf16.msra.mxu0 0
        %3687 = vmatprep.subr.bf16.mxu0 0
        %3688 = vmatpush2.bf16.msra.mxu0 0
        %3689 = vmatprep.mubr.bf16.mxu0 0
        %3690 = vmatmul.mubr.bf16.gmra.mxu0 %v3628
        %v3691 = vpop.f32.mrf.mxu0
        %v3692 = vadd.f32 0.0, %v3691
        %v3693 = vpop.f32.mrf.mxu0
        %v3694 = vadd.f32 0.0, %v3693
        %v3695 = vpop.f32.mrf.mxu0
        %v3696 = vadd.f32 0.0, %v3695
        %v3697 = vpop.f32.mrf.mxu0
        %v3698 = vadd.f32 0.0, %v3697
        %3699 = vmatprep.mubr.bf16.mxu0 0
        %3700 = vmatmul.mubr.bf16.gmra.mxu0 %v3631
        %v3701 = vpop.f32.mrf.mxu0
        %v3702 = vadd.f32 0.0, %v3701
        %v3703 = vpop.f32.mrf.mxu0
        %v3704 = vadd.f32 0.0, %v3703
        %v3705 = vpop.f32.mrf.mxu0
        %v3706 = vadd.f32 0.0, %v3705
        %v3707 = vpop.f32.mrf.mxu0
        %v3708 = vadd.f32 0.0, %v3707
        %3709 = vmatprep.mubr.bf16.mxu0 0
        %3710 = vmatmul.mubr.bf16.gmra.mxu0 %v3634
        %v3711 = vpop.f32.mrf.mxu0
        %v3712 = vadd.f32 0.0, %v3711
        %v3713 = vpop.f32.mrf.mxu0
        %v3714 = vadd.f32 0.0, %v3713
        %v3715 = vpop.f32.mrf.mxu0
        %v3716 = vadd.f32 0.0, %v3715
        %v3717 = vpop.f32.mrf.mxu0
        %v3718 = vadd.f32 0.0, %v3717
        %3719 = vmatprep.mubr.bf16.mxu0 0
        %3720 = vmatmul.mubr.bf16.gmra.mxu0 %v3637
        %v3721 = vpop.f32.mrf.mxu0
        %v3722 = vadd.f32 0.0, %v3721
        %v3723 = vpop.f32.mrf.mxu0
        %v3724 = vadd.f32 0.0, %v3723
        %v3725 = vpop.f32.mrf.mxu0
        %v3726 = vadd.f32 0.0, %v3725
        %v3727 = vpop.f32.mrf.mxu0
        %v3728 = vadd.f32 0.0, %v3727
        %3729 = vdwg.mxu0
        %3730 = vmatprep.subr.bf16.mxu0 0
        %3731 = vmatpush1.bf16.msra.mxu0 0
        %3732 = vmatprep.subr.bf16.mxu0 %v3649
        %3733 = vmatpush1.bf16.msra.mxu0 %v3646
        %3734 = vmatprep.subr.bf16.mxu0 %v3590
        %3735 = vmatpush1.bf16.msra.mxu0 %v3589
        %3736 = vmatprep.subr.bf16.mxu0 %v3584
        %3737 = vmatpush1.bf16.msra.mxu0 %v3583
        %3738 = vmatprep.subr.bf16.mxu0 %v3578
        %3739 = vmatpush1.bf16.msra.mxu0 %v3577
        %3740 = vmatprep.subr.bf16.mxu0 %v3572
        %3741 = vmatpush1.bf16.msra.mxu0 %v3571
        %3742 = vmatprep.subr.bf16.mxu0 %v3566
        %3743 = vmatpush1.bf16.msra.mxu0 %v3565
        %3744 = vmatprep.subr.bf16.mxu0 %v3560
        %3745 = vmatpush1.bf16.msra.mxu0 %v3559
        %3746 = vmatprep.subr.bf16.mxu0 0
        %3747 = vmatpush2.bf16.msra.mxu0 0
        %3748 = vmatprep.subr.bf16.mxu0 0
        %3749 = vmatpush2.bf16.msra.mxu0 0
        %3750 = vmatprep.subr.bf16.mxu0 0
        %3751 = vmatpush2.bf16.msra.mxu0 0
        %3752 = vmatprep.subr.bf16.mxu0 0
        %3753 = vmatpush2.bf16.msra.mxu0 0
        %3754 = vmatprep.subr.bf16.mxu0 0
        %3755 = vmatpush2.bf16.msra.mxu0 0
        %3756 = vmatprep.subr.bf16.mxu0 0
        %3757 = vmatpush2.bf16.msra.mxu0 0
        %3758 = vmatprep.subr.bf16.mxu0 0
        %3759 = vmatpush2.bf16.msra.mxu0 0
        %3760 = vmatprep.subr.bf16.mxu0 0
        %3761 = vmatpush2.bf16.msra.mxu0 0
        %3762 = vmatprep.mubr.bf16.mxu0 0
        %3763 = vmatmul.mubr.bf16.gmra.mxu0 %v3628
        %v3764 = vpop.f32.mrf.mxu0
        %v3765 = vadd.f32 0.0, %v3764
        %v3766 = vpop.f32.mrf.mxu0
        %v3767 = vadd.f32 0.0, %v3766
        %v3768 = vpop.f32.mrf.mxu0
        %v3769 = vadd.f32 0.0, %v3768
        %v3770 = vpop.f32.mrf.mxu0
        %v3771 = vadd.f32 0.0, %v3770
        %3772 = vmatprep.mubr.bf16.mxu0 0
        %3773 = vmatmul.mubr.bf16.gmra.mxu0 %v3631
        %v3774 = vpop.f32.mrf.mxu0
        %v3775 = vadd.f32 0.0, %v3774
        %v3776 = vpop.f32.mrf.mxu0
        %v3777 = vadd.f32 0.0, %v3776
        %v3778 = vpop.f32.mrf.mxu0
        %v3779 = vadd.f32 0.0, %v3778
        %v3780 = vpop.f32.mrf.mxu0
        %v3781 = vadd.f32 0.0, %v3780
        %3782 = vmatprep.mubr.bf16.mxu0 0
        %3783 = vmatmul.mubr.bf16.gmra.mxu0 %v3634
        %v3784 = vpop.f32.mrf.mxu0
        %v3785 = vadd.f32 0.0, %v3784
        %v3786 = vpop.f32.mrf.mxu0
        %v3787 = vadd.f32 0.0, %v3786
        %v3788 = vpop.f32.mrf.mxu0
        %v3789 = vadd.f32 0.0, %v3788
        %v3790 = vpop.f32.mrf.mxu0
        %v3791 = vadd.f32 0.0, %v3790
        %3792 = vmatprep.mubr.bf16.mxu0 0
        %3793 = vmatmul.mubr.bf16.gmra.mxu0 %v3637
        %v3794 = vpop.f32.mrf.mxu0
        %v3795 = vadd.f32 0.0, %v3794
        %v3796 = vpop.f32.mrf.mxu0
        %v3797 = vadd.f32 0.0, %v3796
        %v3798 = vpop.f32.mrf.mxu0
        %v3799 = vadd.f32 0.0, %v3798
        %v3800 = vpop.f32.mrf.mxu0
        %v3801 = vadd.f32 0.0, %v3800
        %3802 = vdwg.mxu0
        %3803 = vmatprep.subr.bf16.mxu0 0
        %3804 = vmatpush1.bf16.msra.mxu0 0
        %3805 = vmatprep.subr.bf16.mxu0 %v3655
        %3806 = vmatpush1.bf16.msra.mxu0 %v3652
        %3807 = vmatprep.subr.bf16.mxu0 %v3592
        %3808 = vmatpush1.bf16.msra.mxu0 %v3591
        %3809 = vmatprep.subr.bf16.mxu0 %v3586
        %3810 = vmatpush1.bf16.msra.mxu0 %v3585
        %3811 = vmatprep.subr.bf16.mxu0 %v3580
        %3812 = vmatpush1.bf16.msra.mxu0 %v3579
        %3813 = vmatprep.subr.bf16.mxu0 %v3574
        %3814 = vmatpush1.bf16.msra.mxu0 %v3573
        %3815 = vmatprep.subr.bf16.mxu0 %v3568
        %3816 = vmatpush1.bf16.msra.mxu0 %v3567
        %3817 = vmatprep.subr.bf16.mxu0 %v3562
        %3818 = vmatpush1.bf16.msra.mxu0 %v3561
        %3819 = vmatprep.subr.bf16.mxu0 0
        %3820 = vmatpush2.bf16.msra.mxu0 0
        %3821 = vmatprep.subr.bf16.mxu0 0
        %3822 = vmatpush2.bf16.msra.mxu0 0
        %3823 = vmatprep.subr.bf16.mxu0 0
        %3824 = vmatpush2.bf16.msra.mxu0 0
        %3825 = vmatprep.subr.bf16.mxu0 0
        %3826 = vmatpush2.bf16.msra.mxu0 0
        %3827 = vmatprep.subr.bf16.mxu0 0
        %3828 = vmatpush2.bf16.msra.mxu0 0
        %3829 = vmatprep.subr.bf16.mxu0 0
        %3830 = vmatpush2.bf16.msra.mxu0 0
        %3831 = vmatprep.subr.bf16.mxu0 0
        %3832 = vmatpush2.bf16.msra.mxu0 0
        %3833 = vmatprep.subr.bf16.mxu0 0
        %3834 = vmatpush2.bf16.msra.mxu0 0
        %3835 = vmatprep.mubr.bf16.mxu0 0
        %3836 = vmatmul.mubr.bf16.gmra.mxu0 %v3628
        %v3837 = vpop.f32.mrf.mxu0
        %v3838 = vadd.f32 0.0, %v3837
        %v3839 = vpop.f32.mrf.mxu0
        %v3840 = vadd.f32 0.0, %v3839
        %v3841 = vpop.f32.mrf.mxu0
        %v3842 = vadd.f32 0.0, %v3841
        %v3843 = vpop.f32.mrf.mxu0
        %v3844 = vadd.f32 0.0, %v3843
        %3845 = vmatprep.mubr.bf16.mxu0 0
        %3846 = vmatmul.mubr.bf16.gmra.mxu0 %v3631
        %v3847 = vpop.f32.mrf.mxu0
        %v3848 = vadd.f32 0.0, %v3847
        %v3849 = vpop.f32.mrf.mxu0
        %v3850 = vadd.f32 0.0, %v3849
        %v3851 = vpop.f32.mrf.mxu0
        %v3852 = vadd.f32 0.0, %v3851
        %v3853 = vpop.f32.mrf.mxu0
        %v3854 = vadd.f32 0.0, %v3853
        %3855 = vmatprep.mubr.bf16.mxu0 0
        %3856 = vmatmul.mubr.bf16.gmra.mxu0 %v3634
        %v3857 = vpop.f32.mrf.mxu0
        %v3858 = vadd.f32 0.0, %v3857
        %v3859 = vpop.f32.mrf.mxu0
        %v3860 = vadd.f32 0.0, %v3859
        %v3861 = vpop.f32.mrf.mxu0
        %v3862 = vadd.f32 0.0, %v3861
        %v3863 = vpop.f32.mrf.mxu0
        %v3864 = vadd.f32 0.0, %v3863
        %3865 = vmatprep.mubr.bf16.mxu0 0
        %3866 = vmatmul.mubr.bf16.gmra.mxu0 %v3637
        %v3867 = vpop.f32.mrf.mxu0
        %v3868 = vadd.f32 0.0, %v3867
        %v3869 = vpop.f32.mrf.mxu0
        %v3870 = vadd.f32 0.0, %v3869
        %v3871 = vpop.f32.mrf.mxu0
        %v3872 = vadd.f32 0.0, %v3871
        %v3873 = vpop.f32.mrf.mxu0
        %v3874 = vadd.f32 0.0, %v3873
        %3875 = vdwg.mxu0
        %v3876 = vpack.c.bf16 %v3696, %v3692
        %v3877 = vpack.c.bf16 %v3698, %v3694
        %v3878 = vpack.c.bf16 %v3769, %v3765
        %v3879 = vpack.c.bf16 %v3771, %v3767
        %v3880 = vpack.c.bf16 %v3842, %v3838
        %v3881 = vpack.c.bf16 %v3844, %v3840
        %v3882 = vpack.c.bf16 %v3706, %v3702
        %v3883 = vpack.c.bf16 %v3708, %v3704
        %v3884 = vpack.c.bf16 %v3779, %v3775
        %v3885 = vpack.c.bf16 %v3781, %v3777
        %v3886 = vpack.c.bf16 %v3852, %v3848
        %v3887 = vpack.c.bf16 %v3854, %v3850
        %v3888 = vpack.c.bf16 %v3716, %v3712
        %v3889 = vpack.c.bf16 %v3718, %v3714
        %v3890 = vpack.c.bf16 %v3789, %v3785
        %v3891 = vpack.c.bf16 %v3791, %v3787
        %v3892 = vpack.c.bf16 %v3862, %v3858
        %v3893 = vpack.c.bf16 %v3864, %v3860
        %v3894 = vpack.c.bf16 %v3726, %v3722
        %v3895 = vpack.c.bf16 %v3728, %v3724
        %v3896 = vpack.c.bf16 %v3799, %v3795
        %v3897 = vpack.c.bf16 %v3801, %v3797
        %v3898 = vpack.c.bf16 %v3872, %v3868
        %v3899 = vpack.c.bf16 %v3874, %v3870
        %v3900 = vld [vmem:[%s593] sm:$0xff]
        %v3901 = vld [vmem:[%s593 + $0x8] sm:$0xf]
        %v3902 = vld [vmem:[%s593 + $0xc] sm:$0xff]
        %v3903 = vld [vmem:[%s593 + $0x14] sm:$0xf]
        %v3904 = vld [vmem:[%s593 + $0x18] sm:$0xff]
        %v3905 = vld [vmem:[%s593 + $0x20] sm:$0xf]
        %v3906 = vld [vmem:[%s593 + $0x24] sm:$0xff]
        %v3907 = vld [vmem:[%s593 + $0x2c] sm:$0xf]
        %v3908 = vld [vmem:[%s593 + $0x30] sm:$0xff]
        %v3909 = vld [vmem:[%s593 + $0x38] sm:$0xf]
        %v3910 = vld [vmem:[%s593 + $0x3c] sm:$0xff]
        %v3911 = vld [vmem:[%s593 + $0x44] sm:$0xf]
        %v3912 = vld [vmem:[%s593 + $0x48] sm:$0xff]
        %v3913 = vld [vmem:[%s593 + $0x50] sm:$0xf]
        %v3914 = vld [vmem:[%s593 + $0x54] sm:$0xff]
        %v3915 = vld [vmem:[%s593 + $0x5c] sm:$0xf]
        %v3916 = vld [vmem:[%s593 + $0x60] sm:$0xff]
        %v3917 = vld [vmem:[%s593 + $0x68] sm:$0xf]
        %v3918 = vld [vmem:[%s593 + $0x6c] sm:$0xff]
        %v3919 = vld [vmem:[%s593 + $0x74] sm:$0xf]
        %v3920 = vld [vmem:[%s593 + $0x78] sm:$0xff]
        %v3921 = vld [vmem:[%s593 + $0x80] sm:$0xf]
        %v3922 = vld [vmem:[%s593 + $0x84] sm:$0xff]
        %v3923 = vld [vmem:[%s593 + $0x8c] sm:$0xf]
        %v3924 = vld [vmem:[%s593 + $0x90] sm:$0xff]
        %v3925 = vld [vmem:[%s593 + $0x98] sm:$0xf]
        %v3926 = vld [vmem:[%s593 + $0x9c] sm:$0xff]
        %v3927 = vld [vmem:[%s593 + $0xa4] sm:$0xf]
        %v3928 = vld [vmem:[%s593 + $0xa8] sm:$0xff]
        %v3929 = vld [vmem:[%s593 + $0xb0] sm:$0xf]
        %v3930 = vld [vmem:[%s593 + $0xb4] sm:$0xff]
        %v3931 = vld [vmem:[%s593 + $0xbc] sm:$0xf]
        %v3932 = vld [vmem:[%s593 + $0xc0] sm:$0xff]
        %v3933 = vld [vmem:[%s593 + $0xc8] sm:$0xf]
        %v3934 = vld [vmem:[%s593 + $0xcc] sm:$0xff]
        %v3935 = vld [vmem:[%s593 + $0xd4] sm:$0xf]
        %v3936 = vld [vmem:[%s593 + $0xd8] sm:$0xff]
        %v3937 = vld [vmem:[%s593 + $0xe0] sm:$0xf]
        %v3938 = vld [vmem:[%s593 + $0xe4] sm:$0xff]
        %v3939 = vld [vmem:[%s593 + $0xec] sm:$0xf]
        %v3940 = vld [vmem:[%s593 + $0xf0] sm:$0xff]
        %v3941 = vld [vmem:[%s593 + $0xf8] sm:$0xf]
        %v3942 = vld [vmem:[%s593 + $0xfc] sm:$0xff]
        %v3943 = vld [vmem:[%s593 + $0x104] sm:$0xf]
        %v3944 = vld [vmem:[%s593 + $0x108] sm:$0xff]
        %v3945 = vld [vmem:[%s593 + $0x110] sm:$0xf]
        %v3946 = vld [vmem:[%s593 + $0x114] sm:$0xff]
        %v3947 = vld [vmem:[%s593 + $0x11c] sm:$0xf]
        %v3948 = vld [vmem:[%s593 + $0x120] sm:$0xff]
        %v3949 = vld [vmem:[%s593 + $0x128] sm:$0xf]
        %v3950 = vld [vmem:[%s593 + $0x12c] sm:$0xff]
        %v3951 = vld [vmem:[%s593 + $0x134] sm:$0xf]
        %v3952 = vld [vmem:[%s593 + $0x138] sm:$0xff]
        %v3953 = vld [vmem:[%s593 + $0x140] sm:$0xf]
        %v3954 = vld [vmem:[%s593 + $0x144] sm:$0xff]
        %v3955 = vld [vmem:[%s593 + $0x14c] sm:$0xf]
        %v3956 = vld [vmem:[%s593 + $0x150] sm:$0xff]
        %v3957 = vld [vmem:[%s593 + $0x158] sm:$0xf]
        %v3958 = vld [vmem:[%s593 + $0x15c] sm:$0xff]
        %v3959 = vld [vmem:[%s593 + $0x164] sm:$0xf]
        %v3960 = vld [vmem:[%s593 + $0x168] sm:$0xff]
        %v3961 = vld [vmem:[%s593 + $0x170] sm:$0xf]
        %v3962 = vld [vmem:[%s593 + $0x174] sm:$0xff]
        %v3963 = vld [vmem:[%s593 + $0x17c] sm:$0xf]
        %v3964 = vld [vmem:[%s593 + $0x180] sm:$0xff]
        %v3965 = vld [vmem:[%s593 + $0x188] sm:$0xf]
        %v3966 = vld [vmem:[%s593 + $0x18c] sm:$0xff]
        %v3967 = vld [vmem:[%s593 + $0x194] sm:$0xf]
        %v3968 = vld [vmem:[%s593 + $0x198] sm:$0xff]
        %v3969 = vld [vmem:[%s593 + $0x1a0] sm:$0xf]
        %v3970 = vld [vmem:[%s593 + $0x1a4] sm:$0xff]
        %v3971 = vld [vmem:[%s593 + $0x1ac] sm:$0xf]
        %v3972 = vld [vmem:[%s593 + $0x1b0] sm:$0xff]
        %v3973 = vld [vmem:[%s593 + $0x1b8] sm:$0xf]
        %v3974 = vld [vmem:[%s593 + $0x1bc] sm:$0xff]
        %v3975 = vld [vmem:[%s593 + $0x1c4] sm:$0xf]
        %v3976 = vld [vmem:[%s593 + $0x1c8] sm:$0xff]
        %v3977 = vld [vmem:[%s593 + $0x1d0] sm:$0xf]
        %v3978 = vld [vmem:[%s593 + $0x1d4] sm:$0xff]
        %v3979 = vld [vmem:[%s593 + $0x1dc] sm:$0xf]
        %v3980 = vld [vmem:[%s593 + $0x1e0] sm:$0xff]
        %v3981 = vld [vmem:[%s593 + $0x1e8] sm:$0xf]
        %v3982 = vld [vmem:[%s593 + $0x1ec] sm:$0xff]
        %v3983 = vld [vmem:[%s593 + $0x1f4] sm:$0xf]
        %v3984 = vld [vmem:[%s593 + $0x1f8] sm:$0xff]
        %v3985 = vld [vmem:[%s593 + $0x200] sm:$0xf]
        %v3986 = vld [vmem:[%s593 + $0x204] sm:$0xff]
        %v3987 = vld [vmem:[%s593 + $0x20c] sm:$0xf]
        %v3988 = vld [vmem:[%s593 + $0x210] sm:$0xff]
        %v3989 = vld [vmem:[%s593 + $0x218] sm:$0xf]
        %v3990 = vld [vmem:[%s593 + $0x21c] sm:$0xff]
        %v3991 = vld [vmem:[%s593 + $0x224] sm:$0xf]
        %v3992 = vld [vmem:[%s593 + $0x228] sm:$0xff]
        %v3993 = vld [vmem:[%s593 + $0x230] sm:$0xf]
        %v3994 = vld [vmem:[%s593 + $0x234] sm:$0xff]
        %v3995 = vld [vmem:[%s593 + $0x23c] sm:$0xf]
        %v4092 = vunpack.c.l.b16 %v3900
        %v4093 = vunpack.c.h.b16 %v3900
        %v4094 = vunpack.c.l.b16 %v3901
        %v4095 = vunpack.c.l.b16 %v3902
        %v4096 = vunpack.c.h.b16 %v3902
        %v4097 = vunpack.c.l.b16 %v3903
        %v4098 = vunpack.c.l.b16 %v3904
        %v4099 = vunpack.c.h.b16 %v3904
        %v4100 = vunpack.c.l.b16 %v3905
        %v4101 = vunpack.c.l.b16 %v3906
        %v4102 = vunpack.c.h.b16 %v3906
        %v4103 = vunpack.c.l.b16 %v3907
        %v4104 = vunpack.c.l.b16 %v3908
        %v4105 = vunpack.c.h.b16 %v3908
        %v4106 = vunpack.c.l.b16 %v3909
        %v4107 = vunpack.c.l.b16 %v3910
        %v4108 = vunpack.c.h.b16 %v3910
        %v4109 = vunpack.c.l.b16 %v3911
        %v4110 = vunpack.c.l.b16 %v3912
        %v4111 = vunpack.c.h.b16 %v3912
        %v4112 = vunpack.c.l.b16 %v3913
        %v4113 = vunpack.c.l.b16 %v3914
        %v4114 = vunpack.c.h.b16 %v3914
        %v4115 = vunpack.c.l.b16 %v3915
        %v4116 = vunpack.c.l.b16 %v3916
        %v4117 = vunpack.c.h.b16 %v3916
        %v4118 = vunpack.c.l.b16 %v3917
        %v4119 = vunpack.c.l.b16 %v3918
        %v4120 = vunpack.c.h.b16 %v3918
        %v4121 = vunpack.c.l.b16 %v3919
        %v4122 = vunpack.c.l.b16 %v3920
        %v4123 = vunpack.c.h.b16 %v3920
        %v4124 = vunpack.c.l.b16 %v3921
        %v4125 = vunpack.c.l.b16 %v3922
        %v4126 = vunpack.c.h.b16 %v3922
        %v4127 = vunpack.c.l.b16 %v3923
        %v4128 = vunpack.c.l.b16 %v3924
        %v4129 = vunpack.c.h.b16 %v3924
        %v4130 = vunpack.c.l.b16 %v3925
        %v4131 = vunpack.c.l.b16 %v3926
        %v4132 = vunpack.c.h.b16 %v3926
        %v4133 = vunpack.c.l.b16 %v3927
        %v4134 = vunpack.c.l.b16 %v3928
        %v4135 = vunpack.c.h.b16 %v3928
        %v4136 = vunpack.c.l.b16 %v3929
        %v4137 = vunpack.c.l.b16 %v3930
        %v4138 = vunpack.c.h.b16 %v3930
        %v4139 = vunpack.c.l.b16 %v3931
        %v4140 = vunpack.c.l.b16 %v3932
        %v4141 = vunpack.c.h.b16 %v3932
        %v4142 = vunpack.c.l.b16 %v3933
        %v4143 = vunpack.c.l.b16 %v3934
        %v4144 = vunpack.c.h.b16 %v3934
        %v4145 = vunpack.c.l.b16 %v3935
        %v4146 = vunpack.c.l.b16 %v3936
        %v4147 = vunpack.c.h.b16 %v3936
        %v4148 = vunpack.c.l.b16 %v3937
        %v4149 = vunpack.c.l.b16 %v3938
        %v4150 = vunpack.c.h.b16 %v3938
        %v4151 = vunpack.c.l.b16 %v3939
        %v4152 = vunpack.c.l.b16 %v3940
        %v4153 = vunpack.c.h.b16 %v3940
        %v4154 = vunpack.c.l.b16 %v3941
        %v4155 = vunpack.c.l.b16 %v3942
        %v4156 = vunpack.c.h.b16 %v3942
        %v4157 = vunpack.c.l.b16 %v3943
        %v4158 = vunpack.c.l.b16 %v3944
        %v4159 = vunpack.c.h.b16 %v3944
        %v4160 = vunpack.c.l.b16 %v3945
        %v4161 = vunpack.c.l.b16 %v3946
        %v4162 = vunpack.c.h.b16 %v3946
        %v4163 = vunpack.c.l.b16 %v3947
        %v4164 = vunpack.c.l.b16 %v3948
        %v4165 = vunpack.c.h.b16 %v3948
        %v4166 = vunpack.c.l.b16 %v3949
        %v4167 = vunpack.c.l.b16 %v3950
        %v4168 = vunpack.c.h.b16 %v3950
        %v4169 = vunpack.c.l.b16 %v3951
        %v4170 = vunpack.c.l.b16 %v3952
        %v4171 = vunpack.c.h.b16 %v3952
        %v4172 = vunpack.c.l.b16 %v3953
        %v4173 = vunpack.c.l.b16 %v3954
        %v4174 = vunpack.c.h.b16 %v3954
        %v4175 = vunpack.c.l.b16 %v3955
        %v4176 = vunpack.c.l.b16 %v3956
        %v4177 = vunpack.c.h.b16 %v3956
        %v4178 = vunpack.c.l.b16 %v3957
        %v4179 = vunpack.c.l.b16 %v3958
        %v4180 = vunpack.c.h.b16 %v3958
        %v4181 = vunpack.c.l.b16 %v3959
        %v4182 = vunpack.c.l.b16 %v3960
        %v4183 = vunpack.c.h.b16 %v3960
        %v4184 = vunpack.c.l.b16 %v3961
        %v4185 = vunpack.c.l.b16 %v3962
        %v4186 = vunpack.c.h.b16 %v3962
        %v4187 = vunpack.c.l.b16 %v3963
        %v4188 = vunpack.c.l.b16 %v3964
        %v4189 = vunpack.c.h.b16 %v3964
        %v4190 = vunpack.c.l.b16 %v3965
        %v4191 = vunpack.c.l.b16 %v3966
        %v4192 = vunpack.c.h.b16 %v3966
        %v4193 = vunpack.c.l.b16 %v3967
        %v4194 = vunpack.c.l.b16 %v3968
        %v4195 = vunpack.c.h.b16 %v3968
        %v4196 = vunpack.c.l.b16 %v3969
        %v4197 = vunpack.c.l.b16 %v3970
        %v4198 = vunpack.c.h.b16 %v3970
        %v4199 = vunpack.c.l.b16 %v3971
        %v4200 = vunpack.c.l.b16 %v3972
        %v4201 = vunpack.c.h.b16 %v3972
        %v4202 = vunpack.c.l.b16 %v3973
        %v4203 = vunpack.c.l.b16 %v3974
        %v4204 = vunpack.c.h.b16 %v3974
        %v4205 = vunpack.c.l.b16 %v3975
        %v4206 = vunpack.c.l.b16 %v3976
        %v4207 = vunpack.c.h.b16 %v3976
        %v4208 = vunpack.c.l.b16 %v3977
        %v4209 = vunpack.c.l.b16 %v3978
        %v4210 = vunpack.c.h.b16 %v3978
        %v4211 = vunpack.c.l.b16 %v3979
        %v4212 = vunpack.c.l.b16 %v3980
        %v4213 = vunpack.c.h.b16 %v3980
        %v4214 = vunpack.c.l.b16 %v3981
        %v4215 = vunpack.c.l.b16 %v3982
        %v4216 = vunpack.c.h.b16 %v3982
        %v4217 = vunpack.c.l.b16 %v3983
        %v4218 = vunpack.c.l.b16 %v3984
        %v4219 = vunpack.c.h.b16 %v3984
        %v4220 = vunpack.c.l.b16 %v3985
        %v4221 = vunpack.c.l.b16 %v3986
        %v4222 = vunpack.c.h.b16 %v3986
        %v4223 = vunpack.c.l.b16 %v3987
        %v4224 = vunpack.c.l.b16 %v3988
        %v4225 = vunpack.c.h.b16 %v3988
        %v4226 = vunpack.c.l.b16 %v3989
        %v4227 = vunpack.c.l.b16 %v3990
        %v4228 = vunpack.c.h.b16 %v3990
        %v4229 = vunpack.c.l.b16 %v3991
        %v4230 = vunpack.c.l.b16 %v3992
        %v4231 = vunpack.c.h.b16 %v3992
        %v4232 = vunpack.c.l.b16 %v3993
        %v4233 = vunpack.c.l.b16 %v3994
        %v4234 = vunpack.c.h.b16 %v3994
        %v4235 = vunpack.c.l.b16 %v3995
        %v4236 = vpack.c.b16 %v4095, %v4092
        %v4237 = vpack.c.b16 %v4096, %v4093
        %v4238 = vpack.c.b16 %v4097, %v4094
        %v4239 = vpack.c.b16 %v4101, %v4098
        %v4240 = vpack.c.b16 %v4102, %v4099
        %v4241 = vpack.c.b16 %v4103, %v4100
        %v4242 = vpack.c.b16 %v4107, %v4104
        %v4243 = vpack.c.b16 %v4108, %v4105
        %v4244 = vpack.c.b16 %v4109, %v4106
        %v4245 = vpack.c.b16 %v4113, %v4110
        %v4246 = vpack.c.b16 %v4114, %v4111
        %v4247 = vpack.c.b16 %v4115, %v4112
        %v4248 = vpack.c.b16 %v4119, %v4116
        %v4249 = vpack.c.b16 %v4120, %v4117
        %v4250 = vpack.c.b16 %v4121, %v4118
        %v4251 = vpack.c.b16 %v4125, %v4122
        %v4252 = vpack.c.b16 %v4126, %v4123
        %v4253 = vpack.c.b16 %v4127, %v4124
        %v4254 = vpack.c.b16 %v4131, %v4128
        %v4255 = vpack.c.b16 %v4132, %v4129
        %v4256 = vpack.c.b16 %v4133, %v4130
        %v4257 = vpack.c.b16 %v4137, %v4134
        %v4258 = vpack.c.b16 %v4138, %v4135
        %v4259 = vpack.c.b16 %v4139, %v4136
        %v4260 = vpack.c.b16 %v4143, %v4140
        %v4261 = vpack.c.b16 %v4144, %v4141
        %v4262 = vpack.c.b16 %v4145, %v4142
        %v4263 = vpack.c.b16 %v4149, %v4146
        %v4264 = vpack.c.b16 %v4150, %v4147
        %v4265 = vpack.c.b16 %v4151, %v4148
        %v4266 = vpack.c.b16 %v4155, %v4152
        %v4267 = vpack.c.b16 %v4156, %v4153
        %v4268 = vpack.c.b16 %v4157, %v4154
        %v4269 = vpack.c.b16 %v4161, %v4158
        %v4270 = vpack.c.b16 %v4162, %v4159
        %v4271 = vpack.c.b16 %v4163, %v4160
        %v4272 = vpack.c.b16 %v4167, %v4164
        %v4273 = vpack.c.b16 %v4168, %v4165
        %v4274 = vpack.c.b16 %v4169, %v4166
        %v4275 = vpack.c.b16 %v4173, %v4170
        %v4276 = vpack.c.b16 %v4174, %v4171
        %v4277 = vpack.c.b16 %v4175, %v4172
        %v4278 = vpack.c.b16 %v4179, %v4176
        %v4279 = vpack.c.b16 %v4180, %v4177
        %v4280 = vpack.c.b16 %v4181, %v4178
        %v4281 = vpack.c.b16 %v4185, %v4182
        %v4282 = vpack.c.b16 %v4186, %v4183
        %v4283 = vpack.c.b16 %v4187, %v4184
        %v4284 = vpack.c.b16 %v4191, %v4188
        %v4285 = vpack.c.b16 %v4192, %v4189
        %v4286 = vpack.c.b16 %v4193, %v4190
        %v4287 = vpack.c.b16 %v4197, %v4194
        %v4288 = vpack.c.b16 %v4198, %v4195
        %v4289 = vpack.c.b16 %v4199, %v4196
        %v4290 = vpack.c.b16 %v4203, %v4200
        %v4291 = vpack.c.b16 %v4204, %v4201
        %v4292 = vpack.c.b16 %v4205, %v4202
        %v4293 = vpack.c.b16 %v4209, %v4206
        %v4294 = vpack.c.b16 %v4210, %v4207
        %v4295 = vpack.c.b16 %v4211, %v4208
        %v4296 = vpack.c.b16 %v4215, %v4212
        %v4297 = vpack.c.b16 %v4216, %v4213
        %v4298 = vpack.c.b16 %v4217, %v4214
        %v4299 = vpack.c.b16 %v4221, %v4218
        %v4300 = vpack.c.b16 %v4222, %v4219
        %v4301 = vpack.c.b16 %v4223, %v4220
        %v4302 = vpack.c.b16 %v4227, %v4224
        %v4303 = vpack.c.b16 %v4228, %v4225
        %v4304 = vpack.c.b16 %v4229, %v4226
        %v4305 = vpack.c.b16 %v4233, %v4230
        %v4306 = vpack.c.b16 %v4234, %v4231
        %v4307 = vpack.c.b16 %v4235, %v4232
        %4380 = vmatprep.subr.bf16.mxu0 %v4258
        %4381 = vmatpush1.bf16.msra.mxu0 %v4257
        %4382 = vmatprep.subr.bf16.mxu0 %v4255
        %4383 = vmatpush1.bf16.msra.mxu0 %v4254
        %4384 = vmatprep.subr.bf16.mxu0 %v4252
        %4385 = vmatpush1.bf16.msra.mxu0 %v4251
        %4386 = vmatprep.subr.bf16.mxu0 %v4249
        %4387 = vmatpush1.bf16.msra.mxu0 %v4248
        %4388 = vmatprep.subr.bf16.mxu0 %v4246
        %4389 = vmatpush1.bf16.msra.mxu0 %v4245
        %4390 = vmatprep.subr.bf16.mxu0 %v4243
        %4391 = vmatpush1.bf16.msra.mxu0 %v4242
        %4392 = vmatprep.subr.bf16.mxu0 %v4240
        %4393 = vmatpush1.bf16.msra.mxu0 %v4239
        %4394 = vmatprep.subr.bf16.mxu0 %v4237
        %4395 = vmatpush1.bf16.msra.mxu0 %v4236
        %4396 = vmatprep.subr.bf16.mxu0 %v4282
        %4397 = vmatpush2.bf16.msra.mxu0 %v4281
        %4398 = vmatprep.subr.bf16.mxu0 %v4279
        %4399 = vmatpush2.bf16.msra.mxu0 %v4278
        %4400 = vmatprep.subr.bf16.mxu0 %v4276
        %4401 = vmatpush2.bf16.msra.mxu0 %v4275
        %4402 = vmatprep.subr.bf16.mxu0 %v4273
        %4403 = vmatpush2.bf16.msra.mxu0 %v4272
        %4404 = vmatprep.subr.bf16.mxu0 %v4270
        %4405 = vmatpush2.bf16.msra.mxu0 %v4269
        %4406 = vmatprep.subr.bf16.mxu0 %v4267
        %4407 = vmatpush2.bf16.msra.mxu0 %v4266
        %4408 = vmatprep.subr.bf16.mxu0 %v4264
        %4409 = vmatpush2.bf16.msra.mxu0 %v4263
        %4410 = vmatprep.subr.bf16.mxu0 %v4261
        %4411 = vmatpush2.bf16.msra.mxu0 %v4260
        %4412 = vmatprep.mubr.bf16.mxu0 %v3877
        %4413 = vmatmul.mubr.bf16.gmra.mxu0 %v3876
        %v4414 = vpop.f32.mrf.mxu0
        %v4415 = vadd.f32 0.0, %v4414
        %v4416 = vpop.f32.mrf.mxu0
        %v4417 = vadd.f32 0.0, %v4416
        %v4418 = vpop.f32.mrf.mxu0
        %v4419 = vadd.f32 0.0, %v4418
        %v4420 = vpop.f32.mrf.mxu0
        %v4421 = vadd.f32 0.0, %v4420
        %4422 = vmatprep.mubr.bf16.mxu0 %v3883
        %4423 = vmatmul.mubr.bf16.gmra.mxu0 %v3882
        %v4424 = vpop.f32.mrf.mxu0
        %v4425 = vadd.f32 0.0, %v4424
        %v4426 = vpop.f32.mrf.mxu0
        %v4427 = vadd.f32 0.0, %v4426
        %v4428 = vpop.f32.mrf.mxu0
        %v4429 = vadd.f32 0.0, %v4428
        %v4430 = vpop.f32.mrf.mxu0
        %v4431 = vadd.f32 0.0, %v4430
        %4432 = vmatprep.mubr.bf16.mxu0 %v3889
        %4433 = vmatmul.mubr.bf16.gmra.mxu0 %v3888
        %v4434 = vpop.f32.mrf.mxu0
        %v4435 = vadd.f32 0.0, %v4434
        %v4436 = vpop.f32.mrf.mxu0
        %v4437 = vadd.f32 0.0, %v4436
        %v4438 = vpop.f32.mrf.mxu0
        %v4439 = vadd.f32 0.0, %v4438
        %v4440 = vpop.f32.mrf.mxu0
        %v4441 = vadd.f32 0.0, %v4440
        %4442 = vmatprep.mubr.bf16.mxu0 %v3895
        %4443 = vmatmul.mubr.bf16.gmra.mxu0 %v3894
        %v4444 = vpop.f32.mrf.mxu0
        %v4445 = vadd.f32 0.0, %v4444
        %v4446 = vpop.f32.mrf.mxu0
        %v4447 = vadd.f32 0.0, %v4446
        %v4448 = vpop.f32.mrf.mxu0
        %v4449 = vadd.f32 0.0, %v4448
        %v4450 = vpop.f32.mrf.mxu0
        %v4451 = vadd.f32 0.0, %v4450
        %4452 = vdwg.mxu0
        %4453 = vmatprep.subr.bf16.mxu0 %v4306
        %4454 = vmatpush1.bf16.msra.mxu0 %v4305
        %4455 = vmatprep.subr.bf16.mxu0 %v4303
        %4456 = vmatpush1.bf16.msra.mxu0 %v4302
        %4457 = vmatprep.subr.bf16.mxu0 %v4300
        %4458 = vmatpush1.bf16.msra.mxu0 %v4299
        %4459 = vmatprep.subr.bf16.mxu0 %v4297
        %4460 = vmatpush1.bf16.msra.mxu0 %v4296
        %4461 = vmatprep.subr.bf16.mxu0 %v4294
        %4462 = vmatpush1.bf16.msra.mxu0 %v4293
        %4463 = vmatprep.subr.bf16.mxu0 %v4291
        %4464 = vmatpush1.bf16.msra.mxu0 %v4290
        %4465 = vmatprep.subr.bf16.mxu0 %v4288
        %4466 = vmatpush1.bf16.msra.mxu0 %v4287
        %4467 = vmatprep.subr.bf16.mxu0 %v4285
        %4468 = vmatpush1.bf16.msra.mxu0 %v4284
        %4469 = vmatprep.subr.bf16.mxu0 0
        %4470 = vmatpush2.bf16.msra.mxu0 0
        %4471 = vmatprep.subr.bf16.mxu0 0
        %4472 = vmatpush2.bf16.msra.mxu0 0
        %4473 = vmatprep.subr.bf16.mxu0 0
        %4474 = vmatpush2.bf16.msra.mxu0 0
        %4475 = vmatprep.subr.bf16.mxu0 0
        %4476 = vmatpush2.bf16.msra.mxu0 0
        %4477 = vmatprep.subr.bf16.mxu0 0
        %4478 = vmatpush2.bf16.msra.mxu0 0
        %4479 = vmatprep.subr.bf16.mxu0 0
        %4480 = vmatpush2.bf16.msra.mxu0 0
        %4481 = vmatprep.subr.bf16.mxu0 0
        %4482 = vmatpush2.bf16.msra.mxu0 0
        %4483 = vmatprep.subr.bf16.mxu0 0
        %4484 = vmatpush2.bf16.msra.mxu0 0
        %4485 = vmatprep.mubr.bf16.mxu0 0
        %4486 = vmatmul.mubr.bf16.gmra.mxu0 %v3878
        %v4487 = vpop.f32.mrf.mxu0
        %v4488 = vadd.f32 %v4415, %v4487
        %v4489 = vpop.f32.mrf.mxu0
        %v4490 = vadd.f32 %v4417, %v4489
        %v4491 = vpop.f32.mrf.mxu0
        %v4492 = vadd.f32 %v4419, %v4491
        %v4493 = vpop.f32.mrf.mxu0
        %v4494 = vadd.f32 %v4421, %v4493
        %4495 = vmatprep.mubr.bf16.mxu0 0
        %4496 = vmatmul.mubr.bf16.gmra.mxu0 %v3884
        %v4497 = vpop.f32.mrf.mxu0
        %v4498 = vadd.f32 %v4425, %v4497
        %v4499 = vpop.f32.mrf.mxu0
        %v4500 = vadd.f32 %v4427, %v4499
        %v4501 = vpop.f32.mrf.mxu0
        %v4502 = vadd.f32 %v4429, %v4501
        %v4503 = vpop.f32.mrf.mxu0
        %v4504 = vadd.f32 %v4431, %v4503
        %4505 = vmatprep.mubr.bf16.mxu0 0
        %4506 = vmatmul.mubr.bf16.gmra.mxu0 %v3890
        %v4507 = vpop.f32.mrf.mxu0
        %v4508 = vadd.f32 %v4435, %v4507
        %v4509 = vpop.f32.mrf.mxu0
        %v4510 = vadd.f32 %v4437, %v4509
        %v4511 = vpop.f32.mrf.mxu0
        %v4512 = vadd.f32 %v4439, %v4511
        %v4513 = vpop.f32.mrf.mxu0
        %v4514 = vadd.f32 %v4441, %v4513
        %4515 = vmatprep.mubr.bf16.mxu0 0
        %4516 = vmatmul.mubr.bf16.gmra.mxu0 %v3896
        %v4517 = vpop.f32.mrf.mxu0
        %v4518 = vadd.f32 %v4445, %v4517
        %v4519 = vpop.f32.mrf.mxu0
        %v4520 = vadd.f32 %v4447, %v4519
        %v4521 = vpop.f32.mrf.mxu0
        %v4522 = vadd.f32 %v4449, %v4521
        %v4523 = vpop.f32.mrf.mxu0
        %v4524 = vadd.f32 %v4451, %v4523
        %4525 = vdwg.mxu0
        %4526 = vmatprep.subr.bf16.mxu0 0
        %4527 = vmatpush1.bf16.msra.mxu0 %v4259
        %4528 = vmatprep.subr.bf16.mxu0 0
        %4529 = vmatpush1.bf16.msra.mxu0 %v4256
        %4530 = vmatprep.subr.bf16.mxu0 0
        %4531 = vmatpush1.bf16.msra.mxu0 %v4253
        %4532 = vmatprep.subr.bf16.mxu0 0
        %4533 = vmatpush1.bf16.msra.mxu0 %v4250
        %4534 = vmatprep.subr.bf16.mxu0 0
        %4535 = vmatpush1.bf16.msra.mxu0 %v4247
        %4536 = vmatprep.subr.bf16.mxu0 0
        %4537 = vmatpush1.bf16.msra.mxu0 %v4244
        %4538 = vmatprep.subr.bf16.mxu0 0
        %4539 = vmatpush1.bf16.msra.mxu0 %v4241
        %4540 = vmatprep.subr.bf16.mxu0 0
        %4541 = vmatpush1.bf16.msra.mxu0 %v4238
        %4542 = vmatprep.subr.bf16.mxu0 0
        %4543 = vmatpush2.bf16.msra.mxu0 %v4283
        %4544 = vmatprep.subr.bf16.mxu0 0
        %4545 = vmatpush2.bf16.msra.mxu0 %v4280
        %4546 = vmatprep.subr.bf16.mxu0 0
        %4547 = vmatpush2.bf16.msra.mxu0 %v4277
        %4548 = vmatprep.subr.bf16.mxu0 0
        %4549 = vmatpush2.bf16.msra.mxu0 %v4274
        %4550 = vmatprep.subr.bf16.mxu0 0
        %4551 = vmatpush2.bf16.msra.mxu0 %v4271
        %4552 = vmatprep.subr.bf16.mxu0 0
        %4553 = vmatpush2.bf16.msra.mxu0 %v4268
        %4554 = vmatprep.subr.bf16.mxu0 0
        %4555 = vmatpush2.bf16.msra.mxu0 %v4265
        %4556 = vmatprep.subr.bf16.mxu0 0
        %4557 = vmatpush2.bf16.msra.mxu0 %v4262
        %4558 = vmatprep.mubr.bf16.mxu0 %v3877
        %4559 = vmatmul.mubr.bf16.gmra.mxu0 %v3876
        %v4560 = vpop.f32.mrf.mxu0
        %v4561 = vadd.f32 0.0, %v4560
        %v4562 = vpop.f32.mrf.mxu0
        %v4563 = vpop.f32.mrf.mxu0
        %v4564 = vadd.f32 0.0, %v4563
        %v4565 = vpop.f32.mrf.mxu0
        %4566 = vmatprep.mubr.bf16.mxu0 %v3883
        %4567 = vmatmul.mubr.bf16.gmra.mxu0 %v3882
        %v4568 = vpop.f32.mrf.mxu0
        %v4569 = vadd.f32 0.0, %v4568
        %v4570 = vpop.f32.mrf.mxu0
        %v4571 = vpop.f32.mrf.mxu0
        %v4572 = vadd.f32 0.0, %v4571
        %v4573 = vpop.f32.mrf.mxu0
        %4574 = vmatprep.mubr.bf16.mxu0 %v3889
        %4575 = vmatmul.mubr.bf16.gmra.mxu0 %v3888
        %v4576 = vpop.f32.mrf.mxu0
        %v4577 = vadd.f32 0.0, %v4576
        %v4578 = vpop.f32.mrf.mxu0
        %v4579 = vpop.f32.mrf.mxu0
        %v4580 = vadd.f32 0.0, %v4579
        %v4581 = vpop.f32.mrf.mxu0
        %4582 = vmatprep.mubr.bf16.mxu0 %v3895
        %4583 = vmatmul.mubr.bf16.gmra.mxu0 %v3894
        %v4584 = vpop.f32.mrf.mxu0
        %v4585 = vadd.f32 0.0, %v4584
        %v4586 = vpop.f32.mrf.mxu0
        %v4587 = vpop.f32.mrf.mxu0
        %v4588 = vadd.f32 0.0, %v4587
        %v4589 = vpop.f32.mrf.mxu0
        %4590 = vdwg.mxu0
        %4591 = vmatprep.subr.bf16.mxu0 0
        %4592 = vmatpush1.bf16.msra.mxu0 %v4307
        %4593 = vmatprep.subr.bf16.mxu0 0
        %4594 = vmatpush1.bf16.msra.mxu0 %v4304
        %4595 = vmatprep.subr.bf16.mxu0 0
        %4596 = vmatpush1.bf16.msra.mxu0 %v4301
        %4597 = vmatprep.subr.bf16.mxu0 0
        %4598 = vmatpush1.bf16.msra.mxu0 %v4298
        %4599 = vmatprep.subr.bf16.mxu0 0
        %4600 = vmatpush1.bf16.msra.mxu0 %v4295
        %4601 = vmatprep.subr.bf16.mxu0 0
        %4602 = vmatpush1.bf16.msra.mxu0 %v4292
        %4603 = vmatprep.subr.bf16.mxu0 0
        %4604 = vmatpush1.bf16.msra.mxu0 %v4289
        %4605 = vmatprep.subr.bf16.mxu0 0
        %4606 = vmatpush1.bf16.msra.mxu0 %v4286
        %4607 = vmatprep.subr.bf16.mxu0 0
        %4608 = vmatpush2.bf16.msra.mxu0 0
        %4609 = vmatprep.subr.bf16.mxu0 0
        %4610 = vmatpush2.bf16.msra.mxu0 0
        %4611 = vmatprep.subr.bf16.mxu0 0
        %4612 = vmatpush2.bf16.msra.mxu0 0
        %4613 = vmatprep.subr.bf16.mxu0 0
        %4614 = vmatpush2.bf16.msra.mxu0 0
        %4615 = vmatprep.subr.bf16.mxu0 0
        %4616 = vmatpush2.bf16.msra.mxu0 0
        %4617 = vmatprep.subr.bf16.mxu0 0
        %4618 = vmatpush2.bf16.msra.mxu0 0
        %4619 = vmatprep.subr.bf16.mxu0 0
        %4620 = vmatpush2.bf16.msra.mxu0 0
        %4621 = vmatprep.subr.bf16.mxu0 0
        %4622 = vmatpush2.bf16.msra.mxu0 0
        %4623 = vmatprep.mubr.bf16.mxu0 0
        %4624 = vmatmul.mubr.bf16.gmra.mxu0 %v3878
        %v4625 = vpop.f32.mrf.mxu0
        %v4626 = vadd.f32 %v4561, %v4625
        %v4627 = vpop.f32.mrf.mxu0
        %v4628 = vpop.f32.mrf.mxu0
        %v4629 = vadd.f32 %v4564, %v4628
        %v4630 = vpop.f32.mrf.mxu0
        %4631 = vmatprep.mubr.bf16.mxu0 0
        %4632 = vmatmul.mubr.bf16.gmra.mxu0 %v3884
        %v4633 = vpop.f32.mrf.mxu0
        %v4634 = vadd.f32 %v4569, %v4633
        %v4635 = vpop.f32.mrf.mxu0
        %v4636 = vpop.f32.mrf.mxu0
        %v4637 = vadd.f32 %v4572, %v4636
        %v4638 = vpop.f32.mrf.mxu0
        %4639 = vmatprep.mubr.bf16.mxu0 0
        %4640 = vmatmul.mubr.bf16.gmra.mxu0 %v3890
        %v4641 = vpop.f32.mrf.mxu0
        %v4642 = vadd.f32 %v4577, %v4641
        %v4643 = vpop.f32.mrf.mxu0
        %v4644 = vpop.f32.mrf.mxu0
        %v4645 = vadd.f32 %v4580, %v4644
        %v4646 = vpop.f32.mrf.mxu0
        %4647 = vmatprep.mubr.bf16.mxu0 0
        %4648 = vmatmul.mubr.bf16.gmra.mxu0 %v3896
        %v4649 = vpop.f32.mrf.mxu0
        %v4650 = vadd.f32 %v4585, %v4649
        %v4651 = vpop.f32.mrf.mxu0
        %v4652 = vpop.f32.mrf.mxu0
        %v4653 = vadd.f32 %v4588, %v4652
        %v4654 = vpop.f32.mrf.mxu0
        %4655 = vdwg.mxu0
        %s4656 = scalar_lea.vmem %s593, 576
        %v4657 = vld [vmem:[%s4656] sm:$0xff]
        %v4658 = vld [vmem:[%s4656 + $0x8] sm:$0xf]
        %v4659 = vld [vmem:[%s4656 + $0xc] sm:$0xff]
        %v4660 = vld [vmem:[%s4656 + $0x14] sm:$0xf]
        %v4661 = vld [vmem:[%s4656 + $0x18] sm:$0xff]
        %v4662 = vld [vmem:[%s4656 + $0x20] sm:$0xf]
        %v4663 = vld [vmem:[%s4656 + $0x24] sm:$0xff]
        %v4664 = vld [vmem:[%s4656 + $0x2c] sm:$0xf]
        %v4665 = vld [vmem:[%s4656 + $0x30] sm:$0xff]
        %v4666 = vld [vmem:[%s4656 + $0x38] sm:$0xf]
        %v4667 = vld [vmem:[%s4656 + $0x3c] sm:$0xff]
        %v4668 = vld [vmem:[%s4656 + $0x44] sm:$0xf]
        %v4669 = vld [vmem:[%s4656 + $0x48] sm:$0xff]
        %v4670 = vld [vmem:[%s4656 + $0x50] sm:$0xf]
        %v4671 = vld [vmem:[%s4656 + $0x54] sm:$0xff]
        %v4672 = vld [vmem:[%s4656 + $0x5c] sm:$0xf]
        %v4673 = vld [vmem:[%s4656 + $0x60] sm:$0xff]
        %v4674 = vld [vmem:[%s4656 + $0x68] sm:$0xf]
        %v4675 = vld [vmem:[%s4656 + $0x6c] sm:$0xff]
        %v4676 = vld [vmem:[%s4656 + $0x74] sm:$0xf]
        %v4677 = vld [vmem:[%s4656 + $0x78] sm:$0xff]
        %v4678 = vld [vmem:[%s4656 + $0x80] sm:$0xf]
        %v4679 = vld [vmem:[%s4656 + $0x84] sm:$0xff]
        %v4680 = vld [vmem:[%s4656 + $0x8c] sm:$0xf]
        %v4681 = vld [vmem:[%s4656 + $0x90] sm:$0xff]
        %v4682 = vld [vmem:[%s4656 + $0x98] sm:$0xf]
        %v4683 = vld [vmem:[%s4656 + $0x9c] sm:$0xff]
        %v4684 = vld [vmem:[%s4656 + $0xa4] sm:$0xf]
        %v4685 = vld [vmem:[%s4656 + $0xa8] sm:$0xff]
        %v4686 = vld [vmem:[%s4656 + $0xb0] sm:$0xf]
        %v4687 = vld [vmem:[%s4656 + $0xb4] sm:$0xff]
        %v4688 = vld [vmem:[%s4656 + $0xbc] sm:$0xf]
        %v4689 = vld [vmem:[%s4656 + $0xc0] sm:$0xff]
        %v4690 = vld [vmem:[%s4656 + $0xc8] sm:$0xf]
        %v4691 = vld [vmem:[%s4656 + $0xcc] sm:$0xff]
        %v4692 = vld [vmem:[%s4656 + $0xd4] sm:$0xf]
        %v4693 = vld [vmem:[%s4656 + $0xd8] sm:$0xff]
        %v4694 = vld [vmem:[%s4656 + $0xe0] sm:$0xf]
        %v4695 = vld [vmem:[%s4656 + $0xe4] sm:$0xff]
        %v4696 = vld [vmem:[%s4656 + $0xec] sm:$0xf]
        %v4697 = vld [vmem:[%s4656 + $0xf0] sm:$0xff]
        %v4698 = vld [vmem:[%s4656 + $0xf8] sm:$0xf]
        %v4699 = vld [vmem:[%s4656 + $0xfc] sm:$0xff]
        %v4700 = vld [vmem:[%s4656 + $0x104] sm:$0xf]
        %v4701 = vld [vmem:[%s4656 + $0x108] sm:$0xff]
        %v4702 = vld [vmem:[%s4656 + $0x110] sm:$0xf]
        %v4703 = vld [vmem:[%s4656 + $0x114] sm:$0xff]
        %v4704 = vld [vmem:[%s4656 + $0x11c] sm:$0xf]
        %v4705 = vld [vmem:[%s4656 + $0x120] sm:$0xff]
        %v4706 = vld [vmem:[%s4656 + $0x128] sm:$0xf]
        %v4707 = vld [vmem:[%s4656 + $0x12c] sm:$0xff]
        %v4708 = vld [vmem:[%s4656 + $0x134] sm:$0xf]
        %v4709 = vld [vmem:[%s4656 + $0x138] sm:$0xff]
        %v4710 = vld [vmem:[%s4656 + $0x140] sm:$0xf]
        %v4711 = vld [vmem:[%s4656 + $0x144] sm:$0xff]
        %v4712 = vld [vmem:[%s4656 + $0x14c] sm:$0xf]
        %v4713 = vld [vmem:[%s4656 + $0x150] sm:$0xff]
        %v4714 = vld [vmem:[%s4656 + $0x158] sm:$0xf]
        %v4715 = vld [vmem:[%s4656 + $0x15c] sm:$0xff]
        %v4716 = vld [vmem:[%s4656 + $0x164] sm:$0xf]
        %v4717 = vld [vmem:[%s4656 + $0x168] sm:$0xff]
        %v4718 = vld [vmem:[%s4656 + $0x170] sm:$0xf]
        %v4719 = vld [vmem:[%s4656 + $0x174] sm:$0xff]
        %v4720 = vld [vmem:[%s4656 + $0x17c] sm:$0xf]
        %v4721 = vld [vmem:[%s4656 + $0x180] sm:$0xff]
        %v4722 = vld [vmem:[%s4656 + $0x188] sm:$0xf]
        %v4723 = vld [vmem:[%s4656 + $0x18c] sm:$0xff]
        %v4724 = vld [vmem:[%s4656 + $0x194] sm:$0xf]
        %v4725 = vld [vmem:[%s4656 + $0x198] sm:$0xff]
        %v4726 = vld [vmem:[%s4656 + $0x1a0] sm:$0xf]
        %v4727 = vld [vmem:[%s4656 + $0x1a4] sm:$0xff]
        %v4728 = vld [vmem:[%s4656 + $0x1ac] sm:$0xf]
        %v4729 = vld [vmem:[%s4656 + $0x1b0] sm:$0xff]
        %v4730 = vld [vmem:[%s4656 + $0x1b8] sm:$0xf]
        %v4731 = vld [vmem:[%s4656 + $0x1bc] sm:$0xff]
        %v4732 = vld [vmem:[%s4656 + $0x1c4] sm:$0xf]
        %v4733 = vld [vmem:[%s4656 + $0x1c8] sm:$0xff]
        %v4734 = vld [vmem:[%s4656 + $0x1d0] sm:$0xf]
        %v4735 = vld [vmem:[%s4656 + $0x1d4] sm:$0xff]
        %v4736 = vld [vmem:[%s4656 + $0x1dc] sm:$0xf]
        %v4737 = vld [vmem:[%s4656 + $0x1e0] sm:$0xff]
        %v4738 = vld [vmem:[%s4656 + $0x1e8] sm:$0xf]
        %v4739 = vld [vmem:[%s4656 + $0x1ec] sm:$0xff]
        %v4740 = vld [vmem:[%s4656 + $0x1f4] sm:$0xf]
        %v4741 = vld [vmem:[%s4656 + $0x1f8] sm:$0xff]
        %v4742 = vld [vmem:[%s4656 + $0x200] sm:$0xf]
        %v4743 = vld [vmem:[%s4656 + $0x204] sm:$0xff]
        %v4744 = vld [vmem:[%s4656 + $0x20c] sm:$0xf]
        %v4745 = vld [vmem:[%s4656 + $0x210] sm:$0xff]
        %v4746 = vld [vmem:[%s4656 + $0x218] sm:$0xf]
        %v4747 = vld [vmem:[%s4656 + $0x21c] sm:$0xff]
        %v4748 = vld [vmem:[%s4656 + $0x224] sm:$0xf]
        %v4749 = vld [vmem:[%s4656 + $0x228] sm:$0xff]
        %v4750 = vld [vmem:[%s4656 + $0x230] sm:$0xf]
        %v4751 = vld [vmem:[%s4656 + $0x234] sm:$0xff]
        %v4752 = vld [vmem:[%s4656 + $0x23c] sm:$0xf]
        %v4849 = vunpack.c.l.b16 %v4657
        %v4850 = vunpack.c.h.b16 %v4657
        %v4851 = vunpack.c.l.b16 %v4658
        %v4852 = vunpack.c.l.b16 %v4659
        %v4853 = vunpack.c.h.b16 %v4659
        %v4854 = vunpack.c.l.b16 %v4660
        %v4855 = vunpack.c.l.b16 %v4661
        %v4856 = vunpack.c.h.b16 %v4661
        %v4857 = vunpack.c.l.b16 %v4662
        %v4858 = vunpack.c.l.b16 %v4663
        %v4859 = vunpack.c.h.b16 %v4663
        %v4860 = vunpack.c.l.b16 %v4664
        %v4861 = vunpack.c.l.b16 %v4665
        %v4862 = vunpack.c.h.b16 %v4665
        %v4863 = vunpack.c.l.b16 %v4666
        %v4864 = vunpack.c.l.b16 %v4667
        %v4865 = vunpack.c.h.b16 %v4667
        %v4866 = vunpack.c.l.b16 %v4668
        %v4867 = vunpack.c.l.b16 %v4669
        %v4868 = vunpack.c.h.b16 %v4669
        %v4869 = vunpack.c.l.b16 %v4670
        %v4870 = vunpack.c.l.b16 %v4671
        %v4871 = vunpack.c.h.b16 %v4671
        %v4872 = vunpack.c.l.b16 %v4672
        %v4873 = vunpack.c.l.b16 %v4673
        %v4874 = vunpack.c.h.b16 %v4673
        %v4875 = vunpack.c.l.b16 %v4674
        %v4876 = vunpack.c.l.b16 %v4675
        %v4877 = vunpack.c.h.b16 %v4675
        %v4878 = vunpack.c.l.b16 %v4676
        %v4879 = vunpack.c.l.b16 %v4677
        %v4880 = vunpack.c.h.b16 %v4677
        %v4881 = vunpack.c.l.b16 %v4678
        %v4882 = vunpack.c.l.b16 %v4679
        %v4883 = vunpack.c.h.b16 %v4679
        %v4884 = vunpack.c.l.b16 %v4680
        %v4885 = vunpack.c.l.b16 %v4681
        %v4886 = vunpack.c.h.b16 %v4681
        %v4887 = vunpack.c.l.b16 %v4682
        %v4888 = vunpack.c.l.b16 %v4683
        %v4889 = vunpack.c.h.b16 %v4683
        %v4890 = vunpack.c.l.b16 %v4684
        %v4891 = vunpack.c.l.b16 %v4685
        %v4892 = vunpack.c.h.b16 %v4685
        %v4893 = vunpack.c.l.b16 %v4686
        %v4894 = vunpack.c.l.b16 %v4687
        %v4895 = vunpack.c.h.b16 %v4687
        %v4896 = vunpack.c.l.b16 %v4688
        %v4897 = vunpack.c.l.b16 %v4689
        %v4898 = vunpack.c.h.b16 %v4689
        %v4899 = vunpack.c.l.b16 %v4690
        %v4900 = vunpack.c.l.b16 %v4691
        %v4901 = vunpack.c.h.b16 %v4691
        %v4902 = vunpack.c.l.b16 %v4692
        %v4903 = vunpack.c.l.b16 %v4693
        %v4904 = vunpack.c.h.b16 %v4693
        %v4905 = vunpack.c.l.b16 %v4694
        %v4906 = vunpack.c.l.b16 %v4695
        %v4907 = vunpack.c.h.b16 %v4695
        %v4908 = vunpack.c.l.b16 %v4696
        %v4909 = vunpack.c.l.b16 %v4697
        %v4910 = vunpack.c.h.b16 %v4697
        %v4911 = vunpack.c.l.b16 %v4698
        %v4912 = vunpack.c.l.b16 %v4699
        %v4913 = vunpack.c.h.b16 %v4699
        %v4914 = vunpack.c.l.b16 %v4700
        %v4915 = vunpack.c.l.b16 %v4701
        %v4916 = vunpack.c.h.b16 %v4701
        %v4917 = vunpack.c.l.b16 %v4702
        %v4918 = vunpack.c.l.b16 %v4703
        %v4919 = vunpack.c.h.b16 %v4703
        %v4920 = vunpack.c.l.b16 %v4704
        %v4921 = vunpack.c.l.b16 %v4705
        %v4922 = vunpack.c.h.b16 %v4705
        %v4923 = vunpack.c.l.b16 %v4706
        %v4924 = vunpack.c.l.b16 %v4707
        %v4925 = vunpack.c.h.b16 %v4707
        %v4926 = vunpack.c.l.b16 %v4708
        %v4927 = vunpack.c.l.b16 %v4709
        %v4928 = vunpack.c.h.b16 %v4709
        %v4929 = vunpack.c.l.b16 %v4710
        %v4930 = vunpack.c.l.b16 %v4711
        %v4931 = vunpack.c.h.b16 %v4711
        %v4932 = vunpack.c.l.b16 %v4712
        %v4933 = vunpack.c.l.b16 %v4713
        %v4934 = vunpack.c.h.b16 %v4713
        %v4935 = vunpack.c.l.b16 %v4714
        %v4936 = vunpack.c.l.b16 %v4715
        %v4937 = vunpack.c.h.b16 %v4715
        %v4938 = vunpack.c.l.b16 %v4716
        %v4939 = vunpack.c.l.b16 %v4717
        %v4940 = vunpack.c.h.b16 %v4717
        %v4941 = vunpack.c.l.b16 %v4718
        %v4942 = vunpack.c.l.b16 %v4719
        %v4943 = vunpack.c.h.b16 %v4719
        %v4944 = vunpack.c.l.b16 %v4720
        %v4945 = vunpack.c.l.b16 %v4721
        %v4946 = vunpack.c.h.b16 %v4721
        %v4947 = vunpack.c.l.b16 %v4722
        %v4948 = vunpack.c.l.b16 %v4723
        %v4949 = vunpack.c.h.b16 %v4723
        %v4950 = vunpack.c.l.b16 %v4724
        %v4951 = vunpack.c.l.b16 %v4725
        %v4952 = vunpack.c.h.b16 %v4725
        %v4953 = vunpack.c.l.b16 %v4726
        %v4954 = vunpack.c.l.b16 %v4727
        %v4955 = vunpack.c.h.b16 %v4727
        %v4956 = vunpack.c.l.b16 %v4728
        %v4957 = vunpack.c.l.b16 %v4729
        %v4958 = vunpack.c.h.b16 %v4729
        %v4959 = vunpack.c.l.b16 %v4730
        %v4960 = vunpack.c.l.b16 %v4731
        %v4961 = vunpack.c.h.b16 %v4731
        %v4962 = vunpack.c.l.b16 %v4732
        %v4963 = vunpack.c.l.b16 %v4733
        %v4964 = vunpack.c.h.b16 %v4733
        %v4965 = vunpack.c.l.b16 %v4734
        %v4966 = vunpack.c.l.b16 %v4735
        %v4967 = vunpack.c.h.b16 %v4735
        %v4968 = vunpack.c.l.b16 %v4736
        %v4969 = vunpack.c.l.b16 %v4737
        %v4970 = vunpack.c.h.b16 %v4737
        %v4971 = vunpack.c.l.b16 %v4738
        %v4972 = vunpack.c.l.b16 %v4739
        %v4973 = vunpack.c.h.b16 %v4739
        %v4974 = vunpack.c.l.b16 %v4740
        %v4975 = vunpack.c.l.b16 %v4741
        %v4976 = vunpack.c.h.b16 %v4741
        %v4977 = vunpack.c.l.b16 %v4742
        %v4978 = vunpack.c.l.b16 %v4743
        %v4979 = vunpack.c.h.b16 %v4743
        %v4980 = vunpack.c.l.b16 %v4744
        %v4981 = vunpack.c.l.b16 %v4745
        %v4982 = vunpack.c.h.b16 %v4745
        %v4983 = vunpack.c.l.b16 %v4746
        %v4984 = vunpack.c.l.b16 %v4747
        %v4985 = vunpack.c.h.b16 %v4747
        %v4986 = vunpack.c.l.b16 %v4748
        %v4987 = vunpack.c.l.b16 %v4749
        %v4988 = vunpack.c.h.b16 %v4749
        %v4989 = vunpack.c.l.b16 %v4750
        %v4990 = vunpack.c.l.b16 %v4751
        %v4991 = vunpack.c.h.b16 %v4751
        %v4992 = vunpack.c.l.b16 %v4752
        %v4993 = vpack.c.b16 %v4852, %v4849
        %v4994 = vpack.c.b16 %v4853, %v4850
        %v4995 = vpack.c.b16 %v4854, %v4851
        %v4996 = vpack.c.b16 %v4858, %v4855
        %v4997 = vpack.c.b16 %v4859, %v4856
        %v4998 = vpack.c.b16 %v4860, %v4857
        %v4999 = vpack.c.b16 %v4864, %v4861
        %v5000 = vpack.c.b16 %v4865, %v4862
        %v5001 = vpack.c.b16 %v4866, %v4863
        %v5002 = vpack.c.b16 %v4870, %v4867
        %v5003 = vpack.c.b16 %v4871, %v4868
        %v5004 = vpack.c.b16 %v4872, %v4869
        %v5005 = vpack.c.b16 %v4876, %v4873
        %v5006 = vpack.c.b16 %v4877, %v4874
        %v5007 = vpack.c.b16 %v4878, %v4875
        %v5008 = vpack.c.b16 %v4882, %v4879
        %v5009 = vpack.c.b16 %v4883, %v4880
        %v5010 = vpack.c.b16 %v4884, %v4881
        %v5011 = vpack.c.b16 %v4888, %v4885
        %v5012 = vpack.c.b16 %v4889, %v4886
        %v5013 = vpack.c.b16 %v4890, %v4887
        %v5014 = vpack.c.b16 %v4894, %v4891
        %v5015 = vpack.c.b16 %v4895, %v4892
        %v5016 = vpack.c.b16 %v4896, %v4893
        %v5017 = vpack.c.b16 %v4900, %v4897
        %v5018 = vpack.c.b16 %v4901, %v4898
        %v5019 = vpack.c.b16 %v4902, %v4899
        %v5020 = vpack.c.b16 %v4906, %v4903
        %v5021 = vpack.c.b16 %v4907, %v4904
        %v5022 = vpack.c.b16 %v4908, %v4905
        %v5023 = vpack.c.b16 %v4912, %v4909
        %v5024 = vpack.c.b16 %v4913, %v4910
        %v5025 = vpack.c.b16 %v4914, %v4911
        %v5026 = vpack.c.b16 %v4918, %v4915
        %v5027 = vpack.c.b16 %v4919, %v4916
        %v5028 = vpack.c.b16 %v4920, %v4917
        %v5029 = vpack.c.b16 %v4924, %v4921
        %v5030 = vpack.c.b16 %v4925, %v4922
        %v5031 = vpack.c.b16 %v4926, %v4923
        %v5032 = vpack.c.b16 %v4930, %v4927
        %v5033 = vpack.c.b16 %v4931, %v4928
        %v5034 = vpack.c.b16 %v4932, %v4929
        %v5035 = vpack.c.b16 %v4936, %v4933
        %v5036 = vpack.c.b16 %v4937, %v4934
        %v5037 = vpack.c.b16 %v4938, %v4935
        %v5038 = vpack.c.b16 %v4942, %v4939
        %v5039 = vpack.c.b16 %v4943, %v4940
        %v5040 = vpack.c.b16 %v4944, %v4941
        %v5041 = vpack.c.b16 %v4948, %v4945
        %v5042 = vpack.c.b16 %v4949, %v4946
        %v5043 = vpack.c.b16 %v4950, %v4947
        %v5044 = vpack.c.b16 %v4954, %v4951
        %v5045 = vpack.c.b16 %v4955, %v4952
        %v5046 = vpack.c.b16 %v4956, %v4953
        %v5047 = vpack.c.b16 %v4960, %v4957
        %v5048 = vpack.c.b16 %v4961, %v4958
        %v5049 = vpack.c.b16 %v4962, %v4959
        %v5050 = vpack.c.b16 %v4966, %v4963
        %v5051 = vpack.c.b16 %v4967, %v4964
        %v5052 = vpack.c.b16 %v4968, %v4965
        %v5053 = vpack.c.b16 %v4972, %v4969
        %v5054 = vpack.c.b16 %v4973, %v4970
        %v5055 = vpack.c.b16 %v4974, %v4971
        %v5056 = vpack.c.b16 %v4978, %v4975
        %v5057 = vpack.c.b16 %v4979, %v4976
        %v5058 = vpack.c.b16 %v4980, %v4977
        %v5059 = vpack.c.b16 %v4984, %v4981
        %v5060 = vpack.c.b16 %v4985, %v4982
        %v5061 = vpack.c.b16 %v4986, %v4983
        %v5062 = vpack.c.b16 %v4990, %v4987
        %v5063 = vpack.c.b16 %v4991, %v4988
        %v5064 = vpack.c.b16 %v4992, %v4989
        %5137 = vmatprep.subr.bf16.mxu0 %v5015
        %5138 = vmatpush1.bf16.msra.mxu0 %v5014
        %5139 = vmatprep.subr.bf16.mxu0 %v5012
        %5140 = vmatpush1.bf16.msra.mxu0 %v5011
        %5141 = vmatprep.subr.bf16.mxu0 %v5009
        %5142 = vmatpush1.bf16.msra.mxu0 %v5008
        %5143 = vmatprep.subr.bf16.mxu0 %v5006
        %5144 = vmatpush1.bf16.msra.mxu0 %v5005
        %5145 = vmatprep.subr.bf16.mxu0 %v5003
        %5146 = vmatpush1.bf16.msra.mxu0 %v5002
        %5147 = vmatprep.subr.bf16.mxu0 %v5000
        %5148 = vmatpush1.bf16.msra.mxu0 %v4999
        %5149 = vmatprep.subr.bf16.mxu0 %v4997
        %5150 = vmatpush1.bf16.msra.mxu0 %v4996
        %5151 = vmatprep.subr.bf16.mxu0 %v4994
        %5152 = vmatpush1.bf16.msra.mxu0 %v4993
        %5153 = vmatprep.subr.bf16.mxu0 %v5039
        %5154 = vmatpush2.bf16.msra.mxu0 %v5038
        %5155 = vmatprep.subr.bf16.mxu0 %v5036
        %5156 = vmatpush2.bf16.msra.mxu0 %v5035
        %5157 = vmatprep.subr.bf16.mxu0 %v5033
        %5158 = vmatpush2.bf16.msra.mxu0 %v5032
        %5159 = vmatprep.subr.bf16.mxu0 %v5030
        %5160 = vmatpush2.bf16.msra.mxu0 %v5029
        %5161 = vmatprep.subr.bf16.mxu0 %v5027
        %5162 = vmatpush2.bf16.msra.mxu0 %v5026
        %5163 = vmatprep.subr.bf16.mxu0 %v5024
        %5164 = vmatpush2.bf16.msra.mxu0 %v5023
        %5165 = vmatprep.subr.bf16.mxu0 %v5021
        %5166 = vmatpush2.bf16.msra.mxu0 %v5020
        %5167 = vmatprep.subr.bf16.mxu0 %v5018
        %5168 = vmatpush2.bf16.msra.mxu0 %v5017
        %5169 = vmatprep.mubr.bf16.mxu0 %v3880
        %5170 = vmatmul.mubr.bf16.gmra.mxu0 %v3879
        %v5171 = vpop.f32.mrf.mxu0
        %v5172 = vadd.f32 0.0, %v5171
        %v5173 = vpop.f32.mrf.mxu0
        %v5174 = vadd.f32 0.0, %v5173
        %v5175 = vpop.f32.mrf.mxu0
        %v5176 = vadd.f32 0.0, %v5175
        %v5177 = vpop.f32.mrf.mxu0
        %v5178 = vadd.f32 0.0, %v5177
        %5179 = vmatprep.mubr.bf16.mxu0 %v3886
        %5180 = vmatmul.mubr.bf16.gmra.mxu0 %v3885
        %v5181 = vpop.f32.mrf.mxu0
        %v5182 = vadd.f32 0.0, %v5181
        %v5183 = vpop.f32.mrf.mxu0
        %v5184 = vadd.f32 0.0, %v5183
        %v5185 = vpop.f32.mrf.mxu0
        %v5186 = vadd.f32 0.0, %v5185
        %v5187 = vpop.f32.mrf.mxu0
        %v5188 = vadd.f32 0.0, %v5187
        %5189 = vmatprep.mubr.bf16.mxu0 %v3892
        %5190 = vmatmul.mubr.bf16.gmra.mxu0 %v3891
        %v5191 = vpop.f32.mrf.mxu0
        %v5192 = vadd.f32 0.0, %v5191
        %v5193 = vpop.f32.mrf.mxu0
        %v5194 = vadd.f32 0.0, %v5193
        %v5195 = vpop.f32.mrf.mxu0
        %v5196 = vadd.f32 0.0, %v5195
        %v5197 = vpop.f32.mrf.mxu0
        %v5198 = vadd.f32 0.0, %v5197
        %5199 = vmatprep.mubr.bf16.mxu0 %v3898
        %5200 = vmatmul.mubr.bf16.gmra.mxu0 %v3897
        %v5201 = vpop.f32.mrf.mxu0
        %v5202 = vadd.f32 0.0, %v5201
        %v5203 = vpop.f32.mrf.mxu0
        %v5204 = vadd.f32 0.0, %v5203
        %v5205 = vpop.f32.mrf.mxu0
        %v5206 = vadd.f32 0.0, %v5205
        %v5207 = vpop.f32.mrf.mxu0
        %v5208 = vadd.f32 0.0, %v5207
        %5209 = vdwg.mxu0
        %5210 = vmatprep.subr.bf16.mxu0 %v5063
        %5211 = vmatpush1.bf16.msra.mxu0 %v5062
        %5212 = vmatprep.subr.bf16.mxu0 %v5060
        %5213 = vmatpush1.bf16.msra.mxu0 %v5059
        %5214 = vmatprep.subr.bf16.mxu0 %v5057
        %5215 = vmatpush1.bf16.msra.mxu0 %v5056
        %5216 = vmatprep.subr.bf16.mxu0 %v5054
        %5217 = vmatpush1.bf16.msra.mxu0 %v5053
        %5218 = vmatprep.subr.bf16.mxu0 %v5051
        %5219 = vmatpush1.bf16.msra.mxu0 %v5050
        %5220 = vmatprep.subr.bf16.mxu0 %v5048
        %5221 = vmatpush1.bf16.msra.mxu0 %v5047
        %5222 = vmatprep.subr.bf16.mxu0 %v5045
        %5223 = vmatpush1.bf16.msra.mxu0 %v5044
        %5224 = vmatprep.subr.bf16.mxu0 %v5042
        %5225 = vmatpush1.bf16.msra.mxu0 %v5041
        %5226 = vmatprep.subr.bf16.mxu0 0
        %5227 = vmatpush2.bf16.msra.mxu0 0
        %5228 = vmatprep.subr.bf16.mxu0 0
        %5229 = vmatpush2.bf16.msra.mxu0 0
        %5230 = vmatprep.subr.bf16.mxu0 0
        %5231 = vmatpush2.bf16.msra.mxu0 0
        %5232 = vmatprep.subr.bf16.mxu0 0
        %5233 = vmatpush2.bf16.msra.mxu0 0
        %5234 = vmatprep.subr.bf16.mxu0 0
        %5235 = vmatpush2.bf16.msra.mxu0 0
        %5236 = vmatprep.subr.bf16.mxu0 0
        %5237 = vmatpush2.bf16.msra.mxu0 0
        %5238 = vmatprep.subr.bf16.mxu0 0
        %5239 = vmatpush2.bf16.msra.mxu0 0
        %5240 = vmatprep.subr.bf16.mxu0 0
        %5241 = vmatpush2.bf16.msra.mxu0 0
        %5242 = vmatprep.mubr.bf16.mxu0 0
        %5243 = vmatmul.mubr.bf16.gmra.mxu0 %v3881
        %v5244 = vpop.f32.mrf.mxu0
        %v5245 = vadd.f32 %v5172, %v5244
        %v5246 = vpop.f32.mrf.mxu0
        %v5247 = vadd.f32 %v5174, %v5246
        %v5248 = vpop.f32.mrf.mxu0
        %v5249 = vadd.f32 %v5176, %v5248
        %v5250 = vpop.f32.mrf.mxu0
        %v5251 = vadd.f32 %v5178, %v5250
        %5252 = vmatprep.mubr.bf16.mxu0 0
        %5253 = vmatmul.mubr.bf16.gmra.mxu0 %v3887
        %v5254 = vpop.f32.mrf.mxu0
        %v5255 = vadd.f32 %v5182, %v5254
        %v5256 = vpop.f32.mrf.mxu0
        %v5257 = vadd.f32 %v5184, %v5256
        %v5258 = vpop.f32.mrf.mxu0
        %v5259 = vadd.f32 %v5186, %v5258
        %v5260 = vpop.f32.mrf.mxu0
        %v5261 = vadd.f32 %v5188, %v5260
        %5262 = vmatprep.mubr.bf16.mxu0 0
        %5263 = vmatmul.mubr.bf16.gmra.mxu0 %v3893
        %v5264 = vpop.f32.mrf.mxu0
        %v5265 = vadd.f32 %v5192, %v5264
        %v5266 = vpop.f32.mrf.mxu0
        %v5267 = vadd.f32 %v5194, %v5266
        %v5268 = vpop.f32.mrf.mxu0
        %v5269 = vadd.f32 %v5196, %v5268
        %v5270 = vpop.f32.mrf.mxu0
        %v5271 = vadd.f32 %v5198, %v5270
        %5272 = vmatprep.mubr.bf16.mxu0 0
        %5273 = vmatmul.mubr.bf16.gmra.mxu0 %v3899
        %v5274 = vpop.f32.mrf.mxu0
        %v5275 = vadd.f32 %v5202, %v5274
        %v5276 = vpop.f32.mrf.mxu0
        %v5277 = vadd.f32 %v5204, %v5276
        %v5278 = vpop.f32.mrf.mxu0
        %v5279 = vadd.f32 %v5206, %v5278
        %v5280 = vpop.f32.mrf.mxu0
        %v5281 = vadd.f32 %v5208, %v5280
        %5282 = vdwg.mxu0
        %5283 = vmatprep.subr.bf16.mxu0 0
        %5284 = vmatpush1.bf16.msra.mxu0 %v5016
        %5285 = vmatprep.subr.bf16.mxu0 0
        %5286 = vmatpush1.bf16.msra.mxu0 %v5013
        %5287 = vmatprep.subr.bf16.mxu0 0
        %5288 = vmatpush1.bf16.msra.mxu0 %v5010
        %5289 = vmatprep.subr.bf16.mxu0 0
        %5290 = vmatpush1.bf16.msra.mxu0 %v5007
        %5291 = vmatprep.subr.bf16.mxu0 0
        %5292 = vmatpush1.bf16.msra.mxu0 %v5004
        %5293 = vmatprep.subr.bf16.mxu0 0
        %5294 = vmatpush1.bf16.msra.mxu0 %v5001
        %5295 = vmatprep.subr.bf16.mxu0 0
        %5296 = vmatpush1.bf16.msra.mxu0 %v4998
        %5297 = vmatprep.subr.bf16.mxu0 0
        %5298 = vmatpush1.bf16.msra.mxu0 %v4995
        %5299 = vmatprep.subr.bf16.mxu0 0
        %5300 = vmatpush2.bf16.msra.mxu0 %v5040
        %5301 = vmatprep.subr.bf16.mxu0 0
        %5302 = vmatpush2.bf16.msra.mxu0 %v5037
        %5303 = vmatprep.subr.bf16.mxu0 0
        %5304 = vmatpush2.bf16.msra.mxu0 %v5034
        %5305 = vmatprep.subr.bf16.mxu0 0
        %5306 = vmatpush2.bf16.msra.mxu0 %v5031
        %5307 = vmatprep.subr.bf16.mxu0 0
        %5308 = vmatpush2.bf16.msra.mxu0 %v5028
        %5309 = vmatprep.subr.bf16.mxu0 0
        %5310 = vmatpush2.bf16.msra.mxu0 %v5025
        %5311 = vmatprep.subr.bf16.mxu0 0
        %5312 = vmatpush2.bf16.msra.mxu0 %v5022
        %5313 = vmatprep.subr.bf16.mxu0 0
        %5314 = vmatpush2.bf16.msra.mxu0 %v5019
        %5315 = vmatprep.mubr.bf16.mxu0 %v3880
        %5316 = vmatmul.mubr.bf16.gmra.mxu0 %v3879
        %v5317 = vpop.f32.mrf.mxu0
        %v5318 = vadd.f32 0.0, %v5317
        %v5319 = vpop.f32.mrf.mxu0
        %v5320 = vpop.f32.mrf.mxu0
        %v5321 = vadd.f32 0.0, %v5320
        %v5322 = vpop.f32.mrf.mxu0
        %5323 = vmatprep.mubr.bf16.mxu0 %v3886
        %5324 = vmatmul.mubr.bf16.gmra.mxu0 %v3885
        %v5325 = vpop.f32.mrf.mxu0
        %v5326 = vadd.f32 0.0, %v5325
        %v5327 = vpop.f32.mrf.mxu0
        %v5328 = vpop.f32.mrf.mxu0
        %v5329 = vadd.f32 0.0, %v5328
        %v5330 = vpop.f32.mrf.mxu0
        %5331 = vmatprep.mubr.bf16.mxu0 %v3892
        %5332 = vmatmul.mubr.bf16.gmra.mxu0 %v3891
        %v5333 = vpop.f32.mrf.mxu0
        %v5334 = vadd.f32 0.0, %v5333
        %v5335 = vpop.f32.mrf.mxu0
        %v5336 = vpop.f32.mrf.mxu0
        %v5337 = vadd.f32 0.0, %v5336
        %v5338 = vpop.f32.mrf.mxu0
        %5339 = vmatprep.mubr.bf16.mxu0 %v3898
        %5340 = vmatmul.mubr.bf16.gmra.mxu0 %v3897
        %v5341 = vpop.f32.mrf.mxu0
        %v5342 = vadd.f32 0.0, %v5341
        %v5343 = vpop.f32.mrf.mxu0
        %v5344 = vpop.f32.mrf.mxu0
        %v5345 = vadd.f32 0.0, %v5344
        %v5346 = vpop.f32.mrf.mxu0
        %5347 = vdwg.mxu0
        %5348 = vmatprep.subr.bf16.mxu0 0
        %5349 = vmatpush1.bf16.msra.mxu0 %v5064
        %5350 = vmatprep.subr.bf16.mxu0 0
        %5351 = vmatpush1.bf16.msra.mxu0 %v5061
        %5352 = vmatprep.subr.bf16.mxu0 0
        %5353 = vmatpush1.bf16.msra.mxu0 %v5058
        %5354 = vmatprep.subr.bf16.mxu0 0
        %5355 = vmatpush1.bf16.msra.mxu0 %v5055
        %5356 = vmatprep.subr.bf16.mxu0 0
        %5357 = vmatpush1.bf16.msra.mxu0 %v5052
        %5358 = vmatprep.subr.bf16.mxu0 0
        %5359 = vmatpush1.bf16.msra.mxu0 %v5049
        %5360 = vmatprep.subr.bf16.mxu0 0
        %5361 = vmatpush1.bf16.msra.mxu0 %v5046
        %5362 = vmatprep.subr.bf16.mxu0 0
        %5363 = vmatpush1.bf16.msra.mxu0 %v5043
        %5364 = vmatprep.subr.bf16.mxu0 0
        %5365 = vmatpush2.bf16.msra.mxu0 0
        %5366 = vmatprep.subr.bf16.mxu0 0
        %5367 = vmatpush2.bf16.msra.mxu0 0
        %5368 = vmatprep.subr.bf16.mxu0 0
        %5369 = vmatpush2.bf16.msra.mxu0 0
        %5370 = vmatprep.subr.bf16.mxu0 0
        %5371 = vmatpush2.bf16.msra.mxu0 0
        %5372 = vmatprep.subr.bf16.mxu0 0
        %5373 = vmatpush2.bf16.msra.mxu0 0
        %5374 = vmatprep.subr.bf16.mxu0 0
        %5375 = vmatpush2.bf16.msra.mxu0 0
        %5376 = vmatprep.subr.bf16.mxu0 0
        %5377 = vmatpush2.bf16.msra.mxu0 0
        %5378 = vmatprep.subr.bf16.mxu0 0
        %5379 = vmatpush2.bf16.msra.mxu0 0
        %5380 = vmatprep.mubr.bf16.mxu0 0
        %5381 = vmatmul.mubr.bf16.gmra.mxu0 %v3881
        %v5382 = vpop.f32.mrf.mxu0
        %v5383 = vadd.f32 %v5318, %v5382
        %v5384 = vpop.f32.mrf.mxu0
        %v5385 = vpop.f32.mrf.mxu0
        %v5386 = vadd.f32 %v5321, %v5385
        %v5387 = vpop.f32.mrf.mxu0
        %5388 = vmatprep.mubr.bf16.mxu0 0
        %5389 = vmatmul.mubr.bf16.gmra.mxu0 %v3887
        %v5390 = vpop.f32.mrf.mxu0
        %v5391 = vadd.f32 %v5326, %v5390
        %v5392 = vpop.f32.mrf.mxu0
        %v5393 = vpop.f32.mrf.mxu0
        %v5394 = vadd.f32 %v5329, %v5393
        %v5395 = vpop.f32.mrf.mxu0
        %5396 = vmatprep.mubr.bf16.mxu0 0
        %5397 = vmatmul.mubr.bf16.gmra.mxu0 %v3893
        %v5398 = vpop.f32.mrf.mxu0
        %v5399 = vadd.f32 %v5334, %v5398
        %v5400 = vpop.f32.mrf.mxu0
        %v5401 = vpop.f32.mrf.mxu0
        %v5402 = vadd.f32 %v5337, %v5401
        %v5403 = vpop.f32.mrf.mxu0
        %5404 = vmatprep.mubr.bf16.mxu0 0
        %5405 = vmatmul.mubr.bf16.gmra.mxu0 %v3899
        %v5406 = vpop.f32.mrf.mxu0
        %v5407 = vadd.f32 %v5342, %v5406
        %v5408 = vpop.f32.mrf.mxu0
        %v5409 = vpop.f32.mrf.mxu0
        %v5410 = vadd.f32 %v5345, %v5409
        %v5411 = vpop.f32.mrf.mxu0
        %5412 = vdwg.mxu0
        %v5413 = vld [vmem:[%s7] sm:$0xff]
        %v5414 = vld [vmem:[%s7 + $0x8] sm:$0xff]
        %v5415 = vld [vmem:[%s7 + $0x10] sm:$0xff]
        %v5416 = vld [vmem:[%s7 + $0x18] sm:$0xff]
        %v5417 = vld [vmem:[%s7 + $0x20] sm:$0xff]
        %v5418 = vld [vmem:[%s7 + $0x28] sm:$0xff]
        %v5419 = vld [vmem:[%s7 + $0x30] sm:$0xff]
        %v5420 = vld [vmem:[%s7 + $0x38] sm:$0xff]
        %5422 = vset.pattern.permute.xlu0 0
        %5423 = vperm.xlu0 %5422, %v5413
        %v5424 = vpop.permute.xlu0 %5423
        %5427 = vset.pattern.permute.xlu0 0
        %5428 = vperm.xlu0 %5427, %v5414
        %v5429 = vpop.permute.xlu0 %5428
        %5432 = vset.pattern.permute.xlu0 0
        %5433 = vperm.xlu0 %5432, %v5415
        %v5434 = vpop.permute.xlu0 %5433
        %5437 = vset.pattern.permute.xlu0 0
        %5438 = vperm.xlu0 %5437, %v5416
        %v5439 = vpop.permute.xlu0 %5438
        %5442 = vset.pattern.permute.xlu0 0
        %5443 = vperm.xlu0 %5442, %v5417
        %v5444 = vpop.permute.xlu0 %5443
        %5447 = vset.pattern.permute.xlu0 0
        %5448 = vperm.xlu0 %5447, %v5418
        %v5449 = vpop.permute.xlu0 %5448
        %5452 = vset.pattern.permute.xlu0 0
        %5453 = vperm.xlu0 %5452, %v5419
        %v5454 = vpop.permute.xlu0 %5453
        %5457 = vset.pattern.permute.xlu0 0
        %5458 = vperm.xlu0 %5457, %v5420
        %v5459 = vpop.permute.xlu0 %5458
        %v5461 = vadd.f32 %v4488, %v5424
        %v5462 = vadd.f32 %v4490, %v5424
        %v5463 = vadd.f32 %v4626, %v5424
        %v5464 = vadd.f32 %v5245, %v5424
        %v5465 = vadd.f32 %v5247, %v5424
        %v5466 = vadd.f32 %v5383, %v5424
        %v5467 = vadd.f32 %v4492, %v5429
        %v5468 = vadd.f32 %v4494, %v5429
        %v5469 = vadd.f32 %v4629, %v5429
        %v5470 = vadd.f32 %v5249, %v5429
        %v5471 = vadd.f32 %v5251, %v5429
        %v5472 = vadd.f32 %v5386, %v5429
        %v5473 = vadd.f32 %v4498, %v5434
        %v5474 = vadd.f32 %v4500, %v5434
        %v5475 = vadd.f32 %v4634, %v5434
        %v5476 = vadd.f32 %v5255, %v5434
        %v5477 = vadd.f32 %v5257, %v5434
        %v5478 = vadd.f32 %v5391, %v5434
        %v5479 = vadd.f32 %v4502, %v5439
        %v5480 = vadd.f32 %v4504, %v5439
        %v5481 = vadd.f32 %v4637, %v5439
        %v5482 = vadd.f32 %v5259, %v5439
        %v5483 = vadd.f32 %v5261, %v5439
        %v5484 = vadd.f32 %v5394, %v5439
        %v5485 = vadd.f32 %v4508, %v5444
        %v5486 = vadd.f32 %v4510, %v5444
        %v5487 = vadd.f32 %v4642, %v5444
        %v5488 = vadd.f32 %v5265, %v5444
        %v5489 = vadd.f32 %v5267, %v5444
        %v5490 = vadd.f32 %v5399, %v5444
        %v5491 = vadd.f32 %v4512, %v5449
        %v5492 = vadd.f32 %v4514, %v5449
        %v5493 = vadd.f32 %v4645, %v5449
        %v5494 = vadd.f32 %v5269, %v5449
        %v5495 = vadd.f32 %v5271, %v5449
        %v5496 = vadd.f32 %v5402, %v5449
        %v5497 = vadd.f32 %v4518, %v5454
        %v5498 = vadd.f32 %v4520, %v5454
        %v5499 = vadd.f32 %v4650, %v5454
        %v5500 = vadd.f32 %v5275, %v5454
        %v5501 = vadd.f32 %v5277, %v5454
        %v5502 = vadd.f32 %v5407, %v5454
        %v5503 = vadd.f32 %v4522, %v5459
        %v5504 = vadd.f32 %v4524, %v5459
        %v5505 = vadd.f32 %v4653, %v5459
        %v5506 = vadd.f32 %v5279, %v5459
        %v5507 = vadd.f32 %v5281, %v5459
        %v5508 = vadd.f32 %v5410, %v5459
        %v5509 = vmax.f32 %v5461, 0.0
        %v5510 = vmax.f32 %v5462, 0.0
        %v5511 = vmax.f32 %v5463, 0.0
        %v5512 = vmax.f32 %v5464, 0.0
        %v5513 = vmax.f32 %v5465, 0.0
        %v5514 = vmax.f32 %v5466, 0.0
        %v5515 = vmax.f32 %v5467, 0.0
        %v5516 = vmax.f32 %v5468, 0.0
        %v5517 = vmax.f32 %v5469, 0.0
        %v5518 = vmax.f32 %v5470, 0.0
        %v5519 = vmax.f32 %v5471, 0.0
        %v5520 = vmax.f32 %v5472, 0.0
        %v5521 = vmax.f32 %v5473, 0.0
        %v5522 = vmax.f32 %v5474, 0.0
        %v5523 = vmax.f32 %v5475, 0.0
        %v5524 = vmax.f32 %v5476, 0.0
        %v5525 = vmax.f32 %v5477, 0.0
        %v5526 = vmax.f32 %v5478, 0.0
        %v5527 = vmax.f32 %v5479, 0.0
        %v5528 = vmax.f32 %v5480, 0.0
        %v5529 = vmax.f32 %v5481, 0.0
        %v5530 = vmax.f32 %v5482, 0.0
        %v5531 = vmax.f32 %v5483, 0.0
        %v5532 = vmax.f32 %v5484, 0.0
        %v5533 = vmax.f32 %v5485, 0.0
        %v5534 = vmax.f32 %v5486, 0.0
        %v5535 = vmax.f32 %v5487, 0.0
        %v5536 = vmax.f32 %v5488, 0.0
        %v5537 = vmax.f32 %v5489, 0.0
        %v5538 = vmax.f32 %v5490, 0.0
        %v5539 = vmax.f32 %v5491, 0.0
        %v5540 = vmax.f32 %v5492, 0.0
        %v5541 = vmax.f32 %v5493, 0.0
        %v5542 = vmax.f32 %v5494, 0.0
        %v5543 = vmax.f32 %v5495, 0.0
        %v5544 = vmax.f32 %v5496, 0.0
        %v5545 = vmax.f32 %v5497, 0.0
        %v5546 = vmax.f32 %v5498, 0.0
        %v5547 = vmax.f32 %v5499, 0.0
        %v5548 = vmax.f32 %v5500, 0.0
        %v5549 = vmax.f32 %v5501, 0.0
        %v5550 = vmax.f32 %v5502, 0.0
        %v5551 = vmax.f32 %v5503, 0.0
        %v5552 = vmax.f32 %v5504, 0.0
        %v5553 = vmax.f32 %v5505, 0.0
        %v5554 = vmax.f32 %v5506, 0.0
        %v5555 = vmax.f32 %v5507, 0.0
        %v5556 = vmax.f32 %v5508, 0.0
        %v5557 = vpack.c.bf16 %v5515, %v5509
        %v5558 = vpack.c.bf16 %v5516, %v5510
        %v5559 = vpack.c.bf16 %v5517, %v5511
        %v5560 = vpack.c.bf16 %v5518, %v5512
        %v5561 = vpack.c.bf16 %v5519, %v5513
        %v5562 = vpack.c.bf16 %v5520, %v5514
        %v5563 = vpack.c.bf16 %v5527, %v5521
        %v5564 = vpack.c.bf16 %v5528, %v5522
        %v5565 = vpack.c.bf16 %v5529, %v5523
        %v5566 = vpack.c.bf16 %v5530, %v5524
        %v5567 = vpack.c.bf16 %v5531, %v5525
        %v5568 = vpack.c.bf16 %v5532, %v5526
        %v5569 = vpack.c.bf16 %v5539, %v5533
        %v5570 = vpack.c.bf16 %v5540, %v5534
        %v5571 = vpack.c.bf16 %v5541, %v5535
        %v5572 = vpack.c.bf16 %v5542, %v5536
        %v5573 = vpack.c.bf16 %v5543, %v5537
        %v5574 = vpack.c.bf16 %v5544, %v5538
        %v5575 = vpack.c.bf16 %v5551, %v5545
        %v5576 = vpack.c.bf16 %v5552, %v5546
        %v5577 = vpack.c.bf16 %v5553, %v5547
        %v5578 = vpack.c.bf16 %v5554, %v5548
        %v5579 = vpack.c.bf16 %v5555, %v5549
        %v5580 = vpack.c.bf16 %v5556, %v5550
        %v5581 = vld [vmem:[%s8] sm:$0xf]
        %v5582 = vld [vmem:[%s8 + $0x4] sm:$0xf]
        %v5583 = vld [vmem:[%s8 + $0x8] sm:$0xf]
        %v5584 = vld [vmem:[%s8 + $0xc] sm:$0xf]
        %v5589 = vunpack.c.l.b16 %v5581
        %v5590 = vunpack.c.l.b16 %v5582
        %v5591 = vunpack.c.l.b16 %v5583
        %v5592 = vunpack.c.l.b16 %v5584
        %v5593 = vpack.c.b16 %v5590, %v5589
        %v5594 = vpack.c.b16 %v5592, %v5591
        %vm5595 = vcmask 523264
        %v5597 = vsel %vm5595, %v5593, 0
        %v5600 = vsel %vm5595, %v5594, 0
        %5602 = vmatprep.subr.bf16.mxu0 0
        %5603 = vmatpush1.bf16.msra.mxu0 0
        %5604 = vmatprep.subr.bf16.mxu0 0
        %5605 = vmatpush1.bf16.msra.mxu0 0
        %5606 = vmatprep.subr.bf16.mxu0 0
        %5607 = vmatpush1.bf16.msra.mxu0 0
        %5608 = vmatprep.subr.bf16.mxu0 0
        %5609 = vmatpush1.bf16.msra.mxu0 0
        %5610 = vmatprep.subr.bf16.mxu0 %v5576
        %5611 = vmatpush1.bf16.msra.mxu0 %v5575
        %5612 = vmatprep.subr.bf16.mxu0 %v5570
        %5613 = vmatpush1.bf16.msra.mxu0 %v5569
        %5614 = vmatprep.subr.bf16.mxu0 %v5564
        %5615 = vmatpush1.bf16.msra.mxu0 %v5563
        %5616 = vmatprep.subr.bf16.mxu0 %v5558
        %5617 = vmatpush1.bf16.msra.mxu0 %v5557
        %5618 = vmatprep.subr.bf16.mxu0 0
        %5619 = vmatpush2.bf16.msra.mxu0 0
        %5620 = vmatprep.subr.bf16.mxu0 0
        %5621 = vmatpush2.bf16.msra.mxu0 0
        %5622 = vmatprep.subr.bf16.mxu0 0
        %5623 = vmatpush2.bf16.msra.mxu0 0
        %5624 = vmatprep.subr.bf16.mxu0 0
        %5625 = vmatpush2.bf16.msra.mxu0 0
        %5626 = vmatprep.subr.bf16.mxu0 0
        %5627 = vmatpush2.bf16.msra.mxu0 0
        %5628 = vmatprep.subr.bf16.mxu0 0
        %5629 = vmatpush2.bf16.msra.mxu0 0
        %5630 = vmatprep.subr.bf16.mxu0 0
        %5631 = vmatpush2.bf16.msra.mxu0 0
        %5632 = vmatprep.subr.bf16.mxu0 0
        %5633 = vmatpush2.bf16.msra.mxu0 0
        %5634 = vmatprep.mubr.bf16.mxu0 0
        %5635 = vmatmul.mubr.bf16.gmra.mxu0 %v5597
        %v5636 = vpop.f32.mrf.mxu0
        %v5637 = vadd.f32 0.0, %v5636
        %v5638 = vpop.f32.mrf.mxu0
        %v5639 = vadd.f32 0.0, %v5638
        %v5640 = vpop.f32.mrf.mxu0
        %v5641 = vadd.f32 0.0, %v5640
        %v5642 = vpop.f32.mrf.mxu0
        %v5643 = vadd.f32 0.0, %v5642
        %5644 = vmatprep.mubr.bf16.mxu0 0
        %5645 = vmatmul.mubr.bf16.gmra.mxu0 %v5600
        %v5646 = vpop.f32.mrf.mxu0
        %v5647 = vadd.f32 0.0, %v5646
        %v5648 = vpop.f32.mrf.mxu0
        %v5649 = vadd.f32 0.0, %v5648
        %v5650 = vpop.f32.mrf.mxu0
        %v5651 = vadd.f32 0.0, %v5650
        %v5652 = vpop.f32.mrf.mxu0
        %v5653 = vadd.f32 0.0, %v5652
        %5654 = vdwg.mxu0
        %5655 = vmatprep.subr.bf16.mxu0 0
        %5656 = vmatpush1.bf16.msra.mxu0 0
        %5657 = vmatprep.subr.bf16.mxu0 0
        %5658 = vmatpush1.bf16.msra.mxu0 0
        %5659 = vmatprep.subr.bf16.mxu0 0
        %5660 = vmatpush1.bf16.msra.mxu0 0
        %5661 = vmatprep.subr.bf16.mxu0 0
        %5662 = vmatpush1.bf16.msra.mxu0 0
        %5663 = vmatprep.subr.bf16.mxu0 %v5578
        %5664 = vmatpush1.bf16.msra.mxu0 %v5577
        %5665 = vmatprep.subr.bf16.mxu0 %v5572
        %5666 = vmatpush1.bf16.msra.mxu0 %v5571
        %5667 = vmatprep.subr.bf16.mxu0 %v5566
        %5668 = vmatpush1.bf16.msra.mxu0 %v5565
        %5669 = vmatprep.subr.bf16.mxu0 %v5560
        %5670 = vmatpush1.bf16.msra.mxu0 %v5559
        %5671 = vmatprep.subr.bf16.mxu0 0
        %5672 = vmatpush2.bf16.msra.mxu0 0
        %5673 = vmatprep.subr.bf16.mxu0 0
        %5674 = vmatpush2.bf16.msra.mxu0 0
        %5675 = vmatprep.subr.bf16.mxu0 0
        %5676 = vmatpush2.bf16.msra.mxu0 0
        %5677 = vmatprep.subr.bf16.mxu0 0
        %5678 = vmatpush2.bf16.msra.mxu0 0
        %5679 = vmatprep.subr.bf16.mxu0 0
        %5680 = vmatpush2.bf16.msra.mxu0 0
        %5681 = vmatprep.subr.bf16.mxu0 0
        %5682 = vmatpush2.bf16.msra.mxu0 0
        %5683 = vmatprep.subr.bf16.mxu0 0
        %5684 = vmatpush2.bf16.msra.mxu0 0
        %5685 = vmatprep.subr.bf16.mxu0 0
        %5686 = vmatpush2.bf16.msra.mxu0 0
        %5687 = vmatprep.mubr.bf16.mxu0 0
        %5688 = vmatmul.mubr.bf16.gmra.mxu0 %v5597
        %v5689 = vpop.f32.mrf.mxu0
        %v5690 = vadd.f32 0.0, %v5689
        %v5691 = vpop.f32.mrf.mxu0
        %v5692 = vadd.f32 0.0, %v5691
        %v5693 = vpop.f32.mrf.mxu0
        %v5694 = vadd.f32 0.0, %v5693
        %v5695 = vpop.f32.mrf.mxu0
        %v5696 = vadd.f32 0.0, %v5695
        %5697 = vmatprep.mubr.bf16.mxu0 0
        %5698 = vmatmul.mubr.bf16.gmra.mxu0 %v5600
        %v5699 = vpop.f32.mrf.mxu0
        %v5700 = vadd.f32 0.0, %v5699
        %v5701 = vpop.f32.mrf.mxu0
        %v5702 = vadd.f32 0.0, %v5701
        %v5703 = vpop.f32.mrf.mxu0
        %v5704 = vadd.f32 0.0, %v5703
        %v5705 = vpop.f32.mrf.mxu0
        %v5706 = vadd.f32 0.0, %v5705
        %5707 = vdwg.mxu0
        %5708 = vmatprep.subr.bf16.mxu0 0
        %5709 = vmatpush1.bf16.msra.mxu0 0
        %5710 = vmatprep.subr.bf16.mxu0 0
        %5711 = vmatpush1.bf16.msra.mxu0 0
        %5712 = vmatprep.subr.bf16.mxu0 0
        %5713 = vmatpush1.bf16.msra.mxu0 0
        %5714 = vmatprep.subr.bf16.mxu0 0
        %5715 = vmatpush1.bf16.msra.mxu0 0
        %5716 = vmatprep.subr.bf16.mxu0 %v5580
        %5717 = vmatpush1.bf16.msra.mxu0 %v5579
        %5718 = vmatprep.subr.bf16.mxu0 %v5574
        %5719 = vmatpush1.bf16.msra.mxu0 %v5573
        %5720 = vmatprep.subr.bf16.mxu0 %v5568
        %5721 = vmatpush1.bf16.msra.mxu0 %v5567
        %5722 = vmatprep.subr.bf16.mxu0 %v5562
        %5723 = vmatpush1.bf16.msra.mxu0 %v5561
        %5724 = vmatprep.subr.bf16.mxu0 0
        %5725 = vmatpush2.bf16.msra.mxu0 0
        %5726 = vmatprep.subr.bf16.mxu0 0
        %5727 = vmatpush2.bf16.msra.mxu0 0
        %5728 = vmatprep.subr.bf16.mxu0 0
        %5729 = vmatpush2.bf16.msra.mxu0 0
        %5730 = vmatprep.subr.bf16.mxu0 0
        %5731 = vmatpush2.bf16.msra.mxu0 0
        %5732 = vmatprep.subr.bf16.mxu0 0
        %5733 = vmatpush2.bf16.msra.mxu0 0
        %5734 = vmatprep.subr.bf16.mxu0 0
        %5735 = vmatpush2.bf16.msra.mxu0 0
        %5736 = vmatprep.subr.bf16.mxu0 0
        %5737 = vmatpush2.bf16.msra.mxu0 0
        %5738 = vmatprep.subr.bf16.mxu0 0
        %5739 = vmatpush2.bf16.msra.mxu0 0
        %5740 = vmatprep.mubr.bf16.mxu0 0
        %5741 = vmatmul.mubr.bf16.gmra.mxu0 %v5597
        %v5742 = vpop.f32.mrf.mxu0
        %v5743 = vadd.f32 0.0, %v5742
        %v5744 = vpop.f32.mrf.mxu0
        %v5745 = vadd.f32 0.0, %v5744
        %v5746 = vpop.f32.mrf.mxu0
        %v5747 = vadd.f32 0.0, %v5746
        %v5748 = vpop.f32.mrf.mxu0
        %v5749 = vadd.f32 0.0, %v5748
        %5750 = vmatprep.mubr.bf16.mxu0 0
        %5751 = vmatmul.mubr.bf16.gmra.mxu0 %v5600
        %v5752 = vpop.f32.mrf.mxu0
        %v5753 = vadd.f32 0.0, %v5752
        %v5754 = vpop.f32.mrf.mxu0
        %v5755 = vadd.f32 0.0, %v5754
        %v5756 = vpop.f32.mrf.mxu0
        %v5757 = vadd.f32 0.0, %v5756
        %v5758 = vpop.f32.mrf.mxu0
        %v5759 = vadd.f32 0.0, %v5758
        %5760 = vdwg.mxu0
        %v5761 = vpack.c.bf16 %v5641, %v5637
        %v5762 = vpack.c.bf16 %v5643, %v5639
        %v5763 = vpack.c.bf16 %v5694, %v5690
        %v5764 = vpack.c.bf16 %v5696, %v5692
        %v5765 = vpack.c.bf16 %v5747, %v5743
        %v5766 = vpack.c.bf16 %v5749, %v5745
        %v5767 = vpack.c.bf16 %v5651, %v5647
        %v5768 = vpack.c.bf16 %v5653, %v5649
        %v5769 = vpack.c.bf16 %v5704, %v5700
        %v5770 = vpack.c.bf16 %v5706, %v5702
        %v5771 = vpack.c.bf16 %v5757, %v5753
        %v5772 = vpack.c.bf16 %v5759, %v5755
        %5773 = vmatprep.subr.bf16.mxu0 %v4258
        %5774 = vmatpush1.bf16.msra.mxu0 %v4257
        %5775 = vmatprep.subr.bf16.mxu0 %v4255
        %5776 = vmatpush1.bf16.msra.mxu0 %v4254
        %5777 = vmatprep.subr.bf16.mxu0 %v4252
        %5778 = vmatpush1.bf16.msra.mxu0 %v4251
        %5779 = vmatprep.subr.bf16.mxu0 %v4249
        %5780 = vmatpush1.bf16.msra.mxu0 %v4248
        %5781 = vmatprep.subr.bf16.mxu0 %v4246
        %5782 = vmatpush1.bf16.msra.mxu0 %v4245
        %5783 = vmatprep.subr.bf16.mxu0 %v4243
        %5784 = vmatpush1.bf16.msra.mxu0 %v4242
        %5785 = vmatprep.subr.bf16.mxu0 %v4240
        %5786 = vmatpush1.bf16.msra.mxu0 %v4239
        %5787 = vmatprep.subr.bf16.mxu0 %v4237
        %5788 = vmatpush1.bf16.msra.mxu0 %v4236
        %5789 = vmatprep.subr.bf16.mxu0 %v4282
        %5790 = vmatpush2.bf16.msra.mxu0 %v4281
        %5791 = vmatprep.subr.bf16.mxu0 %v4279
        %5792 = vmatpush2.bf16.msra.mxu0 %v4278
        %5793 = vmatprep.subr.bf16.mxu0 %v4276
        %5794 = vmatpush2.bf16.msra.mxu0 %v4275
        %5795 = vmatprep.subr.bf16.mxu0 %v4273
        %5796 = vmatpush2.bf16.msra.mxu0 %v4272
        %5797 = vmatprep.subr.bf16.mxu0 %v4270
        %5798 = vmatpush2.bf16.msra.mxu0 %v4269
        %5799 = vmatprep.subr.bf16.mxu0 %v4267
        %5800 = vmatpush2.bf16.msra.mxu0 %v4266
        %5801 = vmatprep.subr.bf16.mxu0 %v4264
        %5802 = vmatpush2.bf16.msra.mxu0 %v4263
        %5803 = vmatprep.subr.bf16.mxu0 %v4261
        %5804 = vmatpush2.bf16.msra.mxu0 %v4260
        %5805 = vmatprep.mubr.bf16.mxu0 %v5762
        %5806 = vmatmul.mubr.bf16.gmra.mxu0 %v5761
        %v5807 = vpop.f32.mrf.mxu0
        %v5808 = vadd.f32 0.0, %v5807
        %v5809 = vpop.f32.mrf.mxu0
        %v5810 = vadd.f32 0.0, %v5809
        %v5811 = vpop.f32.mrf.mxu0
        %v5812 = vadd.f32 0.0, %v5811
        %v5813 = vpop.f32.mrf.mxu0
        %v5814 = vadd.f32 0.0, %v5813
        %5815 = vmatprep.mubr.bf16.mxu0 %v5768
        %5816 = vmatmul.mubr.bf16.gmra.mxu0 %v5767
        %v5817 = vpop.f32.mrf.mxu0
        %v5818 = vadd.f32 0.0, %v5817
        %v5819 = vpop.f32.mrf.mxu0
        %v5820 = vadd.f32 0.0, %v5819
        %v5821 = vpop.f32.mrf.mxu0
        %v5822 = vadd.f32 0.0, %v5821
        %v5823 = vpop.f32.mrf.mxu0
        %v5824 = vadd.f32 0.0, %v5823
        %5825 = vdwg.mxu0
        %5826 = vmatprep.subr.bf16.mxu0 %v4306
        %5827 = vmatpush1.bf16.msra.mxu0 %v4305
        %5828 = vmatprep.subr.bf16.mxu0 %v4303
        %5829 = vmatpush1.bf16.msra.mxu0 %v4302
        %5830 = vmatprep.subr.bf16.mxu0 %v4300
        %5831 = vmatpush1.bf16.msra.mxu0 %v4299
        %5832 = vmatprep.subr.bf16.mxu0 %v4297
        %5833 = vmatpush1.bf16.msra.mxu0 %v4296
        %5834 = vmatprep.subr.bf16.mxu0 %v4294
        %5835 = vmatpush1.bf16.msra.mxu0 %v4293
        %5836 = vmatprep.subr.bf16.mxu0 %v4291
        %5837 = vmatpush1.bf16.msra.mxu0 %v4290
        %5838 = vmatprep.subr.bf16.mxu0 %v4288
        %5839 = vmatpush1.bf16.msra.mxu0 %v4287
        %5840 = vmatprep.subr.bf16.mxu0 %v4285
        %5841 = vmatpush1.bf16.msra.mxu0 %v4284
        %5842 = vmatprep.subr.bf16.mxu0 0
        %5843 = vmatpush2.bf16.msra.mxu0 0
        %5844 = vmatprep.subr.bf16.mxu0 0
        %5845 = vmatpush2.bf16.msra.mxu0 0
        %5846 = vmatprep.subr.bf16.mxu0 0
        %5847 = vmatpush2.bf16.msra.mxu0 0
        %5848 = vmatprep.subr.bf16.mxu0 0
        %5849 = vmatpush2.bf16.msra.mxu0 0
        %5850 = vmatprep.subr.bf16.mxu0 0
        %5851 = vmatpush2.bf16.msra.mxu0 0
        %5852 = vmatprep.subr.bf16.mxu0 0
        %5853 = vmatpush2.bf16.msra.mxu0 0
        %5854 = vmatprep.subr.bf16.mxu0 0
        %5855 = vmatpush2.bf16.msra.mxu0 0
        %5856 = vmatprep.subr.bf16.mxu0 0
        %5857 = vmatpush2.bf16.msra.mxu0 0
        %5858 = vmatprep.mubr.bf16.mxu0 0
        %5859 = vmatmul.mubr.bf16.gmra.mxu0 %v5763
        %v5860 = vpop.f32.mrf.mxu0
        %v5861 = vadd.f32 %v5808, %v5860
        %v5862 = vpop.f32.mrf.mxu0
        %v5863 = vadd.f32 %v5810, %v5862
        %v5864 = vpop.f32.mrf.mxu0
        %v5865 = vadd.f32 %v5812, %v5864
        %v5866 = vpop.f32.mrf.mxu0
        %v5867 = vadd.f32 %v5814, %v5866
        %5868 = vmatprep.mubr.bf16.mxu0 0
        %5869 = vmatmul.mubr.bf16.gmra.mxu0 %v5769
        %v5870 = vpop.f32.mrf.mxu0
        %v5871 = vadd.f32 %v5818, %v5870
        %v5872 = vpop.f32.mrf.mxu0
        %v5873 = vadd.f32 %v5820, %v5872
        %v5874 = vpop.f32.mrf.mxu0
        %v5875 = vadd.f32 %v5822, %v5874
        %v5876 = vpop.f32.mrf.mxu0
        %v5877 = vadd.f32 %v5824, %v5876
        %5878 = vdwg.mxu0
        %5879 = vmatprep.subr.bf16.mxu0 0
        %5880 = vmatpush1.bf16.msra.mxu0 %v4259
        %5881 = vmatprep.subr.bf16.mxu0 0
        %5882 = vmatpush1.bf16.msra.mxu0 %v4256
        %5883 = vmatprep.subr.bf16.mxu0 0
        %5884 = vmatpush1.bf16.msra.mxu0 %v4253
        %5885 = vmatprep.subr.bf16.mxu0 0
        %5886 = vmatpush1.bf16.msra.mxu0 %v4250
        %5887 = vmatprep.subr.bf16.mxu0 0
        %5888 = vmatpush1.bf16.msra.mxu0 %v4247
        %5889 = vmatprep.subr.bf16.mxu0 0
        %5890 = vmatpush1.bf16.msra.mxu0 %v4244
        %5891 = vmatprep.subr.bf16.mxu0 0
        %5892 = vmatpush1.bf16.msra.mxu0 %v4241
        %5893 = vmatprep.subr.bf16.mxu0 0
        %5894 = vmatpush1.bf16.msra.mxu0 %v4238
        %5895 = vmatprep.subr.bf16.mxu0 0
        %5896 = vmatpush2.bf16.msra.mxu0 %v4283
        %5897 = vmatprep.subr.bf16.mxu0 0
        %5898 = vmatpush2.bf16.msra.mxu0 %v4280
        %5899 = vmatprep.subr.bf16.mxu0 0
        %5900 = vmatpush2.bf16.msra.mxu0 %v4277
        %5901 = vmatprep.subr.bf16.mxu0 0
        %5902 = vmatpush2.bf16.msra.mxu0 %v4274
        %5903 = vmatprep.subr.bf16.mxu0 0
        %5904 = vmatpush2.bf16.msra.mxu0 %v4271
        %5905 = vmatprep.subr.bf16.mxu0 0
        %5906 = vmatpush2.bf16.msra.mxu0 %v4268
        %5907 = vmatprep.subr.bf16.mxu0 0
        %5908 = vmatpush2.bf16.msra.mxu0 %v4265
        %5909 = vmatprep.subr.bf16.mxu0 0
        %5910 = vmatpush2.bf16.msra.mxu0 %v4262
        %5911 = vmatprep.mubr.bf16.mxu0 %v5762
        %5912 = vmatmul.mubr.bf16.gmra.mxu0 %v5761
        %v5913 = vpop.f32.mrf.mxu0
        %v5914 = vadd.f32 0.0, %v5913
        %v5915 = vpop.f32.mrf.mxu0
        %v5916 = vpop.f32.mrf.mxu0
        %v5917 = vadd.f32 0.0, %v5916
        %v5918 = vpop.f32.mrf.mxu0
        %5919 = vmatprep.mubr.bf16.mxu0 %v5768
        %5920 = vmatmul.mubr.bf16.gmra.mxu0 %v5767
        %v5921 = vpop.f32.mrf.mxu0
        %v5922 = vadd.f32 0.0, %v5921
        %v5923 = vpop.f32.mrf.mxu0
        %v5924 = vpop.f32.mrf.mxu0
        %v5925 = vadd.f32 0.0, %v5924
        %v5926 = vpop.f32.mrf.mxu0
        %5927 = vdwg.mxu0
        %5928 = vmatprep.subr.bf16.mxu0 0
        %5929 = vmatpush1.bf16.msra.mxu0 %v4307
        %5930 = vmatprep.subr.bf16.mxu0 0
        %5931 = vmatpush1.bf16.msra.mxu0 %v4304
        %5932 = vmatprep.subr.bf16.mxu0 0
        %5933 = vmatpush1.bf16.msra.mxu0 %v4301
        %5934 = vmatprep.subr.bf16.mxu0 0
        %5935 = vmatpush1.bf16.msra.mxu0 %v4298
        %5936 = vmatprep.subr.bf16.mxu0 0
        %5937 = vmatpush1.bf16.msra.mxu0 %v4295
        %5938 = vmatprep.subr.bf16.mxu0 0
        %5939 = vmatpush1.bf16.msra.mxu0 %v4292
        %5940 = vmatprep.subr.bf16.mxu0 0
        %5941 = vmatpush1.bf16.msra.mxu0 %v4289
        %5942 = vmatprep.subr.bf16.mxu0 0
        %5943 = vmatpush1.bf16.msra.mxu0 %v4286
        %5944 = vmatprep.subr.bf16.mxu0 0
        %5945 = vmatpush2.bf16.msra.mxu0 0
        %5946 = vmatprep.subr.bf16.mxu0 0
        %5947 = vmatpush2.bf16.msra.mxu0 0
        %5948 = vmatprep.subr.bf16.mxu0 0
        %5949 = vmatpush2.bf16.msra.mxu0 0
        %5950 = vmatprep.subr.bf16.mxu0 0
        %5951 = vmatpush2.bf16.msra.mxu0 0
        %5952 = vmatprep.subr.bf16.mxu0 0
        %5953 = vmatpush2.bf16.msra.mxu0 0
        %5954 = vmatprep.subr.bf16.mxu0 0
        %5955 = vmatpush2.bf16.msra.mxu0 0
        %5956 = vmatprep.subr.bf16.mxu0 0
        %5957 = vmatpush2.bf16.msra.mxu0 0
        %5958 = vmatprep.subr.bf16.mxu0 0
        %5959 = vmatpush2.bf16.msra.mxu0 0
        %5960 = vmatprep.mubr.bf16.mxu0 0
        %5961 = vmatmul.mubr.bf16.gmra.mxu0 %v5763
        %v5962 = vpop.f32.mrf.mxu0
        %v5963 = vadd.f32 %v5914, %v5962
        %v5964 = vpop.f32.mrf.mxu0
        %v5965 = vpop.f32.mrf.mxu0
        %v5966 = vadd.f32 %v5917, %v5965
        %v5967 = vpop.f32.mrf.mxu0
        %5968 = vmatprep.mubr.bf16.mxu0 0
        %5969 = vmatmul.mubr.bf16.gmra.mxu0 %v5769
        %v5970 = vpop.f32.mrf.mxu0
        %v5971 = vadd.f32 %v5922, %v5970
        %v5972 = vpop.f32.mrf.mxu0
        %v5973 = vpop.f32.mrf.mxu0
        %v5974 = vadd.f32 %v5925, %v5973
        %v5975 = vpop.f32.mrf.mxu0
        %5976 = vdwg.mxu0
        %5977 = vmatprep.subr.bf16.mxu0 %v5015
        %5978 = vmatpush1.bf16.msra.mxu0 %v5014
        %5979 = vmatprep.subr.bf16.mxu0 %v5012
        %5980 = vmatpush1.bf16.msra.mxu0 %v5011
        %5981 = vmatprep.subr.bf16.mxu0 %v5009
        %5982 = vmatpush1.bf16.msra.mxu0 %v5008
        %5983 = vmatprep.subr.bf16.mxu0 %v5006
        %5984 = vmatpush1.bf16.msra.mxu0 %v5005
        %5985 = vmatprep.subr.bf16.mxu0 %v5003
        %5986 = vmatpush1.bf16.msra.mxu0 %v5002
        %5987 = vmatprep.subr.bf16.mxu0 %v5000
        %5988 = vmatpush1.bf16.msra.mxu0 %v4999
        %5989 = vmatprep.subr.bf16.mxu0 %v4997
        %5990 = vmatpush1.bf16.msra.mxu0 %v4996
        %5991 = vmatprep.subr.bf16.mxu0 %v4994
        %5992 = vmatpush1.bf16.msra.mxu0 %v4993
        %5993 = vmatprep.subr.bf16.mxu0 %v5039
        %5994 = vmatpush2.bf16.msra.mxu0 %v5038
        %5995 = vmatprep.subr.bf16.mxu0 %v5036
        %5996 = vmatpush2.bf16.msra.mxu0 %v5035
        %5997 = vmatprep.subr.bf16.mxu0 %v5033
        %5998 = vmatpush2.bf16.msra.mxu0 %v5032
        %5999 = vmatprep.subr.bf16.mxu0 %v5030
        %6000 = vmatpush2.bf16.msra.mxu0 %v5029
        %6001 = vmatprep.subr.bf16.mxu0 %v5027
        %6002 = vmatpush2.bf16.msra.mxu0 %v5026
        %6003 = vmatprep.subr.bf16.mxu0 %v5024
        %6004 = vmatpush2.bf16.msra.mxu0 %v5023
        %6005 = vmatprep.subr.bf16.mxu0 %v5021
        %6006 = vmatpush2.bf16.msra.mxu0 %v5020
        %6007 = vmatprep.subr.bf16.mxu0 %v5018
        %6008 = vmatpush2.bf16.msra.mxu0 %v5017
        %6009 = vmatprep.mubr.bf16.mxu0 %v5765
        %6010 = vmatmul.mubr.bf16.gmra.mxu0 %v5764
        %v6011 = vpop.f32.mrf.mxu0
        %v6012 = vadd.f32 0.0, %v6011
        %v6013 = vpop.f32.mrf.mxu0
        %v6014 = vadd.f32 0.0, %v6013
        %v6015 = vpop.f32.mrf.mxu0
        %v6016 = vadd.f32 0.0, %v6015
        %v6017 = vpop.f32.mrf.mxu0
        %v6018 = vadd.f32 0.0, %v6017
        %6019 = vmatprep.mubr.bf16.mxu0 %v5771
        %6020 = vmatmul.mubr.bf16.gmra.mxu0 %v5770
        %v6021 = vpop.f32.mrf.mxu0
        %v6022 = vadd.f32 0.0, %v6021
        %v6023 = vpop.f32.mrf.mxu0
        %v6024 = vadd.f32 0.0, %v6023
        %v6025 = vpop.f32.mrf.mxu0
        %v6026 = vadd.f32 0.0, %v6025
        %v6027 = vpop.f32.mrf.mxu0
        %v6028 = vadd.f32 0.0, %v6027
        %6029 = vdwg.mxu0
        %6030 = vmatprep.subr.bf16.mxu0 %v5063
        %6031 = vmatpush1.bf16.msra.mxu0 %v5062
        %6032 = vmatprep.subr.bf16.mxu0 %v5060
        %6033 = vmatpush1.bf16.msra.mxu0 %v5059
        %6034 = vmatprep.subr.bf16.mxu0 %v5057
        %6035 = vmatpush1.bf16.msra.mxu0 %v5056
        %6036 = vmatprep.subr.bf16.mxu0 %v5054
        %6037 = vmatpush1.bf16.msra.mxu0 %v5053
        %6038 = vmatprep.subr.bf16.mxu0 %v5051
        %6039 = vmatpush1.bf16.msra.mxu0 %v5050
        %6040 = vmatprep.subr.bf16.mxu0 %v5048
        %6041 = vmatpush1.bf16.msra.mxu0 %v5047
        %6042 = vmatprep.subr.bf16.mxu0 %v5045
        %6043 = vmatpush1.bf16.msra.mxu0 %v5044
        %6044 = vmatprep.subr.bf16.mxu0 %v5042
        %6045 = vmatpush1.bf16.msra.mxu0 %v5041
        %6046 = vmatprep.subr.bf16.mxu0 0
        %6047 = vmatpush2.bf16.msra.mxu0 0
        %6048 = vmatprep.subr.bf16.mxu0 0
        %6049 = vmatpush2.bf16.msra.mxu0 0
        %6050 = vmatprep.subr.bf16.mxu0 0
        %6051 = vmatpush2.bf16.msra.mxu0 0
        %6052 = vmatprep.subr.bf16.mxu0 0
        %6053 = vmatpush2.bf16.msra.mxu0 0
        %6054 = vmatprep.subr.bf16.mxu0 0
        %6055 = vmatpush2.bf16.msra.mxu0 0
        %6056 = vmatprep.subr.bf16.mxu0 0
        %6057 = vmatpush2.bf16.msra.mxu0 0
        %6058 = vmatprep.subr.bf16.mxu0 0
        %6059 = vmatpush2.bf16.msra.mxu0 0
        %6060 = vmatprep.subr.bf16.mxu0 0
        %6061 = vmatpush2.bf16.msra.mxu0 0
        %6062 = vmatprep.mubr.bf16.mxu0 0
        %6063 = vmatmul.mubr.bf16.gmra.mxu0 %v5766
        %v6064 = vpop.f32.mrf.mxu0
        %v6065 = vadd.f32 %v6012, %v6064
        %v6066 = vpop.f32.mrf.mxu0
        %v6067 = vadd.f32 %v6014, %v6066
        %v6068 = vpop.f32.mrf.mxu0
        %v6069 = vadd.f32 %v6016, %v6068
        %v6070 = vpop.f32.mrf.mxu0
        %v6071 = vadd.f32 %v6018, %v6070
        %6072 = vmatprep.mubr.bf16.mxu0 0
        %6073 = vmatmul.mubr.bf16.gmra.mxu0 %v5772
        %v6074 = vpop.f32.mrf.mxu0
        %v6075 = vadd.f32 %v6022, %v6074
        %v6076 = vpop.f32.mrf.mxu0
        %v6077 = vadd.f32 %v6024, %v6076
        %v6078 = vpop.f32.mrf.mxu0
        %v6079 = vadd.f32 %v6026, %v6078
        %v6080 = vpop.f32.mrf.mxu0
        %v6081 = vadd.f32 %v6028, %v6080
        %6082 = vdwg.mxu0
        %6083 = vmatprep.subr.bf16.mxu0 0
        %6084 = vmatpush1.bf16.msra.mxu0 %v5016
        %6085 = vmatprep.subr.bf16.mxu0 0
        %6086 = vmatpush1.bf16.msra.mxu0 %v5013
        %6087 = vmatprep.subr.bf16.mxu0 0
        %6088 = vmatpush1.bf16.msra.mxu0 %v5010
        %6089 = vmatprep.subr.bf16.mxu0 0
        %6090 = vmatpush1.bf16.msra.mxu0 %v5007
        %6091 = vmatprep.subr.bf16.mxu0 0
        %6092 = vmatpush1.bf16.msra.mxu0 %v5004
        %6093 = vmatprep.subr.bf16.mxu0 0
        %6094 = vmatpush1.bf16.msra.mxu0 %v5001
        %6095 = vmatprep.subr.bf16.mxu0 0
        %6096 = vmatpush1.bf16.msra.mxu0 %v4998
        %6097 = vmatprep.subr.bf16.mxu0 0
        %6098 = vmatpush1.bf16.msra.mxu0 %v4995
        %6099 = vmatprep.subr.bf16.mxu0 0
        %6100 = vmatpush2.bf16.msra.mxu0 %v5040
        %6101 = vmatprep.subr.bf16.mxu0 0
        %6102 = vmatpush2.bf16.msra.mxu0 %v5037
        %6103 = vmatprep.subr.bf16.mxu0 0
        %6104 = vmatpush2.bf16.msra.mxu0 %v5034
        %6105 = vmatprep.subr.bf16.mxu0 0
        %6106 = vmatpush2.bf16.msra.mxu0 %v5031
        %6107 = vmatprep.subr.bf16.mxu0 0
        %6108 = vmatpush2.bf16.msra.mxu0 %v5028
        %6109 = vmatprep.subr.bf16.mxu0 0
        %6110 = vmatpush2.bf16.msra.mxu0 %v5025
        %6111 = vmatprep.subr.bf16.mxu0 0
        %6112 = vmatpush2.bf16.msra.mxu0 %v5022
        %6113 = vmatprep.subr.bf16.mxu0 0
        %6114 = vmatpush2.bf16.msra.mxu0 %v5019
        %6115 = vmatprep.mubr.bf16.mxu0 %v5765
        %6116 = vmatmul.mubr.bf16.gmra.mxu0 %v5764
        %v6117 = vpop.f32.mrf.mxu0
        %v6118 = vadd.f32 0.0, %v6117
        %v6119 = vpop.f32.mrf.mxu0
        %v6120 = vpop.f32.mrf.mxu0
        %v6121 = vadd.f32 0.0, %v6120
        %v6122 = vpop.f32.mrf.mxu0
        %6123 = vmatprep.mubr.bf16.mxu0 %v5771
        %6124 = vmatmul.mubr.bf16.gmra.mxu0 %v5770
        %v6125 = vpop.f32.mrf.mxu0
        %v6126 = vadd.f32 0.0, %v6125
        %v6127 = vpop.f32.mrf.mxu0
        %v6128 = vpop.f32.mrf.mxu0
        %v6129 = vadd.f32 0.0, %v6128
        %v6130 = vpop.f32.mrf.mxu0
        %6131 = vdwg.mxu0
        %6132 = vmatprep.subr.bf16.mxu0 0
        %6133 = vmatpush1.bf16.msra.mxu0 %v5064
        %6134 = vmatprep.subr.bf16.mxu0 0
        %6135 = vmatpush1.bf16.msra.mxu0 %v5061
        %6136 = vmatprep.subr.bf16.mxu0 0
        %6137 = vmatpush1.bf16.msra.mxu0 %v5058
        %6138 = vmatprep.subr.bf16.mxu0 0
        %6139 = vmatpush1.bf16.msra.mxu0 %v5055
        %6140 = vmatprep.subr.bf16.mxu0 0
        %6141 = vmatpush1.bf16.msra.mxu0 %v5052
        %6142 = vmatprep.subr.bf16.mxu0 0
        %6143 = vmatpush1.bf16.msra.mxu0 %v5049
        %6144 = vmatprep.subr.bf16.mxu0 0
        %6145 = vmatpush1.bf16.msra.mxu0 %v5046
        %6146 = vmatprep.subr.bf16.mxu0 0
        %6147 = vmatpush1.bf16.msra.mxu0 %v5043
        %6148 = vmatprep.subr.bf16.mxu0 0
        %6149 = vmatpush2.bf16.msra.mxu0 0
        %6150 = vmatprep.subr.bf16.mxu0 0
        %6151 = vmatpush2.bf16.msra.mxu0 0
        %6152 = vmatprep.subr.bf16.mxu0 0
        %6153 = vmatpush2.bf16.msra.mxu0 0
        %6154 = vmatprep.subr.bf16.mxu0 0
        %6155 = vmatpush2.bf16.msra.mxu0 0
        %6156 = vmatprep.subr.bf16.mxu0 0
        %6157 = vmatpush2.bf16.msra.mxu0 0
        %6158 = vmatprep.subr.bf16.mxu0 0
        %6159 = vmatpush2.bf16.msra.mxu0 0
        %6160 = vmatprep.subr.bf16.mxu0 0
        %6161 = vmatpush2.bf16.msra.mxu0 0
        %6162 = vmatprep.subr.bf16.mxu0 0
        %6163 = vmatpush2.bf16.msra.mxu0 0
        %6164 = vmatprep.mubr.bf16.mxu0 0
        %6165 = vmatmul.mubr.bf16.gmra.mxu0 %v5766
        %v6166 = vpop.f32.mrf.mxu0
        %v6167 = vadd.f32 %v6118, %v6166
        %v6168 = vpop.f32.mrf.mxu0
        %v6169 = vpop.f32.mrf.mxu0
        %v6170 = vadd.f32 %v6121, %v6169
        %v6171 = vpop.f32.mrf.mxu0
        %6172 = vmatprep.mubr.bf16.mxu0 0
        %6173 = vmatmul.mubr.bf16.gmra.mxu0 %v5772
        %v6174 = vpop.f32.mrf.mxu0
        %v6175 = vadd.f32 %v6126, %v6174
        %v6176 = vpop.f32.mrf.mxu0
        %v6177 = vpop.f32.mrf.mxu0
        %v6178 = vadd.f32 %v6129, %v6177
        %v6179 = vpop.f32.mrf.mxu0
        %6180 = vdwg.mxu0
        %v6181 = vld [vmem:[%s9] sm:$0xff]
        %v6182 = vld [vmem:[%s9 + $0x8] sm:$0xff]
        %v6183 = vld [vmem:[%s9 + $0x10] sm:$0xff]
        %v6184 = vld [vmem:[%s9 + $0x18] sm:$0xff]
        %6186 = vset.pattern.permute.xlu0 0
        %6187 = vperm.xlu0 %6186, %v6181
        %v6188 = vpop.permute.xlu0 %6187
        %6191 = vset.pattern.permute.xlu0 0
        %6192 = vperm.xlu0 %6191, %v6182
        %v6193 = vpop.permute.xlu0 %6192
        %6196 = vset.pattern.permute.xlu0 0
        %6197 = vperm.xlu0 %6196, %v6183
        %v6198 = vpop.permute.xlu0 %6197
        %6201 = vset.pattern.permute.xlu0 0
        %6202 = vperm.xlu0 %6201, %v6184
        %v6203 = vpop.permute.xlu0 %6202
        %v6205 = vadd.f32 %v5861, %v6188
        %v6206 = vadd.f32 %v5863, %v6188
        %v6207 = vadd.f32 %v5963, %v6188
        %v6208 = vadd.f32 %v6065, %v6188
        %v6209 = vadd.f32 %v6067, %v6188
        %v6210 = vadd.f32 %v6167, %v6188
        %v6211 = vadd.f32 %v5865, %v6193
        %v6212 = vadd.f32 %v5867, %v6193
        %v6213 = vadd.f32 %v5966, %v6193
        %v6214 = vadd.f32 %v6069, %v6193
        %v6215 = vadd.f32 %v6071, %v6193
        %v6216 = vadd.f32 %v6170, %v6193
        %v6217 = vadd.f32 %v5871, %v6198
        %v6218 = vadd.f32 %v5873, %v6198
        %v6219 = vadd.f32 %v5971, %v6198
        %v6220 = vadd.f32 %v6075, %v6198
        %v6221 = vadd.f32 %v6077, %v6198
        %v6222 = vadd.f32 %v6175, %v6198
        %v6223 = vadd.f32 %v5875, %v6203
        %v6224 = vadd.f32 %v5877, %v6203
        %v6225 = vadd.f32 %v5974, %v6203
        %v6226 = vadd.f32 %v6079, %v6203
        %v6227 = vadd.f32 %v6081, %v6203
        %v6228 = vadd.f32 %v6178, %v6203
        %v6229 = vmax.f32 %v6205, 0.0
        %v6230 = vmax.f32 %v6206, 0.0
        %v6231 = vmax.f32 %v6207, 0.0
        %v6232 = vmax.f32 %v6208, 0.0
        %v6233 = vmax.f32 %v6209, 0.0
        %v6234 = vmax.f32 %v6210, 0.0
        %v6235 = vmax.f32 %v6211, 0.0
        %v6236 = vmax.f32 %v6212, 0.0
        %v6237 = vmax.f32 %v6213, 0.0
        %v6238 = vmax.f32 %v6214, 0.0
        %v6239 = vmax.f32 %v6215, 0.0
        %v6240 = vmax.f32 %v6216, 0.0
        %v6241 = vmax.f32 %v6217, 0.0
        %v6242 = vmax.f32 %v6218, 0.0
        %v6243 = vmax.f32 %v6219, 0.0
        %v6244 = vmax.f32 %v6220, 0.0
        %v6245 = vmax.f32 %v6221, 0.0
        %v6246 = vmax.f32 %v6222, 0.0
        %v6247 = vmax.f32 %v6223, 0.0
        %v6248 = vmax.f32 %v6224, 0.0
        %v6249 = vmax.f32 %v6225, 0.0
        %v6250 = vmax.f32 %v6226, 0.0
        %v6251 = vmax.f32 %v6227, 0.0
        %v6252 = vmax.f32 %v6228, 0.0
        %v6253 = vpack.c.bf16 %v6235, %v6229
        %v6254 = vpack.c.bf16 %v6236, %v6230
        %v6255 = vpack.c.bf16 %v6237, %v6231
        %v6256 = vpack.c.bf16 %v6238, %v6232
        %v6257 = vpack.c.bf16 %v6239, %v6233
        %v6258 = vpack.c.bf16 %v6240, %v6234
        %v6259 = vpack.c.bf16 %v6247, %v6241
        %v6260 = vpack.c.bf16 %v6248, %v6242
        %v6261 = vpack.c.bf16 %v6249, %v6243
        %v6262 = vpack.c.bf16 %v6250, %v6244
        %v6263 = vpack.c.bf16 %v6251, %v6245
        %v6264 = vpack.c.bf16 %v6252, %v6246
        %v6265 = vld [vmem:[%s10] sm:$0xf]
        %v6266 = vld [vmem:[%s10 + $0x4] sm:$0xf]
        %v6269 = vunpack.c.l.b16 %v6265
        %v6270 = vunpack.c.l.b16 %v6266
        %v6271 = vpack.c.b16 %v6270, %v6269
        %vm6272 = vcmask 261120
        %v6274 = vsel %vm6272, %v6271, 0
        %6276 = vmatprep.subr.bf16.mxu0 0
        %6277 = vmatpush1.bf16.msra.mxu0 0
        %6278 = vmatprep.subr.bf16.mxu0 0
        %6279 = vmatpush1.bf16.msra.mxu0 0
        %6280 = vmatprep.subr.bf16.mxu0 0
        %6281 = vmatpush1.bf16.msra.mxu0 0
        %6282 = vmatprep.subr.bf16.mxu0 0
        %6283 = vmatpush1.bf16.msra.mxu0 0
        %6284 = vmatprep.subr.bf16.mxu0 0
        %6285 = vmatpush1.bf16.msra.mxu0 0
        %6286 = vmatprep.subr.bf16.mxu0 0
        %6287 = vmatpush1.bf16.msra.mxu0 0
        %6288 = vmatprep.subr.bf16.mxu0 %v6260
        %6289 = vmatpush1.bf16.msra.mxu0 %v6259
        %6290 = vmatprep.subr.bf16.mxu0 %v6254
        %6291 = vmatpush1.bf16.msra.mxu0 %v6253
        %6292 = vmatprep.subr.bf16.mxu0 0
        %6293 = vmatpush2.bf16.msra.mxu0 0
        %6294 = vmatprep.subr.bf16.mxu0 0
        %6295 = vmatpush2.bf16.msra.mxu0 0
        %6296 = vmatprep.subr.bf16.mxu0 0
        %6297 = vmatpush2.bf16.msra.mxu0 0
        %6298 = vmatprep.subr.bf16.mxu0 0
        %6299 = vmatpush2.bf16.msra.mxu0 0
        %6300 = vmatprep.subr.bf16.mxu0 0
        %6301 = vmatpush2.bf16.msra.mxu0 0
        %6302 = vmatprep.subr.bf16.mxu0 0
        %6303 = vmatpush2.bf16.msra.mxu0 0
        %6304 = vmatprep.subr.bf16.mxu0 0
        %6305 = vmatpush2.bf16.msra.mxu0 0
        %6306 = vmatprep.subr.bf16.mxu0 0
        %6307 = vmatpush2.bf16.msra.mxu0 0
        %6308 = vmatprep.mubr.bf16.mxu0 0
        %6309 = vmatmul.mubr.bf16.gmra.mxu0 %v6274
        %v6310 = vpop.f32.mrf.mxu0
        %v6311 = vadd.f32 0.0, %v6310
        %v6312 = vpop.f32.mrf.mxu0
        %v6313 = vadd.f32 0.0, %v6312
        %v6314 = vpop.f32.mrf.mxu0
        %v6315 = vadd.f32 0.0, %v6314
        %v6316 = vpop.f32.mrf.mxu0
        %v6317 = vadd.f32 0.0, %v6316
        %6318 = vdwg.mxu0
        %6319 = vmatprep.subr.bf16.mxu0 0
        %6320 = vmatpush1.bf16.msra.mxu0 0
        %6321 = vmatprep.subr.bf16.mxu0 0
        %6322 = vmatpush1.bf16.msra.mxu0 0
        %6323 = vmatprep.subr.bf16.mxu0 0
        %6324 = vmatpush1.bf16.msra.mxu0 0
        %6325 = vmatprep.subr.bf16.mxu0 0
        %6326 = vmatpush1.bf16.msra.mxu0 0
        %6327 = vmatprep.subr.bf16.mxu0 0
        %6328 = vmatpush1.bf16.msra.mxu0 0
        %6329 = vmatprep.subr.bf16.mxu0 0
        %6330 = vmatpush1.bf16.msra.mxu0 0
        %6331 = vmatprep.subr.bf16.mxu0 %v6262
        %6332 = vmatpush1.bf16.msra.mxu0 %v6261
        %6333 = vmatprep.subr.bf16.mxu0 %v6256
        %6334 = vmatpush1.bf16.msra.mxu0 %v6255
        %6335 = vmatprep.subr.bf16.mxu0 0
        %6336 = vmatpush2.bf16.msra.mxu0 0
        %6337 = vmatprep.subr.bf16.mxu0 0
        %6338 = vmatpush2.bf16.msra.mxu0 0
        %6339 = vmatprep.subr.bf16.mxu0 0
        %6340 = vmatpush2.bf16.msra.mxu0 0
        %6341 = vmatprep.subr.bf16.mxu0 0
        %6342 = vmatpush2.bf16.msra.mxu0 0
        %6343 = vmatprep.subr.bf16.mxu0 0
        %6344 = vmatpush2.bf16.msra.mxu0 0
        %6345 = vmatprep.subr.bf16.mxu0 0
        %6346 = vmatpush2.bf16.msra.mxu0 0
        %6347 = vmatprep.subr.bf16.mxu0 0
        %6348 = vmatpush2.bf16.msra.mxu0 0
        %6349 = vmatprep.subr.bf16.mxu0 0
        %6350 = vmatpush2.bf16.msra.mxu0 0
        %6351 = vmatprep.mubr.bf16.mxu0 0
        %6352 = vmatmul.mubr.bf16.gmra.mxu0 %v6274
        %v6353 = vpop.f32.mrf.mxu0
        %v6354 = vadd.f32 0.0, %v6353
        %v6355 = vpop.f32.mrf.mxu0
        %v6356 = vadd.f32 0.0, %v6355
        %v6357 = vpop.f32.mrf.mxu0
        %v6358 = vadd.f32 0.0, %v6357
        %v6359 = vpop.f32.mrf.mxu0
        %v6360 = vadd.f32 0.0, %v6359
        %6361 = vdwg.mxu0
        %6362 = vmatprep.subr.bf16.mxu0 0
        %6363 = vmatpush1.bf16.msra.mxu0 0
        %6364 = vmatprep.subr.bf16.mxu0 0
        %6365 = vmatpush1.bf16.msra.mxu0 0
        %6366 = vmatprep.subr.bf16.mxu0 0
        %6367 = vmatpush1.bf16.msra.mxu0 0
        %6368 = vmatprep.subr.bf16.mxu0 0
        %6369 = vmatpush1.bf16.msra.mxu0 0
        %6370 = vmatprep.subr.bf16.mxu0 0
        %6371 = vmatpush1.bf16.msra.mxu0 0
        %6372 = vmatprep.subr.bf16.mxu0 0
        %6373 = vmatpush1.bf16.msra.mxu0 0
        %6374 = vmatprep.subr.bf16.mxu0 %v6264
        %6375 = vmatpush1.bf16.msra.mxu0 %v6263
        %6376 = vmatprep.subr.bf16.mxu0 %v6258
        %6377 = vmatpush1.bf16.msra.mxu0 %v6257
        %6378 = vmatprep.subr.bf16.mxu0 0
        %6379 = vmatpush2.bf16.msra.mxu0 0
        %6380 = vmatprep.subr.bf16.mxu0 0
        %6381 = vmatpush2.bf16.msra.mxu0 0
        %6382 = vmatprep.subr.bf16.mxu0 0
        %6383 = vmatpush2.bf16.msra.mxu0 0
        %6384 = vmatprep.subr.bf16.mxu0 0
        %6385 = vmatpush2.bf16.msra.mxu0 0
        %6386 = vmatprep.subr.bf16.mxu0 0
        %6387 = vmatpush2.bf16.msra.mxu0 0
        %6388 = vmatprep.subr.bf16.mxu0 0
        %6389 = vmatpush2.bf16.msra.mxu0 0
        %6390 = vmatprep.subr.bf16.mxu0 0
        %6391 = vmatpush2.bf16.msra.mxu0 0
        %6392 = vmatprep.subr.bf16.mxu0 0
        %6393 = vmatpush2.bf16.msra.mxu0 0
        %6394 = vmatprep.mubr.bf16.mxu0 0
        %6395 = vmatmul.mubr.bf16.gmra.mxu0 %v6274
        %v6396 = vpop.f32.mrf.mxu0
        %v6397 = vadd.f32 0.0, %v6396
        %v6398 = vpop.f32.mrf.mxu0
        %v6399 = vadd.f32 0.0, %v6398
        %v6400 = vpop.f32.mrf.mxu0
        %v6401 = vadd.f32 0.0, %v6400
        %v6402 = vpop.f32.mrf.mxu0
        %v6403 = vadd.f32 0.0, %v6402
        %6404 = vdwg.mxu0
        %v6405 = vpack.c.bf16 %v6315, %v6311
        %v6406 = vpack.c.bf16 %v6317, %v6313
        %v6407 = vpack.c.bf16 %v6358, %v6354
        %v6408 = vpack.c.bf16 %v6360, %v6356
        %v6409 = vpack.c.bf16 %v6401, %v6397
        %v6410 = vpack.c.bf16 %v6403, %v6399
        %6411 = vmatprep.subr.bf16.mxu0 %v4258
        %6412 = vmatpush1.bf16.msra.mxu0 %v4257
        %6413 = vmatprep.subr.bf16.mxu0 %v4255
        %6414 = vmatpush1.bf16.msra.mxu0 %v4254
        %6415 = vmatprep.subr.bf16.mxu0 %v4252
        %6416 = vmatpush1.bf16.msra.mxu0 %v4251
        %6417 = vmatprep.subr.bf16.mxu0 %v4249
        %6418 = vmatpush1.bf16.msra.mxu0 %v4248
        %6419 = vmatprep.subr.bf16.mxu0 %v4246
        %6420 = vmatpush1.bf16.msra.mxu0 %v4245
        %6421 = vmatprep.subr.bf16.mxu0 %v4243
        %6422 = vmatpush1.bf16.msra.mxu0 %v4242
        %6423 = vmatprep.subr.bf16.mxu0 %v4240
        %6424 = vmatpush1.bf16.msra.mxu0 %v4239
        %6425 = vmatprep.subr.bf16.mxu0 %v4237
        %6426 = vmatpush1.bf16.msra.mxu0 %v4236
        %6427 = vmatprep.subr.bf16.mxu0 %v4282
        %6428 = vmatpush2.bf16.msra.mxu0 %v4281
        %6429 = vmatprep.subr.bf16.mxu0 %v4279
        %6430 = vmatpush2.bf16.msra.mxu0 %v4278
        %6431 = vmatprep.subr.bf16.mxu0 %v4276
        %6432 = vmatpush2.bf16.msra.mxu0 %v4275
        %6433 = vmatprep.subr.bf16.mxu0 %v4273
        %6434 = vmatpush2.bf16.msra.mxu0 %v4272
        %6435 = vmatprep.subr.bf16.mxu0 %v4270
        %6436 = vmatpush2.bf16.msra.mxu0 %v4269
        %6437 = vmatprep.subr.bf16.mxu0 %v4267
        %6438 = vmatpush2.bf16.msra.mxu0 %v4266
        %6439 = vmatprep.subr.bf16.mxu0 %v4264
        %6440 = vmatpush2.bf16.msra.mxu0 %v4263
        %6441 = vmatprep.subr.bf16.mxu0 %v4261
        %6442 = vmatpush2.bf16.msra.mxu0 %v4260
        %6443 = vmatprep.mubr.bf16.mxu0 %v6406
        %6444 = vmatmul.mubr.bf16.gmra.mxu0 %v6405
        %v6445 = vpop.f32.mrf.mxu0
        %v6446 = vadd.f32 0.0, %v6445
        %v6447 = vpop.f32.mrf.mxu0
        %v6448 = vadd.f32 0.0, %v6447
        %v6449 = vpop.f32.mrf.mxu0
        %v6450 = vadd.f32 0.0, %v6449
        %v6451 = vpop.f32.mrf.mxu0
        %v6452 = vadd.f32 0.0, %v6451
        %6453 = vdwg.mxu0
        %6454 = vmatprep.subr.bf16.mxu0 %v4306
        %6455 = vmatpush1.bf16.msra.mxu0 %v4305
        %6456 = vmatprep.subr.bf16.mxu0 %v4303
        %6457 = vmatpush1.bf16.msra.mxu0 %v4302
        %6458 = vmatprep.subr.bf16.mxu0 %v4300
        %6459 = vmatpush1.bf16.msra.mxu0 %v4299
        %6460 = vmatprep.subr.bf16.mxu0 %v4297
        %6461 = vmatpush1.bf16.msra.mxu0 %v4296
        %6462 = vmatprep.subr.bf16.mxu0 %v4294
        %6463 = vmatpush1.bf16.msra.mxu0 %v4293
        %6464 = vmatprep.subr.bf16.mxu0 %v4291
        %6465 = vmatpush1.bf16.msra.mxu0 %v4290
        %6466 = vmatprep.subr.bf16.mxu0 %v4288
        %6467 = vmatpush1.bf16.msra.mxu0 %v4287
        %6468 = vmatprep.subr.bf16.mxu0 %v4285
        %6469 = vmatpush1.bf16.msra.mxu0 %v4284
        %6470 = vmatprep.subr.bf16.mxu0 0
        %6471 = vmatpush2.bf16.msra.mxu0 0
        %6472 = vmatprep.subr.bf16.mxu0 0
        %6473 = vmatpush2.bf16.msra.mxu0 0
        %6474 = vmatprep.subr.bf16.mxu0 0
        %6475 = vmatpush2.bf16.msra.mxu0 0
        %6476 = vmatprep.subr.bf16.mxu0 0
        %6477 = vmatpush2.bf16.msra.mxu0 0
        %6478 = vmatprep.subr.bf16.mxu0 0
        %6479 = vmatpush2.bf16.msra.mxu0 0
        %6480 = vmatprep.subr.bf16.mxu0 0
        %6481 = vmatpush2.bf16.msra.mxu0 0
        %6482 = vmatprep.subr.bf16.mxu0 0
        %6483 = vmatpush2.bf16.msra.mxu0 0
        %6484 = vmatprep.subr.bf16.mxu0 0
        %6485 = vmatpush2.bf16.msra.mxu0 0
        %6486 = vmatprep.mubr.bf16.mxu0 0
        %6487 = vmatmul.mubr.bf16.gmra.mxu0 %v6407
        %v6488 = vpop.f32.mrf.mxu0
        %v6489 = vadd.f32 %v6446, %v6488
        %v6490 = vpop.f32.mrf.mxu0
        %v6491 = vadd.f32 %v6448, %v6490
        %v6492 = vpop.f32.mrf.mxu0
        %v6493 = vadd.f32 %v6450, %v6492
        %v6494 = vpop.f32.mrf.mxu0
        %v6495 = vadd.f32 %v6452, %v6494
        %6496 = vdwg.mxu0
        %6497 = vmatprep.subr.bf16.mxu0 0
        %6498 = vmatpush1.bf16.msra.mxu0 %v4259
        %6499 = vmatprep.subr.bf16.mxu0 0
        %6500 = vmatpush1.bf16.msra.mxu0 %v4256
        %6501 = vmatprep.subr.bf16.mxu0 0
        %6502 = vmatpush1.bf16.msra.mxu0 %v4253
        %6503 = vmatprep.subr.bf16.mxu0 0
        %6504 = vmatpush1.bf16.msra.mxu0 %v4250
        %6505 = vmatprep.subr.bf16.mxu0 0
        %6506 = vmatpush1.bf16.msra.mxu0 %v4247
        %6507 = vmatprep.subr.bf16.mxu0 0
        %6508 = vmatpush1.bf16.msra.mxu0 %v4244
        %6509 = vmatprep.subr.bf16.mxu0 0
        %6510 = vmatpush1.bf16.msra.mxu0 %v4241
        %6511 = vmatprep.subr.bf16.mxu0 0
        %6512 = vmatpush1.bf16.msra.mxu0 %v4238
        %6513 = vmatprep.subr.bf16.mxu0 0
        %6514 = vmatpush2.bf16.msra.mxu0 %v4283
        %6515 = vmatprep.subr.bf16.mxu0 0
        %6516 = vmatpush2.bf16.msra.mxu0 %v4280
        %6517 = vmatprep.subr.bf16.mxu0 0
        %6518 = vmatpush2.bf16.msra.mxu0 %v4277
        %6519 = vmatprep.subr.bf16.mxu0 0
        %6520 = vmatpush2.bf16.msra.mxu0 %v4274
        %6521 = vmatprep.subr.bf16.mxu0 0
        %6522 = vmatpush2.bf16.msra.mxu0 %v4271
        %6523 = vmatprep.subr.bf16.mxu0 0
        %6524 = vmatpush2.bf16.msra.mxu0 %v4268
        %6525 = vmatprep.subr.bf16.mxu0 0
        %6526 = vmatpush2.bf16.msra.mxu0 %v4265
        %6527 = vmatprep.subr.bf16.mxu0 0
        %6528 = vmatpush2.bf16.msra.mxu0 %v4262
        %6529 = vmatprep.mubr.bf16.mxu0 %v6406
        %6530 = vmatmul.mubr.bf16.gmra.mxu0 %v6405
        %v6531 = vpop.f32.mrf.mxu0
        %v6532 = vadd.f32 0.0, %v6531
        %v6533 = vpop.f32.mrf.mxu0
        %v6534 = vpop.f32.mrf.mxu0
        %v6535 = vadd.f32 0.0, %v6534
        %v6536 = vpop.f32.mrf.mxu0
        %6537 = vdwg.mxu0
        %6538 = vmatprep.subr.bf16.mxu0 0
        %6539 = vmatpush1.bf16.msra.mxu0 %v4307
        %6540 = vmatprep.subr.bf16.mxu0 0
        %6541 = vmatpush1.bf16.msra.mxu0 %v4304
        %6542 = vmatprep.subr.bf16.mxu0 0
        %6543 = vmatpush1.bf16.msra.mxu0 %v4301
        %6544 = vmatprep.subr.bf16.mxu0 0
        %6545 = vmatpush1.bf16.msra.mxu0 %v4298
        %6546 = vmatprep.subr.bf16.mxu0 0
        %6547 = vmatpush1.bf16.msra.mxu0 %v4295
        %6548 = vmatprep.subr.bf16.mxu0 0
        %6549 = vmatpush1.bf16.msra.mxu0 %v4292
        %6550 = vmatprep.subr.bf16.mxu0 0
        %6551 = vmatpush1.bf16.msra.mxu0 %v4289
        %6552 = vmatprep.subr.bf16.mxu0 0
        %6553 = vmatpush1.bf16.msra.mxu0 %v4286
        %6554 = vmatprep.subr.bf16.mxu0 0
        %6555 = vmatpush2.bf16.msra.mxu0 0
        %6556 = vmatprep.subr.bf16.mxu0 0
        %6557 = vmatpush2.bf16.msra.mxu0 0
        %6558 = vmatprep.subr.bf16.mxu0 0
        %6559 = vmatpush2.bf16.msra.mxu0 0
        %6560 = vmatprep.subr.bf16.mxu0 0
        %6561 = vmatpush2.bf16.msra.mxu0 0
        %6562 = vmatprep.subr.bf16.mxu0 0
        %6563 = vmatpush2.bf16.msra.mxu0 0
        %6564 = vmatprep.subr.bf16.mxu0 0
        %6565 = vmatpush2.bf16.msra.mxu0 0
        %6566 = vmatprep.subr.bf16.mxu0 0
        %6567 = vmatpush2.bf16.msra.mxu0 0
        %6568 = vmatprep.subr.bf16.mxu0 0
        %6569 = vmatpush2.bf16.msra.mxu0 0
        %6570 = vmatprep.mubr.bf16.mxu0 0
        %6571 = vmatmul.mubr.bf16.gmra.mxu0 %v6407
        %v6572 = vpop.f32.mrf.mxu0
        %v6573 = vadd.f32 %v6532, %v6572
        %v6574 = vpop.f32.mrf.mxu0
        %v6575 = vpop.f32.mrf.mxu0
        %v6576 = vadd.f32 %v6535, %v6575
        %v6577 = vpop.f32.mrf.mxu0
        %6578 = vdwg.mxu0
        %6579 = vmatprep.subr.bf16.mxu0 %v5015
        %6580 = vmatpush1.bf16.msra.mxu0 %v5014
        %6581 = vmatprep.subr.bf16.mxu0 %v5012
        %6582 = vmatpush1.bf16.msra.mxu0 %v5011
        %6583 = vmatprep.subr.bf16.mxu0 %v5009
        %6584 = vmatpush1.bf16.msra.mxu0 %v5008
        %6585 = vmatprep.subr.bf16.mxu0 %v5006
        %6586 = vmatpush1.bf16.msra.mxu0 %v5005
        %6587 = vmatprep.subr.bf16.mxu0 %v5003
        %6588 = vmatpush1.bf16.msra.mxu0 %v5002
        %6589 = vmatprep.subr.bf16.mxu0 %v5000
        %6590 = vmatpush1.bf16.msra.mxu0 %v4999
        %6591 = vmatprep.subr.bf16.mxu0 %v4997
        %6592 = vmatpush1.bf16.msra.mxu0 %v4996
        %6593 = vmatprep.subr.bf16.mxu0 %v4994
        %6594 = vmatpush1.bf16.msra.mxu0 %v4993
        %6595 = vmatprep.subr.bf16.mxu0 %v5039
        %6596 = vmatpush2.bf16.msra.mxu0 %v5038
        %6597 = vmatprep.subr.bf16.mxu0 %v5036
        %6598 = vmatpush2.bf16.msra.mxu0 %v5035
        %6599 = vmatprep.subr.bf16.mxu0 %v5033
        %6600 = vmatpush2.bf16.msra.mxu0 %v5032
        %6601 = vmatprep.subr.bf16.mxu0 %v5030
        %6602 = vmatpush2.bf16.msra.mxu0 %v5029
        %6603 = vmatprep.subr.bf16.mxu0 %v5027
        %6604 = vmatpush2.bf16.msra.mxu0 %v5026
        %6605 = vmatprep.subr.bf16.mxu0 %v5024
        %6606 = vmatpush2.bf16.msra.mxu0 %v5023
        %6607 = vmatprep.subr.bf16.mxu0 %v5021
        %6608 = vmatpush2.bf16.msra.mxu0 %v5020
        %6609 = vmatprep.subr.bf16.mxu0 %v5018
        %6610 = vmatpush2.bf16.msra.mxu0 %v5017
        %6611 = vmatprep.mubr.bf16.mxu0 %v6409
        %6612 = vmatmul.mubr.bf16.gmra.mxu0 %v6408
        %v6613 = vpop.f32.mrf.mxu0
        %v6614 = vadd.f32 0.0, %v6613
        %v6615 = vpop.f32.mrf.mxu0
        %v6616 = vadd.f32 0.0, %v6615
        %v6617 = vpop.f32.mrf.mxu0
        %v6618 = vadd.f32 0.0, %v6617
        %v6619 = vpop.f32.mrf.mxu0
        %v6620 = vadd.f32 0.0, %v6619
        %6621 = vdwg.mxu0
        %6622 = vmatprep.subr.bf16.mxu0 %v5063
        %6623 = vmatpush1.bf16.msra.mxu0 %v5062
        %6624 = vmatprep.subr.bf16.mxu0 %v5060
        %6625 = vmatpush1.bf16.msra.mxu0 %v5059
        %6626 = vmatprep.subr.bf16.mxu0 %v5057
        %6627 = vmatpush1.bf16.msra.mxu0 %v5056
        %6628 = vmatprep.subr.bf16.mxu0 %v5054
        %6629 = vmatpush1.bf16.msra.mxu0 %v5053
        %6630 = vmatprep.subr.bf16.mxu0 %v5051
        %6631 = vmatpush1.bf16.msra.mxu0 %v5050
        %6632 = vmatprep.subr.bf16.mxu0 %v5048
        %6633 = vmatpush1.bf16.msra.mxu0 %v5047
        %6634 = vmatprep.subr.bf16.mxu0 %v5045
        %6635 = vmatpush1.bf16.msra.mxu0 %v5044
        %6636 = vmatprep.subr.bf16.mxu0 %v5042
        %6637 = vmatpush1.bf16.msra.mxu0 %v5041
        %6638 = vmatprep.subr.bf16.mxu0 0
        %6639 = vmatpush2.bf16.msra.mxu0 0
        %6640 = vmatprep.subr.bf16.mxu0 0
        %6641 = vmatpush2.bf16.msra.mxu0 0
        %6642 = vmatprep.subr.bf16.mxu0 0
        %6643 = vmatpush2.bf16.msra.mxu0 0
        %6644 = vmatprep.subr.bf16.mxu0 0
        %6645 = vmatpush2.bf16.msra.mxu0 0
        %6646 = vmatprep.subr.bf16.mxu0 0
        %6647 = vmatpush2.bf16.msra.mxu0 0
        %6648 = vmatprep.subr.bf16.mxu0 0
        %6649 = vmatpush2.bf16.msra.mxu0 0
        %6650 = vmatprep.subr.bf16.mxu0 0
        %6651 = vmatpush2.bf16.msra.mxu0 0
        %6652 = vmatprep.subr.bf16.mxu0 0
        %6653 = vmatpush2.bf16.msra.mxu0 0
        %6654 = vmatprep.mubr.bf16.mxu0 0
        %6655 = vmatmul.mubr.bf16.gmra.mxu0 %v6410
        %v6656 = vpop.f32.mrf.mxu0
        %v6657 = vadd.f32 %v6614, %v6656
        %v6658 = vpop.f32.mrf.mxu0
        %v6659 = vadd.f32 %v6616, %v6658
        %v6660 = vpop.f32.mrf.mxu0
        %v6661 = vadd.f32 %v6618, %v6660
        %v6662 = vpop.f32.mrf.mxu0
        %v6663 = vadd.f32 %v6620, %v6662
        %6664 = vdwg.mxu0
        %6665 = vmatprep.subr.bf16.mxu0 0
        %6666 = vmatpush1.bf16.msra.mxu0 %v5016
        %6667 = vmatprep.subr.bf16.mxu0 0
        %6668 = vmatpush1.bf16.msra.mxu0 %v5013
        %6669 = vmatprep.subr.bf16.mxu0 0
        %6670 = vmatpush1.bf16.msra.mxu0 %v5010
        %6671 = vmatprep.subr.bf16.mxu0 0
        %6672 = vmatpush1.bf16.msra.mxu0 %v5007
        %6673 = vmatprep.subr.bf16.mxu0 0
        %6674 = vmatpush1.bf16.msra.mxu0 %v5004
        %6675 = vmatprep.subr.bf16.mxu0 0
        %6676 = vmatpush1.bf16.msra.mxu0 %v5001
        %6677 = vmatprep.subr.bf16.mxu0 0
        %6678 = vmatpush1.bf16.msra.mxu0 %v4998
        %6679 = vmatprep.subr.bf16.mxu0 0
        %6680 = vmatpush1.bf16.msra.mxu0 %v4995
        %6681 = vmatprep.subr.bf16.mxu0 0
        %6682 = vmatpush2.bf16.msra.mxu0 %v5040
        %6683 = vmatprep.subr.bf16.mxu0 0
        %6684 = vmatpush2.bf16.msra.mxu0 %v5037
        %6685 = vmatprep.subr.bf16.mxu0 0
        %6686 = vmatpush2.bf16.msra.mxu0 %v5034
        %6687 = vmatprep.subr.bf16.mxu0 0
        %6688 = vmatpush2.bf16.msra.mxu0 %v5031
        %6689 = vmatprep.subr.bf16.mxu0 0
        %6690 = vmatpush2.bf16.msra.mxu0 %v5028
        %6691 = vmatprep.subr.bf16.mxu0 0
        %6692 = vmatpush2.bf16.msra.mxu0 %v5025
        %6693 = vmatprep.subr.bf16.mxu0 0
        %6694 = vmatpush2.bf16.msra.mxu0 %v5022
        %6695 = vmatprep.subr.bf16.mxu0 0
        %6696 = vmatpush2.bf16.msra.mxu0 %v5019
        %6697 = vmatprep.mubr.bf16.mxu0 %v6409
        %6698 = vmatmul.mubr.bf16.gmra.mxu0 %v6408
        %v6699 = vpop.f32.mrf.mxu0
        %v6700 = vadd.f32 0.0, %v6699
        %v6701 = vpop.f32.mrf.mxu0
        %v6702 = vpop.f32.mrf.mxu0
        %v6703 = vadd.f32 0.0, %v6702
        %v6704 = vpop.f32.mrf.mxu0
        %6705 = vdwg.mxu0
        %6706 = vmatprep.subr.bf16.mxu0 0
        %6707 = vmatpush1.bf16.msra.mxu0 %v5064
        %6708 = vmatprep.subr.bf16.mxu0 0
        %6709 = vmatpush1.bf16.msra.mxu0 %v5061
        %6710 = vmatprep.subr.bf16.mxu0 0
        %6711 = vmatpush1.bf16.msra.mxu0 %v5058
        %6712 = vmatprep.subr.bf16.mxu0 0
        %6713 = vmatpush1.bf16.msra.mxu0 %v5055
        %6714 = vmatprep.subr.bf16.mxu0 0
        %6715 = vmatpush1.bf16.msra.mxu0 %v5052
        %6716 = vmatprep.subr.bf16.mxu0 0
        %6717 = vmatpush1.bf16.msra.mxu0 %v5049
        %6718 = vmatprep.subr.bf16.mxu0 0
        %6719 = vmatpush1.bf16.msra.mxu0 %v5046
        %6720 = vmatprep.subr.bf16.mxu0 0
        %6721 = vmatpush1.bf16.msra.mxu0 %v5043
        %6722 = vmatprep.subr.bf16.mxu0 0
        %6723 = vmatpush2.bf16.msra.mxu0 0
        %6724 = vmatprep.subr.bf16.mxu0 0
        %6725 = vmatpush2.bf16.msra.mxu0 0
        %6726 = vmatprep.subr.bf16.mxu0 0
        %6727 = vmatpush2.bf16.msra.mxu0 0
        %6728 = vmatprep.subr.bf16.mxu0 0
        %6729 = vmatpush2.bf16.msra.mxu0 0
        %6730 = vmatprep.subr.bf16.mxu0 0
        %6731 = vmatpush2.bf16.msra.mxu0 0
        %6732 = vmatprep.subr.bf16.mxu0 0
        %6733 = vmatpush2.bf16.msra.mxu0 0
        %6734 = vmatprep.subr.bf16.mxu0 0
        %6735 = vmatpush2.bf16.msra.mxu0 0
        %6736 = vmatprep.subr.bf16.mxu0 0
        %6737 = vmatpush2.bf16.msra.mxu0 0
        %6738 = vmatprep.mubr.bf16.mxu0 0
        %6739 = vmatmul.mubr.bf16.gmra.mxu0 %v6410
        %v6740 = vpop.f32.mrf.mxu0
        %v6741 = vadd.f32 %v6700, %v6740
        %v6742 = vpop.f32.mrf.mxu0
        %v6743 = vpop.f32.mrf.mxu0
        %v6744 = vadd.f32 %v6703, %v6743
        %v6745 = vpop.f32.mrf.mxu0
        %6746 = vdwg.mxu0
        %v6747 = vld [vmem:[%s11] sm:$0xff]
        %v6748 = vld [vmem:[%s11 + $0x8] sm:$0xff]
        %6750 = vset.pattern.permute.xlu0 0
        %6751 = vperm.xlu0 %6750, %v6747
        %v6752 = vpop.permute.xlu0 %6751
        %6755 = vset.pattern.permute.xlu0 0
        %6756 = vperm.xlu0 %6755, %v6748
        %v6757 = vpop.permute.xlu0 %6756
        %v6759 = vadd.f32 %v6489, %v6752
        %v6760 = vadd.f32 %v6491, %v6752
        %v6761 = vadd.f32 %v6573, %v6752
        %v6762 = vadd.f32 %v6657, %v6752
        %v6763 = vadd.f32 %v6659, %v6752
        %v6764 = vadd.f32 %v6741, %v6752
        %v6765 = vadd.f32 %v6493, %v6757
        %v6766 = vadd.f32 %v6495, %v6757
        %v6767 = vadd.f32 %v6576, %v6757
        %v6768 = vadd.f32 %v6661, %v6757
        %v6769 = vadd.f32 %v6663, %v6757
        %v6770 = vadd.f32 %v6744, %v6757
        %v6771 = vmax.f32 %v6759, 0.0
        %v6772 = vmax.f32 %v6760, 0.0
        %v6773 = vmax.f32 %v6761, 0.0
        %v6774 = vmax.f32 %v6762, 0.0
        %v6775 = vmax.f32 %v6763, 0.0
        %v6776 = vmax.f32 %v6764, 0.0
        %v6777 = vmax.f32 %v6765, 0.0
        %v6778 = vmax.f32 %v6766, 0.0
        %v6779 = vmax.f32 %v6767, 0.0
        %v6780 = vmax.f32 %v6768, 0.0
        %v6781 = vmax.f32 %v6769, 0.0
        %v6782 = vmax.f32 %v6770, 0.0
        %v6783 = vpack.c.bf16 %v6777, %v6771
        %v6784 = vpack.c.bf16 %v6778, %v6772
        %v6785 = vpack.c.bf16 %v6779, %v6773
        %v6786 = vpack.c.bf16 %v6780, %v6774
        %v6787 = vpack.c.bf16 %v6781, %v6775
        %v6788 = vpack.c.bf16 %v6782, %v6776
        %v6789 = vld [vmem:[%s12] sm:$0xf]
        %v6791 = vsel %vm2929, %v6789, 0
        %6793 = vmatprep.subr.bf16.mxu0 0
        %6794 = vmatpush1.bf16.msra.mxu0 0
        %6795 = vmatprep.subr.bf16.mxu0 0
        %6796 = vmatpush1.bf16.msra.mxu0 0
        %6797 = vmatprep.subr.bf16.mxu0 0
        %6798 = vmatpush1.bf16.msra.mxu0 0
        %6799 = vmatprep.subr.bf16.mxu0 0
        %6800 = vmatpush1.bf16.msra.mxu0 0
        %6801 = vmatprep.subr.bf16.mxu0 0
        %6802 = vmatpush1.bf16.msra.mxu0 0
        %6803 = vmatprep.subr.bf16.mxu0 0
        %6804 = vmatpush1.bf16.msra.mxu0 0
        %6805 = vmatprep.subr.bf16.mxu0 0
        %6806 = vmatpush1.bf16.msra.mxu0 0
        %6807 = vmatprep.subr.bf16.mxu0 %v6784
        %6808 = vmatpush1.bf16.msra.mxu0 %v6783
        %6809 = vmatprep.subr.bf16.mxu0 0
        %6810 = vmatpush2.bf16.msra.mxu0 0
        %6811 = vmatprep.subr.bf16.mxu0 0
        %6812 = vmatpush2.bf16.msra.mxu0 0
        %6813 = vmatprep.subr.bf16.mxu0 0
        %6814 = vmatpush2.bf16.msra.mxu0 0
        %6815 = vmatprep.subr.bf16.mxu0 0
        %6816 = vmatpush2.bf16.msra.mxu0 0
        %6817 = vmatprep.subr.bf16.mxu0 0
        %6818 = vmatpush2.bf16.msra.mxu0 0
        %6819 = vmatprep.subr.bf16.mxu0 0
        %6820 = vmatpush2.bf16.msra.mxu0 0
        %6821 = vmatprep.subr.bf16.mxu0 0
        %6822 = vmatpush2.bf16.msra.mxu0 0
        %6823 = vmatprep.subr.bf16.mxu0 0
        %6824 = vmatpush2.bf16.msra.mxu0 0
        %6825 = vmatprep.mubr.bf16.mxu0 0
        %6826 = vmatmul.mubr.bf16.gmra.mxu0 %v6791
        %v6827 = vpop.f32.mrf.mxu0
        %v6828 = vadd.f32 0.0, %v6827
        %v6829 = vpop.f32.mrf.mxu0
        %v6830 = vadd.f32 0.0, %v6829
        %v6831 = vpop.f32.mrf.mxu0
        %v6832 = vpop.f32.mrf.mxu0
        %6833 = vdwg.mxu0
        %6834 = vmatprep.subr.bf16.mxu0 0
        %6835 = vmatpush1.bf16.msra.mxu0 0
        %6836 = vmatprep.subr.bf16.mxu0 0
        %6837 = vmatpush1.bf16.msra.mxu0 0
        %6838 = vmatprep.subr.bf16.mxu0 0
        %6839 = vmatpush1.bf16.msra.mxu0 0
        %6840 = vmatprep.subr.bf16.mxu0 0
        %6841 = vmatpush1.bf16.msra.mxu0 0
        %6842 = vmatprep.subr.bf16.mxu0 0
        %6843 = vmatpush1.bf16.msra.mxu0 0
        %6844 = vmatprep.subr.bf16.mxu0 0
        %6845 = vmatpush1.bf16.msra.mxu0 0
        %6846 = vmatprep.subr.bf16.mxu0 0
        %6847 = vmatpush1.bf16.msra.mxu0 0
        %6848 = vmatprep.subr.bf16.mxu0 %v6786
        %6849 = vmatpush1.bf16.msra.mxu0 %v6785
        %6850 = vmatprep.subr.bf16.mxu0 0
        %6851 = vmatpush2.bf16.msra.mxu0 0
        %6852 = vmatprep.subr.bf16.mxu0 0
        %6853 = vmatpush2.bf16.msra.mxu0 0
        %6854 = vmatprep.subr.bf16.mxu0 0
        %6855 = vmatpush2.bf16.msra.mxu0 0
        %6856 = vmatprep.subr.bf16.mxu0 0
        %6857 = vmatpush2.bf16.msra.mxu0 0
        %6858 = vmatprep.subr.bf16.mxu0 0
        %6859 = vmatpush2.bf16.msra.mxu0 0
        %6860 = vmatprep.subr.bf16.mxu0 0
        %6861 = vmatpush2.bf16.msra.mxu0 0
        %6862 = vmatprep.subr.bf16.mxu0 0
        %6863 = vmatpush2.bf16.msra.mxu0 0
        %6864 = vmatprep.subr.bf16.mxu0 0
        %6865 = vmatpush2.bf16.msra.mxu0 0
        %6866 = vmatprep.mubr.bf16.mxu0 0
        %6867 = vmatmul.mubr.bf16.gmra.mxu0 %v6791
        %v6868 = vpop.f32.mrf.mxu0
        %v6869 = vadd.f32 0.0, %v6868
        %v6870 = vpop.f32.mrf.mxu0
        %v6871 = vadd.f32 0.0, %v6870
        %v6872 = vpop.f32.mrf.mxu0
        %v6873 = vpop.f32.mrf.mxu0
        %6874 = vdwg.mxu0
        %6875 = vmatprep.subr.bf16.mxu0 0
        %6876 = vmatpush1.bf16.msra.mxu0 0
        %6877 = vmatprep.subr.bf16.mxu0 0
        %6878 = vmatpush1.bf16.msra.mxu0 0
        %6879 = vmatprep.subr.bf16.mxu0 0
        %6880 = vmatpush1.bf16.msra.mxu0 0
        %6881 = vmatprep.subr.bf16.mxu0 0
        %6882 = vmatpush1.bf16.msra.mxu0 0
        %6883 = vmatprep.subr.bf16.mxu0 0
        %6884 = vmatpush1.bf16.msra.mxu0 0
        %6885 = vmatprep.subr.bf16.mxu0 0
        %6886 = vmatpush1.bf16.msra.mxu0 0
        %6887 = vmatprep.subr.bf16.mxu0 0
        %6888 = vmatpush1.bf16.msra.mxu0 0
        %6889 = vmatprep.subr.bf16.mxu0 %v6788
        %6890 = vmatpush1.bf16.msra.mxu0 %v6787
        %6891 = vmatprep.subr.bf16.mxu0 0
        %6892 = vmatpush2.bf16.msra.mxu0 0
        %6893 = vmatprep.subr.bf16.mxu0 0
        %6894 = vmatpush2.bf16.msra.mxu0 0
        %6895 = vmatprep.subr.bf16.mxu0 0
        %6896 = vmatpush2.bf16.msra.mxu0 0
        %6897 = vmatprep.subr.bf16.mxu0 0
        %6898 = vmatpush2.bf16.msra.mxu0 0
        %6899 = vmatprep.subr.bf16.mxu0 0
        %6900 = vmatpush2.bf16.msra.mxu0 0
        %6901 = vmatprep.subr.bf16.mxu0 0
        %6902 = vmatpush2.bf16.msra.mxu0 0
        %6903 = vmatprep.subr.bf16.mxu0 0
        %6904 = vmatpush2.bf16.msra.mxu0 0
        %6905 = vmatprep.subr.bf16.mxu0 0
        %6906 = vmatpush2.bf16.msra.mxu0 0
        %6907 = vmatprep.mubr.bf16.mxu0 0
        %6908 = vmatmul.mubr.bf16.gmra.mxu0 %v6791
        %v6909 = vpop.f32.mrf.mxu0
        %v6910 = vadd.f32 0.0, %v6909
        %v6911 = vpop.f32.mrf.mxu0
        %v6912 = vadd.f32 0.0, %v6911
        %v6913 = vpop.f32.mrf.mxu0
        %v6914 = vpop.f32.mrf.mxu0
        %6915 = vdwg.mxu0
        %v6916 = vpack.c.bf16 %v6828, %v6828
        %v6917 = vpack.c.bf16 %v6830, %v6830
        %v6918 = vpack.c.bf16 %v6869, %v6869
        %v6919 = vpack.c.bf16 %v6871, %v6871
        %v6920 = vpack.c.bf16 %v6910, %v6910
        %v6921 = vpack.c.bf16 %v6912, %v6912
        %6922 = vmatprep.subr.bf16.mxu0 %v4258
        %6923 = vmatpush1.bf16.msra.mxu0 %v4257
        %6924 = vmatprep.subr.bf16.mxu0 %v4255
        %6925 = vmatpush1.bf16.msra.mxu0 %v4254
        %6926 = vmatprep.subr.bf16.mxu0 %v4252
        %6927 = vmatpush1.bf16.msra.mxu0 %v4251
        %6928 = vmatprep.subr.bf16.mxu0 %v4249
        %6929 = vmatpush1.bf16.msra.mxu0 %v4248
        %6930 = vmatprep.subr.bf16.mxu0 %v4246
        %6931 = vmatpush1.bf16.msra.mxu0 %v4245
        %6932 = vmatprep.subr.bf16.mxu0 %v4243
        %6933 = vmatpush1.bf16.msra.mxu0 %v4242
        %6934 = vmatprep.subr.bf16.mxu0 %v4240
        %6935 = vmatpush1.bf16.msra.mxu0 %v4239
        %6936 = vmatprep.subr.bf16.mxu0 %v4237
        %6937 = vmatpush1.bf16.msra.mxu0 %v4236
        %6938 = vmatprep.subr.bf16.mxu0 %v4282
        %6939 = vmatpush2.bf16.msra.mxu0 %v4281
        %6940 = vmatprep.subr.bf16.mxu0 %v4279
        %6941 = vmatpush2.bf16.msra.mxu0 %v4278
        %6942 = vmatprep.subr.bf16.mxu0 %v4276
        %6943 = vmatpush2.bf16.msra.mxu0 %v4275
        %6944 = vmatprep.subr.bf16.mxu0 %v4273
        %6945 = vmatpush2.bf16.msra.mxu0 %v4272
        %6946 = vmatprep.subr.bf16.mxu0 %v4270
        %6947 = vmatpush2.bf16.msra.mxu0 %v4269
        %6948 = vmatprep.subr.bf16.mxu0 %v4267
        %6949 = vmatpush2.bf16.msra.mxu0 %v4266
        %6950 = vmatprep.subr.bf16.mxu0 %v4264
        %6951 = vmatpush2.bf16.msra.mxu0 %v4263
        %6952 = vmatprep.subr.bf16.mxu0 %v4261
        %6953 = vmatpush2.bf16.msra.mxu0 %v4260
        %6954 = vmatprep.mubr.bf16.mxu0 %v6917
        %6955 = vmatmul.mubr.bf16.gmra.mxu0 %v6916
        %v6956 = vpop.f32.mrf.mxu0
        %v6957 = vadd.f32 0.0, %v6956
        %v6958 = vpop.f32.mrf.mxu0
        %v6959 = vadd.f32 0.0, %v6958
        %v6960 = vpop.f32.mrf.mxu0
        %v6961 = vpop.f32.mrf.mxu0
        %6962 = vdwg.mxu0
        %6963 = vmatprep.subr.bf16.mxu0 %v4306
        %6964 = vmatpush1.bf16.msra.mxu0 %v4305
        %6965 = vmatprep.subr.bf16.mxu0 %v4303
        %6966 = vmatpush1.bf16.msra.mxu0 %v4302
        %6967 = vmatprep.subr.bf16.mxu0 %v4300
        %6968 = vmatpush1.bf16.msra.mxu0 %v4299
        %6969 = vmatprep.subr.bf16.mxu0 %v4297
        %6970 = vmatpush1.bf16.msra.mxu0 %v4296
        %6971 = vmatprep.subr.bf16.mxu0 %v4294
        %6972 = vmatpush1.bf16.msra.mxu0 %v4293
        %6973 = vmatprep.subr.bf16.mxu0 %v4291
        %6974 = vmatpush1.bf16.msra.mxu0 %v4290
        %6975 = vmatprep.subr.bf16.mxu0 %v4288
        %6976 = vmatpush1.bf16.msra.mxu0 %v4287
        %6977 = vmatprep.subr.bf16.mxu0 %v4285
        %6978 = vmatpush1.bf16.msra.mxu0 %v4284
        %6979 = vmatprep.subr.bf16.mxu0 0
        %6980 = vmatpush2.bf16.msra.mxu0 0
        %6981 = vmatprep.subr.bf16.mxu0 0
        %6982 = vmatpush2.bf16.msra.mxu0 0
        %6983 = vmatprep.subr.bf16.mxu0 0
        %6984 = vmatpush2.bf16.msra.mxu0 0
        %6985 = vmatprep.subr.bf16.mxu0 0
        %6986 = vmatpush2.bf16.msra.mxu0 0
        %6987 = vmatprep.subr.bf16.mxu0 0
        %6988 = vmatpush2.bf16.msra.mxu0 0
        %6989 = vmatprep.subr.bf16.mxu0 0
        %6990 = vmatpush2.bf16.msra.mxu0 0
        %6991 = vmatprep.subr.bf16.mxu0 0
        %6992 = vmatpush2.bf16.msra.mxu0 0
        %6993 = vmatprep.subr.bf16.mxu0 0
        %6994 = vmatpush2.bf16.msra.mxu0 0
        %6995 = vmatprep.mubr.bf16.mxu0 0
        %6996 = vmatmul.mubr.bf16.gmra.mxu0 %v6918
        %v6997 = vpop.f32.mrf.mxu0
        %v6998 = vadd.f32 %v6957, %v6997
        %v6999 = vpop.f32.mrf.mxu0
        %v7000 = vadd.f32 %v6959, %v6999
        %v7001 = vpop.f32.mrf.mxu0
        %v7002 = vpop.f32.mrf.mxu0
        %7003 = vdwg.mxu0
        %7004 = vmatprep.subr.bf16.mxu0 0
        %7005 = vmatpush1.bf16.msra.mxu0 %v4259
        %7006 = vmatprep.subr.bf16.mxu0 0
        %7007 = vmatpush1.bf16.msra.mxu0 %v4256
        %7008 = vmatprep.subr.bf16.mxu0 0
        %7009 = vmatpush1.bf16.msra.mxu0 %v4253
        %7010 = vmatprep.subr.bf16.mxu0 0
        %7011 = vmatpush1.bf16.msra.mxu0 %v4250
        %7012 = vmatprep.subr.bf16.mxu0 0
        %7013 = vmatpush1.bf16.msra.mxu0 %v4247
        %7014 = vmatprep.subr.bf16.mxu0 0
        %7015 = vmatpush1.bf16.msra.mxu0 %v4244
        %7016 = vmatprep.subr.bf16.mxu0 0
        %7017 = vmatpush1.bf16.msra.mxu0 %v4241
        %7018 = vmatprep.subr.bf16.mxu0 0
        %7019 = vmatpush1.bf16.msra.mxu0 %v4238
        %7020 = vmatprep.subr.bf16.mxu0 0
        %7021 = vmatpush2.bf16.msra.mxu0 %v4283
        %7022 = vmatprep.subr.bf16.mxu0 0
        %7023 = vmatpush2.bf16.msra.mxu0 %v4280
        %7024 = vmatprep.subr.bf16.mxu0 0
        %7025 = vmatpush2.bf16.msra.mxu0 %v4277
        %7026 = vmatprep.subr.bf16.mxu0 0
        %7027 = vmatpush2.bf16.msra.mxu0 %v4274
        %7028 = vmatprep.subr.bf16.mxu0 0
        %7029 = vmatpush2.bf16.msra.mxu0 %v4271
        %7030 = vmatprep.subr.bf16.mxu0 0
        %7031 = vmatpush2.bf16.msra.mxu0 %v4268
        %7032 = vmatprep.subr.bf16.mxu0 0
        %7033 = vmatpush2.bf16.msra.mxu0 %v4265
        %7034 = vmatprep.subr.bf16.mxu0 0
        %7035 = vmatpush2.bf16.msra.mxu0 %v4262
        %7036 = vmatprep.mubr.bf16.mxu0 %v6917
        %7037 = vmatmul.mubr.bf16.gmra.mxu0 %v6916
        %v7038 = vpop.f32.mrf.mxu0
        %v7039 = vadd.f32 0.0, %v7038
        %v7040 = vpop.f32.mrf.mxu0
        %v7041 = vpop.f32.mrf.mxu0
        %v7042 = vpop.f32.mrf.mxu0
        %7043 = vdwg.mxu0
        %7044 = vmatprep.subr.bf16.mxu0 0
        %7045 = vmatpush1.bf16.msra.mxu0 %v4307
        %7046 = vmatprep.subr.bf16.mxu0 0
        %7047 = vmatpush1.bf16.msra.mxu0 %v4304
        %7048 = vmatprep.subr.bf16.mxu0 0
        %7049 = vmatpush1.bf16.msra.mxu0 %v4301
        %7050 = vmatprep.subr.bf16.mxu0 0
        %7051 = vmatpush1.bf16.msra.mxu0 %v4298
        %7052 = vmatprep.subr.bf16.mxu0 0
        %7053 = vmatpush1.bf16.msra.mxu0 %v4295
        %7054 = vmatprep.subr.bf16.mxu0 0
        %7055 = vmatpush1.bf16.msra.mxu0 %v4292
        %7056 = vmatprep.subr.bf16.mxu0 0
        %7057 = vmatpush1.bf16.msra.mxu0 %v4289
        %7058 = vmatprep.subr.bf16.mxu0 0
        %7059 = vmatpush1.bf16.msra.mxu0 %v4286
        %7060 = vmatprep.subr.bf16.mxu0 0
        %7061 = vmatpush2.bf16.msra.mxu0 0
        %7062 = vmatprep.subr.bf16.mxu0 0
        %7063 = vmatpush2.bf16.msra.mxu0 0
        %7064 = vmatprep.subr.bf16.mxu0 0
        %7065 = vmatpush2.bf16.msra.mxu0 0
        %7066 = vmatprep.subr.bf16.mxu0 0
        %7067 = vmatpush2.bf16.msra.mxu0 0
        %7068 = vmatprep.subr.bf16.mxu0 0
        %7069 = vmatpush2.bf16.msra.mxu0 0
        %7070 = vmatprep.subr.bf16.mxu0 0
        %7071 = vmatpush2.bf16.msra.mxu0 0
        %7072 = vmatprep.subr.bf16.mxu0 0
        %7073 = vmatpush2.bf16.msra.mxu0 0
        %7074 = vmatprep.subr.bf16.mxu0 0
        %7075 = vmatpush2.bf16.msra.mxu0 0
        %7076 = vmatprep.mubr.bf16.mxu0 0
        %7077 = vmatmul.mubr.bf16.gmra.mxu0 %v6918
        %v7078 = vpop.f32.mrf.mxu0
        %v7079 = vadd.f32 %v7039, %v7078
        %v7080 = vpop.f32.mrf.mxu0
        %v7081 = vpop.f32.mrf.mxu0
        %v7082 = vpop.f32.mrf.mxu0
        %7083 = vdwg.mxu0
        %7084 = vmatprep.subr.bf16.mxu0 %v5015
        %7085 = vmatpush1.bf16.msra.mxu0 %v5014
        %7086 = vmatprep.subr.bf16.mxu0 %v5012
        %7087 = vmatpush1.bf16.msra.mxu0 %v5011
        %7088 = vmatprep.subr.bf16.mxu0 %v5009
        %7089 = vmatpush1.bf16.msra.mxu0 %v5008
        %7090 = vmatprep.subr.bf16.mxu0 %v5006
        %7091 = vmatpush1.bf16.msra.mxu0 %v5005
        %7092 = vmatprep.subr.bf16.mxu0 %v5003
        %7093 = vmatpush1.bf16.msra.mxu0 %v5002
        %7094 = vmatprep.subr.bf16.mxu0 %v5000
        %7095 = vmatpush1.bf16.msra.mxu0 %v4999
        %7096 = vmatprep.subr.bf16.mxu0 %v4997
        %7097 = vmatpush1.bf16.msra.mxu0 %v4996
        %7098 = vmatprep.subr.bf16.mxu0 %v4994
        %7099 = vmatpush1.bf16.msra.mxu0 %v4993
        %7100 = vmatprep.subr.bf16.mxu0 %v5039
        %7101 = vmatpush2.bf16.msra.mxu0 %v5038
        %7102 = vmatprep.subr.bf16.mxu0 %v5036
        %7103 = vmatpush2.bf16.msra.mxu0 %v5035
        %7104 = vmatprep.subr.bf16.mxu0 %v5033
        %7105 = vmatpush2.bf16.msra.mxu0 %v5032
        %7106 = vmatprep.subr.bf16.mxu0 %v5030
        %7107 = vmatpush2.bf16.msra.mxu0 %v5029
        %7108 = vmatprep.subr.bf16.mxu0 %v5027
        %7109 = vmatpush2.bf16.msra.mxu0 %v5026
        %7110 = vmatprep.subr.bf16.mxu0 %v5024
        %7111 = vmatpush2.bf16.msra.mxu0 %v5023
        %7112 = vmatprep.subr.bf16.mxu0 %v5021
        %7113 = vmatpush2.bf16.msra.mxu0 %v5020
        %7114 = vmatprep.subr.bf16.mxu0 %v5018
        %7115 = vmatpush2.bf16.msra.mxu0 %v5017
        %7116 = vmatprep.mubr.bf16.mxu0 %v6920
        %7117 = vmatmul.mubr.bf16.gmra.mxu0 %v6919
        %v7118 = vpop.f32.mrf.mxu0
        %v7119 = vadd.f32 0.0, %v7118
        %v7120 = vpop.f32.mrf.mxu0
        %v7121 = vadd.f32 0.0, %v7120
        %v7122 = vpop.f32.mrf.mxu0
        %v7123 = vpop.f32.mrf.mxu0
        %7124 = vdwg.mxu0
        %7125 = vmatprep.subr.bf16.mxu0 %v5063
        %7126 = vmatpush1.bf16.msra.mxu0 %v5062
        %7127 = vmatprep.subr.bf16.mxu0 %v5060
        %7128 = vmatpush1.bf16.msra.mxu0 %v5059
        %7129 = vmatprep.subr.bf16.mxu0 %v5057
        %7130 = vmatpush1.bf16.msra.mxu0 %v5056
        %7131 = vmatprep.subr.bf16.mxu0 %v5054
        %7132 = vmatpush1.bf16.msra.mxu0 %v5053
        %7133 = vmatprep.subr.bf16.mxu0 %v5051
        %7134 = vmatpush1.bf16.msra.mxu0 %v5050
        %7135 = vmatprep.subr.bf16.mxu0 %v5048
        %7136 = vmatpush1.bf16.msra.mxu0 %v5047
        %7137 = vmatprep.subr.bf16.mxu0 %v5045
        %7138 = vmatpush1.bf16.msra.mxu0 %v5044
        %7139 = vmatprep.subr.bf16.mxu0 %v5042
        %7140 = vmatpush1.bf16.msra.mxu0 %v5041
        %7141 = vmatprep.subr.bf16.mxu0 0
        %7142 = vmatpush2.bf16.msra.mxu0 0
        %7143 = vmatprep.subr.bf16.mxu0 0
        %7144 = vmatpush2.bf16.msra.mxu0 0
        %7145 = vmatprep.subr.bf16.mxu0 0
        %7146 = vmatpush2.bf16.msra.mxu0 0
        %7147 = vmatprep.subr.bf16.mxu0 0
        %7148 = vmatpush2.bf16.msra.mxu0 0
        %7149 = vmatprep.subr.bf16.mxu0 0
        %7150 = vmatpush2.bf16.msra.mxu0 0
        %7151 = vmatprep.subr.bf16.mxu0 0
        %7152 = vmatpush2.bf16.msra.mxu0 0
        %7153 = vmatprep.subr.bf16.mxu0 0
        %7154 = vmatpush2.bf16.msra.mxu0 0
        %7155 = vmatprep.subr.bf16.mxu0 0
        %7156 = vmatpush2.bf16.msra.mxu0 0
        %7157 = vmatprep.mubr.bf16.mxu0 0
        %7158 = vmatmul.mubr.bf16.gmra.mxu0 %v6921
        %v7159 = vpop.f32.mrf.mxu0
        %v7160 = vadd.f32 %v7119, %v7159
        %v7161 = vpop.f32.mrf.mxu0
        %v7162 = vadd.f32 %v7121, %v7161
        %v7163 = vpop.f32.mrf.mxu0
        %v7164 = vpop.f32.mrf.mxu0
        %7165 = vdwg.mxu0
        %7166 = vmatprep.subr.bf16.mxu0 0
        %7167 = vmatpush1.bf16.msra.mxu0 %v5016
        %7168 = vmatprep.subr.bf16.mxu0 0
        %7169 = vmatpush1.bf16.msra.mxu0 %v5013
        %7170 = vmatprep.subr.bf16.mxu0 0
        %7171 = vmatpush1.bf16.msra.mxu0 %v5010
        %7172 = vmatprep.subr.bf16.mxu0 0
        %7173 = vmatpush1.bf16.msra.mxu0 %v5007
        %7174 = vmatprep.subr.bf16.mxu0 0
        %7175 = vmatpush1.bf16.msra.mxu0 %v5004
        %7176 = vmatprep.subr.bf16.mxu0 0
        %7177 = vmatpush1.bf16.msra.mxu0 %v5001
        %7178 = vmatprep.subr.bf16.mxu0 0
        %7179 = vmatpush1.bf16.msra.mxu0 %v4998
        %7180 = vmatprep.subr.bf16.mxu0 0
        %7181 = vmatpush1.bf16.msra.mxu0 %v4995
        %7182 = vmatprep.subr.bf16.mxu0 0
        %7183 = vmatpush2.bf16.msra.mxu0 %v5040
        %7184 = vmatprep.subr.bf16.mxu0 0
        %7185 = vmatpush2.bf16.msra.mxu0 %v5037
        %7186 = vmatprep.subr.bf16.mxu0 0
        %7187 = vmatpush2.bf16.msra.mxu0 %v5034
        %7188 = vmatprep.subr.bf16.mxu0 0
        %7189 = vmatpush2.bf16.msra.mxu0 %v5031
        %7190 = vmatprep.subr.bf16.mxu0 0
        %7191 = vmatpush2.bf16.msra.mxu0 %v5028
        %7192 = vmatprep.subr.bf16.mxu0 0
        %7193 = vmatpush2.bf16.msra.mxu0 %v5025
        %7194 = vmatprep.subr.bf16.mxu0 0
        %7195 = vmatpush2.bf16.msra.mxu0 %v5022
        %7196 = vmatprep.subr.bf16.mxu0 0
        %7197 = vmatpush2.bf16.msra.mxu0 %v5019
        %7198 = vmatprep.mubr.bf16.mxu0 %v6920
        %7199 = vmatmul.mubr.bf16.gmra.mxu0 %v6919
        %v7200 = vpop.f32.mrf.mxu0
        %v7201 = vadd.f32 0.0, %v7200
        %v7202 = vpop.f32.mrf.mxu0
        %v7203 = vpop.f32.mrf.mxu0
        %v7204 = vpop.f32.mrf.mxu0
        %7205 = vdwg.mxu0
        %7206 = vmatprep.subr.bf16.mxu0 0
        %7207 = vmatpush1.bf16.msra.mxu0 %v5064
        %7208 = vmatprep.subr.bf16.mxu0 0
        %7209 = vmatpush1.bf16.msra.mxu0 %v5061
        %7210 = vmatprep.subr.bf16.mxu0 0
        %7211 = vmatpush1.bf16.msra.mxu0 %v5058
        %7212 = vmatprep.subr.bf16.mxu0 0
        %7213 = vmatpush1.bf16.msra.mxu0 %v5055
        %7214 = vmatprep.subr.bf16.mxu0 0
        %7215 = vmatpush1.bf16.msra.mxu0 %v5052
        %7216 = vmatprep.subr.bf16.mxu0 0
        %7217 = vmatpush1.bf16.msra.mxu0 %v5049
        %7218 = vmatprep.subr.bf16.mxu0 0
        %7219 = vmatpush1.bf16.msra.mxu0 %v5046
        %7220 = vmatprep.subr.bf16.mxu0 0
        %7221 = vmatpush1.bf16.msra.mxu0 %v5043
        %7222 = vmatprep.subr.bf16.mxu0 0
        %7223 = vmatpush2.bf16.msra.mxu0 0
        %7224 = vmatprep.subr.bf16.mxu0 0
        %7225 = vmatpush2.bf16.msra.mxu0 0
        %7226 = vmatprep.subr.bf16.mxu0 0
        %7227 = vmatpush2.bf16.msra.mxu0 0
        %7228 = vmatprep.subr.bf16.mxu0 0
        %7229 = vmatpush2.bf16.msra.mxu0 0
        %7230 = vmatprep.subr.bf16.mxu0 0
        %7231 = vmatpush2.bf16.msra.mxu0 0
        %7232 = vmatprep.subr.bf16.mxu0 0
        %7233 = vmatpush2.bf16.msra.mxu0 0
        %7234 = vmatprep.subr.bf16.mxu0 0
        %7235 = vmatpush2.bf16.msra.mxu0 0
        %7236 = vmatprep.subr.bf16.mxu0 0
        %7237 = vmatpush2.bf16.msra.mxu0 0
        %7238 = vmatprep.mubr.bf16.mxu0 0
        %7239 = vmatmul.mubr.bf16.gmra.mxu0 %v6921
        %v7240 = vpop.f32.mrf.mxu0
        %v7241 = vadd.f32 %v7201, %v7240
        %v7242 = vpop.f32.mrf.mxu0
        %v7243 = vpop.f32.mrf.mxu0
        %v7244 = vpop.f32.mrf.mxu0
        %7245 = vdwg.mxu0
        %v7246 = vld [vmem:[%s13] sm:$0xff]
        %7248 = vset.pattern.permute.xlu0 0
        %7249 = vperm.xlu0 %7248, %v7246
        %v7250 = vpop.permute.xlu0 %7249
        %v7252 = vadd.f32 %v6998, %v7250
        %v7253 = vadd.f32 %v7000, %v7250
        %v7254 = vadd.f32 %v7079, %v7250
        %v7255 = vadd.f32 %v7160, %v7250
        %v7256 = vadd.f32 %v7162, %v7250
        %v7257 = vadd.f32 %v7241, %v7250
        %v7258 = vmax.f32 %v7252, 0.0
        %v7259 = vmax.f32 %v7253, 0.0
        %v7260 = vmax.f32 %v7254, 0.0
        %v7261 = vmax.f32 %v7255, 0.0
        %v7262 = vmax.f32 %v7256, 0.0
        %v7263 = vmax.f32 %v7257, 0.0
        %v7264 = vpack.c.bf16 %v7258, %v7258
        %v7265 = vpack.c.bf16 %v7259, %v7259
        %v7266 = vpack.c.bf16 %v7260, %v7260
        %v7267 = vpack.c.bf16 %v7261, %v7261
        %v7268 = vpack.c.bf16 %v7262, %v7262
        %v7269 = vpack.c.bf16 %v7263, %v7263
        %v7270 = vld [vmem:[%s14] sm:$0x3]
        %vm7271 = vcmask 64512
        %v7273 = vsel %vm7271, %v7270, 0
        %vm7275 = vcmask 1043456
        %v7277 = vsel %vm7275, %v7264, 0
        %v7280 = vsel %vm7275, %v7265, 0
        %v7283 = vsel %vm7275, %v7266, 0
        %v7286 = vsel %vm7275, %v7267, 0
        %v7289 = vsel %vm7275, %v7268, 0
        %v7292 = vsel %vm7275, %v7269, 0
        %7294 = vmatprep.subr.bf16.mxu0 0
        %7295 = vmatpush1.bf16.msra.mxu0 0
        %7296 = vmatprep.subr.bf16.mxu0 0
        %7297 = vmatpush1.bf16.msra.mxu0 0
        %7298 = vmatprep.subr.bf16.mxu0 0
        %7299 = vmatpush1.bf16.msra.mxu0 0
        %7300 = vmatprep.subr.bf16.mxu0 0
        %7301 = vmatpush1.bf16.msra.mxu0 0
        %7302 = vmatprep.subr.bf16.mxu0 0
        %7303 = vmatpush1.bf16.msra.mxu0 0
        %7304 = vmatprep.subr.bf16.mxu0 0
        %7305 = vmatpush1.bf16.msra.mxu0 0
        %7306 = vmatprep.subr.bf16.mxu0 0
        %7307 = vmatpush1.bf16.msra.mxu0 0
        %7308 = vmatprep.subr.bf16.mxu0 %v7280
        %7309 = vmatpush1.bf16.msra.mxu0 %v7277
        %7310 = vmatprep.subr.bf16.mxu0 0
        %7311 = vmatpush2.bf16.msra.mxu0 0
        %7312 = vmatprep.subr.bf16.mxu0 0
        %7313 = vmatpush2.bf16.msra.mxu0 0
        %7314 = vmatprep.subr.bf16.mxu0 0
        %7315 = vmatpush2.bf16.msra.mxu0 0
        %7316 = vmatprep.subr.bf16.mxu0 0
        %7317 = vmatpush2.bf16.msra.mxu0 0
        %7318 = vmatprep.subr.bf16.mxu0 0
        %7319 = vmatpush2.bf16.msra.mxu0 0
        %7320 = vmatprep.subr.bf16.mxu0 0
        %7321 = vmatpush2.bf16.msra.mxu0 0
        %7322 = vmatprep.subr.bf16.mxu0 0
        %7323 = vmatpush2.bf16.msra.mxu0 0
        %7324 = vmatprep.subr.bf16.mxu0 0
        %7325 = vmatpush2.bf16.msra.mxu0 0
        %7326 = vmatprep.mubr.bf16.mxu0 0
        %7327 = vmatmul.mubr.bf16.gmra.mxu0 %v7273
        %v7328 = vpop.f32.mrf.mxu0
        %v7329 = vadd.f32 0.0, %v7328
        %v7330 = vpop.f32.mrf.mxu0
        %v7331 = vadd.f32 0.0, %v7330
        %v7332 = vpop.f32.mrf.mxu0
        %v7333 = vpop.f32.mrf.mxu0
        %7334 = vdwg.mxu0
        %7335 = vmatprep.subr.bf16.mxu0 0
        %7336 = vmatpush1.bf16.msra.mxu0 0
        %7337 = vmatprep.subr.bf16.mxu0 0
        %7338 = vmatpush1.bf16.msra.mxu0 0
        %7339 = vmatprep.subr.bf16.mxu0 0
        %7340 = vmatpush1.bf16.msra.mxu0 0
        %7341 = vmatprep.subr.bf16.mxu0 0
        %7342 = vmatpush1.bf16.msra.mxu0 0
        %7343 = vmatprep.subr.bf16.mxu0 0
        %7344 = vmatpush1.bf16.msra.mxu0 0
        %7345 = vmatprep.subr.bf16.mxu0 0
        %7346 = vmatpush1.bf16.msra.mxu0 0
        %7347 = vmatprep.subr.bf16.mxu0 0
        %7348 = vmatpush1.bf16.msra.mxu0 0
        %7349 = vmatprep.subr.bf16.mxu0 %v7286
        %7350 = vmatpush1.bf16.msra.mxu0 %v7283
        %7351 = vmatprep.subr.bf16.mxu0 0
        %7352 = vmatpush2.bf16.msra.mxu0 0
        %7353 = vmatprep.subr.bf16.mxu0 0
        %7354 = vmatpush2.bf16.msra.mxu0 0
        %7355 = vmatprep.subr.bf16.mxu0 0
        %7356 = vmatpush2.bf16.msra.mxu0 0
        %7357 = vmatprep.subr.bf16.mxu0 0
        %7358 = vmatpush2.bf16.msra.mxu0 0
        %7359 = vmatprep.subr.bf16.mxu0 0
        %7360 = vmatpush2.bf16.msra.mxu0 0
        %7361 = vmatprep.subr.bf16.mxu0 0
        %7362 = vmatpush2.bf16.msra.mxu0 0
        %7363 = vmatprep.subr.bf16.mxu0 0
        %7364 = vmatpush2.bf16.msra.mxu0 0
        %7365 = vmatprep.subr.bf16.mxu0 0
        %7366 = vmatpush2.bf16.msra.mxu0 0
        %7367 = vmatprep.mubr.bf16.mxu0 0
        %7368 = vmatmul.mubr.bf16.gmra.mxu0 %v7273
        %v7369 = vpop.f32.mrf.mxu0
        %v7370 = vadd.f32 0.0, %v7369
        %v7371 = vpop.f32.mrf.mxu0
        %v7372 = vadd.f32 0.0, %v7371
        %v7373 = vpop.f32.mrf.mxu0
        %v7374 = vpop.f32.mrf.mxu0
        %7375 = vdwg.mxu0
        %7376 = vmatprep.subr.bf16.mxu0 0
        %7377 = vmatpush1.bf16.msra.mxu0 0
        %7378 = vmatprep.subr.bf16.mxu0 0
        %7379 = vmatpush1.bf16.msra.mxu0 0
        %7380 = vmatprep.subr.bf16.mxu0 0
        %7381 = vmatpush1.bf16.msra.mxu0 0
        %7382 = vmatprep.subr.bf16.mxu0 0
        %7383 = vmatpush1.bf16.msra.mxu0 0
        %7384 = vmatprep.subr.bf16.mxu0 0
        %7385 = vmatpush1.bf16.msra.mxu0 0
        %7386 = vmatprep.subr.bf16.mxu0 0
        %7387 = vmatpush1.bf16.msra.mxu0 0
        %7388 = vmatprep.subr.bf16.mxu0 0
        %7389 = vmatpush1.bf16.msra.mxu0 0
        %7390 = vmatprep.subr.bf16.mxu0 %v7292
        %7391 = vmatpush1.bf16.msra.mxu0 %v7289
        %7392 = vmatprep.subr.bf16.mxu0 0
        %7393 = vmatpush2.bf16.msra.mxu0 0
        %7394 = vmatprep.subr.bf16.mxu0 0
        %7395 = vmatpush2.bf16.msra.mxu0 0
        %7396 = vmatprep.subr.bf16.mxu0 0
        %7397 = vmatpush2.bf16.msra.mxu0 0
        %7398 = vmatprep.subr.bf16.mxu0 0
        %7399 = vmatpush2.bf16.msra.mxu0 0
        %7400 = vmatprep.subr.bf16.mxu0 0
        %7401 = vmatpush2.bf16.msra.mxu0 0
        %7402 = vmatprep.subr.bf16.mxu0 0
        %7403 = vmatpush2.bf16.msra.mxu0 0
        %7404 = vmatprep.subr.bf16.mxu0 0
        %7405 = vmatpush2.bf16.msra.mxu0 0
        %7406 = vmatprep.subr.bf16.mxu0 0
        %7407 = vmatpush2.bf16.msra.mxu0 0
        %7408 = vmatprep.mubr.bf16.mxu0 0
        %7409 = vmatmul.mubr.bf16.gmra.mxu0 %v7273
        %v7410 = vpop.f32.mrf.mxu0
        %v7411 = vadd.f32 0.0, %v7410
        %v7412 = vpop.f32.mrf.mxu0
        %v7413 = vadd.f32 0.0, %v7412
        %v7414 = vpop.f32.mrf.mxu0
        %v7415 = vpop.f32.mrf.mxu0
        %7416 = vdwg.mxu0
        %v7417 = vpack.c.bf16 %v7329, %v7329
        %v7418 = vpack.c.bf16 %v7331, %v7331
        %v7419 = vpack.c.bf16 %v7370, %v7370
        %v7420 = vpack.c.bf16 %v7372, %v7372
        %v7421 = vpack.c.bf16 %v7411, %v7411
        %v7422 = vpack.c.bf16 %v7413, %v7413
        %7423 = vmatprep.subr.bf16.mxu0 %v4258
        %7424 = vmatpush1.bf16.msra.mxu0 %v4257
        %7425 = vmatprep.subr.bf16.mxu0 %v4255
        %7426 = vmatpush1.bf16.msra.mxu0 %v4254
        %7427 = vmatprep.subr.bf16.mxu0 %v4252
        %7428 = vmatpush1.bf16.msra.mxu0 %v4251
        %7429 = vmatprep.subr.bf16.mxu0 %v4249
        %7430 = vmatpush1.bf16.msra.mxu0 %v4248
        %7431 = vmatprep.subr.bf16.mxu0 %v4246
        %7432 = vmatpush1.bf16.msra.mxu0 %v4245
        %7433 = vmatprep.subr.bf16.mxu0 %v4243
        %7434 = vmatpush1.bf16.msra.mxu0 %v4242
        %7435 = vmatprep.subr.bf16.mxu0 %v4240
        %7436 = vmatpush1.bf16.msra.mxu0 %v4239
        %7437 = vmatprep.subr.bf16.mxu0 %v4237
        %7438 = vmatpush1.bf16.msra.mxu0 %v4236
        %7439 = vmatprep.subr.bf16.mxu0 %v4282
        %7440 = vmatpush2.bf16.msra.mxu0 %v4281
        %7441 = vmatprep.subr.bf16.mxu0 %v4279
        %7442 = vmatpush2.bf16.msra.mxu0 %v4278
        %7443 = vmatprep.subr.bf16.mxu0 %v4276
        %7444 = vmatpush2.bf16.msra.mxu0 %v4275
        %7445 = vmatprep.subr.bf16.mxu0 %v4273
        %7446 = vmatpush2.bf16.msra.mxu0 %v4272
        %7447 = vmatprep.subr.bf16.mxu0 %v4270
        %7448 = vmatpush2.bf16.msra.mxu0 %v4269
        %7449 = vmatprep.subr.bf16.mxu0 %v4267
        %7450 = vmatpush2.bf16.msra.mxu0 %v4266
        %7451 = vmatprep.subr.bf16.mxu0 %v4264
        %7452 = vmatpush2.bf16.msra.mxu0 %v4263
        %7453 = vmatprep.subr.bf16.mxu0 %v4261
        %7454 = vmatpush2.bf16.msra.mxu0 %v4260
        %7455 = vmatprep.mubr.bf16.mxu0 %v7418
        %7456 = vmatmul.mubr.bf16.gmra.mxu0 %v7417
        %v7457 = vpop.f32.mrf.mxu0
        %v7458 = vadd.f32 0.0, %v7457
        %v7459 = vpop.f32.mrf.mxu0
        %v7460 = vadd.f32 0.0, %v7459
        %v7461 = vpop.f32.mrf.mxu0
        %v7462 = vpop.f32.mrf.mxu0
        %7463 = vdwg.mxu0
        %7464 = vmatprep.subr.bf16.mxu0 %v4306
        %7465 = vmatpush1.bf16.msra.mxu0 %v4305
        %7466 = vmatprep.subr.bf16.mxu0 %v4303
        %7467 = vmatpush1.bf16.msra.mxu0 %v4302
        %7468 = vmatprep.subr.bf16.mxu0 %v4300
        %7469 = vmatpush1.bf16.msra.mxu0 %v4299
        %7470 = vmatprep.subr.bf16.mxu0 %v4297
        %7471 = vmatpush1.bf16.msra.mxu0 %v4296
        %7472 = vmatprep.subr.bf16.mxu0 %v4294
        %7473 = vmatpush1.bf16.msra.mxu0 %v4293
        %7474 = vmatprep.subr.bf16.mxu0 %v4291
        %7475 = vmatpush1.bf16.msra.mxu0 %v4290
        %7476 = vmatprep.subr.bf16.mxu0 %v4288
        %7477 = vmatpush1.bf16.msra.mxu0 %v4287
        %7478 = vmatprep.subr.bf16.mxu0 %v4285
        %7479 = vmatpush1.bf16.msra.mxu0 %v4284
        %7480 = vmatprep.subr.bf16.mxu0 0
        %7481 = vmatpush2.bf16.msra.mxu0 0
        %7482 = vmatprep.subr.bf16.mxu0 0
        %7483 = vmatpush2.bf16.msra.mxu0 0
        %7484 = vmatprep.subr.bf16.mxu0 0
        %7485 = vmatpush2.bf16.msra.mxu0 0
        %7486 = vmatprep.subr.bf16.mxu0 0
        %7487 = vmatpush2.bf16.msra.mxu0 0
        %7488 = vmatprep.subr.bf16.mxu0 0
        %7489 = vmatpush2.bf16.msra.mxu0 0
        %7490 = vmatprep.subr.bf16.mxu0 0
        %7491 = vmatpush2.bf16.msra.mxu0 0
        %7492 = vmatprep.subr.bf16.mxu0 0
        %7493 = vmatpush2.bf16.msra.mxu0 0
        %7494 = vmatprep.subr.bf16.mxu0 0
        %7495 = vmatpush2.bf16.msra.mxu0 0
        %7496 = vmatprep.mubr.bf16.mxu0 0
        %7497 = vmatmul.mubr.bf16.gmra.mxu0 %v7419
        %v7498 = vpop.f32.mrf.mxu0
        %v7499 = vadd.f32 %v7458, %v7498
        %v7500 = vpop.f32.mrf.mxu0
        %v7501 = vadd.f32 %v7460, %v7500
        %v7502 = vpop.f32.mrf.mxu0
        %v7503 = vpop.f32.mrf.mxu0
        %7504 = vdwg.mxu0
        %7505 = vmatprep.subr.bf16.mxu0 0
        %7506 = vmatpush1.bf16.msra.mxu0 %v4259
        %7507 = vmatprep.subr.bf16.mxu0 0
        %7508 = vmatpush1.bf16.msra.mxu0 %v4256
        %7509 = vmatprep.subr.bf16.mxu0 0
        %7510 = vmatpush1.bf16.msra.mxu0 %v4253
        %7511 = vmatprep.subr.bf16.mxu0 0
        %7512 = vmatpush1.bf16.msra.mxu0 %v4250
        %7513 = vmatprep.subr.bf16.mxu0 0
        %7514 = vmatpush1.bf16.msra.mxu0 %v4247
        %7515 = vmatprep.subr.bf16.mxu0 0
        %7516 = vmatpush1.bf16.msra.mxu0 %v4244
        %7517 = vmatprep.subr.bf16.mxu0 0
        %7518 = vmatpush1.bf16.msra.mxu0 %v4241
        %7519 = vmatprep.subr.bf16.mxu0 0
        %7520 = vmatpush1.bf16.msra.mxu0 %v4238
        %7521 = vmatprep.subr.bf16.mxu0 0
        %7522 = vmatpush2.bf16.msra.mxu0 %v4283
        %7523 = vmatprep.subr.bf16.mxu0 0
        %7524 = vmatpush2.bf16.msra.mxu0 %v4280
        %7525 = vmatprep.subr.bf16.mxu0 0
        %7526 = vmatpush2.bf16.msra.mxu0 %v4277
        %7527 = vmatprep.subr.bf16.mxu0 0
        %7528 = vmatpush2.bf16.msra.mxu0 %v4274
        %7529 = vmatprep.subr.bf16.mxu0 0
        %7530 = vmatpush2.bf16.msra.mxu0 %v4271
        %7531 = vmatprep.subr.bf16.mxu0 0
        %7532 = vmatpush2.bf16.msra.mxu0 %v4268
        %7533 = vmatprep.subr.bf16.mxu0 0
        %7534 = vmatpush2.bf16.msra.mxu0 %v4265
        %7535 = vmatprep.subr.bf16.mxu0 0
        %7536 = vmatpush2.bf16.msra.mxu0 %v4262
        %7537 = vmatprep.mubr.bf16.mxu0 %v7418
        %7538 = vmatmul.mubr.bf16.gmra.mxu0 %v7417
        %v7539 = vpop.f32.mrf.mxu0
        %v7540 = vadd.f32 0.0, %v7539
        %v7541 = vpop.f32.mrf.mxu0
        %v7542 = vpop.f32.mrf.mxu0
        %v7543 = vpop.f32.mrf.mxu0
        %7544 = vdwg.mxu0
        %7545 = vmatprep.subr.bf16.mxu0 0
        %7546 = vmatpush1.bf16.msra.mxu0 %v4307
        %7547 = vmatprep.subr.bf16.mxu0 0
        %7548 = vmatpush1.bf16.msra.mxu0 %v4304
        %7549 = vmatprep.subr.bf16.mxu0 0
        %7550 = vmatpush1.bf16.msra.mxu0 %v4301
        %7551 = vmatprep.subr.bf16.mxu0 0
        %7552 = vmatpush1.bf16.msra.mxu0 %v4298
        %7553 = vmatprep.subr.bf16.mxu0 0
        %7554 = vmatpush1.bf16.msra.mxu0 %v4295
        %7555 = vmatprep.subr.bf16.mxu0 0
        %7556 = vmatpush1.bf16.msra.mxu0 %v4292
        %7557 = vmatprep.subr.bf16.mxu0 0
        %7558 = vmatpush1.bf16.msra.mxu0 %v4289
        %7559 = vmatprep.subr.bf16.mxu0 0
        %7560 = vmatpush1.bf16.msra.mxu0 %v4286
        %7561 = vmatprep.subr.bf16.mxu0 0
        %7562 = vmatpush2.bf16.msra.mxu0 0
        %7563 = vmatprep.subr.bf16.mxu0 0
        %7564 = vmatpush2.bf16.msra.mxu0 0
        %7565 = vmatprep.subr.bf16.mxu0 0
        %7566 = vmatpush2.bf16.msra.mxu0 0
        %7567 = vmatprep.subr.bf16.mxu0 0
        %7568 = vmatpush2.bf16.msra.mxu0 0
        %7569 = vmatprep.subr.bf16.mxu0 0
        %7570 = vmatpush2.bf16.msra.mxu0 0
        %7571 = vmatprep.subr.bf16.mxu0 0
        %7572 = vmatpush2.bf16.msra.mxu0 0
        %7573 = vmatprep.subr.bf16.mxu0 0
        %7574 = vmatpush2.bf16.msra.mxu0 0
        %7575 = vmatprep.subr.bf16.mxu0 0
        %7576 = vmatpush2.bf16.msra.mxu0 0
        %7577 = vmatprep.mubr.bf16.mxu0 0
        %7578 = vmatmul.mubr.bf16.gmra.mxu0 %v7419
        %v7579 = vpop.f32.mrf.mxu0
        %v7580 = vadd.f32 %v7540, %v7579
        %v7581 = vpop.f32.mrf.mxu0
        %v7582 = vpop.f32.mrf.mxu0
        %v7583 = vpop.f32.mrf.mxu0
        %7584 = vdwg.mxu0
        %7585 = vmatprep.subr.bf16.mxu0 %v5015
        %7586 = vmatpush1.bf16.msra.mxu0 %v5014
        %7587 = vmatprep.subr.bf16.mxu0 %v5012
        %7588 = vmatpush1.bf16.msra.mxu0 %v5011
        %7589 = vmatprep.subr.bf16.mxu0 %v5009
        %7590 = vmatpush1.bf16.msra.mxu0 %v5008
        %7591 = vmatprep.subr.bf16.mxu0 %v5006
        %7592 = vmatpush1.bf16.msra.mxu0 %v5005
        %7593 = vmatprep.subr.bf16.mxu0 %v5003
        %7594 = vmatpush1.bf16.msra.mxu0 %v5002
        %7595 = vmatprep.subr.bf16.mxu0 %v5000
        %7596 = vmatpush1.bf16.msra.mxu0 %v4999
        %7597 = vmatprep.subr.bf16.mxu0 %v4997
        %7598 = vmatpush1.bf16.msra.mxu0 %v4996
        %7599 = vmatprep.subr.bf16.mxu0 %v4994
        %7600 = vmatpush1.bf16.msra.mxu0 %v4993
        %7601 = vmatprep.subr.bf16.mxu0 %v5039
        %7602 = vmatpush2.bf16.msra.mxu0 %v5038
        %7603 = vmatprep.subr.bf16.mxu0 %v5036
        %7604 = vmatpush2.bf16.msra.mxu0 %v5035
        %7605 = vmatprep.subr.bf16.mxu0 %v5033
        %7606 = vmatpush2.bf16.msra.mxu0 %v5032
        %7607 = vmatprep.subr.bf16.mxu0 %v5030
        %7608 = vmatpush2.bf16.msra.mxu0 %v5029
        %7609 = vmatprep.subr.bf16.mxu0 %v5027
        %7610 = vmatpush2.bf16.msra.mxu0 %v5026
        %7611 = vmatprep.subr.bf16.mxu0 %v5024
        %7612 = vmatpush2.bf16.msra.mxu0 %v5023
        %7613 = vmatprep.subr.bf16.mxu0 %v5021
        %7614 = vmatpush2.bf16.msra.mxu0 %v5020
        %7615 = vmatprep.subr.bf16.mxu0 %v5018
        %7616 = vmatpush2.bf16.msra.mxu0 %v5017
        %7617 = vmatprep.mubr.bf16.mxu0 %v7421
        %7618 = vmatmul.mubr.bf16.gmra.mxu0 %v7420
        %v7619 = vpop.f32.mrf.mxu0
        %v7620 = vadd.f32 0.0, %v7619
        %v7621 = vpop.f32.mrf.mxu0
        %v7622 = vadd.f32 0.0, %v7621
        %v7623 = vpop.f32.mrf.mxu0
        %v7624 = vpop.f32.mrf.mxu0
        %7625 = vdwg.mxu0
        %7626 = vmatprep.subr.bf16.mxu0 %v5063
        %7627 = vmatpush1.bf16.msra.mxu0 %v5062
        %7628 = vmatprep.subr.bf16.mxu0 %v5060
        %7629 = vmatpush1.bf16.msra.mxu0 %v5059
        %7630 = vmatprep.subr.bf16.mxu0 %v5057
        %7631 = vmatpush1.bf16.msra.mxu0 %v5056
        %7632 = vmatprep.subr.bf16.mxu0 %v5054
        %7633 = vmatpush1.bf16.msra.mxu0 %v5053
        %7634 = vmatprep.subr.bf16.mxu0 %v5051
        %7635 = vmatpush1.bf16.msra.mxu0 %v5050
        %7636 = vmatprep.subr.bf16.mxu0 %v5048
        %7637 = vmatpush1.bf16.msra.mxu0 %v5047
        %7638 = vmatprep.subr.bf16.mxu0 %v5045
        %7639 = vmatpush1.bf16.msra.mxu0 %v5044
        %7640 = vmatprep.subr.bf16.mxu0 %v5042
        %7641 = vmatpush1.bf16.msra.mxu0 %v5041
        %7642 = vmatprep.subr.bf16.mxu0 0
        %7643 = vmatpush2.bf16.msra.mxu0 0
        %7644 = vmatprep.subr.bf16.mxu0 0
        %7645 = vmatpush2.bf16.msra.mxu0 0
        %7646 = vmatprep.subr.bf16.mxu0 0
        %7647 = vmatpush2.bf16.msra.mxu0 0
        %7648 = vmatprep.subr.bf16.mxu0 0
        %7649 = vmatpush2.bf16.msra.mxu0 0
        %7650 = vmatprep.subr.bf16.mxu0 0
        %7651 = vmatpush2.bf16.msra.mxu0 0
        %7652 = vmatprep.subr.bf16.mxu0 0
        %7653 = vmatpush2.bf16.msra.mxu0 0
        %7654 = vmatprep.subr.bf16.mxu0 0
        %7655 = vmatpush2.bf16.msra.mxu0 0
        %7656 = vmatprep.subr.bf16.mxu0 0
        %7657 = vmatpush2.bf16.msra.mxu0 0
        %7658 = vmatprep.mubr.bf16.mxu0 0
        %7659 = vmatmul.mubr.bf16.gmra.mxu0 %v7422
        %v7660 = vpop.f32.mrf.mxu0
        %v7661 = vadd.f32 %v7620, %v7660
        %v7662 = vpop.f32.mrf.mxu0
        %v7663 = vadd.f32 %v7622, %v7662
        %v7664 = vpop.f32.mrf.mxu0
        %v7665 = vpop.f32.mrf.mxu0
        %7666 = vdwg.mxu0
        %7667 = vmatprep.subr.bf16.mxu0 0
        %7668 = vmatpush1.bf16.msra.mxu0 %v5016
        %7669 = vmatprep.subr.bf16.mxu0 0
        %7670 = vmatpush1.bf16.msra.mxu0 %v5013
        %7671 = vmatprep.subr.bf16.mxu0 0
        %7672 = vmatpush1.bf16.msra.mxu0 %v5010
        %7673 = vmatprep.subr.bf16.mxu0 0
        %7674 = vmatpush1.bf16.msra.mxu0 %v5007
        %7675 = vmatprep.subr.bf16.mxu0 0
        %7676 = vmatpush1.bf16.msra.mxu0 %v5004
        %7677 = vmatprep.subr.bf16.mxu0 0
        %7678 = vmatpush1.bf16.msra.mxu0 %v5001
        %7679 = vmatprep.subr.bf16.mxu0 0
        %7680 = vmatpush1.bf16.msra.mxu0 %v4998
        %7681 = vmatprep.subr.bf16.mxu0 0
        %7682 = vmatpush1.bf16.msra.mxu0 %v4995
        %7683 = vmatprep.subr.bf16.mxu0 0
        %7684 = vmatpush2.bf16.msra.mxu0 %v5040
        %7685 = vmatprep.subr.bf16.mxu0 0
        %7686 = vmatpush2.bf16.msra.mxu0 %v5037
        %7687 = vmatprep.subr.bf16.mxu0 0
        %7688 = vmatpush2.bf16.msra.mxu0 %v5034
        %7689 = vmatprep.subr.bf16.mxu0 0
        %7690 = vmatpush2.bf16.msra.mxu0 %v5031
        %7691 = vmatprep.subr.bf16.mxu0 0
        %7692 = vmatpush2.bf16.msra.mxu0 %v5028
        %7693 = vmatprep.subr.bf16.mxu0 0
        %7694 = vmatpush2.bf16.msra.mxu0 %v5025
        %7695 = vmatprep.subr.bf16.mxu0 0
        %7696 = vmatpush2.bf16.msra.mxu0 %v5022
        %7697 = vmatprep.subr.bf16.mxu0 0
        %7698 = vmatpush2.bf16.msra.mxu0 %v5019
        %7699 = vmatprep.mubr.bf16.mxu0 %v7421
        %7700 = vmatmul.mubr.bf16.gmra.mxu0 %v7420
        %v7701 = vpop.f32.mrf.mxu0
        %v7702 = vadd.f32 0.0, %v7701
        %v7703 = vpop.f32.mrf.mxu0
        %v7704 = vpop.f32.mrf.mxu0
        %v7705 = vpop.f32.mrf.mxu0
        %7706 = vdwg.mxu0
        %7707 = vmatprep.subr.bf16.mxu0 0
        %7708 = vmatpush1.bf16.msra.mxu0 %v5064
        %7709 = vmatprep.subr.bf16.mxu0 0
        %7710 = vmatpush1.bf16.msra.mxu0 %v5061
        %7711 = vmatprep.subr.bf16.mxu0 0
        %7712 = vmatpush1.bf16.msra.mxu0 %v5058
        %7713 = vmatprep.subr.bf16.mxu0 0
        %7714 = vmatpush1.bf16.msra.mxu0 %v5055
        %7715 = vmatprep.subr.bf16.mxu0 0
        %7716 = vmatpush1.bf16.msra.mxu0 %v5052
        %7717 = vmatprep.subr.bf16.mxu0 0
        %7718 = vmatpush1.bf16.msra.mxu0 %v5049
        %7719 = vmatprep.subr.bf16.mxu0 0
        %7720 = vmatpush1.bf16.msra.mxu0 %v5046
        %7721 = vmatprep.subr.bf16.mxu0 0
        %7722 = vmatpush1.bf16.msra.mxu0 %v5043
        %7723 = vmatprep.subr.bf16.mxu0 0
        %7724 = vmatpush2.bf16.msra.mxu0 0
        %7725 = vmatprep.subr.bf16.mxu0 0
        %7726 = vmatpush2.bf16.msra.mxu0 0
        %7727 = vmatprep.subr.bf16.mxu0 0
        %7728 = vmatpush2.bf16.msra.mxu0 0
        %7729 = vmatprep.subr.bf16.mxu0 0
        %7730 = vmatpush2.bf16.msra.mxu0 0
        %7731 = vmatprep.subr.bf16.mxu0 0
        %7732 = vmatpush2.bf16.msra.mxu0 0
        %7733 = vmatprep.subr.bf16.mxu0 0
        %7734 = vmatpush2.bf16.msra.mxu0 0
        %7735 = vmatprep.subr.bf16.mxu0 0
        %7736 = vmatpush2.bf16.msra.mxu0 0
        %7737 = vmatprep.subr.bf16.mxu0 0
        %7738 = vmatpush2.bf16.msra.mxu0 0
        %7739 = vmatprep.mubr.bf16.mxu0 0
        %7740 = vmatmul.mubr.bf16.gmra.mxu0 %v7422
        %v7741 = vpop.f32.mrf.mxu0
        %v7742 = vadd.f32 %v7702, %v7741
        %v7743 = vpop.f32.mrf.mxu0
        %v7744 = vpop.f32.mrf.mxu0
        %v7745 = vpop.f32.mrf.mxu0
        %7746 = vdwg.mxu0
        %v7747 = vld [vmem:[%s15] sm:$0xf]
        %7749 = vset.pattern.permute.xlu0 0
        %7750 = vperm.xlu0 %7749, %v7747
        %v7751 = vpop.permute.xlu0 %7750
        %v7753 = vadd.f32 %v7499, %v7751
        %v7754 = vadd.f32 %v7501, %v7751
        %v7755 = vadd.f32 %v7580, %v7751
        %v7756 = vadd.f32 %v7661, %v7751
        %v7757 = vadd.f32 %v7663, %v7751
        %v7758 = vadd.f32 %v7742, %v7751
        %v7759 = vmax.f32 %v7753, 0.0
        %v7760 = vmax.f32 %v7754, 0.0
        %v7761 = vmax.f32 %v7755, 0.0
        %v7762 = vmax.f32 %v7756, 0.0
        %v7763 = vmax.f32 %v7757, 0.0
        %v7764 = vmax.f32 %v7758, 0.0
        %v7765 = vld [vmem:[%s17] sm:$0x1]
        %v7766 = vpack.c.bf16 %v7759, %v7759
        %v7767 = vpack.c.bf16 %v7760, %v7760
        %v7768 = vpack.c.bf16 %v7761, %v7761
        %v7769 = vld [vmem:[%s16] sm:$0xf]
        %v7770 = vld [vmem:[%s16 + $0x4] sm:$0xf]
        %v7771 = vld [vmem:[%s16 + $0x8] sm:$0xf]
        %v7772 = vld [vmem:[%s16 + $0xc] sm:$0xf]
        %v7773 = vld [vmem:[%s16 + $0x10] sm:$0xf]
        %v7774 = vld [vmem:[%s16 + $0x14] sm:$0xf]
        %v7775 = vld [vmem:[%s16 + $0x18] sm:$0xf]
        %v7776 = vld [vmem:[%s16 + $0x1c] sm:$0xf]
        %v7777 = vld [vmem:[%s16 + $0x20] sm:$0xf]
        %v7778 = vld [vmem:[%s16 + $0x24] sm:$0xf]
        %v7779 = vld [vmem:[%s16 + $0x28] sm:$0xf]
        %v7780 = vld [vmem:[%s16 + $0x2c] sm:$0xf]
        %v7781 = vld [vmem:[%s16 + $0x30] sm:$0xf]
        %v7782 = vld [vmem:[%s16 + $0x34] sm:$0xf]
        %v7783 = vld [vmem:[%s16 + $0x38] sm:$0xf]
        %v7784 = vld [vmem:[%s16 + $0x3c] sm:$0xf]
        %v7785 = vld [vmem:[%s16 + $0x40] sm:$0xf]
        %v7786 = vld [vmem:[%s16 + $0x44] sm:$0xf]
        %v7787 = vld [vmem:[%s16 + $0x48] sm:$0xf]
        %v7788 = vld [vmem:[%s16 + $0x4c] sm:$0xf]
        %v7789 = vld [vmem:[%s16 + $0x50] sm:$0xf]
        %v7790 = vld [vmem:[%s16 + $0x54] sm:$0xf]
        %v7791 = vld [vmem:[%s16 + $0x58] sm:$0xf]
        %v7792 = vld [vmem:[%s16 + $0x5c] sm:$0xf]
        %v7793 = vld [vmem:[%s16 + $0x60] sm:$0xf]
        %v7794 = vld [vmem:[%s16 + $0x64] sm:$0xf]
        %v7795 = vld [vmem:[%s16 + $0x68] sm:$0xf]
        %v7796 = vld [vmem:[%s16 + $0x6c] sm:$0xf]
        %v7797 = vld [vmem:[%s16 + $0x70] sm:$0xf]
        %v7798 = vld [vmem:[%s16 + $0x74] sm:$0xf]
        %v7799 = vld [vmem:[%s16 + $0x78] sm:$0xf]
        %v7800 = vld [vmem:[%s16 + $0x7c] sm:$0xf]
        %v7801 = vld [vmem:[%s16 + $0x80] sm:$0xf]
        %v7802 = vld [vmem:[%s16 + $0x84] sm:$0xf]
        %v7803 = vld [vmem:[%s16 + $0x88] sm:$0xf]
        %v7804 = vld [vmem:[%s16 + $0x8c] sm:$0xf]
        %v7805 = vld [vmem:[%s16 + $0x90] sm:$0xf]
        %v7806 = vld [vmem:[%s16 + $0x94] sm:$0xf]
        %v7807 = vld [vmem:[%s16 + $0x98] sm:$0xf]
        %v7808 = vld [vmem:[%s16 + $0x9c] sm:$0xf]
        %v7809 = vld [vmem:[%s16 + $0xa0] sm:$0xf]
        %v7810 = vld [vmem:[%s16 + $0xa4] sm:$0xf]
        %v7811 = vld [vmem:[%s16 + $0xa8] sm:$0xf]
        %v7812 = vld [vmem:[%s16 + $0xac] sm:$0xf]
        %v7813 = vld [vmem:[%s16 + $0xb0] sm:$0xf]
        %v7814 = vld [vmem:[%s16 + $0xb4] sm:$0xf]
        %v7815 = vld [vmem:[%s16 + $0xb8] sm:$0xf]
        %v7816 = vld [vmem:[%s16 + $0xbc] sm:$0xf]
        %v7865 = vunpack.c.l.b16 %v7769
        %v7866 = vunpack.c.l.b16 %v7770
        %v7867 = vunpack.c.l.b16 %v7771
        %v7868 = vunpack.c.l.b16 %v7772
        %v7869 = vunpack.c.l.b16 %v7773
        %v7870 = vunpack.c.l.b16 %v7774
        %v7871 = vunpack.c.l.b16 %v7775
        %v7872 = vunpack.c.l.b16 %v7776
        %v7873 = vunpack.c.l.b16 %v7777
        %v7874 = vunpack.c.l.b16 %v7778
        %v7875 = vunpack.c.l.b16 %v7779
        %v7876 = vunpack.c.l.b16 %v7780
        %v7877 = vunpack.c.l.b16 %v7781
        %v7878 = vunpack.c.l.b16 %v7782
        %v7879 = vunpack.c.l.b16 %v7783
        %v7880 = vunpack.c.l.b16 %v7784
        %v7881 = vunpack.c.l.b16 %v7785
        %v7882 = vunpack.c.l.b16 %v7786
        %v7883 = vunpack.c.l.b16 %v7787
        %v7884 = vunpack.c.l.b16 %v7788
        %v7885 = vunpack.c.l.b16 %v7789
        %v7886 = vunpack.c.l.b16 %v7790
        %v7887 = vunpack.c.l.b16 %v7791
        %v7888 = vunpack.c.l.b16 %v7792
        %v7889 = vunpack.c.l.b16 %v7793
        %v7890 = vunpack.c.l.b16 %v7794
        %v7891 = vunpack.c.l.b16 %v7795
        %v7892 = vunpack.c.l.b16 %v7796
        %v7893 = vunpack.c.l.b16 %v7797
        %v7894 = vunpack.c.l.b16 %v7798
        %v7895 = vunpack.c.l.b16 %v7799
        %v7896 = vunpack.c.l.b16 %v7800
        %v7897 = vunpack.c.l.b16 %v7801
        %v7898 = vunpack.c.l.b16 %v7802
        %v7899 = vunpack.c.l.b16 %v7803
        %v7900 = vunpack.c.l.b16 %v7804
        %v7901 = vunpack.c.l.b16 %v7805
        %v7902 = vunpack.c.l.b16 %v7806
        %v7903 = vunpack.c.l.b16 %v7807
        %v7904 = vunpack.c.l.b16 %v7808
        %v7905 = vunpack.c.l.b16 %v7809
        %v7906 = vunpack.c.l.b16 %v7810
        %v7907 = vunpack.c.l.b16 %v7811
        %v7908 = vunpack.c.l.b16 %v7812
        %v7909 = vunpack.c.l.b16 %v7813
        %v7910 = vunpack.c.l.b16 %v7814
        %v7911 = vunpack.c.l.b16 %v7815
        %v7912 = vunpack.c.l.b16 %v7816
        %v7913 = vpack.c.b16 %v7866, %v7865
        %v7914 = vpack.c.b16 %v7868, %v7867
        %v7915 = vpack.c.b16 %v7870, %v7869
        %v7916 = vpack.c.b16 %v7872, %v7871
        %v7917 = vpack.c.b16 %v7874, %v7873
        %v7918 = vpack.c.b16 %v7876, %v7875
        %v7919 = vpack.c.b16 %v7878, %v7877
        %v7920 = vpack.c.b16 %v7880, %v7879
        %v7921 = vpack.c.b16 %v7882, %v7881
        %v7922 = vpack.c.b16 %v7884, %v7883
        %v7923 = vpack.c.b16 %v7886, %v7885
        %v7924 = vpack.c.b16 %v7888, %v7887
        %v7925 = vpack.c.b16 %v7890, %v7889
        %v7926 = vpack.c.b16 %v7892, %v7891
        %v7927 = vpack.c.b16 %v7894, %v7893
        %v7928 = vpack.c.b16 %v7896, %v7895
        %v7929 = vpack.c.b16 %v7898, %v7897
        %v7930 = vpack.c.b16 %v7900, %v7899
        %v7931 = vpack.c.b16 %v7902, %v7901
        %v7932 = vpack.c.b16 %v7904, %v7903
        %v7933 = vpack.c.b16 %v7906, %v7905
        %v7934 = vpack.c.b16 %v7908, %v7907
        %v7935 = vpack.c.b16 %v7910, %v7909
        %v7936 = vpack.c.b16 %v7912, %v7911
        %7961 = vmatprep.subr.bf16.mxu0 0
        %7962 = vmatpush1.bf16.msra.mxu0 %v7920
        %7963 = vmatprep.subr.bf16.mxu0 0
        %7964 = vmatpush1.bf16.msra.mxu0 %v7919
        %7965 = vmatprep.subr.bf16.mxu0 0
        %7966 = vmatpush1.bf16.msra.mxu0 %v7918
        %7967 = vmatprep.subr.bf16.mxu0 0
        %7968 = vmatpush1.bf16.msra.mxu0 %v7917
        %7969 = vmatprep.subr.bf16.mxu0 0
        %7970 = vmatpush1.bf16.msra.mxu0 %v7916
        %7971 = vmatprep.subr.bf16.mxu0 0
        %7972 = vmatpush1.bf16.msra.mxu0 %v7915
        %7973 = vmatprep.subr.bf16.mxu0 0
        %7974 = vmatpush1.bf16.msra.mxu0 %v7914
        %7975 = vmatprep.subr.bf16.mxu0 0
        %7976 = vmatpush1.bf16.msra.mxu0 %v7913
        %7977 = vmatprep.subr.bf16.mxu0 0
        %7978 = vmatpush2.bf16.msra.mxu0 %v7928
        %7979 = vmatprep.subr.bf16.mxu0 0
        %7980 = vmatpush2.bf16.msra.mxu0 %v7927
        %7981 = vmatprep.subr.bf16.mxu0 0
        %7982 = vmatpush2.bf16.msra.mxu0 %v7926
        %7983 = vmatprep.subr.bf16.mxu0 0
        %7984 = vmatpush2.bf16.msra.mxu0 %v7925
        %7985 = vmatprep.subr.bf16.mxu0 0
        %7986 = vmatpush2.bf16.msra.mxu0 %v7924
        %7987 = vmatprep.subr.bf16.mxu0 0
        %7988 = vmatpush2.bf16.msra.mxu0 %v7923
        %7989 = vmatprep.subr.bf16.mxu0 0
        %7990 = vmatpush2.bf16.msra.mxu0 %v7922
        %7991 = vmatprep.subr.bf16.mxu0 0
        %7992 = vmatpush2.bf16.msra.mxu0 %v7921
        %7993 = vmatprep.mubr.bf16.mxu0 %v7767
        %7994 = vmatmul.mubr.bf16.gmra.mxu0 %v7766
        %v7995 = vpop.f32.mrf.mxu0
        %v7996 = vadd.f32 0.0, %v7995
        %v7997 = vpop.f32.mrf.mxu0
        %v7998 = vpop.f32.mrf.mxu0
        %v7999 = vpop.f32.mrf.mxu0
        %8000 = vdwg.mxu0
        %8001 = vmatprep.subr.bf16.mxu0 0
        %8002 = vmatpush1.bf16.msra.mxu0 %v7936
        %8003 = vmatprep.subr.bf16.mxu0 0
        %8004 = vmatpush1.bf16.msra.mxu0 %v7935
        %8005 = vmatprep.subr.bf16.mxu0 0
        %8006 = vmatpush1.bf16.msra.mxu0 %v7934
        %8007 = vmatprep.subr.bf16.mxu0 0
        %8008 = vmatpush1.bf16.msra.mxu0 %v7933
        %8009 = vmatprep.subr.bf16.mxu0 0
        %8010 = vmatpush1.bf16.msra.mxu0 %v7932
        %8011 = vmatprep.subr.bf16.mxu0 0
        %8012 = vmatpush1.bf16.msra.mxu0 %v7931
        %8013 = vmatprep.subr.bf16.mxu0 0
        %8014 = vmatpush1.bf16.msra.mxu0 %v7930
        %8015 = vmatprep.subr.bf16.mxu0 0
        %8016 = vmatpush1.bf16.msra.mxu0 %v7929
        %8017 = vmatprep.subr.bf16.mxu0 0
        %8018 = vmatpush2.bf16.msra.mxu0 0
        %8019 = vmatprep.subr.bf16.mxu0 0
        %8020 = vmatpush2.bf16.msra.mxu0 0
        %8021 = vmatprep.subr.bf16.mxu0 0
        %8022 = vmatpush2.bf16.msra.mxu0 0
        %8023 = vmatprep.subr.bf16.mxu0 0
        %8024 = vmatpush2.bf16.msra.mxu0 0
        %8025 = vmatprep.subr.bf16.mxu0 0
        %8026 = vmatpush2.bf16.msra.mxu0 0
        %8027 = vmatprep.subr.bf16.mxu0 0
        %8028 = vmatpush2.bf16.msra.mxu0 0
        %8029 = vmatprep.subr.bf16.mxu0 0
        %8030 = vmatpush2.bf16.msra.mxu0 0
        %8031 = vmatprep.subr.bf16.mxu0 0
        %8032 = vmatpush2.bf16.msra.mxu0 0
        %8033 = vmatprep.mubr.bf16.mxu0 0
        %8034 = vmatmul.mubr.bf16.gmra.mxu0 %v7768
        %v8035 = vpop.f32.mrf.mxu0
        %v8036 = vadd.f32 %v7996, %v8035
        %v8037 = vpop.f32.mrf.mxu0
        %v8038 = vpop.f32.mrf.mxu0
        %v8039 = vpop.f32.mrf.mxu0
        %8040 = vdwg.mxu0
        %v8041 = vadd.f32 %v7765, %v8036
        %s8042 = scalar_lea.vmem %s16, 192
        %v8043 = vld [vmem:[%s8042] sm:$0xf]
        %v8044 = vld [vmem:[%s8042 + $0x4] sm:$0xf]
        %v8045 = vld [vmem:[%s8042 + $0x8] sm:$0xf]
        %v8046 = vld [vmem:[%s8042 + $0xc] sm:$0xf]
        %v8047 = vld [vmem:[%s8042 + $0x10] sm:$0xf]
        %v8048 = vld [vmem:[%s8042 + $0x14] sm:$0xf]
        %v8049 = vld [vmem:[%s8042 + $0x18] sm:$0xf]
        %v8050 = vld [vmem:[%s8042 + $0x1c] sm:$0xf]
        %v8051 = vld [vmem:[%s8042 + $0x20] sm:$0xf]
        %v8052 = vld [vmem:[%s8042 + $0x24] sm:$0xf]
        %v8053 = vld [vmem:[%s8042 + $0x28] sm:$0xf]
        %v8054 = vld [vmem:[%s8042 + $0x2c] sm:$0xf]
        %v8055 = vld [vmem:[%s8042 + $0x30] sm:$0xf]
        %v8056 = vld [vmem:[%s8042 + $0x34] sm:$0xf]
        %v8057 = vld [vmem:[%s8042 + $0x38] sm:$0xf]
        %v8058 = vld [vmem:[%s8042 + $0x3c] sm:$0xf]
        %v8059 = vld [vmem:[%s8042 + $0x40] sm:$0xf]
        %v8060 = vld [vmem:[%s8042 + $0x44] sm:$0xf]
        %v8061 = vld [vmem:[%s8042 + $0x48] sm:$0xf]
        %v8062 = vld [vmem:[%s8042 + $0x4c] sm:$0xf]
        %v8063 = vld [vmem:[%s8042 + $0x50] sm:$0xf]
        %v8064 = vld [vmem:[%s8042 + $0x54] sm:$0xf]
        %v8065 = vld [vmem:[%s8042 + $0x58] sm:$0xf]
        %v8066 = vld [vmem:[%s8042 + $0x5c] sm:$0xf]
        %v8067 = vld [vmem:[%s8042 + $0x60] sm:$0xf]
        %v8068 = vld [vmem:[%s8042 + $0x64] sm:$0xf]
        %v8069 = vld [vmem:[%s8042 + $0x68] sm:$0xf]
        %v8070 = vld [vmem:[%s8042 + $0x6c] sm:$0xf]
        %v8071 = vld [vmem:[%s8042 + $0x70] sm:$0xf]
        %v8072 = vld [vmem:[%s8042 + $0x74] sm:$0xf]
        %v8073 = vld [vmem:[%s8042 + $0x78] sm:$0xf]
        %v8074 = vld [vmem:[%s8042 + $0x7c] sm:$0xf]
        %v8075 = vld [vmem:[%s8042 + $0x80] sm:$0xf]
        %v8076 = vld [vmem:[%s8042 + $0x84] sm:$0xf]
        %v8077 = vld [vmem:[%s8042 + $0x88] sm:$0xf]
        %v8078 = vld [vmem:[%s8042 + $0x8c] sm:$0xf]
        %v8079 = vld [vmem:[%s8042 + $0x90] sm:$0xf]
        %v8080 = vld [vmem:[%s8042 + $0x94] sm:$0xf]
        %v8081 = vld [vmem:[%s8042 + $0x98] sm:$0xf]
        %v8082 = vld [vmem:[%s8042 + $0x9c] sm:$0xf]
        %v8083 = vld [vmem:[%s8042 + $0xa0] sm:$0xf]
        %v8084 = vld [vmem:[%s8042 + $0xa4] sm:$0xf]
        %v8085 = vld [vmem:[%s8042 + $0xa8] sm:$0xf]
        %v8086 = vld [vmem:[%s8042 + $0xac] sm:$0xf]
        %v8087 = vld [vmem:[%s8042 + $0xb0] sm:$0xf]
        %v8088 = vld [vmem:[%s8042 + $0xb4] sm:$0xf]
        %v8089 = vld [vmem:[%s8042 + $0xb8] sm:$0xf]
        %v8090 = vld [vmem:[%s8042 + $0xbc] sm:$0xf]
        %v8092 = vshrl.u32 %v7766, 16
        %v8095 = vshrl.u32 %v7767, 16
        %v8098 = vshrl.u32 %v7768, 16
        %v8151 = vunpack.c.l.b16 %v8043
        %v8152 = vunpack.c.l.b16 %v8044
        %v8153 = vunpack.c.l.b16 %v8045
        %v8154 = vunpack.c.l.b16 %v8046
        %v8155 = vunpack.c.l.b16 %v8047
        %v8156 = vunpack.c.l.b16 %v8048
        %v8157 = vunpack.c.l.b16 %v8049
        %v8158 = vunpack.c.l.b16 %v8050
        %v8159 = vunpack.c.l.b16 %v8051
        %v8160 = vunpack.c.l.b16 %v8052
        %v8161 = vunpack.c.l.b16 %v8053
        %v8162 = vunpack.c.l.b16 %v8054
        %v8163 = vunpack.c.l.b16 %v8055
        %v8164 = vunpack.c.l.b16 %v8056
        %v8165 = vunpack.c.l.b16 %v8057
        %v8166 = vunpack.c.l.b16 %v8058
        %v8167 = vunpack.c.l.b16 %v8059
        %v8168 = vunpack.c.l.b16 %v8060
        %v8169 = vunpack.c.l.b16 %v8061
        %v8170 = vunpack.c.l.b16 %v8062
        %v8171 = vunpack.c.l.b16 %v8063
        %v8172 = vunpack.c.l.b16 %v8064
        %v8173 = vunpack.c.l.b16 %v8065
        %v8174 = vunpack.c.l.b16 %v8066
        %v8175 = vunpack.c.l.b16 %v8067
        %v8176 = vunpack.c.l.b16 %v8068
        %v8177 = vunpack.c.l.b16 %v8069
        %v8178 = vunpack.c.l.b16 %v8070
        %v8179 = vunpack.c.l.b16 %v8071
        %v8180 = vunpack.c.l.b16 %v8072
        %v8181 = vunpack.c.l.b16 %v8073
        %v8182 = vunpack.c.l.b16 %v8074
        %v8183 = vunpack.c.l.b16 %v8075
        %v8184 = vunpack.c.l.b16 %v8076
        %v8185 = vunpack.c.l.b16 %v8077
        %v8186 = vunpack.c.l.b16 %v8078
        %v8187 = vunpack.c.l.b16 %v8079
        %v8188 = vunpack.c.l.b16 %v8080
        %v8189 = vunpack.c.l.b16 %v8081
        %v8190 = vunpack.c.l.b16 %v8082
        %v8191 = vunpack.c.l.b16 %v8083
        %v8192 = vunpack.c.l.b16 %v8084
        %v8193 = vunpack.c.l.b16 %v8085
        %v8194 = vunpack.c.l.b16 %v8086
        %v8195 = vunpack.c.l.b16 %v8087
        %v8196 = vunpack.c.l.b16 %v8088
        %v8197 = vunpack.c.l.b16 %v8089
        %v8198 = vunpack.c.l.b16 %v8090
        %v8199 = vpack.c.b16 %v8152, %v8151
        %v8200 = vpack.c.b16 %v8154, %v8153
        %v8201 = vpack.c.b16 %v8156, %v8155
        %v8202 = vpack.c.b16 %v8158, %v8157
        %v8203 = vpack.c.b16 %v8160, %v8159
        %v8204 = vpack.c.b16 %v8162, %v8161
        %v8205 = vpack.c.b16 %v8164, %v8163
        %v8206 = vpack.c.b16 %v8166, %v8165
        %v8207 = vpack.c.b16 %v8168, %v8167
        %v8208 = vpack.c.b16 %v8170, %v8169
        %v8209 = vpack.c.b16 %v8172, %v8171
        %v8210 = vpack.c.b16 %v8174, %v8173
        %v8211 = vpack.c.b16 %v8176, %v8175
        %v8212 = vpack.c.b16 %v8178, %v8177
        %v8213 = vpack.c.b16 %v8180, %v8179
        %v8214 = vpack.c.b16 %v8182, %v8181
        %v8215 = vpack.c.b16 %v8184, %v8183
        %v8216 = vpack.c.b16 %v8186, %v8185
        %v8217 = vpack.c.b16 %v8188, %v8187
        %v8218 = vpack.c.b16 %v8190, %v8189
        %v8219 = vpack.c.b16 %v8192, %v8191
        %v8220 = vpack.c.b16 %v8194, %v8193
        %v8221 = vpack.c.b16 %v8196, %v8195
        %v8222 = vpack.c.b16 %v8198, %v8197
        %8247 = vmatprep.subr.bf16.mxu0 0
        %8248 = vmatpush1.bf16.msra.mxu0 %v8206
        %8249 = vmatprep.subr.bf16.mxu0 0
        %8250 = vmatpush1.bf16.msra.mxu0 %v8205
        %8251 = vmatprep.subr.bf16.mxu0 0
        %8252 = vmatpush1.bf16.msra.mxu0 %v8204
        %8253 = vmatprep.subr.bf16.mxu0 0
        %8254 = vmatpush1.bf16.msra.mxu0 %v8203
        %8255 = vmatprep.subr.bf16.mxu0 0
        %8256 = vmatpush1.bf16.msra.mxu0 %v8202
        %8257 = vmatprep.subr.bf16.mxu0 0
        %8258 = vmatpush1.bf16.msra.mxu0 %v8201
        %8259 = vmatprep.subr.bf16.mxu0 0
        %8260 = vmatpush1.bf16.msra.mxu0 %v8200
        %8261 = vmatprep.subr.bf16.mxu0 0
        %8262 = vmatpush1.bf16.msra.mxu0 %v8199
        %8263 = vmatprep.subr.bf16.mxu0 0
        %8264 = vmatpush2.bf16.msra.mxu0 %v8214
        %8265 = vmatprep.subr.bf16.mxu0 0
        %8266 = vmatpush2.bf16.msra.mxu0 %v8213
        %8267 = vmatprep.subr.bf16.mxu0 0
        %8268 = vmatpush2.bf16.msra.mxu0 %v8212
        %8269 = vmatprep.subr.bf16.mxu0 0
        %8270 = vmatpush2.bf16.msra.mxu0 %v8211
        %8271 = vmatprep.subr.bf16.mxu0 0
        %8272 = vmatpush2.bf16.msra.mxu0 %v8210
        %8273 = vmatprep.subr.bf16.mxu0 0
        %8274 = vmatpush2.bf16.msra.mxu0 %v8209
        %8275 = vmatprep.subr.bf16.mxu0 0
        %8276 = vmatpush2.bf16.msra.mxu0 %v8208
        %8277 = vmatprep.subr.bf16.mxu0 0
        %8278 = vmatpush2.bf16.msra.mxu0 %v8207
        %8279 = vmatprep.mubr.bf16.mxu0 %v8095
        %8280 = vmatmul.mubr.bf16.gmra.mxu0 %v8092
        %v8281 = vpop.f32.mrf.mxu0
        %v8282 = vadd.f32 0.0, %v8281
        %v8283 = vpop.f32.mrf.mxu0
        %v8284 = vpop.f32.mrf.mxu0
        %v8285 = vpop.f32.mrf.mxu0
        %8286 = vdwg.mxu0
        %8287 = vmatprep.subr.bf16.mxu0 0
        %8288 = vmatpush1.bf16.msra.mxu0 %v8222
        %8289 = vmatprep.subr.bf16.mxu0 0
        %8290 = vmatpush1.bf16.msra.mxu0 %v8221
        %8291 = vmatprep.subr.bf16.mxu0 0
        %8292 = vmatpush1.bf16.msra.mxu0 %v8220
        %8293 = vmatprep.subr.bf16.mxu0 0
        %8294 = vmatpush1.bf16.msra.mxu0 %v8219
        %8295 = vmatprep.subr.bf16.mxu0 0
        %8296 = vmatpush1.bf16.msra.mxu0 %v8218
        %8297 = vmatprep.subr.bf16.mxu0 0
        %8298 = vmatpush1.bf16.msra.mxu0 %v8217
        %8299 = vmatprep.subr.bf16.mxu0 0
        %8300 = vmatpush1.bf16.msra.mxu0 %v8216
        %8301 = vmatprep.subr.bf16.mxu0 0
        %8302 = vmatpush1.bf16.msra.mxu0 %v8215
        %8303 = vmatprep.subr.bf16.mxu0 0
        %8304 = vmatpush2.bf16.msra.mxu0 0
        %8305 = vmatprep.subr.bf16.mxu0 0
        %8306 = vmatpush2.bf16.msra.mxu0 0
        %8307 = vmatprep.subr.bf16.mxu0 0
        %8308 = vmatpush2.bf16.msra.mxu0 0
        %8309 = vmatprep.subr.bf16.mxu0 0
        %8310 = vmatpush2.bf16.msra.mxu0 0
        %8311 = vmatprep.subr.bf16.mxu0 0
        %8312 = vmatpush2.bf16.msra.mxu0 0
        %8313 = vmatprep.subr.bf16.mxu0 0
        %8314 = vmatpush2.bf16.msra.mxu0 0
        %8315 = vmatprep.subr.bf16.mxu0 0
        %8316 = vmatpush2.bf16.msra.mxu0 0
        %8317 = vmatprep.subr.bf16.mxu0 0
        %8318 = vmatpush2.bf16.msra.mxu0 0
        %8319 = vmatprep.mubr.bf16.mxu0 0
        %8320 = vmatmul.mubr.bf16.gmra.mxu0 %v8098
        %v8321 = vpop.f32.mrf.mxu0
        %v8322 = vadd.f32 %v8282, %v8321
        %v8323 = vpop.f32.mrf.mxu0
        %v8324 = vpop.f32.mrf.mxu0
        %v8325 = vpop.f32.mrf.mxu0
        %8326 = vdwg.mxu0
        %v8327 = vadd.f32 %v8041, %v8322
        %s8328 = scalar_lea.vmem %s16, 384
        %v8329 = vld [vmem:[%s8328] sm:$0xf]
        %v8330 = vld [vmem:[%s8328 + $0x4] sm:$0xf]
        %v8331 = vld [vmem:[%s8328 + $0x8] sm:$0xf]
        %v8332 = vld [vmem:[%s8328 + $0xc] sm:$0xf]
        %v8333 = vld [vmem:[%s8328 + $0x10] sm:$0xf]
        %v8334 = vld [vmem:[%s8328 + $0x14] sm:$0xf]
        %v8335 = vld [vmem:[%s8328 + $0x18] sm:$0xf]
        %v8336 = vld [vmem:[%s8328 + $0x1c] sm:$0xf]
        %v8337 = vld [vmem:[%s8328 + $0x20] sm:$0xf]
        %v8338 = vld [vmem:[%s8328 + $0x24] sm:$0xf]
        %v8339 = vld [vmem:[%s8328 + $0x28] sm:$0xf]
        %v8340 = vld [vmem:[%s8328 + $0x2c] sm:$0xf]
        %v8341 = vld [vmem:[%s8328 + $0x30] sm:$0xf]
        %v8342 = vld [vmem:[%s8328 + $0x34] sm:$0xf]
        %v8343 = vld [vmem:[%s8328 + $0x38] sm:$0xf]
        %v8344 = vld [vmem:[%s8328 + $0x3c] sm:$0xf]
        %v8345 = vld [vmem:[%s8328 + $0x40] sm:$0xf]
        %v8346 = vld [vmem:[%s8328 + $0x44] sm:$0xf]
        %v8347 = vld [vmem:[%s8328 + $0x48] sm:$0xf]
        %v8348 = vld [vmem:[%s8328 + $0x4c] sm:$0xf]
        %v8349 = vld [vmem:[%s8328 + $0x50] sm:$0xf]
        %v8350 = vld [vmem:[%s8328 + $0x54] sm:$0xf]
        %v8351 = vld [vmem:[%s8328 + $0x58] sm:$0xf]
        %v8352 = vld [vmem:[%s8328 + $0x5c] sm:$0xf]
        %v8353 = vld [vmem:[%s8328 + $0x60] sm:$0xf]
        %v8354 = vld [vmem:[%s8328 + $0x64] sm:$0xf]
        %v8355 = vld [vmem:[%s8328 + $0x68] sm:$0xf]
        %v8356 = vld [vmem:[%s8328 + $0x6c] sm:$0xf]
        %v8357 = vld [vmem:[%s8328 + $0x70] sm:$0xf]
        %v8358 = vld [vmem:[%s8328 + $0x74] sm:$0xf]
        %v8359 = vld [vmem:[%s8328 + $0x78] sm:$0xf]
        %v8360 = vld [vmem:[%s8328 + $0x7c] sm:$0xf]
        %v8361 = vld [vmem:[%s8328 + $0x80] sm:$0xf]
        %v8362 = vld [vmem:[%s8328 + $0x84] sm:$0xf]
        %v8363 = vld [vmem:[%s8328 + $0x88] sm:$0xf]
        %v8364 = vld [vmem:[%s8328 + $0x8c] sm:$0xf]
        %v8365 = vld [vmem:[%s8328 + $0x90] sm:$0xf]
        %v8366 = vld [vmem:[%s8328 + $0x94] sm:$0xf]
        %v8367 = vld [vmem:[%s8328 + $0x98] sm:$0xf]
        %v8368 = vld [vmem:[%s8328 + $0x9c] sm:$0xf]
        %v8369 = vld [vmem:[%s8328 + $0xa0] sm:$0xf]
        %v8370 = vld [vmem:[%s8328 + $0xa4] sm:$0xf]
        %v8371 = vld [vmem:[%s8328 + $0xa8] sm:$0xf]
        %v8372 = vld [vmem:[%s8328 + $0xac] sm:$0xf]
        %v8373 = vld [vmem:[%s8328 + $0xb0] sm:$0xf]
        %v8374 = vld [vmem:[%s8328 + $0xb4] sm:$0xf]
        %v8375 = vld [vmem:[%s8328 + $0xb8] sm:$0xf]
        %v8376 = vld [vmem:[%s8328 + $0xbc] sm:$0xf]
        %v8380 = vrot.slane %v7766, 1
        %v8381 = vrot.slane %v7767, 1
        %v8382 = vrot.slane %v7768, 1
        %v8434 = vunpack.c.l.b16 %v8329
        %v8435 = vunpack.c.l.b16 %v8330
        %v8436 = vunpack.c.l.b16 %v8331
        %v8437 = vunpack.c.l.b16 %v8332
        %v8438 = vunpack.c.l.b16 %v8333
        %v8439 = vunpack.c.l.b16 %v8334
        %v8440 = vunpack.c.l.b16 %v8335
        %v8441 = vunpack.c.l.b16 %v8336
        %v8442 = vunpack.c.l.b16 %v8337
        %v8443 = vunpack.c.l.b16 %v8338
        %v8444 = vunpack.c.l.b16 %v8339
        %v8445 = vunpack.c.l.b16 %v8340
        %v8446 = vunpack.c.l.b16 %v8341
        %v8447 = vunpack.c.l.b16 %v8342
        %v8448 = vunpack.c.l.b16 %v8343
        %v8449 = vunpack.c.l.b16 %v8344
        %v8450 = vunpack.c.l.b16 %v8345
        %v8451 = vunpack.c.l.b16 %v8346
        %v8452 = vunpack.c.l.b16 %v8347
        %v8453 = vunpack.c.l.b16 %v8348
        %v8454 = vunpack.c.l.b16 %v8349
        %v8455 = vunpack.c.l.b16 %v8350
        %v8456 = vunpack.c.l.b16 %v8351
        %v8457 = vunpack.c.l.b16 %v8352
        %v8458 = vunpack.c.l.b16 %v8353
        %v8459 = vunpack.c.l.b16 %v8354
        %v8460 = vunpack.c.l.b16 %v8355
        %v8461 = vunpack.c.l.b16 %v8356
        %v8462 = vunpack.c.l.b16 %v8357
        %v8463 = vunpack.c.l.b16 %v8358
        %v8464 = vunpack.c.l.b16 %v8359
        %v8465 = vunpack.c.l.b16 %v8360
        %v8466 = vunpack.c.l.b16 %v8361
        %v8467 = vunpack.c.l.b16 %v8362
        %v8468 = vunpack.c.l.b16 %v8363
        %v8469 = vunpack.c.l.b16 %v8364
        %v8470 = vunpack.c.l.b16 %v8365
        %v8471 = vunpack.c.l.b16 %v8366
        %v8472 = vunpack.c.l.b16 %v8367
        %v8473 = vunpack.c.l.b16 %v8368
        %v8474 = vunpack.c.l.b16 %v8369
        %v8475 = vunpack.c.l.b16 %v8370
        %v8476 = vunpack.c.l.b16 %v8371
        %v8477 = vunpack.c.l.b16 %v8372
        %v8478 = vunpack.c.l.b16 %v8373
        %v8479 = vunpack.c.l.b16 %v8374
        %v8480 = vunpack.c.l.b16 %v8375
        %v8481 = vunpack.c.l.b16 %v8376
        %v8482 = vpack.c.b16 %v8435, %v8434
        %v8483 = vpack.c.b16 %v8437, %v8436
        %v8484 = vpack.c.b16 %v8439, %v8438
        %v8485 = vpack.c.b16 %v8441, %v8440
        %v8486 = vpack.c.b16 %v8443, %v8442
        %v8487 = vpack.c.b16 %v8445, %v8444
        %v8488 = vpack.c.b16 %v8447, %v8446
        %v8489 = vpack.c.b16 %v8449, %v8448
        %v8490 = vpack.c.b16 %v8451, %v8450
        %v8491 = vpack.c.b16 %v8453, %v8452
        %v8492 = vpack.c.b16 %v8455, %v8454
        %v8493 = vpack.c.b16 %v8457, %v8456
        %v8494 = vpack.c.b16 %v8459, %v8458
        %v8495 = vpack.c.b16 %v8461, %v8460
        %v8496 = vpack.c.b16 %v8463, %v8462
        %v8497 = vpack.c.b16 %v8465, %v8464
        %v8498 = vpack.c.b16 %v8467, %v8466
        %v8499 = vpack.c.b16 %v8469, %v8468
        %v8500 = vpack.c.b16 %v8471, %v8470
        %v8501 = vpack.c.b16 %v8473, %v8472
        %v8502 = vpack.c.b16 %v8475, %v8474
        %v8503 = vpack.c.b16 %v8477, %v8476
        %v8504 = vpack.c.b16 %v8479, %v8478
        %v8505 = vpack.c.b16 %v8481, %v8480
        %8530 = vmatprep.subr.bf16.mxu0 0
        %8531 = vmatpush1.bf16.msra.mxu0 %v8489
        %8532 = vmatprep.subr.bf16.mxu0 0
        %8533 = vmatpush1.bf16.msra.mxu0 %v8488
        %8534 = vmatprep.subr.bf16.mxu0 0
        %8535 = vmatpush1.bf16.msra.mxu0 %v8487
        %8536 = vmatprep.subr.bf16.mxu0 0
        %8537 = vmatpush1.bf16.msra.mxu0 %v8486
        %8538 = vmatprep.subr.bf16.mxu0 0
        %8539 = vmatpush1.bf16.msra.mxu0 %v8485
        %8540 = vmatprep.subr.bf16.mxu0 0
        %8541 = vmatpush1.bf16.msra.mxu0 %v8484
        %8542 = vmatprep.subr.bf16.mxu0 0
        %8543 = vmatpush1.bf16.msra.mxu0 %v8483
        %8544 = vmatprep.subr.bf16.mxu0 0
        %8545 = vmatpush1.bf16.msra.mxu0 %v8482
        %8546 = vmatprep.subr.bf16.mxu0 0
        %8547 = vmatpush2.bf16.msra.mxu0 %v8497
        %8548 = vmatprep.subr.bf16.mxu0 0
        %8549 = vmatpush2.bf16.msra.mxu0 %v8496
        %8550 = vmatprep.subr.bf16.mxu0 0
        %8551 = vmatpush2.bf16.msra.mxu0 %v8495
        %8552 = vmatprep.subr.bf16.mxu0 0
        %8553 = vmatpush2.bf16.msra.mxu0 %v8494
        %8554 = vmatprep.subr.bf16.mxu0 0
        %8555 = vmatpush2.bf16.msra.mxu0 %v8493
        %8556 = vmatprep.subr.bf16.mxu0 0
        %8557 = vmatpush2.bf16.msra.mxu0 %v8492
        %8558 = vmatprep.subr.bf16.mxu0 0
        %8559 = vmatpush2.bf16.msra.mxu0 %v8491
        %8560 = vmatprep.subr.bf16.mxu0 0
        %8561 = vmatpush2.bf16.msra.mxu0 %v8490
        %8562 = vmatprep.mubr.bf16.mxu0 %v8381
        %8563 = vmatmul.mubr.bf16.gmra.mxu0 %v8380
        %v8564 = vpop.f32.mrf.mxu0
        %v8565 = vadd.f32 0.0, %v8564
        %v8566 = vpop.f32.mrf.mxu0
        %v8567 = vpop.f32.mrf.mxu0
        %v8568 = vpop.f32.mrf.mxu0
        %8569 = vdwg.mxu0
        %8570 = vmatprep.subr.bf16.mxu0 0
        %8571 = vmatpush1.bf16.msra.mxu0 %v8505
        %8572 = vmatprep.subr.bf16.mxu0 0
        %8573 = vmatpush1.bf16.msra.mxu0 %v8504
        %8574 = vmatprep.subr.bf16.mxu0 0
        %8575 = vmatpush1.bf16.msra.mxu0 %v8503
        %8576 = vmatprep.subr.bf16.mxu0 0
        %8577 = vmatpush1.bf16.msra.mxu0 %v8502
        %8578 = vmatprep.subr.bf16.mxu0 0
        %8579 = vmatpush1.bf16.msra.mxu0 %v8501
        %8580 = vmatprep.subr.bf16.mxu0 0
        %8581 = vmatpush1.bf16.msra.mxu0 %v8500
        %8582 = vmatprep.subr.bf16.mxu0 0
        %8583 = vmatpush1.bf16.msra.mxu0 %v8499
        %8584 = vmatprep.subr.bf16.mxu0 0
        %8585 = vmatpush1.bf16.msra.mxu0 %v8498
        %8586 = vmatprep.subr.bf16.mxu0 0
        %8587 = vmatpush2.bf16.msra.mxu0 0
        %8588 = vmatprep.subr.bf16.mxu0 0
        %8589 = vmatpush2.bf16.msra.mxu0 0
        %8590 = vmatprep.subr.bf16.mxu0 0
        %8591 = vmatpush2.bf16.msra.mxu0 0
        %8592 = vmatprep.subr.bf16.mxu0 0
        %8593 = vmatpush2.bf16.msra.mxu0 0
        %8594 = vmatprep.subr.bf16.mxu0 0
        %8595 = vmatpush2.bf16.msra.mxu0 0
        %8596 = vmatprep.subr.bf16.mxu0 0
        %8597 = vmatpush2.bf16.msra.mxu0 0
        %8598 = vmatprep.subr.bf16.mxu0 0
        %8599 = vmatpush2.bf16.msra.mxu0 0
        %8600 = vmatprep.subr.bf16.mxu0 0
        %8601 = vmatpush2.bf16.msra.mxu0 0
        %8602 = vmatprep.mubr.bf16.mxu0 0
        %8603 = vmatmul.mubr.bf16.gmra.mxu0 %v8382
        %v8604 = vpop.f32.mrf.mxu0
        %v8605 = vadd.f32 %v8565, %v8604
        %v8606 = vpop.f32.mrf.mxu0
        %v8607 = vpop.f32.mrf.mxu0
        %v8608 = vpop.f32.mrf.mxu0
        %8609 = vdwg.mxu0
        %v8610 = vadd.f32 %v8327, %v8605
        %s8611 = scalar_lea.vmem %s16, 576
        %v8612 = vld [vmem:[%s8611] sm:$0xf]
        %v8613 = vld [vmem:[%s8611 + $0x4] sm:$0xf]
        %v8614 = vld [vmem:[%s8611 + $0x8] sm:$0xf]
        %v8615 = vld [vmem:[%s8611 + $0xc] sm:$0xf]
        %v8616 = vld [vmem:[%s8611 + $0x10] sm:$0xf]
        %v8617 = vld [vmem:[%s8611 + $0x14] sm:$0xf]
        %v8618 = vld [vmem:[%s8611 + $0x18] sm:$0xf]
        %v8619 = vld [vmem:[%s8611 + $0x1c] sm:$0xf]
        %v8620 = vld [vmem:[%s8611 + $0x20] sm:$0xf]
        %v8621 = vld [vmem:[%s8611 + $0x24] sm:$0xf]
        %v8622 = vld [vmem:[%s8611 + $0x28] sm:$0xf]
        %v8623 = vld [vmem:[%s8611 + $0x2c] sm:$0xf]
        %v8624 = vld [vmem:[%s8611 + $0x30] sm:$0xf]
        %v8625 = vld [vmem:[%s8611 + $0x34] sm:$0xf]
        %v8626 = vld [vmem:[%s8611 + $0x38] sm:$0xf]
        %v8627 = vld [vmem:[%s8611 + $0x3c] sm:$0xf]
        %v8628 = vld [vmem:[%s8611 + $0x40] sm:$0xf]
        %v8629 = vld [vmem:[%s8611 + $0x44] sm:$0xf]
        %v8630 = vld [vmem:[%s8611 + $0x48] sm:$0xf]
        %v8631 = vld [vmem:[%s8611 + $0x4c] sm:$0xf]
        %v8632 = vld [vmem:[%s8611 + $0x50] sm:$0xf]
        %v8633 = vld [vmem:[%s8611 + $0x54] sm:$0xf]
        %v8634 = vld [vmem:[%s8611 + $0x58] sm:$0xf]
        %v8635 = vld [vmem:[%s8611 + $0x5c] sm:$0xf]
        %v8636 = vld [vmem:[%s8611 + $0x60] sm:$0xf]
        %v8637 = vld [vmem:[%s8611 + $0x64] sm:$0xf]
        %v8638 = vld [vmem:[%s8611 + $0x68] sm:$0xf]
        %v8639 = vld [vmem:[%s8611 + $0x6c] sm:$0xf]
        %v8640 = vld [vmem:[%s8611 + $0x70] sm:$0xf]
        %v8641 = vld [vmem:[%s8611 + $0x74] sm:$0xf]
        %v8642 = vld [vmem:[%s8611 + $0x78] sm:$0xf]
        %v8643 = vld [vmem:[%s8611 + $0x7c] sm:$0xf]
        %v8644 = vld [vmem:[%s8611 + $0x80] sm:$0xf]
        %v8645 = vld [vmem:[%s8611 + $0x84] sm:$0xf]
        %v8646 = vld [vmem:[%s8611 + $0x88] sm:$0xf]
        %v8647 = vld [vmem:[%s8611 + $0x8c] sm:$0xf]
        %v8648 = vld [vmem:[%s8611 + $0x90] sm:$0xf]
        %v8649 = vld [vmem:[%s8611 + $0x94] sm:$0xf]
        %v8650 = vld [vmem:[%s8611 + $0x98] sm:$0xf]
        %v8651 = vld [vmem:[%s8611 + $0x9c] sm:$0xf]
        %v8652 = vld [vmem:[%s8611 + $0xa0] sm:$0xf]
        %v8653 = vld [vmem:[%s8611 + $0xa4] sm:$0xf]
        %v8654 = vld [vmem:[%s8611 + $0xa8] sm:$0xf]
        %v8655 = vld [vmem:[%s8611 + $0xac] sm:$0xf]
        %v8656 = vld [vmem:[%s8611 + $0xb0] sm:$0xf]
        %v8657 = vld [vmem:[%s8611 + $0xb4] sm:$0xf]
        %v8658 = vld [vmem:[%s8611 + $0xb8] sm:$0xf]
        %v8659 = vld [vmem:[%s8611 + $0xbc] sm:$0xf]
        %v8660 = vrot.slane %v8092, 1
        %v8661 = vrot.slane %v8095, 1
        %v8662 = vrot.slane %v8098, 1
        %v8714 = vunpack.c.l.b16 %v8612
        %v8715 = vunpack.c.l.b16 %v8613
        %v8716 = vunpack.c.l.b16 %v8614
        %v8717 = vunpack.c.l.b16 %v8615
        %v8718 = vunpack.c.l.b16 %v8616
        %v8719 = vunpack.c.l.b16 %v8617
        %v8720 = vunpack.c.l.b16 %v8618
        %v8721 = vunpack.c.l.b16 %v8619
        %v8722 = vunpack.c.l.b16 %v8620
        %v8723 = vunpack.c.l.b16 %v8621
        %v8724 = vunpack.c.l.b16 %v8622
        %v8725 = vunpack.c.l.b16 %v8623
        %v8726 = vunpack.c.l.b16 %v8624
        %v8727 = vunpack.c.l.b16 %v8625
        %v8728 = vunpack.c.l.b16 %v8626
        %v8729 = vunpack.c.l.b16 %v8627
        %v8730 = vunpack.c.l.b16 %v8628
        %v8731 = vunpack.c.l.b16 %v8629
        %v8732 = vunpack.c.l.b16 %v8630
        %v8733 = vunpack.c.l.b16 %v8631
        %v8734 = vunpack.c.l.b16 %v8632
        %v8735 = vunpack.c.l.b16 %v8633
        %v8736 = vunpack.c.l.b16 %v8634
        %v8737 = vunpack.c.l.b16 %v8635
        %v8738 = vunpack.c.l.b16 %v8636
        %v8739 = vunpack.c.l.b16 %v8637
        %v8740 = vunpack.c.l.b16 %v8638
        %v8741 = vunpack.c.l.b16 %v8639
        %v8742 = vunpack.c.l.b16 %v8640
        %v8743 = vunpack.c.l.b16 %v8641
        %v8744 = vunpack.c.l.b16 %v8642
        %v8745 = vunpack.c.l.b16 %v8643
        %v8746 = vunpack.c.l.b16 %v8644
        %v8747 = vunpack.c.l.b16 %v8645
        %v8748 = vunpack.c.l.b16 %v8646
        %v8749 = vunpack.c.l.b16 %v8647
        %v8750 = vunpack.c.l.b16 %v8648
        %v8751 = vunpack.c.l.b16 %v8649
        %v8752 = vunpack.c.l.b16 %v8650
        %v8753 = vunpack.c.l.b16 %v8651
        %v8754 = vunpack.c.l.b16 %v8652
        %v8755 = vunpack.c.l.b16 %v8653
        %v8756 = vunpack.c.l.b16 %v8654
        %v8757 = vunpack.c.l.b16 %v8655
        %v8758 = vunpack.c.l.b16 %v8656
        %v8759 = vunpack.c.l.b16 %v8657
        %v8760 = vunpack.c.l.b16 %v8658
        %v8761 = vunpack.c.l.b16 %v8659
        %v8762 = vpack.c.b16 %v8715, %v8714
        %v8763 = vpack.c.b16 %v8717, %v8716
        %v8764 = vpack.c.b16 %v8719, %v8718
        %v8765 = vpack.c.b16 %v8721, %v8720
        %v8766 = vpack.c.b16 %v8723, %v8722
        %v8767 = vpack.c.b16 %v8725, %v8724
        %v8768 = vpack.c.b16 %v8727, %v8726
        %v8769 = vpack.c.b16 %v8729, %v8728
        %v8770 = vpack.c.b16 %v8731, %v8730
        %v8771 = vpack.c.b16 %v8733, %v8732
        %v8772 = vpack.c.b16 %v8735, %v8734
        %v8773 = vpack.c.b16 %v8737, %v8736
        %v8774 = vpack.c.b16 %v8739, %v8738
        %v8775 = vpack.c.b16 %v8741, %v8740
        %v8776 = vpack.c.b16 %v8743, %v8742
        %v8777 = vpack.c.b16 %v8745, %v8744
        %v8778 = vpack.c.b16 %v8747, %v8746
        %v8779 = vpack.c.b16 %v8749, %v8748
        %v8780 = vpack.c.b16 %v8751, %v8750
        %v8781 = vpack.c.b16 %v8753, %v8752
        %v8782 = vpack.c.b16 %v8755, %v8754
        %v8783 = vpack.c.b16 %v8757, %v8756
        %v8784 = vpack.c.b16 %v8759, %v8758
        %v8785 = vpack.c.b16 %v8761, %v8760
        %8810 = vmatprep.subr.bf16.mxu0 0
        %8811 = vmatpush1.bf16.msra.mxu0 %v8769
        %8812 = vmatprep.subr.bf16.mxu0 0
        %8813 = vmatpush1.bf16.msra.mxu0 %v8768
        %8814 = vmatprep.subr.bf16.mxu0 0
        %8815 = vmatpush1.bf16.msra.mxu0 %v8767
        %8816 = vmatprep.subr.bf16.mxu0 0
        %8817 = vmatpush1.bf16.msra.mxu0 %v8766
        %8818 = vmatprep.subr.bf16.mxu0 0
        %8819 = vmatpush1.bf16.msra.mxu0 %v8765
        %8820 = vmatprep.subr.bf16.mxu0 0
        %8821 = vmatpush1.bf16.msra.mxu0 %v8764
        %8822 = vmatprep.subr.bf16.mxu0 0
        %8823 = vmatpush1.bf16.msra.mxu0 %v8763
        %8824 = vmatprep.subr.bf16.mxu0 0
        %8825 = vmatpush1.bf16.msra.mxu0 %v8762
        %8826 = vmatprep.subr.bf16.mxu0 0
        %8827 = vmatpush2.bf16.msra.mxu0 %v8777
        %8828 = vmatprep.subr.bf16.mxu0 0
        %8829 = vmatpush2.bf16.msra.mxu0 %v8776
        %8830 = vmatprep.subr.bf16.mxu0 0
        %8831 = vmatpush2.bf16.msra.mxu0 %v8775
        %8832 = vmatprep.subr.bf16.mxu0 0
        %8833 = vmatpush2.bf16.msra.mxu0 %v8774
        %8834 = vmatprep.subr.bf16.mxu0 0
        %8835 = vmatpush2.bf16.msra.mxu0 %v8773
        %8836 = vmatprep.subr.bf16.mxu0 0
        %8837 = vmatpush2.bf16.msra.mxu0 %v8772
        %8838 = vmatprep.subr.bf16.mxu0 0
        %8839 = vmatpush2.bf16.msra.mxu0 %v8771
        %8840 = vmatprep.subr.bf16.mxu0 0
        %8841 = vmatpush2.bf16.msra.mxu0 %v8770
        %8842 = vmatprep.mubr.bf16.mxu0 %v8661
        %8843 = vmatmul.mubr.bf16.gmra.mxu0 %v8660
        %v8844 = vpop.f32.mrf.mxu0
        %v8845 = vadd.f32 0.0, %v8844
        %v8846 = vpop.f32.mrf.mxu0
        %v8847 = vpop.f32.mrf.mxu0
        %v8848 = vpop.f32.mrf.mxu0
        %8849 = vdwg.mxu0
        %8850 = vmatprep.subr.bf16.mxu0 0
        %8851 = vmatpush1.bf16.msra.mxu0 %v8785
        %8852 = vmatprep.subr.bf16.mxu0 0
        %8853 = vmatpush1.bf16.msra.mxu0 %v8784
        %8854 = vmatprep.subr.bf16.mxu0 0
        %8855 = vmatpush1.bf16.msra.mxu0 %v8783
        %8856 = vmatprep.subr.bf16.mxu0 0
        %8857 = vmatpush1.bf16.msra.mxu0 %v8782
        %8858 = vmatprep.subr.bf16.mxu0 0
        %8859 = vmatpush1.bf16.msra.mxu0 %v8781
        %8860 = vmatprep.subr.bf16.mxu0 0
        %8861 = vmatpush1.bf16.msra.mxu0 %v8780
        %8862 = vmatprep.subr.bf16.mxu0 0
        %8863 = vmatpush1.bf16.msra.mxu0 %v8779
        %8864 = vmatprep.subr.bf16.mxu0 0
        %8865 = vmatpush1.bf16.msra.mxu0 %v8778
        %8866 = vmatprep.subr.bf16.mxu0 0
        %8867 = vmatpush2.bf16.msra.mxu0 0
        %8868 = vmatprep.subr.bf16.mxu0 0
        %8869 = vmatpush2.bf16.msra.mxu0 0
        %8870 = vmatprep.subr.bf16.mxu0 0
        %8871 = vmatpush2.bf16.msra.mxu0 0
        %8872 = vmatprep.subr.bf16.mxu0 0
        %8873 = vmatpush2.bf16.msra.mxu0 0
        %8874 = vmatprep.subr.bf16.mxu0 0
        %8875 = vmatpush2.bf16.msra.mxu0 0
        %8876 = vmatprep.subr.bf16.mxu0 0
        %8877 = vmatpush2.bf16.msra.mxu0 0
        %8878 = vmatprep.subr.bf16.mxu0 0
        %8879 = vmatpush2.bf16.msra.mxu0 0
        %8880 = vmatprep.subr.bf16.mxu0 0
        %8881 = vmatpush2.bf16.msra.mxu0 0
        %8882 = vmatprep.mubr.bf16.mxu0 0
        %8883 = vmatmul.mubr.bf16.gmra.mxu0 %v8662
        %v8884 = vpop.f32.mrf.mxu0
        %v8885 = vadd.f32 %v8845, %v8884
        %v8886 = vpop.f32.mrf.mxu0
        %v8887 = vpop.f32.mrf.mxu0
        %v8888 = vpop.f32.mrf.mxu0
        %8889 = vdwg.mxu0
        %v8890 = vadd.f32 %v8610, %v8885
        %vm8891 = vcmask 57344
        %8892 = vst.msk [vmem:[%s583] sm:$0x1] %vm8891, %v8890
        %v8893 = vld [vmem:[%s17] sm:$0x1]
        %v8894 = vpack.c.bf16 %v7762, %v7762
        %v8895 = vpack.c.bf16 %v7763, %v7763
        %v8896 = vpack.c.bf16 %v7764, %v7764
        %v8897 = vld [vmem:[%s16] sm:$0xf]
        %v8898 = vld [vmem:[%s16 + $0x4] sm:$0xf]
        %v8899 = vld [vmem:[%s16 + $0x8] sm:$0xf]
        %v8900 = vld [vmem:[%s16 + $0xc] sm:$0xf]
        %v8901 = vld [vmem:[%s16 + $0x10] sm:$0xf]
        %v8902 = vld [vmem:[%s16 + $0x14] sm:$0xf]
        %v8903 = vld [vmem:[%s16 + $0x18] sm:$0xf]
        %v8904 = vld [vmem:[%s16 + $0x1c] sm:$0xf]
        %v8905 = vld [vmem:[%s16 + $0x20] sm:$0xf]
        %v8906 = vld [vmem:[%s16 + $0x24] sm:$0xf]
        %v8907 = vld [vmem:[%s16 + $0x28] sm:$0xf]
        %v8908 = vld [vmem:[%s16 + $0x2c] sm:$0xf]
        %v8909 = vld [vmem:[%s16 + $0x30] sm:$0xf]
        %v8910 = vld [vmem:[%s16 + $0x34] sm:$0xf]
        %v8911 = vld [vmem:[%s16 + $0x38] sm:$0xf]
        %v8912 = vld [vmem:[%s16 + $0x3c] sm:$0xf]
        %v8913 = vld [vmem:[%s16 + $0x40] sm:$0xf]
        %v8914 = vld [vmem:[%s16 + $0x44] sm:$0xf]
        %v8915 = vld [vmem:[%s16 + $0x48] sm:$0xf]
        %v8916 = vld [vmem:[%s16 + $0x4c] sm:$0xf]
        %v8917 = vld [vmem:[%s16 + $0x50] sm:$0xf]
        %v8918 = vld [vmem:[%s16 + $0x54] sm:$0xf]
        %v8919 = vld [vmem:[%s16 + $0x58] sm:$0xf]
        %v8920 = vld [vmem:[%s16 + $0x5c] sm:$0xf]
        %v8921 = vld [vmem:[%s16 + $0x60] sm:$0xf]
        %v8922 = vld [vmem:[%s16 + $0x64] sm:$0xf]
        %v8923 = vld [vmem:[%s16 + $0x68] sm:$0xf]
        %v8924 = vld [vmem:[%s16 + $0x6c] sm:$0xf]
        %v8925 = vld [vmem:[%s16 + $0x70] sm:$0xf]
        %v8926 = vld [vmem:[%s16 + $0x74] sm:$0xf]
        %v8927 = vld [vmem:[%s16 + $0x78] sm:$0xf]
        %v8928 = vld [vmem:[%s16 + $0x7c] sm:$0xf]
        %v8929 = vld [vmem:[%s16 + $0x80] sm:$0xf]
        %v8930 = vld [vmem:[%s16 + $0x84] sm:$0xf]
        %v8931 = vld [vmem:[%s16 + $0x88] sm:$0xf]
        %v8932 = vld [vmem:[%s16 + $0x8c] sm:$0xf]
        %v8933 = vld [vmem:[%s16 + $0x90] sm:$0xf]
        %v8934 = vld [vmem:[%s16 + $0x94] sm:$0xf]
        %v8935 = vld [vmem:[%s16 + $0x98] sm:$0xf]
        %v8936 = vld [vmem:[%s16 + $0x9c] sm:$0xf]
        %v8937 = vld [vmem:[%s16 + $0xa0] sm:$0xf]
        %v8938 = vld [vmem:[%s16 + $0xa4] sm:$0xf]
        %v8939 = vld [vmem:[%s16 + $0xa8] sm:$0xf]
        %v8940 = vld [vmem:[%s16 + $0xac] sm:$0xf]
        %v8941 = vld [vmem:[%s16 + $0xb0] sm:$0xf]
        %v8942 = vld [vmem:[%s16 + $0xb4] sm:$0xf]
        %v8943 = vld [vmem:[%s16 + $0xb8] sm:$0xf]
        %v8944 = vld [vmem:[%s16 + $0xbc] sm:$0xf]
        %v8993 = vunpack.c.l.b16 %v8897
        %v8994 = vunpack.c.l.b16 %v8898
        %v8995 = vunpack.c.l.b16 %v8899
        %v8996 = vunpack.c.l.b16 %v8900
        %v8997 = vunpack.c.l.b16 %v8901
        %v8998 = vunpack.c.l.b16 %v8902
        %v8999 = vunpack.c.l.b16 %v8903
        %v9000 = vunpack.c.l.b16 %v8904
        %v9001 = vunpack.c.l.b16 %v8905
        %v9002 = vunpack.c.l.b16 %v8906
        %v9003 = vunpack.c.l.b16 %v8907
        %v9004 = vunpack.c.l.b16 %v8908
        %v9005 = vunpack.c.l.b16 %v8909
        %v9006 = vunpack.c.l.b16 %v8910
        %v9007 = vunpack.c.l.b16 %v8911
        %v9008 = vunpack.c.l.b16 %v8912
        %v9009 = vunpack.c.l.b16 %v8913
        %v9010 = vunpack.c.l.b16 %v8914
        %v9011 = vunpack.c.l.b16 %v8915
        %v9012 = vunpack.c.l.b16 %v8916
        %v9013 = vunpack.c.l.b16 %v8917
        %v9014 = vunpack.c.l.b16 %v8918
        %v9015 = vunpack.c.l.b16 %v8919
        %v9016 = vunpack.c.l.b16 %v8920
        %v9017 = vunpack.c.l.b16 %v8921
        %v9018 = vunpack.c.l.b16 %v8922
        %v9019 = vunpack.c.l.b16 %v8923
        %v9020 = vunpack.c.l.b16 %v8924
        %v9021 = vunpack.c.l.b16 %v8925
        %v9022 = vunpack.c.l.b16 %v8926
        %v9023 = vunpack.c.l.b16 %v8927
        %v9024 = vunpack.c.l.b16 %v8928
        %v9025 = vunpack.c.l.b16 %v8929
        %v9026 = vunpack.c.l.b16 %v8930
        %v9027 = vunpack.c.l.b16 %v8931
        %v9028 = vunpack.c.l.b16 %v8932
        %v9029 = vunpack.c.l.b16 %v8933
        %v9030 = vunpack.c.l.b16 %v8934
        %v9031 = vunpack.c.l.b16 %v8935
        %v9032 = vunpack.c.l.b16 %v8936
        %v9033 = vunpack.c.l.b16 %v8937
        %v9034 = vunpack.c.l.b16 %v8938
        %v9035 = vunpack.c.l.b16 %v8939
        %v9036 = vunpack.c.l.b16 %v8940
        %v9037 = vunpack.c.l.b16 %v8941
        %v9038 = vunpack.c.l.b16 %v8942
        %v9039 = vunpack.c.l.b16 %v8943
        %v9040 = vunpack.c.l.b16 %v8944
        %v9041 = vpack.c.b16 %v8994, %v8993
        %v9042 = vpack.c.b16 %v8996, %v8995
        %v9043 = vpack.c.b16 %v8998, %v8997
        %v9044 = vpack.c.b16 %v9000, %v8999
        %v9045 = vpack.c.b16 %v9002, %v9001
        %v9046 = vpack.c.b16 %v9004, %v9003
        %v9047 = vpack.c.b16 %v9006, %v9005
        %v9048 = vpack.c.b16 %v9008, %v9007
        %v9049 = vpack.c.b16 %v9010, %v9009
        %v9050 = vpack.c.b16 %v9012, %v9011
        %v9051 = vpack.c.b16 %v9014, %v9013
        %v9052 = vpack.c.b16 %v9016, %v9015
        %v9053 = vpack.c.b16 %v9018, %v9017
        %v9054 = vpack.c.b16 %v9020, %v9019
        %v9055 = vpack.c.b16 %v9022, %v9021
        %v9056 = vpack.c.b16 %v9024, %v9023
        %v9057 = vpack.c.b16 %v9026, %v9025
        %v9058 = vpack.c.b16 %v9028, %v9027
        %v9059 = vpack.c.b16 %v9030, %v9029
        %v9060 = vpack.c.b16 %v9032, %v9031
        %v9061 = vpack.c.b16 %v9034, %v9033
        %v9062 = vpack.c.b16 %v9036, %v9035
        %v9063 = vpack.c.b16 %v9038, %v9037
        %v9064 = vpack.c.b16 %v9040, %v9039
        %9089 = vmatprep.subr.bf16.mxu0 0
        %9090 = vmatpush1.bf16.msra.mxu0 %v9048
        %9091 = vmatprep.subr.bf16.mxu0 0
        %9092 = vmatpush1.bf16.msra.mxu0 %v9047
        %9093 = vmatprep.subr.bf16.mxu0 0
        %9094 = vmatpush1.bf16.msra.mxu0 %v9046
        %9095 = vmatprep.subr.bf16.mxu0 0
        %9096 = vmatpush1.bf16.msra.mxu0 %v9045
        %9097 = vmatprep.subr.bf16.mxu0 0
        %9098 = vmatpush1.bf16.msra.mxu0 %v9044
        %9099 = vmatprep.subr.bf16.mxu0 0
        %9100 = vmatpush1.bf16.msra.mxu0 %v9043
        %9101 = vmatprep.subr.bf16.mxu0 0
        %9102 = vmatpush1.bf16.msra.mxu0 %v9042
        %9103 = vmatprep.subr.bf16.mxu0 0
        %9104 = vmatpush1.bf16.msra.mxu0 %v9041
        %9105 = vmatprep.subr.bf16.mxu0 0
        %9106 = vmatpush2.bf16.msra.mxu0 %v9056
        %9107 = vmatprep.subr.bf16.mxu0 0
        %9108 = vmatpush2.bf16.msra.mxu0 %v9055
        %9109 = vmatprep.subr.bf16.mxu0 0
        %9110 = vmatpush2.bf16.msra.mxu0 %v9054
        %9111 = vmatprep.subr.bf16.mxu0 0
        %9112 = vmatpush2.bf16.msra.mxu0 %v9053
        %9113 = vmatprep.subr.bf16.mxu0 0
        %9114 = vmatpush2.bf16.msra.mxu0 %v9052
        %9115 = vmatprep.subr.bf16.mxu0 0
        %9116 = vmatpush2.bf16.msra.mxu0 %v9051
        %9117 = vmatprep.subr.bf16.mxu0 0
        %9118 = vmatpush2.bf16.msra.mxu0 %v9050
        %9119 = vmatprep.subr.bf16.mxu0 0
        %9120 = vmatpush2.bf16.msra.mxu0 %v9049
        %9121 = vmatprep.mubr.bf16.mxu0 %v8895
        %9122 = vmatmul.mubr.bf16.gmra.mxu0 %v8894
        %v9123 = vpop.f32.mrf.mxu0
        %v9124 = vadd.f32 0.0, %v9123
        %v9125 = vpop.f32.mrf.mxu0
        %v9126 = vpop.f32.mrf.mxu0
        %v9127 = vpop.f32.mrf.mxu0
        %9128 = vdwg.mxu0
        %9129 = vmatprep.subr.bf16.mxu0 0
        %9130 = vmatpush1.bf16.msra.mxu0 %v9064
        %9131 = vmatprep.subr.bf16.mxu0 0
        %9132 = vmatpush1.bf16.msra.mxu0 %v9063
        %9133 = vmatprep.subr.bf16.mxu0 0
        %9134 = vmatpush1.bf16.msra.mxu0 %v9062
        %9135 = vmatprep.subr.bf16.mxu0 0
        %9136 = vmatpush1.bf16.msra.mxu0 %v9061
        %9137 = vmatprep.subr.bf16.mxu0 0
        %9138 = vmatpush1.bf16.msra.mxu0 %v9060
        %9139 = vmatprep.subr.bf16.mxu0 0
        %9140 = vmatpush1.bf16.msra.mxu0 %v9059
        %9141 = vmatprep.subr.bf16.mxu0 0
        %9142 = vmatpush1.bf16.msra.mxu0 %v9058
        %9143 = vmatprep.subr.bf16.mxu0 0
        %9144 = vmatpush1.bf16.msra.mxu0 %v9057
        %9145 = vmatprep.subr.bf16.mxu0 0
        %9146 = vmatpush2.bf16.msra.mxu0 0
        %9147 = vmatprep.subr.bf16.mxu0 0
        %9148 = vmatpush2.bf16.msra.mxu0 0
        %9149 = vmatprep.subr.bf16.mxu0 0
        %9150 = vmatpush2.bf16.msra.mxu0 0
        %9151 = vmatprep.subr.bf16.mxu0 0
        %9152 = vmatpush2.bf16.msra.mxu0 0
        %9153 = vmatprep.subr.bf16.mxu0 0
        %9154 = vmatpush2.bf16.msra.mxu0 0
        %9155 = vmatprep.subr.bf16.mxu0 0
        %9156 = vmatpush2.bf16.msra.mxu0 0
        %9157 = vmatprep.subr.bf16.mxu0 0
        %9158 = vmatpush2.bf16.msra.mxu0 0
        %9159 = vmatprep.subr.bf16.mxu0 0
        %9160 = vmatpush2.bf16.msra.mxu0 0
        %9161 = vmatprep.mubr.bf16.mxu0 0
        %9162 = vmatmul.mubr.bf16.gmra.mxu0 %v8896
        %v9163 = vpop.f32.mrf.mxu0
        %v9164 = vadd.f32 %v9124, %v9163
        %v9165 = vpop.f32.mrf.mxu0
        %v9166 = vpop.f32.mrf.mxu0
        %v9167 = vpop.f32.mrf.mxu0
        %9168 = vdwg.mxu0
        %v9169 = vadd.f32 %v8893, %v9164
        %v9170 = vld [vmem:[%s8042] sm:$0xf]
        %v9171 = vld [vmem:[%s8042 + $0x4] sm:$0xf]
        %v9172 = vld [vmem:[%s8042 + $0x8] sm:$0xf]
        %v9173 = vld [vmem:[%s8042 + $0xc] sm:$0xf]
        %v9174 = vld [vmem:[%s8042 + $0x10] sm:$0xf]
        %v9175 = vld [vmem:[%s8042 + $0x14] sm:$0xf]
        %v9176 = vld [vmem:[%s8042 + $0x18] sm:$0xf]
        %v9177 = vld [vmem:[%s8042 + $0x1c] sm:$0xf]
        %v9178 = vld [vmem:[%s8042 + $0x20] sm:$0xf]
        %v9179 = vld [vmem:[%s8042 + $0x24] sm:$0xf]
        %v9180 = vld [vmem:[%s8042 + $0x28] sm:$0xf]
        %v9181 = vld [vmem:[%s8042 + $0x2c] sm:$0xf]
        %v9182 = vld [vmem:[%s8042 + $0x30] sm:$0xf]
        %v9183 = vld [vmem:[%s8042 + $0x34] sm:$0xf]
        %v9184 = vld [vmem:[%s8042 + $0x38] sm:$0xf]
        %v9185 = vld [vmem:[%s8042 + $0x3c] sm:$0xf]
        %v9186 = vld [vmem:[%s8042 + $0x40] sm:$0xf]
        %v9187 = vld [vmem:[%s8042 + $0x44] sm:$0xf]
        %v9188 = vld [vmem:[%s8042 + $0x48] sm:$0xf]
        %v9189 = vld [vmem:[%s8042 + $0x4c] sm:$0xf]
        %v9190 = vld [vmem:[%s8042 + $0x50] sm:$0xf]
        %v9191 = vld [vmem:[%s8042 + $0x54] sm:$0xf]
        %v9192 = vld [vmem:[%s8042 + $0x58] sm:$0xf]
        %v9193 = vld [vmem:[%s8042 + $0x5c] sm:$0xf]
        %v9194 = vld [vmem:[%s8042 + $0x60] sm:$0xf]
        %v9195 = vld [vmem:[%s8042 + $0x64] sm:$0xf]
        %v9196 = vld [vmem:[%s8042 + $0x68] sm:$0xf]
        %v9197 = vld [vmem:[%s8042 + $0x6c] sm:$0xf]
        %v9198 = vld [vmem:[%s8042 + $0x70] sm:$0xf]
        %v9199 = vld [vmem:[%s8042 + $0x74] sm:$0xf]
        %v9200 = vld [vmem:[%s8042 + $0x78] sm:$0xf]
        %v9201 = vld [vmem:[%s8042 + $0x7c] sm:$0xf]
        %v9202 = vld [vmem:[%s8042 + $0x80] sm:$0xf]
        %v9203 = vld [vmem:[%s8042 + $0x84] sm:$0xf]
        %v9204 = vld [vmem:[%s8042 + $0x88] sm:$0xf]
        %v9205 = vld [vmem:[%s8042 + $0x8c] sm:$0xf]
        %v9206 = vld [vmem:[%s8042 + $0x90] sm:$0xf]
        %v9207 = vld [vmem:[%s8042 + $0x94] sm:$0xf]
        %v9208 = vld [vmem:[%s8042 + $0x98] sm:$0xf]
        %v9209 = vld [vmem:[%s8042 + $0x9c] sm:$0xf]
        %v9210 = vld [vmem:[%s8042 + $0xa0] sm:$0xf]
        %v9211 = vld [vmem:[%s8042 + $0xa4] sm:$0xf]
        %v9212 = vld [vmem:[%s8042 + $0xa8] sm:$0xf]
        %v9213 = vld [vmem:[%s8042 + $0xac] sm:$0xf]
        %v9214 = vld [vmem:[%s8042 + $0xb0] sm:$0xf]
        %v9215 = vld [vmem:[%s8042 + $0xb4] sm:$0xf]
        %v9216 = vld [vmem:[%s8042 + $0xb8] sm:$0xf]
        %v9217 = vld [vmem:[%s8042 + $0xbc] sm:$0xf]
        %v9219 = vshrl.u32 %v8894, 16
        %v9222 = vshrl.u32 %v8895, 16
        %v9225 = vshrl.u32 %v8896, 16
        %v9278 = vunpack.c.l.b16 %v9170
        %v9279 = vunpack.c.l.b16 %v9171
        %v9280 = vunpack.c.l.b16 %v9172
        %v9281 = vunpack.c.l.b16 %v9173
        %v9282 = vunpack.c.l.b16 %v9174
        %v9283 = vunpack.c.l.b16 %v9175
        %v9284 = vunpack.c.l.b16 %v9176
        %v9285 = vunpack.c.l.b16 %v9177
        %v9286 = vunpack.c.l.b16 %v9178
        %v9287 = vunpack.c.l.b16 %v9179
        %v9288 = vunpack.c.l.b16 %v9180
        %v9289 = vunpack.c.l.b16 %v9181
        %v9290 = vunpack.c.l.b16 %v9182
        %v9291 = vunpack.c.l.b16 %v9183
        %v9292 = vunpack.c.l.b16 %v9184
        %v9293 = vunpack.c.l.b16 %v9185
        %v9294 = vunpack.c.l.b16 %v9186
        %v9295 = vunpack.c.l.b16 %v9187
        %v9296 = vunpack.c.l.b16 %v9188
        %v9297 = vunpack.c.l.b16 %v9189
        %v9298 = vunpack.c.l.b16 %v9190
        %v9299 = vunpack.c.l.b16 %v9191
        %v9300 = vunpack.c.l.b16 %v9192
        %v9301 = vunpack.c.l.b16 %v9193
        %v9302 = vunpack.c.l.b16 %v9194
        %v9303 = vunpack.c.l.b16 %v9195
        %v9304 = vunpack.c.l.b16 %v9196
        %v9305 = vunpack.c.l.b16 %v9197
        %v9306 = vunpack.c.l.b16 %v9198
        %v9307 = vunpack.c.l.b16 %v9199
        %v9308 = vunpack.c.l.b16 %v9200
        %v9309 = vunpack.c.l.b16 %v9201
        %v9310 = vunpack.c.l.b16 %v9202
        %v9311 = vunpack.c.l.b16 %v9203
        %v9312 = vunpack.c.l.b16 %v9204
        %v9313 = vunpack.c.l.b16 %v9205
        %v9314 = vunpack.c.l.b16 %v9206
        %v9315 = vunpack.c.l.b16 %v9207
        %v9316 = vunpack.c.l.b16 %v9208
        %v9317 = vunpack.c.l.b16 %v9209
        %v9318 = vunpack.c.l.b16 %v9210
        %v9319 = vunpack.c.l.b16 %v9211
        %v9320 = vunpack.c.l.b16 %v9212
        %v9321 = vunpack.c.l.b16 %v9213
        %v9322 = vunpack.c.l.b16 %v9214
        %v9323 = vunpack.c.l.b16 %v9215
        %v9324 = vunpack.c.l.b16 %v9216
        %v9325 = vunpack.c.l.b16 %v9217
        %v9326 = vpack.c.b16 %v9279, %v9278
        %v9327 = vpack.c.b16 %v9281, %v9280
        %v9328 = vpack.c.b16 %v9283, %v9282
        %v9329 = vpack.c.b16 %v9285, %v9284
        %v9330 = vpack.c.b16 %v9287, %v9286
        %v9331 = vpack.c.b16 %v9289, %v9288
        %v9332 = vpack.c.b16 %v9291, %v9290
        %v9333 = vpack.c.b16 %v9293, %v9292
        %v9334 = vpack.c.b16 %v9295, %v9294
        %v9335 = vpack.c.b16 %v9297, %v9296
        %v9336 = vpack.c.b16 %v9299, %v9298
        %v9337 = vpack.c.b16 %v9301, %v9300
        %v9338 = vpack.c.b16 %v9303, %v9302
        %v9339 = vpack.c.b16 %v9305, %v9304
        %v9340 = vpack.c.b16 %v9307, %v9306
        %v9341 = vpack.c.b16 %v9309, %v9308
        %v9342 = vpack.c.b16 %v9311, %v9310
        %v9343 = vpack.c.b16 %v9313, %v9312
        %v9344 = vpack.c.b16 %v9315, %v9314
        %v9345 = vpack.c.b16 %v9317, %v9316
        %v9346 = vpack.c.b16 %v9319, %v9318
        %v9347 = vpack.c.b16 %v9321, %v9320
        %v9348 = vpack.c.b16 %v9323, %v9322
        %v9349 = vpack.c.b16 %v9325, %v9324
        %9374 = vmatprep.subr.bf16.mxu0 0
        %9375 = vmatpush1.bf16.msra.mxu0 %v9333
        %9376 = vmatprep.subr.bf16.mxu0 0
        %9377 = vmatpush1.bf16.msra.mxu0 %v9332
        %9378 = vmatprep.subr.bf16.mxu0 0
        %9379 = vmatpush1.bf16.msra.mxu0 %v9331
        %9380 = vmatprep.subr.bf16.mxu0 0
        %9381 = vmatpush1.bf16.msra.mxu0 %v9330
        %9382 = vmatprep.subr.bf16.mxu0 0
        %9383 = vmatpush1.bf16.msra.mxu0 %v9329
        %9384 = vmatprep.subr.bf16.mxu0 0
        %9385 = vmatpush1.bf16.msra.mxu0 %v9328
        %9386 = vmatprep.subr.bf16.mxu0 0
        %9387 = vmatpush1.bf16.msra.mxu0 %v9327
        %9388 = vmatprep.subr.bf16.mxu0 0
        %9389 = vmatpush1.bf16.msra.mxu0 %v9326
        %9390 = vmatprep.subr.bf16.mxu0 0
        %9391 = vmatpush2.bf16.msra.mxu0 %v9341
        %9392 = vmatprep.subr.bf16.mxu0 0
        %9393 = vmatpush2.bf16.msra.mxu0 %v9340
        %9394 = vmatprep.subr.bf16.mxu0 0
        %9395 = vmatpush2.bf16.msra.mxu0 %v9339
        %9396 = vmatprep.subr.bf16.mxu0 0
        %9397 = vmatpush2.bf16.msra.mxu0 %v9338
        %9398 = vmatprep.subr.bf16.mxu0 0
        %9399 = vmatpush2.bf16.msra.mxu0 %v9337
        %9400 = vmatprep.subr.bf16.mxu0 0
        %9401 = vmatpush2.bf16.msra.mxu0 %v9336
        %9402 = vmatprep.subr.bf16.mxu0 0
        %9403 = vmatpush2.bf16.msra.mxu0 %v9335
        %9404 = vmatprep.subr.bf16.mxu0 0
        %9405 = vmatpush2.bf16.msra.mxu0 %v9334
        %9406 = vmatprep.mubr.bf16.mxu0 %v9222
        %9407 = vmatmul.mubr.bf16.gmra.mxu0 %v9219
        %v9408 = vpop.f32.mrf.mxu0
        %v9409 = vadd.f32 0.0, %v9408
        %v9410 = vpop.f32.mrf.mxu0
        %v9411 = vpop.f32.mrf.mxu0
        %v9412 = vpop.f32.mrf.mxu0
        %9413 = vdwg.mxu0
        %9414 = vmatprep.subr.bf16.mxu0 0
        %9415 = vmatpush1.bf16.msra.mxu0 %v9349
        %9416 = vmatprep.subr.bf16.mxu0 0
        %9417 = vmatpush1.bf16.msra.mxu0 %v9348
        %9418 = vmatprep.subr.bf16.mxu0 0
        %9419 = vmatpush1.bf16.msra.mxu0 %v9347
        %9420 = vmatprep.subr.bf16.mxu0 0
        %9421 = vmatpush1.bf16.msra.mxu0 %v9346
        %9422 = vmatprep.subr.bf16.mxu0 0
        %9423 = vmatpush1.bf16.msra.mxu0 %v9345
        %9424 = vmatprep.subr.bf16.mxu0 0
        %9425 = vmatpush1.bf16.msra.mxu0 %v9344
        %9426 = vmatprep.subr.bf16.mxu0 0
        %9427 = vmatpush1.bf16.msra.mxu0 %v9343
        %9428 = vmatprep.subr.bf16.mxu0 0
        %9429 = vmatpush1.bf16.msra.mxu0 %v9342
        %9430 = vmatprep.subr.bf16.mxu0 0
        %9431 = vmatpush2.bf16.msra.mxu0 0
        %9432 = vmatprep.subr.bf16.mxu0 0
        %9433 = vmatpush2.bf16.msra.mxu0 0
        %9434 = vmatprep.subr.bf16.mxu0 0
        %9435 = vmatpush2.bf16.msra.mxu0 0
        %9436 = vmatprep.subr.bf16.mxu0 0
        %9437 = vmatpush2.bf16.msra.mxu0 0
        %9438 = vmatprep.subr.bf16.mxu0 0
        %9439 = vmatpush2.bf16.msra.mxu0 0
        %9440 = vmatprep.subr.bf16.mxu0 0
        %9441 = vmatpush2.bf16.msra.mxu0 0
        %9442 = vmatprep.subr.bf16.mxu0 0
        %9443 = vmatpush2.bf16.msra.mxu0 0
        %9444 = vmatprep.subr.bf16.mxu0 0
        %9445 = vmatpush2.bf16.msra.mxu0 0
        %9446 = vmatprep.mubr.bf16.mxu0 0
        %9447 = vmatmul.mubr.bf16.gmra.mxu0 %v9225
        %v9448 = vpop.f32.mrf.mxu0
        %v9449 = vadd.f32 %v9409, %v9448
        %v9450 = vpop.f32.mrf.mxu0
        %v9451 = vpop.f32.mrf.mxu0
        %v9452 = vpop.f32.mrf.mxu0
        %9453 = vdwg.mxu0
        %v9454 = vadd.f32 %v9169, %v9449
        %v9455 = vld [vmem:[%s8328] sm:$0xf]
        %v9456 = vld [vmem:[%s8328 + $0x4] sm:$0xf]
        %v9457 = vld [vmem:[%s8328 + $0x8] sm:$0xf]
        %v9458 = vld [vmem:[%s8328 + $0xc] sm:$0xf]
        %v9459 = vld [vmem:[%s8328 + $0x10] sm:$0xf]
        %v9460 = vld [vmem:[%s8328 + $0x14] sm:$0xf]
        %v9461 = vld [vmem:[%s8328 + $0x18] sm:$0xf]
        %v9462 = vld [vmem:[%s8328 + $0x1c] sm:$0xf]
        %v9463 = vld [vmem:[%s8328 + $0x20] sm:$0xf]
        %v9464 = vld [vmem:[%s8328 + $0x24] sm:$0xf]
        %v9465 = vld [vmem:[%s8328 + $0x28] sm:$0xf]
        %v9466 = vld [vmem:[%s8328 + $0x2c] sm:$0xf]
        %v9467 = vld [vmem:[%s8328 + $0x30] sm:$0xf]
        %v9468 = vld [vmem:[%s8328 + $0x34] sm:$0xf]
        %v9469 = vld [vmem:[%s8328 + $0x38] sm:$0xf]
        %v9470 = vld [vmem:[%s8328 + $0x3c] sm:$0xf]
        %v9471 = vld [vmem:[%s8328 + $0x40] sm:$0xf]
        %v9472 = vld [vmem:[%s8328 + $0x44] sm:$0xf]
        %v9473 = vld [vmem:[%s8328 + $0x48] sm:$0xf]
        %v9474 = vld [vmem:[%s8328 + $0x4c] sm:$0xf]
        %v9475 = vld [vmem:[%s8328 + $0x50] sm:$0xf]
        %v9476 = vld [vmem:[%s8328 + $0x54] sm:$0xf]
        %v9477 = vld [vmem:[%s8328 + $0x58] sm:$0xf]
        %v9478 = vld [vmem:[%s8328 + $0x5c] sm:$0xf]
        %v9479 = vld [vmem:[%s8328 + $0x60] sm:$0xf]
        %v9480 = vld [vmem:[%s8328 + $0x64] sm:$0xf]
        %v9481 = vld [vmem:[%s8328 + $0x68] sm:$0xf]
        %v9482 = vld [vmem:[%s8328 + $0x6c] sm:$0xf]
        %v9483 = vld [vmem:[%s8328 + $0x70] sm:$0xf]
        %v9484 = vld [vmem:[%s8328 + $0x74] sm:$0xf]
        %v9485 = vld [vmem:[%s8328 + $0x78] sm:$0xf]
        %v9486 = vld [vmem:[%s8328 + $0x7c] sm:$0xf]
        %v9487 = vld [vmem:[%s8328 + $0x80] sm:$0xf]
        %v9488 = vld [vmem:[%s8328 + $0x84] sm:$0xf]
        %v9489 = vld [vmem:[%s8328 + $0x88] sm:$0xf]
        %v9490 = vld [vmem:[%s8328 + $0x8c] sm:$0xf]
        %v9491 = vld [vmem:[%s8328 + $0x90] sm:$0xf]
        %v9492 = vld [vmem:[%s8328 + $0x94] sm:$0xf]
        %v9493 = vld [vmem:[%s8328 + $0x98] sm:$0xf]
        %v9494 = vld [vmem:[%s8328 + $0x9c] sm:$0xf]
        %v9495 = vld [vmem:[%s8328 + $0xa0] sm:$0xf]
        %v9496 = vld [vmem:[%s8328 + $0xa4] sm:$0xf]
        %v9497 = vld [vmem:[%s8328 + $0xa8] sm:$0xf]
        %v9498 = vld [vmem:[%s8328 + $0xac] sm:$0xf]
        %v9499 = vld [vmem:[%s8328 + $0xb0] sm:$0xf]
        %v9500 = vld [vmem:[%s8328 + $0xb4] sm:$0xf]
        %v9501 = vld [vmem:[%s8328 + $0xb8] sm:$0xf]
        %v9502 = vld [vmem:[%s8328 + $0xbc] sm:$0xf]
        %v9506 = vrot.slane %v8894, 1
        %v9507 = vrot.slane %v8895, 1
        %v9508 = vrot.slane %v8896, 1
        %v9560 = vunpack.c.l.b16 %v9455
        %v9561 = vunpack.c.l.b16 %v9456
        %v9562 = vunpack.c.l.b16 %v9457
        %v9563 = vunpack.c.l.b16 %v9458
        %v9564 = vunpack.c.l.b16 %v9459
        %v9565 = vunpack.c.l.b16 %v9460
        %v9566 = vunpack.c.l.b16 %v9461
        %v9567 = vunpack.c.l.b16 %v9462
        %v9568 = vunpack.c.l.b16 %v9463
        %v9569 = vunpack.c.l.b16 %v9464
        %v9570 = vunpack.c.l.b16 %v9465
        %v9571 = vunpack.c.l.b16 %v9466
        %v9572 = vunpack.c.l.b16 %v9467
        %v9573 = vunpack.c.l.b16 %v9468
        %v9574 = vunpack.c.l.b16 %v9469
        %v9575 = vunpack.c.l.b16 %v9470
        %v9576 = vunpack.c.l.b16 %v9471
        %v9577 = vunpack.c.l.b16 %v9472
        %v9578 = vunpack.c.l.b16 %v9473
        %v9579 = vunpack.c.l.b16 %v9474
        %v9580 = vunpack.c.l.b16 %v9475
        %v9581 = vunpack.c.l.b16 %v9476
        %v9582 = vunpack.c.l.b16 %v9477
        %v9583 = vunpack.c.l.b16 %v9478
        %v9584 = vunpack.c.l.b16 %v9479
        %v9585 = vunpack.c.l.b16 %v9480
        %v9586 = vunpack.c.l.b16 %v9481
        %v9587 = vunpack.c.l.b16 %v9482
        %v9588 = vunpack.c.l.b16 %v9483
        %v9589 = vunpack.c.l.b16 %v9484
        %v9590 = vunpack.c.l.b16 %v9485
        %v9591 = vunpack.c.l.b16 %v9486
        %v9592 = vunpack.c.l.b16 %v9487
        %v9593 = vunpack.c.l.b16 %v9488
        %v9594 = vunpack.c.l.b16 %v9489
        %v9595 = vunpack.c.l.b16 %v9490
        %v9596 = vunpack.c.l.b16 %v9491
        %v9597 = vunpack.c.l.b16 %v9492
        %v9598 = vunpack.c.l.b16 %v9493
        %v9599 = vunpack.c.l.b16 %v9494
        %v9600 = vunpack.c.l.b16 %v9495
        %v9601 = vunpack.c.l.b16 %v9496
        %v9602 = vunpack.c.l.b16 %v9497
        %v9603 = vunpack.c.l.b16 %v9498
        %v9604 = vunpack.c.l.b16 %v9499
        %v9605 = vunpack.c.l.b16 %v9500
        %v9606 = vunpack.c.l.b16 %v9501
        %v9607 = vunpack.c.l.b16 %v9502
        %v9608 = vpack.c.b16 %v9561, %v9560
        %v9609 = vpack.c.b16 %v9563, %v9562
        %v9610 = vpack.c.b16 %v9565, %v9564
        %v9611 = vpack.c.b16 %v9567, %v9566
        %v9612 = vpack.c.b16 %v9569, %v9568
        %v9613 = vpack.c.b16 %v9571, %v9570
        %v9614 = vpack.c.b16 %v9573, %v9572
        %v9615 = vpack.c.b16 %v9575, %v9574
        %v9616 = vpack.c.b16 %v9577, %v9576
        %v9617 = vpack.c.b16 %v9579, %v9578
        %v9618 = vpack.c.b16 %v9581, %v9580
        %v9619 = vpack.c.b16 %v9583, %v9582
        %v9620 = vpack.c.b16 %v9585, %v9584
        %v9621 = vpack.c.b16 %v9587, %v9586
        %v9622 = vpack.c.b16 %v9589, %v9588
        %v9623 = vpack.c.b16 %v9591, %v9590
        %v9624 = vpack.c.b16 %v9593, %v9592
        %v9625 = vpack.c.b16 %v9595, %v9594
        %v9626 = vpack.c.b16 %v9597, %v9596
        %v9627 = vpack.c.b16 %v9599, %v9598
        %v9628 = vpack.c.b16 %v9601, %v9600
        %v9629 = vpack.c.b16 %v9603, %v9602
        %v9630 = vpack.c.b16 %v9605, %v9604
        %v9631 = vpack.c.b16 %v9607, %v9606
        %9656 = vmatprep.subr.bf16.mxu0 0
        %9657 = vmatpush1.bf16.msra.mxu0 %v9615
        %9658 = vmatprep.subr.bf16.mxu0 0
        %9659 = vmatpush1.bf16.msra.mxu0 %v9614
        %9660 = vmatprep.subr.bf16.mxu0 0
        %9661 = vmatpush1.bf16.msra.mxu0 %v9613
        %9662 = vmatprep.subr.bf16.mxu0 0
        %9663 = vmatpush1.bf16.msra.mxu0 %v9612
        %9664 = vmatprep.subr.bf16.mxu0 0
        %9665 = vmatpush1.bf16.msra.mxu0 %v9611
        %9666 = vmatprep.subr.bf16.mxu0 0
        %9667 = vmatpush1.bf16.msra.mxu0 %v9610
        %9668 = vmatprep.subr.bf16.mxu0 0
        %9669 = vmatpush1.bf16.msra.mxu0 %v9609
        %9670 = vmatprep.subr.bf16.mxu0 0
        %9671 = vmatpush1.bf16.msra.mxu0 %v9608
        %9672 = vmatprep.subr.bf16.mxu0 0
        %9673 = vmatpush2.bf16.msra.mxu0 %v9623
        %9674 = vmatprep.subr.bf16.mxu0 0
        %9675 = vmatpush2.bf16.msra.mxu0 %v9622
        %9676 = vmatprep.subr.bf16.mxu0 0
        %9677 = vmatpush2.bf16.msra.mxu0 %v9621
        %9678 = vmatprep.subr.bf16.mxu0 0
        %9679 = vmatpush2.bf16.msra.mxu0 %v9620
        %9680 = vmatprep.subr.bf16.mxu0 0
        %9681 = vmatpush2.bf16.msra.mxu0 %v9619
        %9682 = vmatprep.subr.bf16.mxu0 0
        %9683 = vmatpush2.bf16.msra.mxu0 %v9618
        %9684 = vmatprep.subr.bf16.mxu0 0
        %9685 = vmatpush2.bf16.msra.mxu0 %v9617
        %9686 = vmatprep.subr.bf16.mxu0 0
        %9687 = vmatpush2.bf16.msra.mxu0 %v9616
        %9688 = vmatprep.mubr.bf16.mxu0 %v9507
        %9689 = vmatmul.mubr.bf16.gmra.mxu0 %v9506
        %v9690 = vpop.f32.mrf.mxu0
        %v9691 = vadd.f32 0.0, %v9690
        %v9692 = vpop.f32.mrf.mxu0
        %v9693 = vpop.f32.mrf.mxu0
        %v9694 = vpop.f32.mrf.mxu0
        %9695 = vdwg.mxu0
        %9696 = vmatprep.subr.bf16.mxu0 0
        %9697 = vmatpush1.bf16.msra.mxu0 %v9631
        %9698 = vmatprep.subr.bf16.mxu0 0
        %9699 = vmatpush1.bf16.msra.mxu0 %v9630
        %9700 = vmatprep.subr.bf16.mxu0 0
        %9701 = vmatpush1.bf16.msra.mxu0 %v9629
        %9702 = vmatprep.subr.bf16.mxu0 0
        %9703 = vmatpush1.bf16.msra.mxu0 %v9628
        %9704 = vmatprep.subr.bf16.mxu0 0
        %9705 = vmatpush1.bf16.msra.mxu0 %v9627
        %9706 = vmatprep.subr.bf16.mxu0 0
        %9707 = vmatpush1.bf16.msra.mxu0 %v9626
        %9708 = vmatprep.subr.bf16.mxu0 0
        %9709 = vmatpush1.bf16.msra.mxu0 %v9625
        %9710 = vmatprep.subr.bf16.mxu0 0
        %9711 = vmatpush1.bf16.msra.mxu0 %v9624
        %9712 = vmatprep.subr.bf16.mxu0 0
        %9713 = vmatpush2.bf16.msra.mxu0 0
        %9714 = vmatprep.subr.bf16.mxu0 0
        %9715 = vmatpush2.bf16.msra.mxu0 0
        %9716 = vmatprep.subr.bf16.mxu0 0
        %9717 = vmatpush2.bf16.msra.mxu0 0
        %9718 = vmatprep.subr.bf16.mxu0 0
        %9719 = vmatpush2.bf16.msra.mxu0 0
        %9720 = vmatprep.subr.bf16.mxu0 0
        %9721 = vmatpush2.bf16.msra.mxu0 0
        %9722 = vmatprep.subr.bf16.mxu0 0
        %9723 = vmatpush2.bf16.msra.mxu0 0
        %9724 = vmatprep.subr.bf16.mxu0 0
        %9725 = vmatpush2.bf16.msra.mxu0 0
        %9726 = vmatprep.subr.bf16.mxu0 0
        %9727 = vmatpush2.bf16.msra.mxu0 0
        %9728 = vmatprep.mubr.bf16.mxu0 0
        %9729 = vmatmul.mubr.bf16.gmra.mxu0 %v9508
        %v9730 = vpop.f32.mrf.mxu0
        %v9731 = vadd.f32 %v9691, %v9730
        %v9732 = vpop.f32.mrf.mxu0
        %v9733 = vpop.f32.mrf.mxu0
        %v9734 = vpop.f32.mrf.mxu0
        %9735 = vdwg.mxu0
        %v9736 = vadd.f32 %v9454, %v9731
        %v9737 = vld [vmem:[%s8611] sm:$0xf]
        %v9738 = vld [vmem:[%s8611 + $0x4] sm:$0xf]
        %v9739 = vld [vmem:[%s8611 + $0x8] sm:$0xf]
        %v9740 = vld [vmem:[%s8611 + $0xc] sm:$0xf]
        %v9741 = vld [vmem:[%s8611 + $0x10] sm:$0xf]
        %v9742 = vld [vmem:[%s8611 + $0x14] sm:$0xf]
        %v9743 = vld [vmem:[%s8611 + $0x18] sm:$0xf]
        %v9744 = vld [vmem:[%s8611 + $0x1c] sm:$0xf]
        %v9745 = vld [vmem:[%s8611 + $0x20] sm:$0xf]
        %v9746 = vld [vmem:[%s8611 + $0x24] sm:$0xf]
        %v9747 = vld [vmem:[%s8611 + $0x28] sm:$0xf]
        %v9748 = vld [vmem:[%s8611 + $0x2c] sm:$0xf]
        %v9749 = vld [vmem:[%s8611 + $0x30] sm:$0xf]
        %v9750 = vld [vmem:[%s8611 + $0x34] sm:$0xf]
        %v9751 = vld [vmem:[%s8611 + $0x38] sm:$0xf]
        %v9752 = vld [vmem:[%s8611 + $0x3c] sm:$0xf]
        %v9753 = vld [vmem:[%s8611 + $0x40] sm:$0xf]
        %v9754 = vld [vmem:[%s8611 + $0x44] sm:$0xf]
        %v9755 = vld [vmem:[%s8611 + $0x48] sm:$0xf]
        %v9756 = vld [vmem:[%s8611 + $0x4c] sm:$0xf]
        %v9757 = vld [vmem:[%s8611 + $0x50] sm:$0xf]
        %v9758 = vld [vmem:[%s8611 + $0x54] sm:$0xf]
        %v9759 = vld [vmem:[%s8611 + $0x58] sm:$0xf]
        %v9760 = vld [vmem:[%s8611 + $0x5c] sm:$0xf]
        %v9761 = vld [vmem:[%s8611 + $0x60] sm:$0xf]
        %v9762 = vld [vmem:[%s8611 + $0x64] sm:$0xf]
        %v9763 = vld [vmem:[%s8611 + $0x68] sm:$0xf]
        %v9764 = vld [vmem:[%s8611 + $0x6c] sm:$0xf]
        %v9765 = vld [vmem:[%s8611 + $0x70] sm:$0xf]
        %v9766 = vld [vmem:[%s8611 + $0x74] sm:$0xf]
        %v9767 = vld [vmem:[%s8611 + $0x78] sm:$0xf]
        %v9768 = vld [vmem:[%s8611 + $0x7c] sm:$0xf]
        %v9769 = vld [vmem:[%s8611 + $0x80] sm:$0xf]
        %v9770 = vld [vmem:[%s8611 + $0x84] sm:$0xf]
        %v9771 = vld [vmem:[%s8611 + $0x88] sm:$0xf]
        %v9772 = vld [vmem:[%s8611 + $0x8c] sm:$0xf]
        %v9773 = vld [vmem:[%s8611 + $0x90] sm:$0xf]
        %v9774 = vld [vmem:[%s8611 + $0x94] sm:$0xf]
        %v9775 = vld [vmem:[%s8611 + $0x98] sm:$0xf]
        %v9776 = vld [vmem:[%s8611 + $0x9c] sm:$0xf]
        %v9777 = vld [vmem:[%s8611 + $0xa0] sm:$0xf]
        %v9778 = vld [vmem:[%s8611 + $0xa4] sm:$0xf]
        %v9779 = vld [vmem:[%s8611 + $0xa8] sm:$0xf]
        %v9780 = vld [vmem:[%s8611 + $0xac] sm:$0xf]
        %v9781 = vld [vmem:[%s8611 + $0xb0] sm:$0xf]
        %v9782 = vld [vmem:[%s8611 + $0xb4] sm:$0xf]
        %v9783 = vld [vmem:[%s8611 + $0xb8] sm:$0xf]
        %v9784 = vld [vmem:[%s8611 + $0xbc] sm:$0xf]
        %v9785 = vrot.slane %v9219, 1
        %v9786 = vrot.slane %v9222, 1
        %v9787 = vrot.slane %v9225, 1
        %v9839 = vunpack.c.l.b16 %v9737
        %v9840 = vunpack.c.l.b16 %v9738
        %v9841 = vunpack.c.l.b16 %v9739
        %v9842 = vunpack.c.l.b16 %v9740
        %v9843 = vunpack.c.l.b16 %v9741
        %v9844 = vunpack.c.l.b16 %v9742
        %v9845 = vunpack.c.l.b16 %v9743
        %v9846 = vunpack.c.l.b16 %v9744
        %v9847 = vunpack.c.l.b16 %v9745
        %v9848 = vunpack.c.l.b16 %v9746
        %v9849 = vunpack.c.l.b16 %v9747
        %v9850 = vunpack.c.l.b16 %v9748
        %v9851 = vunpack.c.l.b16 %v9749
        %v9852 = vunpack.c.l.b16 %v9750
        %v9853 = vunpack.c.l.b16 %v9751
        %v9854 = vunpack.c.l.b16 %v9752
        %v9855 = vunpack.c.l.b16 %v9753
        %v9856 = vunpack.c.l.b16 %v9754
        %v9857 = vunpack.c.l.b16 %v9755
        %v9858 = vunpack.c.l.b16 %v9756
        %v9859 = vunpack.c.l.b16 %v9757
        %v9860 = vunpack.c.l.b16 %v9758
        %v9861 = vunpack.c.l.b16 %v9759
        %v9862 = vunpack.c.l.b16 %v9760
        %v9863 = vunpack.c.l.b16 %v9761
        %v9864 = vunpack.c.l.b16 %v9762
        %v9865 = vunpack.c.l.b16 %v9763
        %v9866 = vunpack.c.l.b16 %v9764
        %v9867 = vunpack.c.l.b16 %v9765
        %v9868 = vunpack.c.l.b16 %v9766
        %v9869 = vunpack.c.l.b16 %v9767
        %v9870 = vunpack.c.l.b16 %v9768
        %v9871 = vunpack.c.l.b16 %v9769
        %v9872 = vunpack.c.l.b16 %v9770
        %v9873 = vunpack.c.l.b16 %v9771
        %v9874 = vunpack.c.l.b16 %v9772
        %v9875 = vunpack.c.l.b16 %v9773
        %v9876 = vunpack.c.l.b16 %v9774
        %v9877 = vunpack.c.l.b16 %v9775
        %v9878 = vunpack.c.l.b16 %v9776
        %v9879 = vunpack.c.l.b16 %v9777
        %v9880 = vunpack.c.l.b16 %v9778
        %v9881 = vunpack.c.l.b16 %v9779
        %v9882 = vunpack.c.l.b16 %v9780
        %v9883 = vunpack.c.l.b16 %v9781
        %v9884 = vunpack.c.l.b16 %v9782
        %v9885 = vunpack.c.l.b16 %v9783
        %v9886 = vunpack.c.l.b16 %v9784
        %v9887 = vpack.c.b16 %v9840, %v9839
        %v9888 = vpack.c.b16 %v9842, %v9841
        %v9889 = vpack.c.b16 %v9844, %v9843
        %v9890 = vpack.c.b16 %v9846, %v9845
        %v9891 = vpack.c.b16 %v9848, %v9847
        %v9892 = vpack.c.b16 %v9850, %v9849
        %v9893 = vpack.c.b16 %v9852, %v9851
        %v9894 = vpack.c.b16 %v9854, %v9853
        %v9895 = vpack.c.b16 %v9856, %v9855
        %v9896 = vpack.c.b16 %v9858, %v9857
        %v9897 = vpack.c.b16 %v9860, %v9859
        %v9898 = vpack.c.b16 %v9862, %v9861
        %v9899 = vpack.c.b16 %v9864, %v9863
        %v9900 = vpack.c.b16 %v9866, %v9865
        %v9901 = vpack.c.b16 %v9868, %v9867
        %v9902 = vpack.c.b16 %v9870, %v9869
        %v9903 = vpack.c.b16 %v9872, %v9871
        %v9904 = vpack.c.b16 %v9874, %v9873
        %v9905 = vpack.c.b16 %v9876, %v9875
        %v9906 = vpack.c.b16 %v9878, %v9877
        %v9907 = vpack.c.b16 %v9880, %v9879
        %v9908 = vpack.c.b16 %v9882, %v9881
        %v9909 = vpack.c.b16 %v9884, %v9883
        %v9910 = vpack.c.b16 %v9886, %v9885
        %9935 = vmatprep.subr.bf16.mxu0 0
        %9936 = vmatpush1.bf16.msra.mxu0 %v9894
        %9937 = vmatprep.subr.bf16.mxu0 0
        %9938 = vmatpush1.bf16.msra.mxu0 %v9893
        %9939 = vmatprep.subr.bf16.mxu0 0
        %9940 = vmatpush1.bf16.msra.mxu0 %v9892
        %9941 = vmatprep.subr.bf16.mxu0 0
        %9942 = vmatpush1.bf16.msra.mxu0 %v9891
        %9943 = vmatprep.subr.bf16.mxu0 0
        %9944 = vmatpush1.bf16.msra.mxu0 %v9890
        %9945 = vmatprep.subr.bf16.mxu0 0
        %9946 = vmatpush1.bf16.msra.mxu0 %v9889
        %9947 = vmatprep.subr.bf16.mxu0 0
        %9948 = vmatpush1.bf16.msra.mxu0 %v9888
        %9949 = vmatprep.subr.bf16.mxu0 0
        %9950 = vmatpush1.bf16.msra.mxu0 %v9887
        %9951 = vmatprep.subr.bf16.mxu0 0
        %9952 = vmatpush2.bf16.msra.mxu0 %v9902
        %9953 = vmatprep.subr.bf16.mxu0 0
        %9954 = vmatpush2.bf16.msra.mxu0 %v9901
        %9955 = vmatprep.subr.bf16.mxu0 0
        %9956 = vmatpush2.bf16.msra.mxu0 %v9900
        %9957 = vmatprep.subr.bf16.mxu0 0
        %9958 = vmatpush2.bf16.msra.mxu0 %v9899
        %9959 = vmatprep.subr.bf16.mxu0 0
        %9960 = vmatpush2.bf16.msra.mxu0 %v9898
        %9961 = vmatprep.subr.bf16.mxu0 0
        %9962 = vmatpush2.bf16.msra.mxu0 %v9897
        %9963 = vmatprep.subr.bf16.mxu0 0
        %9964 = vmatpush2.bf16.msra.mxu0 %v9896
        %9965 = vmatprep.subr.bf16.mxu0 0
        %9966 = vmatpush2.bf16.msra.mxu0 %v9895
        %9967 = vmatprep.mubr.bf16.mxu0 %v9786
        %9968 = vmatmul.mubr.bf16.gmra.mxu0 %v9785
        %v9969 = vpop.f32.mrf.mxu0
        %v9970 = vadd.f32 0.0, %v9969
        %v9971 = vpop.f32.mrf.mxu0
        %v9972 = vpop.f32.mrf.mxu0
        %v9973 = vpop.f32.mrf.mxu0
        %9974 = vdwg.mxu0
        %9975 = vmatprep.subr.bf16.mxu0 0
        %9976 = vmatpush1.bf16.msra.mxu0 %v9910
        %9977 = vmatprep.subr.bf16.mxu0 0
        %9978 = vmatpush1.bf16.msra.mxu0 %v9909
        %9979 = vmatprep.subr.bf16.mxu0 0
        %9980 = vmatpush1.bf16.msra.mxu0 %v9908
        %9981 = vmatprep.subr.bf16.mxu0 0
        %9982 = vmatpush1.bf16.msra.mxu0 %v9907
        %9983 = vmatprep.subr.bf16.mxu0 0
        %9984 = vmatpush1.bf16.msra.mxu0 %v9906
        %9985 = vmatprep.subr.bf16.mxu0 0
        %9986 = vmatpush1.bf16.msra.mxu0 %v9905
        %9987 = vmatprep.subr.bf16.mxu0 0
        %9988 = vmatpush1.bf16.msra.mxu0 %v9904
        %9989 = vmatprep.subr.bf16.mxu0 0
        %9990 = vmatpush1.bf16.msra.mxu0 %v9903
        %9991 = vmatprep.subr.bf16.mxu0 0
        %9992 = vmatpush2.bf16.msra.mxu0 0
        %9993 = vmatprep.subr.bf16.mxu0 0
        %9994 = vmatpush2.bf16.msra.mxu0 0
        %9995 = vmatprep.subr.bf16.mxu0 0
        %9996 = vmatpush2.bf16.msra.mxu0 0
        %9997 = vmatprep.subr.bf16.mxu0 0
        %9998 = vmatpush2.bf16.msra.mxu0 0
        %9999 = vmatprep.subr.bf16.mxu0 0
        %10000 = vmatpush2.bf16.msra.mxu0 0
        %10001 = vmatprep.subr.bf16.mxu0 0
        %10002 = vmatpush2.bf16.msra.mxu0 0
        %10003 = vmatprep.subr.bf16.mxu0 0
        %10004 = vmatpush2.bf16.msra.mxu0 0
        %10005 = vmatprep.subr.bf16.mxu0 0
        %10006 = vmatpush2.bf16.msra.mxu0 0
        %10007 = vmatprep.mubr.bf16.mxu0 0
        %10008 = vmatmul.mubr.bf16.gmra.mxu0 %v9787
        %v10009 = vpop.f32.mrf.mxu0
        %v10010 = vadd.f32 %v9970, %v10009
        %v10011 = vpop.f32.mrf.mxu0
        %v10012 = vpop.f32.mrf.mxu0
        %v10013 = vpop.f32.mrf.mxu0
        %10014 = vdwg.mxu0
        %v10015 = vadd.f32 %v9736, %v10010
        %10016 = vst.msk [vmem:[%s583 + $0x1] sm:$0x1] %vm8891, %v10015
        %s10017 = sand.u32 %s428, 1
        %s10018 = scalar_lea.sflag [#allocation3], %s10017
        %s10019 = sand.u32 %s428, 1
        %s10020 = smul.addr %s10019, 2
        %s10021 = scalar_lea.vmem [#allocation2], %s10020
        // Predicated region
        $region93: #{gcn300_forward.1} parent=91 // pred_check
          %p10022 = pneg %p438
        $region94: #{gcn300_forward.1} parent=91 // pred_check_branch
          %10024 = sbr.rel (%p10022) target = $region96
        $region95: #{gcn300_forward.1} parent=91 // pred_region
          %s10026 = ssub.s32 32, 32
          %10027 = vsyncadd %s10018, %s10026
          %s10028 = smul.addr %s32, 32
          %s10029 = scalar_lea.hbm %s18, %s10028
          %s10031 = sshll.u32 %s10021, 4
          %s10032 = int_to_ptr.vmem [resolvable:$true] %s10031
          %10034 = dma.vmem_to_hbm [thread:$0]  %s10032, 32, %s10029, %s10018
        $region96: #{gcn300_forward.1} parent=91 // pred_fallthru
          _
      $region92: #{gcn300_forward.1} parent=5 // pred_fallthru
        _
      %p10035 = scmp.le.s32.totalorder 2, %s27
      // Predicated region
      $region97: #{gcn300_forward.1} parent=5 // pred_check
        %p10036 = pneg %p10035
      $region98: #{gcn300_forward.1} parent=5 // pred_check_branch
        %10038 = sbr.rel (%p10036) target = $region100
      $region99: #{gcn300_forward.1} parent=5 // pred_region
        %s10039 = ssub.s32 %s27, 2
        // Predicated region
        $region101: #{gcn300_forward.1} parent=99 // pred_check
          %p10040 = pneg %p444
        $region102: #{gcn300_forward.1} parent=99 // pred_check_branch
          %10042 = sbr.rel (%p10040) target = $region104
        $region103: #{gcn300_forward.1} parent=99 // pred_region
          %s10043 = sand.u32 %s429, 1
          %s10044 = scalar_lea.sflag [#allocation3], %s10043
          %s10045 = sand.u32 %s429, 1
          %s10046 = smul.addr %s10045, 2
          %s10047 = scalar_lea.vmem [#allocation2], %s10046
          %10048 = dma.done %s10044, 32
        $region104: #{gcn300_forward.1} parent=99 // pred_fallthru
          _
      $region100: #{gcn300_forward.1} parent=5 // pred_fallthru
        _
    $region6: #{gcn300_forward.1} parent=1 // loop_footer
      %s31 = sadd.s32 1, %s27
    $region7: #{gcn300_forward.1} parent=1 // loop_footer_branch
      %26 = sbr.rel target = $region3
    $region8: #{gcn300_forward.1} parent=1 // loop_exit
      _
    %10049 = vsyncpa [#allocation3], 1
    %s10050 = scalar_lea.sflag [#allocation3], 1
    %10051 = vsyncpa %s10050, 1

</llo_original>
